<compile_context>
chip_gen: v7x
topology: tpu7x:2x2x1
jax: 0.10.0
libtpu: 0.0.40
codegen_flags: <defaults>
</compile_context>

<pallas_src>
import functools

import jax
import jax.numpy as jnp
from jax import lax
from jax.experimental import pallas as pl
from jax.experimental.pallas import tpu as pltpu


def _mil_kernel(x_ref,
                w1_ref, b1_ref, w2_ref, b2_ref,        # feature_ex
                wa1_ref, ba1_ref, wa2_ref, ba2_ref,    # attention (wa2 stored as (1, 8) row)
                wc1_ref, bc1_ref, wc2_ref, bc2_ref,    # classifier
                prob_ref, an_ref,
                *, bags_per_step, bag_size):
    G, N = bags_per_step, bag_size

    # ---- shared trunk over all G*N instances of this grid step -------------
    # x, w1 are bf16; MXU accumulates in f32.  M = G*N (=128 for G=16, N=8).
    x = x_ref[...]                                                   # (G*N, 784) bf16
    h = jnp.dot(x, w1_ref[...], preferred_element_type=jnp.float32) + b1_ref[...]
    h = jnp.maximum(h, 0.0)
    h = jnp.dot(h, w2_ref[...], preferred_element_type=jnp.float32) + b2_ref[...]
    # h: (G*N, 16) f32
    ha = jnp.dot(h, wa1_ref[...], preferred_element_type=jnp.float32) + ba1_ref[...]
    ha = jnp.maximum(ha, 0.0)                                        # (G*N, 8)

    wa2_row = wa2_ref[...]                                           # (1, 8)

    # ---- tiny per-bag heads (unrolled; covered by MXU/DMA slack) -----------
    for g in range(G):
        lo = g * N
        h_g = h[lo:lo + N, :]                                        # (N, 16) aligned sublane slice
        ha_g = ha[lo:lo + N, :]                                      # (N, 8)

        # attention logits, lane-dense row: (1,8) . (N,8)^T -> (1, N)
        a_row = lax.dot_general(wa2_row, ha_g, (((1,), (1,)), ((), ())),
                                preferred_element_type=jnp.float32) + ba2_ref[...]

        # softmax over the N instances of this bag (lane axis)
        m = jnp.max(a_row, axis=1, keepdims=True)                    # (1, 1)
        e = jnp.exp(a_row - m)                                       # (1, N)
        s = jnp.sum(e, axis=1, keepdims=True)                        # (1, 1)
        a_n = e * pl.reciprocal(s, approx=True)                      # (1, N)
        an_ref[pl.ds(g, 1), :] = a_n

        # attention pooling + classifier
        z = jnp.dot(a_n, h_g, preferred_element_type=jnp.float32)    # (1, 16)
        c = jnp.dot(z, wc1_ref[...], preferred_element_type=jnp.float32) + bc1_ref[...]
        c = jnp.maximum(c, 0.0)
        c = jnp.dot(c, wc2_ref[...], preferred_element_type=jnp.float32) + bc2_ref[...]
        prob_ref[pl.ds(g, 1), :] = c                                 # (1, n_class)


def init_mil_params(key, n_class):
    """Deterministic parameter init; shapes match the torch module ((in,out) weights)."""
    ks = jax.random.split(key, 6)

    def lin(k, fan_in, fan_out):
        kw, kb = jax.random.split(k)
        bound = float(1.0 / (fan_in ** 0.5))
        w = jax.random.uniform(kw, (fan_in, fan_out), jnp.float32, -bound, bound)
        b = jax.random.uniform(kb, (1, fan_out), jnp.float32, -bound, bound)
        return w, b

    w1, b1 = lin(ks[0], 784, 128)
    w2, b2 = lin(ks[1], 128, 16)
    wa1, ba1 = lin(ks[2], 16, 8)
    wa2, ba2 = lin(ks[3], 8, 1)
    wc1, bc1 = lin(ks[4], 16, 8)
    wc2, bc2 = lin(ks[5], 8, n_class)
    return (w1, b1, w2, b2, wa1, ba1, wa2, ba2, wc1, bc1, wc2, bc2)


def prep_kernel_params(params):
    """Kernel-layout params: w1 in bf16 (dominant HBM traffic), wa2 as a (1,8) row."""
    (w1, b1, w2, b2, wa1, ba1, wa2, ba2, wc1, bc1, wc2, bc2) = params
    return (w1.astype(jnp.bfloat16), b1, w2, b2,
            wa1, ba1, wa2.T, ba2,
            wc1, bc1, wc2, bc2)


def mil_forward_bags(x_bags, kparams, n_class, bags_per_step=None):
    """x_bags: (B, N, 784).  Returns (class_prob (B, n_class), a_n (B, N))."""
    B, N, D = x_bags.shape
    if bags_per_step is None:
        bags_per_step = 16 if B >= 16 else B      # G*N = 128 fills the MXU M dim
    G = bags_per_step
    B_pad = ((B + G - 1) // G) * G

    x = x_bags.astype(jnp.bfloat16)
    if B_pad != B:
        x = jnp.concatenate([x, jnp.zeros((B_pad - B, N, D), x.dtype)], axis=0)
    x = x.reshape(B_pad * N, D)                   # instances, bags contiguous

    (w1, b1, w2, b2, wa1, ba1, wa2r, ba2, wc1, bc1, wc2, bc2) = kparams

    def resident(a):                              # weights: DMA'd once, stay in VMEM
        return pl.BlockSpec(a.shape, lambda c: (0, 0))

    kernel = functools.partial(_mil_kernel, bags_per_step=G, bag_size=N)
    prob, a_n = pl.pallas_call(
        kernel,
        grid=(B_pad // G,),
        out_shape=(jax.ShapeDtypeStruct((B_pad, n_class), jnp.float32),
                   jax.ShapeDtypeStruct((B_pad, N), jnp.float32)),
        in_specs=[pl.BlockSpec((G * N, D), lambda c: (c, 0))] +
                 [resident(a) for a in (w1, b1, w2, b2, wa1, ba1, wa2r, ba2,
                                        wc1, bc1, wc2, bc2)],
        out_specs=(pl.BlockSpec((G, n_class), lambda c: (c, 0)),
                   pl.BlockSpec((G, N), lambda c: (c, 0))),
        compiler_params=pltpu.CompilerParams(
            dimension_semantics=("parallel",)),   # bag-chunk axis: megacore on v7x
    )(x, w1, b1, w2, b2, wa1, ba1, wa2r, ba2, wc1, bc1, wc2, bc2)

    return prob[:B], a_n[:B]


def mil_forward(inp, kparams, n_class):
    """Torch-style forward: inp (1, N, 784) -> ((1, n_class), (1, N))."""
    return mil_forward_bags(inp, kparams, n_class)


def mil_reference(x_bag, params, n_class, bf16_trunk=False):
    """Pure-JAX reference mirroring the torch forward for one bag (N, 784)."""
    (w1, b1, w2, b2, wa1, ba1, wa2, ba2, wc1, bc1, wc2, bc2) = params
    x = x_bag.astype(jnp.float32)
    if bf16_trunk:
        h = jnp.dot(x.astype(jnp.bfloat16), w1.astype(jnp.bfloat16),
                    preferred_element_type=jnp.float32) + b1
    else:
        h = x @ w1 + b1
    h = jnp.maximum(h, 0.0) @ w2 + b2                            # (N, 16)
    a = jnp.maximum(h @ wa1 + ba1, 0.0) @ wa2 + ba2              # (N, 1)
    a_n = jax.nn.softmax(a.T, axis=1)                            # (1, N)
    z = a_n @ h                                                  # (1, 16)
    prob = (jnp.maximum(z @ wc1 + bc1, 0.0) @ wc2 + bc2).reshape(1, n_class)
    return prob, a_n


if __name__ == "__main__":
    n_class = 4
    bag_size = 8          # N instances per bag
    num_bags = 32         # batched bags -> grid of 2 steps of 16 bags each

    key = jax.random.PRNGKey(0)
    k_in, k_par = jax.random.split(key)
    x_bags = jax.random.normal(k_in, (num_bags, bag_size, 784), dtype=jnp.float32)
    params = init_mil_params(k_par, n_class)
    kparams = prep_kernel_params(params)

    # batched path: grid over 16-bag chunks, resident weights, M=128 trunk matmul
    prob_b, an_b = mil_forward_bags(x_bags, kparams, n_class)
    prob_b = jax.block_until_ready(prob_b)
    an_b = jax.block_until_ready(an_b)
    assert prob_b.shape == (num_bags, n_class)
    assert an_b.shape == (num_bags, bag_size)

    # torch-style single-bag forward: input (1, N, 784) -> ((1, C), (1, N))
    prob_1, an_1 = mil_forward(x_bags[:1], kparams, n_class)
    prob_1 = jax.block_until_ready(prob_1)
    an_1 = jax.block_until_ready(an_1)
    assert prob_1.shape == (1, n_class) and an_1.shape == (1, bag_size)

    # correctness: tight vs. bf16-trunk reference, loose vs. full-f32 (torch) reference
    for b in range(num_bags):
        rp16, ra16 = mil_reference(x_bags[b], params, n_class, bf16_trunk=True)
        assert jnp.allclose(prob_b[b], rp16[0], atol=1e-3, rtol=1e-3)
        assert jnp.allclose(an_b[b], ra16[0], atol=1e-3, rtol=1e-3)
        rp32, ra32 = mil_reference(x_bags[b], params, n_class, bf16_trunk=False)
        assert jnp.allclose(prob_b[b], rp32[0], atol=2e-2, rtol=2e-2)
        assert jnp.allclose(an_b[b], ra32[0], atol=2e-2, rtol=2e-2)

    # batched path and single-bag path agree
    assert jnp.allclose(prob_1, prob_b[:1], atol=1e-4)
    assert jnp.allclose(an_1, an_b[:1], atol=1e-4)

    print("KERNEL_OK")
</pallas_src>

<mosaic_0001>
module attributes {stable_mosaic.version = 11 : i64} {
  func.func @_mil_kernel(%arg0: i32, %arg1: memref<128x784xbf16, #tpu.memory_space<vmem>>, %arg2: memref<784x128xbf16, #tpu.memory_space<vmem>>, %arg3: memref<1x128xf32, #tpu.memory_space<vmem>>, %arg4: memref<128x16xf32, #tpu.memory_space<vmem>>, %arg5: memref<1x16xf32, #tpu.memory_space<vmem>>, %arg6: memref<16x8xf32, #tpu.memory_space<vmem>>, %arg7: memref<1x8xf32, #tpu.memory_space<vmem>>, %arg8: memref<1x8xf32, #tpu.memory_space<vmem>>, %arg9: memref<1x1xf32, #tpu.memory_space<vmem>>, %arg10: memref<16x8xf32, #tpu.memory_space<vmem>>, %arg11: memref<1x8xf32, #tpu.memory_space<vmem>>, %arg12: memref<8x4xf32, #tpu.memory_space<vmem>>, %arg13: memref<1x4xf32, #tpu.memory_space<vmem>>, %arg14: memref<16x4xf32, #tpu.memory_space<vmem>>, %arg15: memref<16x8xf32, #tpu.memory_space<vmem>>) attributes {dimension_semantics = [#tpu.dimension_semantics<parallel>], iteration_bounds = array<i64: 2>, scalar_prefetch = 0 : i64, scratch_operands = 0 : i64, tpu.core_type = #tpu.core_type<tc>, window_params = [{transform_indices = @transform_0, window_bounds = array<i64: 128, 784>}, {pipeline_mode = #tpu.pipeline_mode<synchronous>, transform_indices = @transform_1, window_bounds = array<i64: 784, 128>}, {pipeline_mode = #tpu.pipeline_mode<synchronous>, transform_indices = @transform_2, window_bounds = array<i64: 1, 128>}, {pipeline_mode = #tpu.pipeline_mode<synchronous>, transform_indices = @transform_3, window_bounds = array<i64: 128, 16>}, {pipeline_mode = #tpu.pipeline_mode<synchronous>, transform_indices = @transform_4, window_bounds = array<i64: 1, 16>}, {pipeline_mode = #tpu.pipeline_mode<synchronous>, transform_indices = @transform_5, window_bounds = array<i64: 16, 8>}, {pipeline_mode = #tpu.pipeline_mode<synchronous>, transform_indices = @transform_6, window_bounds = array<i64: 1, 8>}, {pipeline_mode = #tpu.pipeline_mode<synchronous>, transform_indices = @transform_7, window_bounds = array<i64: 1, 8>}, {pipeline_mode = #tpu.pipeline_mode<synchronous>, transform_indices = @transform_8, window_bounds = array<i64: 1, 1>}, {pipeline_mode = #tpu.pipeline_mode<synchronous>, transform_indices = @transform_9, window_bounds = array<i64: 16, 8>}, {pipeline_mode = #tpu.pipeline_mode<synchronous>, transform_indices = @transform_10, window_bounds = array<i64: 1, 8>}, {pipeline_mode = #tpu.pipeline_mode<synchronous>, transform_indices = @transform_11, window_bounds = array<i64: 8, 4>}, {pipeline_mode = #tpu.pipeline_mode<synchronous>, transform_indices = @transform_12, window_bounds = array<i64: 1, 4>}, {transform_indices = @transform_13, window_bounds = array<i64: 16, 4>}, {transform_indices = @transform_14, window_bounds = array<i64: 16, 8>}]} {
    %c0 = arith.constant 0 : index
    %c0_0 = arith.constant 0 : index
    %0 = vector.load %arg1[%c0, %c0_0] : memref<128x784xbf16, #tpu.memory_space<vmem>>, vector<128x784xbf16>
    %c0_1 = arith.constant 0 : index
    %c0_2 = arith.constant 0 : index
    %1 = vector.load %arg2[%c0_1, %c0_2] : memref<784x128xbf16, #tpu.memory_space<vmem>>, vector<784x128xbf16>
    %cst = arith.constant dense<0.000000e+00> : vector<128x128xf32>
    %2 = tpu.matmul %0, %1, %cst {dimension_numbers = #tpu.dot_dimension_numbers<[1], [0], [0], [1], [0, 0, 1, 1], [], []>} : vector<128x784xbf16>, vector<784x128xbf16>, vector<128x128xf32> -> vector<128x128xf32>
    %c0_3 = arith.constant 0 : index
    %c0_4 = arith.constant 0 : index
    %3 = vector.load %arg3[%c0_3, %c0_4] : memref<1x128xf32, #tpu.memory_space<vmem>>, vector<1x128xf32>
    %4 = vector.broadcast %3 : vector<1x128xf32> to vector<128x128xf32>
    %5 = arith.addf %2, %4 : vector<128x128xf32>
    %cst_5 = arith.constant 0.000000e+00 : f32
    %6 = vector.broadcast %cst_5 : f32 to vector<128x128xf32>
    %7 = arith.maximumf %5, %6 : vector<128x128xf32>
    %c0_6 = arith.constant 0 : index
    %c0_7 = arith.constant 0 : index
    %8 = vector.load %arg4[%c0_6, %c0_7] : memref<128x16xf32, #tpu.memory_space<vmem>>, vector<128x16xf32>
    %cst_8 = arith.constant dense<0.000000e+00> : vector<128x16xf32>
    %9 = tpu.matmul %7, %8, %cst_8 {dimension_numbers = #tpu.dot_dimension_numbers<[1], [0], [0], [1], [0, 0, 1, 1], [], []>} : vector<128x128xf32>, vector<128x16xf32>, vector<128x16xf32> -> vector<128x16xf32>
    %c0_9 = arith.constant 0 : index
    %c0_10 = arith.constant 0 : index
    %10 = vector.load %arg5[%c0_9, %c0_10] : memref<1x16xf32, #tpu.memory_space<vmem>>, vector<1x16xf32>
    %11 = vector.broadcast %10 : vector<1x16xf32> to vector<128x16xf32>
    %12 = arith.addf %9, %11 : vector<128x16xf32>
    %c0_11 = arith.constant 0 : index
    %c0_12 = arith.constant 0 : index
    %13 = vector.load %arg6[%c0_11, %c0_12] : memref<16x8xf32, #tpu.memory_space<vmem>>, vector<16x8xf32>
    %cst_13 = arith.constant dense<0.000000e+00> : vector<128x8xf32>
    %14 = tpu.matmul %12, %13, %cst_13 {dimension_numbers = #tpu.dot_dimension_numbers<[1], [0], [0], [1], [0, 0, 1, 1], [], []>} : vector<128x16xf32>, vector<16x8xf32>, vector<128x8xf32> -> vector<128x8xf32>
    %c0_14 = arith.constant 0 : index
    %c0_15 = arith.constant 0 : index
    %15 = vector.load %arg7[%c0_14, %c0_15] : memref<1x8xf32, #tpu.memory_space<vmem>>, vector<1x8xf32>
    %16 = vector.broadcast %15 : vector<1x8xf32> to vector<128x8xf32>
    %17 = arith.addf %14, %16 : vector<128x8xf32>
    %cst_16 = arith.constant 0.000000e+00 : f32
    %18 = vector.broadcast %cst_16 : f32 to vector<128x8xf32>
    %19 = arith.maximumf %17, %18 : vector<128x8xf32>
    %c0_17 = arith.constant 0 : index
    %c0_18 = arith.constant 0 : index
    %20 = vector.load %arg8[%c0_17, %c0_18] : memref<1x8xf32, #tpu.memory_space<vmem>>, vector<1x8xf32>
    %21 = vector.extract_strided_slice %12 {offsets = [0, 0], sizes = [8, 16], strides = [1, 1]} : vector<128x16xf32> to vector<8x16xf32>
    %22 = vector.extract_strided_slice %19 {offsets = [0, 0], sizes = [8, 8], strides = [1, 1]} : vector<128x8xf32> to vector<8x8xf32>
    %cst_19 = arith.constant dense<0.000000e+00> : vector<1x8xf32>
    %23 = tpu.matmul %20, %22, %cst_19 {dimension_numbers = #tpu.dot_dimension_numbers<[1], [1], [0], [0], [0, 0, 1, 0], [], []>} : vector<1x8xf32>, vector<8x8xf32>, vector<1x8xf32> -> vector<1x8xf32>
    %c0_20 = arith.constant 0 : index
    %c0_21 = arith.constant 0 : index
    %24 = vector.load %arg9[%c0_20, %c0_21] : memref<1x1xf32, #tpu.memory_space<vmem>>, vector<1x1xf32>
    %25 = vector.broadcast %24 : vector<1x1xf32> to vector<1x8xf32>
    %26 = arith.addf %23, %25 : vector<1x8xf32>
    %cst_22 = arith.constant dense<0xFF800000> : vector<1xf32>
    %27 = vector.multi_reduction <maximumf>, %26, %cst_22 [1] : vector<1x8xf32> to vector<1xf32>
    %28 = vector.shape_cast %27 : vector<1xf32> to vector<1x1xf32>
    %29 = vector.broadcast %28 : vector<1x1xf32> to vector<1x8xf32>
    %30 = arith.subf %26, %29 : vector<1x8xf32>
    %31 = math.exp %30 : vector<1x8xf32>
    %cst_23 = arith.constant dense<0.000000e+00> : vector<1xf32>
    %32 = vector.multi_reduction <add>, %31, %cst_23 [1] : vector<1x8xf32> to vector<1xf32>
    %33 = vector.shape_cast %32 : vector<1xf32> to vector<1x1xf32>
    %34 = tpu.reciprocal %33 {approx = true} : vector<1x1xf32> -> vector<1x1xf32>
    %35 = vector.broadcast %34 : vector<1x1xf32> to vector<1x8xf32>
    %36 = arith.mulf %31, %35 : vector<1x8xf32>
    %c0_24 = arith.constant 0 : index
    %c0_25 = arith.constant 0 : index
    %37 = vector.load %arg15[%c0_24, %c0_25] : memref<16x8xf32, #tpu.memory_space<vmem>>, vector<1x8xf32>
    tpu.vector_store %arg15[%c0_24, %c0_25], %36 {strides = array<i32>} : memref<16x8xf32, #tpu.memory_space<vmem>>, vector<1x8xf32>,
    %cst_26 = arith.constant dense<0.000000e+00> : vector<1x16xf32>
    %38 = tpu.matmul %36, %21, %cst_26 {dimension_numbers = #tpu.dot_dimension_numbers<[1], [0], [0], [1], [0, 0, 1, 1], [], []>} : vector<1x8xf32>, vector<8x16xf32>, vector<1x16xf32> -> vector<1x16xf32>
    %c0_27 = arith.constant 0 : index
    %c0_28 = arith.constant 0 : index
    %39 = vector.load %arg10[%c0_27, %c0_28] : memref<16x8xf32, #tpu.memory_space<vmem>>, vector<16x8xf32>
    %cst_29 = arith.constant dense<0.000000e+00> : vector<1x8xf32>
    %40 = tpu.matmul %38, %39, %cst_29 {dimension_numbers = #tpu.dot_dimension_numbers<[1], [0], [0], [1], [0, 0, 1, 1], [], []>} : vector<1x16xf32>, vector<16x8xf32>, vector<1x8xf32> -> vector<1x8xf32>
    %c0_30 = arith.constant 0 : index
    %c0_31 = arith.constant 0 : index
    %41 = vector.load %arg11[%c0_30, %c0_31] : memref<1x8xf32, #tpu.memory_space<vmem>>, vector<1x8xf32>
    %42 = arith.addf %40, %41 : vector<1x8xf32>
    %cst_32 = arith.constant 0.000000e+00 : f32
    %43 = vector.broadcast %cst_32 : f32 to vector<1x8xf32>
    %44 = arith.maximumf %42, %43 : vector<1x8xf32>
    %c0_33 = arith.constant 0 : index
    %c0_34 = arith.constant 0 : index
    %45 = vector.load %arg12[%c0_33, %c0_34] : memref<8x4xf32, #tpu.memory_space<vmem>>, vector<8x4xf32>
    %cst_35 = arith.constant dense<0.000000e+00> : vector<1x4xf32>
    %46 = tpu.matmul %44, %45, %cst_35 {dimension_numbers = #tpu.dot_dimension_numbers<[1], [0], [0], [1], [0, 0, 1, 1], [], []>} : vector<1x8xf32>, vector<8x4xf32>, vector<1x4xf32> -> vector<1x4xf32>
    %c0_36 = arith.constant 0 : index
    %c0_37 = arith.constant 0 : index
    %47 = vector.load %arg13[%c0_36, %c0_37] : memref<1x4xf32, #tpu.memory_space<vmem>>, vector<1x4xf32>
    %48 = arith.addf %46, %47 : vector<1x4xf32>
    %c0_38 = arith.constant 0 : index
    %c0_39 = arith.constant 0 : index
    %49 = vector.load %arg14[%c0_38, %c0_39] : memref<16x4xf32, #tpu.memory_space<vmem>>, vector<1x4xf32>
    tpu.vector_store %arg14[%c0_38, %c0_39], %48 {strides = array<i32>} : memref<16x4xf32, #tpu.memory_space<vmem>>, vector<1x4xf32>,
    %50 = vector.extract_strided_slice %12 {offsets = [8, 0], sizes = [8, 16], strides = [1, 1]} : vector<128x16xf32> to vector<8x16xf32>
    %51 = vector.extract_strided_slice %19 {offsets = [8, 0], sizes = [8, 8], strides = [1, 1]} : vector<128x8xf32> to vector<8x8xf32>
    %cst_40 = arith.constant dense<0.000000e+00> : vector<1x8xf32>
    %52 = tpu.matmul %20, %51, %cst_40 {dimension_numbers = #tpu.dot_dimension_numbers<[1], [1], [0], [0], [0, 0, 1, 0], [], []>} : vector<1x8xf32>, vector<8x8xf32>, vector<1x8xf32> -> vector<1x8xf32>
    %c0_41 = arith.constant 0 : index
    %c0_42 = arith.constant 0 : index
    %53 = vector.load %arg9[%c0_41, %c0_42] : memref<1x1xf32, #tpu.memory_space<vmem>>, vector<1x1xf32>
    %54 = vector.broadcast %53 : vector<1x1xf32> to vector<1x8xf32>
    %55 = arith.addf %52, %54 : vector<1x8xf32>
    %cst_43 = arith.constant dense<0xFF800000> : vector<1xf32>
    %56 = vector.multi_reduction <maximumf>, %55, %cst_43 [1] : vector<1x8xf32> to vector<1xf32>
    %57 = vector.shape_cast %56 : vector<1xf32> to vector<1x1xf32>
    %58 = vector.broadcast %57 : vector<1x1xf32> to vector<1x8xf32>
    %59 = arith.subf %55, %58 : vector<1x8xf32>
    %60 = math.exp %59 : vector<1x8xf32>
    %cst_44 = arith.constant dense<0.000000e+00> : vector<1xf32>
    %61 = vector.multi_reduction <add>, %60, %cst_44 [1] : vector<1x8xf32> to vector<1xf32>
    %62 = vector.shape_cast %61 : vector<1xf32> to vector<1x1xf32>
    %63 = tpu.reciprocal %62 {approx = true} : vector<1x1xf32> -> vector<1x1xf32>
    %64 = vector.broadcast %63 : vector<1x1xf32> to vector<1x8xf32>
    %65 = arith.mulf %60, %64 : vector<1x8xf32>
    %c1 = arith.constant 1 : index
    %c0_45 = arith.constant 0 : index
    %66 = vector.load %arg15[%c1, %c0_45] : memref<16x8xf32, #tpu.memory_space<vmem>>, vector<1x8xf32>
    tpu.vector_store %arg15[%c1, %c0_45], %65 {strides = array<i32>} : memref<16x8xf32, #tpu.memory_space<vmem>>, vector<1x8xf32>,
    %cst_46 = arith.constant dense<0.000000e+00> : vector<1x16xf32>
    %67 = tpu.matmul %65, %50, %cst_46 {dimension_numbers = #tpu.dot_dimension_numbers<[1], [0], [0], [1], [0, 0, 1, 1], [], []>} : vector<1x8xf32>, vector<8x16xf32>, vector<1x16xf32> -> vector<1x16xf32>
    %c0_47 = arith.constant 0 : index
    %c0_48 = arith.constant 0 : index
    %68 = vector.load %arg10[%c0_47, %c0_48] : memref<16x8xf32, #tpu.memory_space<vmem>>, vector<16x8xf32>
    %cst_49 = arith.constant dense<0.000000e+00> : vector<1x8xf32>
    %69 = tpu.matmul %67, %68, %cst_49 {dimension_numbers = #tpu.dot_dimension_numbers<[1], [0], [0], [1], [0, 0, 1, 1], [], []>} : vector<1x16xf32>, vector<16x8xf32>, vector<1x8xf32> -> vector<1x8xf32>
    %c0_50 = arith.constant 0 : index
    %c0_51 = arith.constant 0 : index
    %70 = vector.load %arg11[%c0_50, %c0_51] : memref<1x8xf32, #tpu.memory_space<vmem>>, vector<1x8xf32>
    %71 = arith.addf %69, %70 : vector<1x8xf32>
    %cst_52 = arith.constant 0.000000e+00 : f32
    %72 = vector.broadcast %cst_52 : f32 to vector<1x8xf32>
    %73 = arith.maximumf %71, %72 : vector<1x8xf32>
    %c0_53 = arith.constant 0 : index
    %c0_54 = arith.constant 0 : index
    %74 = vector.load %arg12[%c0_53, %c0_54] : memref<8x4xf32, #tpu.memory_space<vmem>>, vector<8x4xf32>
    %cst_55 = arith.constant dense<0.000000e+00> : vector<1x4xf32>
    %75 = tpu.matmul %73, %74, %cst_55 {dimension_numbers = #tpu.dot_dimension_numbers<[1], [0], [0], [1], [0, 0, 1, 1], [], []>} : vector<1x8xf32>, vector<8x4xf32>, vector<1x4xf32> -> vector<1x4xf32>
    %c0_56 = arith.constant 0 : index
    %c0_57 = arith.constant 0 : index
    %76 = vector.load %arg13[%c0_56, %c0_57] : memref<1x4xf32, #tpu.memory_space<vmem>>, vector<1x4xf32>
    %77 = arith.addf %75, %76 : vector<1x4xf32>
    %c1_58 = arith.constant 1 : index
    %c0_59 = arith.constant 0 : index
    %78 = vector.load %arg14[%c1_58, %c0_59] : memref<16x4xf32, #tpu.memory_space<vmem>>, vector<1x4xf32>
    tpu.vector_store %arg14[%c1_58, %c0_59], %77 {strides = array<i32>} : memref<16x4xf32, #tpu.memory_space<vmem>>, vector<1x4xf32>,
    %79 = vector.extract_strided_slice %12 {offsets = [16, 0], sizes = [8, 16], strides = [1, 1]} : vector<128x16xf32> to vector<8x16xf32>
    %80 = vector.extract_strided_slice %19 {offsets = [16, 0], sizes = [8, 8], strides = [1, 1]} : vector<128x8xf32> to vector<8x8xf32>
    %cst_60 = arith.constant dense<0.000000e+00> : vector<1x8xf32>
    %81 = tpu.matmul %20, %80, %cst_60 {dimension_numbers = #tpu.dot_dimension_numbers<[1], [1], [0], [0], [0, 0, 1, 0], [], []>} : vector<1x8xf32>, vector<8x8xf32>, vector<1x8xf32> -> vector<1x8xf32>
    %c0_61 = arith.constant 0 : index
    %c0_62 = arith.constant 0 : index
    %82 = vector.load %arg9[%c0_61, %c0_62] : memref<1x1xf32, #tpu.memory_space<vmem>>, vector<1x1xf32>
    %83 = vector.broadcast %82 : vector<1x1xf32> to vector<1x8xf32>
    %84 = arith.addf %81, %83 : vector<1x8xf32>
    %cst_63 = arith.constant dense<0xFF800000> : vector<1xf32>
    %85 = vector.multi_reduction <maximumf>, %84, %cst_63 [1] : vector<1x8xf32> to vector<1xf32>
    %86 = vector.shape_cast %85 : vector<1xf32> to vector<1x1xf32>
    %87 = vector.broadcast %86 : vector<1x1xf32> to vector<1x8xf32>
    %88 = arith.subf %84, %87 : vector<1x8xf32>
    %89 = math.exp %88 : vector<1x8xf32>
    %cst_64 = arith.constant dense<0.000000e+00> : vector<1xf32>
    %90 = vector.multi_reduction <add>, %89, %cst_64 [1] : vector<1x8xf32> to vector<1xf32>
    %91 = vector.shape_cast %90 : vector<1xf32> to vector<1x1xf32>
    %92 = tpu.reciprocal %91 {approx = true} : vector<1x1xf32> -> vector<1x1xf32>
    %93 = vector.broadcast %92 : vector<1x1xf32> to vector<1x8xf32>
    %94 = arith.mulf %89, %93 : vector<1x8xf32>
    %c2 = arith.constant 2 : index
    %c0_65 = arith.constant 0 : index
    %95 = vector.load %arg15[%c2, %c0_65] : memref<16x8xf32, #tpu.memory_space<vmem>>, vector<1x8xf32>
    tpu.vector_store %arg15[%c2, %c0_65], %94 {strides = array<i32>} : memref<16x8xf32, #tpu.memory_space<vmem>>, vector<1x8xf32>,
    %cst_66 = arith.constant dense<0.000000e+00> : vector<1x16xf32>
    %96 = tpu.matmul %94, %79, %cst_66 {dimension_numbers = #tpu.dot_dimension_numbers<[1], [0], [0], [1], [0, 0, 1, 1], [], []>} : vector<1x8xf32>, vector<8x16xf32>, vector<1x16xf32> -> vector<1x16xf32>
    %c0_67 = arith.constant 0 : index
    %c0_68 = arith.constant 0 : index
    %97 = vector.load %arg10[%c0_67, %c0_68] : memref<16x8xf32, #tpu.memory_space<vmem>>, vector<16x8xf32>
    %cst_69 = arith.constant dense<0.000000e+00> : vector<1x8xf32>
    %98 = tpu.matmul %96, %97, %cst_69 {dimension_numbers = #tpu.dot_dimension_numbers<[1], [0], [0], [1], [0, 0, 1, 1], [], []>} : vector<1x16xf32>, vector<16x8xf32>, vector<1x8xf32> -> vector<1x8xf32>
    %c0_70 = arith.constant 0 : index
    %c0_71 = arith.constant 0 : index
    %99 = vector.load %arg11[%c0_70, %c0_71] : memref<1x8xf32, #tpu.memory_space<vmem>>, vector<1x8xf32>
    %100 = arith.addf %98, %99 : vector<1x8xf32>
    %cst_72 = arith.constant 0.000000e+00 : f32
    %101 = vector.broadcast %cst_72 : f32 to vector<1x8xf32>
    %102 = arith.maximumf %100, %101 : vector<1x8xf32>
    %c0_73 = arith.constant 0 : index
    %c0_74 = arith.constant 0 : index
    %103 = vector.load %arg12[%c0_73, %c0_74] : memref<8x4xf32, #tpu.memory_space<vmem>>, vector<8x4xf32>
    %cst_75 = arith.constant dense<0.000000e+00> : vector<1x4xf32>
    %104 = tpu.matmul %102, %103, %cst_75 {dimension_numbers = #tpu.dot_dimension_numbers<[1], [0], [0], [1], [0, 0, 1, 1], [], []>} : vector<1x8xf32>, vector<8x4xf32>, vector<1x4xf32> -> vector<1x4xf32>
    %c0_76 = arith.constant 0 : index
    %c0_77 = arith.constant 0 : index
    %105 = vector.load %arg13[%c0_76, %c0_77] : memref<1x4xf32, #tpu.memory_space<vmem>>, vector<1x4xf32>
    %106 = arith.addf %104, %105 : vector<1x4xf32>
    %c2_78 = arith.constant 2 : index
    %c0_79 = arith.constant 0 : index
    %107 = vector.load %arg14[%c2_78, %c0_79] : memref<16x4xf32, #tpu.memory_space<vmem>>, vector<1x4xf32>
    tpu.vector_store %arg14[%c2_78, %c0_79], %106 {strides = array<i32>} : memref<16x4xf32, #tpu.memory_space<vmem>>, vector<1x4xf32>,
    %108 = vector.extract_strided_slice %12 {offsets = [24, 0], sizes = [8, 16], strides = [1, 1]} : vector<128x16xf32> to vector<8x16xf32>
    %109 = vector.extract_strided_slice %19 {offsets = [24, 0], sizes = [8, 8], strides = [1, 1]} : vector<128x8xf32> to vector<8x8xf32>
    %cst_80 = arith.constant dense<0.000000e+00> : vector<1x8xf32>
    %110 = tpu.matmul %20, %109, %cst_80 {dimension_numbers = #tpu.dot_dimension_numbers<[1], [1], [0], [0], [0, 0, 1, 0], [], []>} : vector<1x8xf32>, vector<8x8xf32>, vector<1x8xf32> -> vector<1x8xf32>
    %c0_81 = arith.constant 0 : index
    %c0_82 = arith.constant 0 : index
    %111 = vector.load %arg9[%c0_81, %c0_82] : memref<1x1xf32, #tpu.memory_space<vmem>>, vector<1x1xf32>
    %112 = vector.broadcast %111 : vector<1x1xf32> to vector<1x8xf32>
    %113 = arith.addf %110, %112 : vector<1x8xf32>
    %cst_83 = arith.constant dense<0xFF800000> : vector<1xf32>
    %114 = vector.multi_reduction <maximumf>, %113, %cst_83 [1] : vector<1x8xf32> to vector<1xf32>
    %115 = vector.shape_cast %114 : vector<1xf32> to vector<1x1xf32>
    %116 = vector.broadcast %115 : vector<1x1xf32> to vector<1x8xf32>
    %117 = arith.subf %113, %116 : vector<1x8xf32>
    %118 = math.exp %117 : vector<1x8xf32>
    %cst_84 = arith.constant dense<0.000000e+00> : vector<1xf32>
    %119 = vector.multi_reduction <add>, %118, %cst_84 [1] : vector<1x8xf32> to vector<1xf32>
    %120 = vector.shape_cast %119 : vector<1xf32> to vector<1x1xf32>
    %121 = tpu.reciprocal %120 {approx = true} : vector<1x1xf32> -> vector<1x1xf32>
    %122 = vector.broadcast %121 : vector<1x1xf32> to vector<1x8xf32>
    %123 = arith.mulf %118, %122 : vector<1x8xf32>
    %c3 = arith.constant 3 : index
    %c0_85 = arith.constant 0 : index
    %124 = vector.load %arg15[%c3, %c0_85] : memref<16x8xf32, #tpu.memory_space<vmem>>, vector<1x8xf32>
    tpu.vector_store %arg15[%c3, %c0_85], %123 {strides = array<i32>} : memref<16x8xf32, #tpu.memory_space<vmem>>, vector<1x8xf32>,
    %cst_86 = arith.constant dense<0.000000e+00> : vector<1x16xf32>
    %125 = tpu.matmul %123, %108, %cst_86 {dimension_numbers = #tpu.dot_dimension_numbers<[1], [0], [0], [1], [0, 0, 1, 1], [], []>} : vector<1x8xf32>, vector<8x16xf32>, vector<1x16xf32> -> vector<1x16xf32>
    %c0_87 = arith.constant 0 : index
    %c0_88 = arith.constant 0 : index
    %126 = vector.load %arg10[%c0_87, %c0_88] : memref<16x8xf32, #tpu.memory_space<vmem>>, vector<16x8xf32>
    %cst_89 = arith.constant dense<0.000000e+00> : vector<1x8xf32>
    %127 = tpu.matmul %125, %126, %cst_89 {dimension_numbers = #tpu.dot_dimension_numbers<[1], [0], [0], [1], [0, 0, 1, 1], [], []>} : vector<1x16xf32>, vector<16x8xf32>, vector<1x8xf32> -> vector<1x8xf32>
    %c0_90 = arith.constant 0 : index
    %c0_91 = arith.constant 0 : index
    %128 = vector.load %arg11[%c0_90, %c0_91] : memref<1x8xf32, #tpu.memory_space<vmem>>, vector<1x8xf32>
    %129 = arith.addf %127, %128 : vector<1x8xf32>
    %cst_92 = arith.constant 0.000000e+00 : f32
    %130 = vector.broadcast %cst_92 : f32 to vector<1x8xf32>
    %131 = arith.maximumf %129, %130 : vector<1x8xf32>
    %c0_93 = arith.constant 0 : index
    %c0_94 = arith.constant 0 : index
    %132 = vector.load %arg12[%c0_93, %c0_94] : memref<8x4xf32, #tpu.memory_space<vmem>>, vector<8x4xf32>
    %cst_95 = arith.constant dense<0.000000e+00> : vector<1x4xf32>
    %133 = tpu.matmul %131, %132, %cst_95 {dimension_numbers = #tpu.dot_dimension_numbers<[1], [0], [0], [1], [0, 0, 1, 1], [], []>} : vector<1x8xf32>, vector<8x4xf32>, vector<1x4xf32> -> vector<1x4xf32>
    %c0_96 = arith.constant 0 : index
    %c0_97 = arith.constant 0 : index
    %134 = vector.load %arg13[%c0_96, %c0_97] : memref<1x4xf32, #tpu.memory_space<vmem>>, vector<1x4xf32>
    %135 = arith.addf %133, %134 : vector<1x4xf32>
    %c3_98 = arith.constant 3 : index
    %c0_99 = arith.constant 0 : index
    %136 = vector.load %arg14[%c3_98, %c0_99] : memref<16x4xf32, #tpu.memory_space<vmem>>, vector<1x4xf32>
    tpu.vector_store %arg14[%c3_98, %c0_99], %135 {strides = array<i32>} : memref<16x4xf32, #tpu.memory_space<vmem>>, vector<1x4xf32>,
    %137 = vector.extract_strided_slice %12 {offsets = [32, 0], sizes = [8, 16], strides = [1, 1]} : vector<128x16xf32> to vector<8x16xf32>
    %138 = vector.extract_strided_slice %19 {offsets = [32, 0], sizes = [8, 8], strides = [1, 1]} : vector<128x8xf32> to vector<8x8xf32>
    %cst_100 = arith.constant dense<0.000000e+00> : vector<1x8xf32>
    %139 = tpu.matmul %20, %138, %cst_100 {dimension_numbers = #tpu.dot_dimension_numbers<[1], [1], [0], [0], [0, 0, 1, 0], [], []>} : vector<1x8xf32>, vector<8x8xf32>, vector<1x8xf32> -> vector<1x8xf32>
    %c0_101 = arith.constant 0 : index
    %c0_102 = arith.constant 0 : index
    %140 = vector.load %arg9[%c0_101, %c0_102] : memref<1x1xf32, #tpu.memory_space<vmem>>, vector<1x1xf32>
    %141 = vector.broadcast %140 : vector<1x1xf32> to vector<1x8xf32>
    %142 = arith.addf %139, %141 : vector<1x8xf32>
    %cst_103 = arith.constant dense<0xFF800000> : vector<1xf32>
    %143 = vector.multi_reduction <maximumf>, %142, %cst_103 [1] : vector<1x8xf32> to vector<1xf32>
    %144 = vector.shape_cast %143 : vector<1xf32> to vector<1x1xf32>
    %145 = vector.broadcast %144 : vector<1x1xf32> to vector<1x8xf32>
    %146 = arith.subf %142, %145 : vector<1x8xf32>
    %147 = math.exp %146 : vector<1x8xf32>
    %cst_104 = arith.constant dense<0.000000e+00> : vector<1xf32>
    %148 = vector.multi_reduction <add>, %147, %cst_104 [1] : vector<1x8xf32> to vector<1xf32>
    %149 = vector.shape_cast %148 : vector<1xf32> to vector<1x1xf32>
    %150 = tpu.reciprocal %149 {approx = true} : vector<1x1xf32> -> vector<1x1xf32>
    %151 = vector.broadcast %150 : vector<1x1xf32> to vector<1x8xf32>
    %152 = arith.mulf %147, %151 : vector<1x8xf32>
    %c4 = arith.constant 4 : index
    %c0_105 = arith.constant 0 : index
    %153 = vector.load %arg15[%c4, %c0_105] : memref<16x8xf32, #tpu.memory_space<vmem>>, vector<1x8xf32>
    tpu.vector_store %arg15[%c4, %c0_105], %152 {strides = array<i32>} : memref<16x8xf32, #tpu.memory_space<vmem>>, vector<1x8xf32>,
    %cst_106 = arith.constant dense<0.000000e+00> : vector<1x16xf32>
    %154 = tpu.matmul %152, %137, %cst_106 {dimension_numbers = #tpu.dot_dimension_numbers<[1], [0], [0], [1], [0, 0, 1, 1], [], []>} : vector<1x8xf32>, vector<8x16xf32>, vector<1x16xf32> -> vector<1x16xf32>
    %c0_107 = arith.constant 0 : index
    %c0_108 = arith.constant 0 : index
    %155 = vector.load %arg10[%c0_107, %c0_108] : memref<16x8xf32, #tpu.memory_space<vmem>>, vector<16x8xf32>
    %cst_109 = arith.constant dense<0.000000e+00> : vector<1x8xf32>
    %156 = tpu.matmul %154, %155, %cst_109 {dimension_numbers = #tpu.dot_dimension_numbers<[1], [0], [0], [1], [0, 0, 1, 1], [], []>} : vector<1x16xf32>, vector<16x8xf32>, vector<1x8xf32> -> vector<1x8xf32>
    %c0_110 = arith.constant 0 : index
    %c0_111 = arith.constant 0 : index
    %157 = vector.load %arg11[%c0_110, %c0_111] : memref<1x8xf32, #tpu.memory_space<vmem>>, vector<1x8xf32>
    %158 = arith.addf %156, %157 : vector<1x8xf32>
    %cst_112 = arith.constant 0.000000e+00 : f32
    %159 = vector.broadcast %cst_112 : f32 to vector<1x8xf32>
    %160 = arith.maximumf %158, %159 : vector<1x8xf32>
    %c0_113 = arith.constant 0 : index
    %c0_114 = arith.constant 0 : index
    %161 = vector.load %arg12[%c0_113, %c0_114] : memref<8x4xf32, #tpu.memory_space<vmem>>, vector<8x4xf32>
    %cst_115 = arith.constant dense<0.000000e+00> : vector<1x4xf32>
    %162 = tpu.matmul %160, %161, %cst_115 {dimension_numbers = #tpu.dot_dimension_numbers<[1], [0], [0], [1], [0, 0, 1, 1], [], []>} : vector<1x8xf32>, vector<8x4xf32>, vector<1x4xf32> -> vector<1x4xf32>
    %c0_116 = arith.constant 0 : index
    %c0_117 = arith.constant 0 : index
    %163 = vector.load %arg13[%c0_116, %c0_117] : memref<1x4xf32, #tpu.memory_space<vmem>>, vector<1x4xf32>
    %164 = arith.addf %162, %163 : vector<1x4xf32>
    %c4_118 = arith.constant 4 : index
    %c0_119 = arith.constant 0 : index
    %165 = vector.load %arg14[%c4_118, %c0_119] : memref<16x4xf32, #tpu.memory_space<vmem>>, vector<1x4xf32>
    tpu.vector_store %arg14[%c4_118, %c0_119], %164 {strides = array<i32>} : memref<16x4xf32, #tpu.memory_space<vmem>>, vector<1x4xf32>,
    %166 = vector.extract_strided_slice %12 {offsets = [40, 0], sizes = [8, 16], strides = [1, 1]} : vector<128x16xf32> to vector<8x16xf32>
    %167 = vector.extract_strided_slice %19 {offsets = [40, 0], sizes = [8, 8], strides = [1, 1]} : vector<128x8xf32> to vector<8x8xf32>
    %cst_120 = arith.constant dense<0.000000e+00> : vector<1x8xf32>
    %168 = tpu.matmul %20, %167, %cst_120 {dimension_numbers = #tpu.dot_dimension_numbers<[1], [1], [0], [0], [0, 0, 1, 0], [], []>} : vector<1x8xf32>, vector<8x8xf32>, vector<1x8xf32> -> vector<1x8xf32>
    %c0_121 = arith.constant 0 : index
    %c0_122 = arith.constant 0 : index
    %169 = vector.load %arg9[%c0_121, %c0_122] : memref<1x1xf32, #tpu.memory_space<vmem>>, vector<1x1xf32>
    %170 = vector.broadcast %169 : vector<1x1xf32> to vector<1x8xf32>
    %171 = arith.addf %168, %170 : vector<1x8xf32>
    %cst_123 = arith.constant dense<0xFF800000> : vector<1xf32>
    %172 = vector.multi_reduction <maximumf>, %171, %cst_123 [1] : vector<1x8xf32> to vector<1xf32>
    %173 = vector.shape_cast %172 : vector<1xf32> to vector<1x1xf32>
    %174 = vector.broadcast %173 : vector<1x1xf32> to vector<1x8xf32>
    %175 = arith.subf %171, %174 : vector<1x8xf32>
    %176 = math.exp %175 : vector<1x8xf32>
    %cst_124 = arith.constant dense<0.000000e+00> : vector<1xf32>
    %177 = vector.multi_reduction <add>, %176, %cst_124 [1] : vector<1x8xf32> to vector<1xf32>
    %178 = vector.shape_cast %177 : vector<1xf32> to vector<1x1xf32>
    %179 = tpu.reciprocal %178 {approx = true} : vector<1x1xf32> -> vector<1x1xf32>
    %180 = vector.broadcast %179 : vector<1x1xf32> to vector<1x8xf32>
    %181 = arith.mulf %176, %180 : vector<1x8xf32>
    %c5 = arith.constant 5 : index
    %c0_125 = arith.constant 0 : index
    %182 = vector.load %arg15[%c5, %c0_125] : memref<16x8xf32, #tpu.memory_space<vmem>>, vector<1x8xf32>
    tpu.vector_store %arg15[%c5, %c0_125], %181 {strides = array<i32>} : memref<16x8xf32, #tpu.memory_space<vmem>>, vector<1x8xf32>,
    %cst_126 = arith.constant dense<0.000000e+00> : vector<1x16xf32>
    %183 = tpu.matmul %181, %166, %cst_126 {dimension_numbers = #tpu.dot_dimension_numbers<[1], [0], [0], [1], [0, 0, 1, 1], [], []>} : vector<1x8xf32>, vector<8x16xf32>, vector<1x16xf32> -> vector<1x16xf32>
    %c0_127 = arith.constant 0 : index
    %c0_128 = arith.constant 0 : index
    %184 = vector.load %arg10[%c0_127, %c0_128] : memref<16x8xf32, #tpu.memory_space<vmem>>, vector<16x8xf32>
    %cst_129 = arith.constant dense<0.000000e+00> : vector<1x8xf32>
    %185 = tpu.matmul %183, %184, %cst_129 {dimension_numbers = #tpu.dot_dimension_numbers<[1], [0], [0], [1], [0, 0, 1, 1], [], []>} : vector<1x16xf32>, vector<16x8xf32>, vector<1x8xf32> -> vector<1x8xf32>
    %c0_130 = arith.constant 0 : index
    %c0_131 = arith.constant 0 : index
    %186 = vector.load %arg11[%c0_130, %c0_131] : memref<1x8xf32, #tpu.memory_space<vmem>>, vector<1x8xf32>
    %187 = arith.addf %185, %186 : vector<1x8xf32>
    %cst_132 = arith.constant 0.000000e+00 : f32
    %188 = vector.broadcast %cst_132 : f32 to vector<1x8xf32>
    %189 = arith.maximumf %187, %188 : vector<1x8xf32>
    %c0_133 = arith.constant 0 : index
    %c0_134 = arith.constant 0 : index
    %190 = vector.load %arg12[%c0_133, %c0_134] : memref<8x4xf32, #tpu.memory_space<vmem>>, vector<8x4xf32>
    %cst_135 = arith.constant dense<0.000000e+00> : vector<1x4xf32>
    %191 = tpu.matmul %189, %190, %cst_135 {dimension_numbers = #tpu.dot_dimension_numbers<[1], [0], [0], [1], [0, 0, 1, 1], [], []>} : vector<1x8xf32>, vector<8x4xf32>, vector<1x4xf32> -> vector<1x4xf32>
    %c0_136 = arith.constant 0 : index
    %c0_137 = arith.constant 0 : index
    %192 = vector.load %arg13[%c0_136, %c0_137] : memref<1x4xf32, #tpu.memory_space<vmem>>, vector<1x4xf32>
    %193 = arith.addf %191, %192 : vector<1x4xf32>
    %c5_138 = arith.constant 5 : index
    %c0_139 = arith.constant 0 : index
    %194 = vector.load %arg14[%c5_138, %c0_139] : memref<16x4xf32, #tpu.memory_space<vmem>>, vector<1x4xf32>
    tpu.vector_store %arg14[%c5_138, %c0_139], %193 {strides = array<i32>} : memref<16x4xf32, #tpu.memory_space<vmem>>, vector<1x4xf32>,
    %195 = vector.extract_strided_slice %12 {offsets = [48, 0], sizes = [8, 16], strides = [1, 1]} : vector<128x16xf32> to vector<8x16xf32>
    %196 = vector.extract_strided_slice %19 {offsets = [48, 0], sizes = [8, 8], strides = [1, 1]} : vector<128x8xf32> to vector<8x8xf32>
    %cst_140 = arith.constant dense<0.000000e+00> : vector<1x8xf32>
    %197 = tpu.matmul %20, %196, %cst_140 {dimension_numbers = #tpu.dot_dimension_numbers<[1], [1], [0], [0], [0, 0, 1, 0], [], []>} : vector<1x8xf32>, vector<8x8xf32>, vector<1x8xf32> -> vector<1x8xf32>
    %c0_141 = arith.constant 0 : index
    %c0_142 = arith.constant 0 : index
    %198 = vector.load %arg9[%c0_141, %c0_142] : memref<1x1xf32, #tpu.memory_space<vmem>>, vector<1x1xf32>
    %199 = vector.broadcast %198 : vector<1x1xf32> to vector<1x8xf32>
    %200 = arith.addf %197, %199 : vector<1x8xf32>
    %cst_143 = arith.constant dense<0xFF800000> : vector<1xf32>
    %201 = vector.multi_reduction <maximumf>, %200, %cst_143 [1] : vector<1x8xf32> to vector<1xf32>
    %202 = vector.shape_cast %201 : vector<1xf32> to vector<1x1xf32>
    %203 = vector.broadcast %202 : vector<1x1xf32> to vector<1x8xf32>
    %204 = arith.subf %200, %203 : vector<1x8xf32>
    %205 = math.exp %204 : vector<1x8xf32>
    %cst_144 = arith.constant dense<0.000000e+00> : vector<1xf32>
    %206 = vector.multi_reduction <add>, %205, %cst_144 [1] : vector<1x8xf32> to vector<1xf32>
    %207 = vector.shape_cast %206 : vector<1xf32> to vector<1x1xf32>
    %208 = tpu.reciprocal %207 {approx = true} : vector<1x1xf32> -> vector<1x1xf32>
    %209 = vector.broadcast %208 : vector<1x1xf32> to vector<1x8xf32>
    %210 = arith.mulf %205, %209 : vector<1x8xf32>
    %c6 = arith.constant 6 : index
    %c0_145 = arith.constant 0 : index
    %211 = vector.load %arg15[%c6, %c0_145] : memref<16x8xf32, #tpu.memory_space<vmem>>, vector<1x8xf32>
    tpu.vector_store %arg15[%c6, %c0_145], %210 {strides = array<i32>} : memref<16x8xf32, #tpu.memory_space<vmem>>, vector<1x8xf32>,
    %cst_146 = arith.constant dense<0.000000e+00> : vector<1x16xf32>
    %212 = tpu.matmul %210, %195, %cst_146 {dimension_numbers = #tpu.dot_dimension_numbers<[1], [0], [0], [1], [0, 0, 1, 1], [], []>} : vector<1x8xf32>, vector<8x16xf32>, vector<1x16xf32> -> vector<1x16xf32>
    %c0_147 = arith.constant 0 : index
    %c0_148 = arith.constant 0 : index
    %213 = vector.load %arg10[%c0_147, %c0_148] : memref<16x8xf32, #tpu.memory_space<vmem>>, vector<16x8xf32>
    %cst_149 = arith.constant dense<0.000000e+00> : vector<1x8xf32>
    %214 = tpu.matmul %212, %213, %cst_149 {dimension_numbers = #tpu.dot_dimension_numbers<[1], [0], [0], [1], [0, 0, 1, 1], [], []>} : vector<1x16xf32>, vector<16x8xf32>, vector<1x8xf32> -> vector<1x8xf32>
    %c0_150 = arith.constant 0 : index
    %c0_151 = arith.constant 0 : index
    %215 = vector.load %arg11[%c0_150, %c0_151] : memref<1x8xf32, #tpu.memory_space<vmem>>, vector<1x8xf32>
    %216 = arith.addf %214, %215 : vector<1x8xf32>
    %cst_152 = arith.constant 0.000000e+00 : f32
    %217 = vector.broadcast %cst_152 : f32 to vector<1x8xf32>
    %218 = arith.maximumf %216, %217 : vector<1x8xf32>
    %c0_153 = arith.constant 0 : index
    %c0_154 = arith.constant 0 : index
    %219 = vector.load %arg12[%c0_153, %c0_154] : memref<8x4xf32, #tpu.memory_space<vmem>>, vector<8x4xf32>
    %cst_155 = arith.constant dense<0.000000e+00> : vector<1x4xf32>
    %220 = tpu.matmul %218, %219, %cst_155 {dimension_numbers = #tpu.dot_dimension_numbers<[1], [0], [0], [1], [0, 0, 1, 1], [], []>} : vector<1x8xf32>, vector<8x4xf32>, vector<1x4xf32> -> vector<1x4xf32>
    %c0_156 = arith.constant 0 : index
    %c0_157 = arith.constant 0 : index
    %221 = vector.load %arg13[%c0_156, %c0_157] : memref<1x4xf32, #tpu.memory_space<vmem>>, vector<1x4xf32>
    %222 = arith.addf %220, %221 : vector<1x4xf32>
    %c6_158 = arith.constant 6 : index
    %c0_159 = arith.constant 0 : index
    %223 = vector.load %arg14[%c6_158, %c0_159] : memref<16x4xf32, #tpu.memory_space<vmem>>, vector<1x4xf32>
    tpu.vector_store %arg14[%c6_158, %c0_159], %222 {strides = array<i32>} : memref<16x4xf32, #tpu.memory_space<vmem>>, vector<1x4xf32>,
    %224 = vector.extract_strided_slice %12 {offsets = [56, 0], sizes = [8, 16], strides = [1, 1]} : vector<128x16xf32> to vector<8x16xf32>
    %225 = vector.extract_strided_slice %19 {offsets = [56, 0], sizes = [8, 8], strides = [1, 1]} : vector<128x8xf32> to vector<8x8xf32>
    %cst_160 = arith.constant dense<0.000000e+00> : vector<1x8xf32>
    %226 = tpu.matmul %20, %225, %cst_160 {dimension_numbers = #tpu.dot_dimension_numbers<[1], [1], [0], [0], [0, 0, 1, 0], [], []>} : vector<1x8xf32>, vector<8x8xf32>, vector<1x8xf32> -> vector<1x8xf32>
    %c0_161 = arith.constant 0 : index
    %c0_162 = arith.constant 0 : index
    %227 = vector.load %arg9[%c0_161, %c0_162] : memref<1x1xf32, #tpu.memory_space<vmem>>, vector<1x1xf32>
    %228 = vector.broadcast %227 : vector<1x1xf32> to vector<1x8xf32>
    %229 = arith.addf %226, %228 : vector<1x8xf32>
    %cst_163 = arith.constant dense<0xFF800000> : vector<1xf32>
    %230 = vector.multi_reduction <maximumf>, %229, %cst_163 [1] : vector<1x8xf32> to vector<1xf32>
    %231 = vector.shape_cast %230 : vector<1xf32> to vector<1x1xf32>
    %232 = vector.broadcast %231 : vector<1x1xf32> to vector<1x8xf32>
    %233 = arith.subf %229, %232 : vector<1x8xf32>
    %234 = math.exp %233 : vector<1x8xf32>
    %cst_164 = arith.constant dense<0.000000e+00> : vector<1xf32>
    %235 = vector.multi_reduction <add>, %234, %cst_164 [1] : vector<1x8xf32> to vector<1xf32>
    %236 = vector.shape_cast %235 : vector<1xf32> to vector<1x1xf32>
    %237 = tpu.reciprocal %236 {approx = true} : vector<1x1xf32> -> vector<1x1xf32>
    %238 = vector.broadcast %237 : vector<1x1xf32> to vector<1x8xf32>
    %239 = arith.mulf %234, %238 : vector<1x8xf32>
    %c7 = arith.constant 7 : index
    %c0_165 = arith.constant 0 : index
    %240 = vector.load %arg15[%c7, %c0_165] : memref<16x8xf32, #tpu.memory_space<vmem>>, vector<1x8xf32>
    tpu.vector_store %arg15[%c7, %c0_165], %239 {strides = array<i32>} : memref<16x8xf32, #tpu.memory_space<vmem>>, vector<1x8xf32>,
    %cst_166 = arith.constant dense<0.000000e+00> : vector<1x16xf32>
    %241 = tpu.matmul %239, %224, %cst_166 {dimension_numbers = #tpu.dot_dimension_numbers<[1], [0], [0], [1], [0, 0, 1, 1], [], []>} : vector<1x8xf32>, vector<8x16xf32>, vector<1x16xf32> -> vector<1x16xf32>
    %c0_167 = arith.constant 0 : index
    %c0_168 = arith.constant 0 : index
    %242 = vector.load %arg10[%c0_167, %c0_168] : memref<16x8xf32, #tpu.memory_space<vmem>>, vector<16x8xf32>
    %cst_169 = arith.constant dense<0.000000e+00> : vector<1x8xf32>
    %243 = tpu.matmul %241, %242, %cst_169 {dimension_numbers = #tpu.dot_dimension_numbers<[1], [0], [0], [1], [0, 0, 1, 1], [], []>} : vector<1x16xf32>, vector<16x8xf32>, vector<1x8xf32> -> vector<1x8xf32>
    %c0_170 = arith.constant 0 : index
    %c0_171 = arith.constant 0 : index
    %244 = vector.load %arg11[%c0_170, %c0_171] : memref<1x8xf32, #tpu.memory_space<vmem>>, vector<1x8xf32>
    %245 = arith.addf %243, %244 : vector<1x8xf32>
    %cst_172 = arith.constant 0.000000e+00 : f32
    %246 = vector.broadcast %cst_172 : f32 to vector<1x8xf32>
    %247 = arith.maximumf %245, %246 : vector<1x8xf32>
    %c0_173 = arith.constant 0 : index
    %c0_174 = arith.constant 0 : index
    %248 = vector.load %arg12[%c0_173, %c0_174] : memref<8x4xf32, #tpu.memory_space<vmem>>, vector<8x4xf32>
    %cst_175 = arith.constant dense<0.000000e+00> : vector<1x4xf32>
    %249 = tpu.matmul %247, %248, %cst_175 {dimension_numbers = #tpu.dot_dimension_numbers<[1], [0], [0], [1], [0, 0, 1, 1], [], []>} : vector<1x8xf32>, vector<8x4xf32>, vector<1x4xf32> -> vector<1x4xf32>
    %c0_176 = arith.constant 0 : index
    %c0_177 = arith.constant 0 : index
    %250 = vector.load %arg13[%c0_176, %c0_177] : memref<1x4xf32, #tpu.memory_space<vmem>>, vector<1x4xf32>
    %251 = arith.addf %249, %250 : vector<1x4xf32>
    %c7_178 = arith.constant 7 : index
    %c0_179 = arith.constant 0 : index
    %252 = vector.load %arg14[%c7_178, %c0_179] : memref<16x4xf32, #tpu.memory_space<vmem>>, vector<1x4xf32>
    tpu.vector_store %arg14[%c7_178, %c0_179], %251 {strides = array<i32>} : memref<16x4xf32, #tpu.memory_space<vmem>>, vector<1x4xf32>,
    %253 = vector.extract_strided_slice %12 {offsets = [64, 0], sizes = [8, 16], strides = [1, 1]} : vector<128x16xf32> to vector<8x16xf32>
    %254 = vector.extract_strided_slice %19 {offsets = [64, 0], sizes = [8, 8], strides = [1, 1]} : vector<128x8xf32> to vector<8x8xf32>
    %cst_180 = arith.constant dense<0.000000e+00> : vector<1x8xf32>
    %255 = tpu.matmul %20, %254, %cst_180 {dimension_numbers = #tpu.dot_dimension_numbers<[1], [1], [0], [0], [0, 0, 1, 0], [], []>} : vector<1x8xf32>, vector<8x8xf32>, vector<1x8xf32> -> vector<1x8xf32>
    %c0_181 = arith.constant 0 : index
    %c0_182 = arith.constant 0 : index
    %256 = vector.load %arg9[%c0_181, %c0_182] : memref<1x1xf32, #tpu.memory_space<vmem>>, vector<1x1xf32>
    %257 = vector.broadcast %256 : vector<1x1xf32> to vector<1x8xf32>
    %258 = arith.addf %255, %257 : vector<1x8xf32>
    %cst_183 = arith.constant dense<0xFF800000> : vector<1xf32>
    %259 = vector.multi_reduction <maximumf>, %258, %cst_183 [1] : vector<1x8xf32> to vector<1xf32>
    %260 = vector.shape_cast %259 : vector<1xf32> to vector<1x1xf32>
    %261 = vector.broadcast %260 : vector<1x1xf32> to vector<1x8xf32>
    %262 = arith.subf %258, %261 : vector<1x8xf32>
    %263 = math.exp %262 : vector<1x8xf32>
    %cst_184 = arith.constant dense<0.000000e+00> : vector<1xf32>
    %264 = vector.multi_reduction <add>, %263, %cst_184 [1] : vector<1x8xf32> to vector<1xf32>
    %265 = vector.shape_cast %264 : vector<1xf32> to vector<1x1xf32>
    %266 = tpu.reciprocal %265 {approx = true} : vector<1x1xf32> -> vector<1x1xf32>
    %267 = vector.broadcast %266 : vector<1x1xf32> to vector<1x8xf32>
    %268 = arith.mulf %263, %267 : vector<1x8xf32>
    %c8 = arith.constant 8 : index
    %c0_185 = arith.constant 0 : index
    %269 = vector.load %arg15[%c8, %c0_185] : memref<16x8xf32, #tpu.memory_space<vmem>>, vector<1x8xf32>
    tpu.vector_store %arg15[%c8, %c0_185], %268 {strides = array<i32>} : memref<16x8xf32, #tpu.memory_space<vmem>>, vector<1x8xf32>,
    %cst_186 = arith.constant dense<0.000000e+00> : vector<1x16xf32>
    %270 = tpu.matmul %268, %253, %cst_186 {dimension_numbers = #tpu.dot_dimension_numbers<[1], [0], [0], [1], [0, 0, 1, 1], [], []>} : vector<1x8xf32>, vector<8x16xf32>, vector<1x16xf32> -> vector<1x16xf32>
    %c0_187 = arith.constant 0 : index
    %c0_188 = arith.constant 0 : index
    %271 = vector.load %arg10[%c0_187, %c0_188] : memref<16x8xf32, #tpu.memory_space<vmem>>, vector<16x8xf32>
    %cst_189 = arith.constant dense<0.000000e+00> : vector<1x8xf32>
    %272 = tpu.matmul %270, %271, %cst_189 {dimension_numbers = #tpu.dot_dimension_numbers<[1], [0], [0], [1], [0, 0, 1, 1], [], []>} : vector<1x16xf32>, vector<16x8xf32>, vector<1x8xf32> -> vector<1x8xf32>
    %c0_190 = arith.constant 0 : index
    %c0_191 = arith.constant 0 : index
    %273 = vector.load %arg11[%c0_190, %c0_191] : memref<1x8xf32, #tpu.memory_space<vmem>>, vector<1x8xf32>
    %274 = arith.addf %272, %273 : vector<1x8xf32>
    %cst_192 = arith.constant 0.000000e+00 : f32
    %275 = vector.broadcast %cst_192 : f32 to vector<1x8xf32>
    %276 = arith.maximumf %274, %275 : vector<1x8xf32>
    %c0_193 = arith.constant 0 : index
    %c0_194 = arith.constant 0 : index
    %277 = vector.load %arg12[%c0_193, %c0_194] : memref<8x4xf32, #tpu.memory_space<vmem>>, vector<8x4xf32>
    %cst_195 = arith.constant dense<0.000000e+00> : vector<1x4xf32>
    %278 = tpu.matmul %276, %277, %cst_195 {dimension_numbers = #tpu.dot_dimension_numbers<[1], [0], [0], [1], [0, 0, 1, 1], [], []>} : vector<1x8xf32>, vector<8x4xf32>, vector<1x4xf32> -> vector<1x4xf32>
    %c0_196 = arith.constant 0 : index
    %c0_197 = arith.constant 0 : index
    %279 = vector.load %arg13[%c0_196, %c0_197] : memref<1x4xf32, #tpu.memory_space<vmem>>, vector<1x4xf32>
    %280 = arith.addf %278, %279 : vector<1x4xf32>
    %c8_198 = arith.constant 8 : index
    %c0_199 = arith.constant 0 : index
    %281 = vector.load %arg14[%c8_198, %c0_199] : memref<16x4xf32, #tpu.memory_space<vmem>>, vector<1x4xf32>
    tpu.vector_store %arg14[%c8_198, %c0_199], %280 {strides = array<i32>} : memref<16x4xf32, #tpu.memory_space<vmem>>, vector<1x4xf32>,
    %282 = vector.extract_strided_slice %12 {offsets = [72, 0], sizes = [8, 16], strides = [1, 1]} : vector<128x16xf32> to vector<8x16xf32>
    %283 = vector.extract_strided_slice %19 {offsets = [72, 0], sizes = [8, 8], strides = [1, 1]} : vector<128x8xf32> to vector<8x8xf32>
    %cst_200 = arith.constant dense<0.000000e+00> : vector<1x8xf32>
    %284 = tpu.matmul %20, %283, %cst_200 {dimension_numbers = #tpu.dot_dimension_numbers<[1], [1], [0], [0], [0, 0, 1, 0], [], []>} : vector<1x8xf32>, vector<8x8xf32>, vector<1x8xf32> -> vector<1x8xf32>
    %c0_201 = arith.constant 0 : index
    %c0_202 = arith.constant 0 : index
    %285 = vector.load %arg9[%c0_201, %c0_202] : memref<1x1xf32, #tpu.memory_space<vmem>>, vector<1x1xf32>
    %286 = vector.broadcast %285 : vector<1x1xf32> to vector<1x8xf32>
    %287 = arith.addf %284, %286 : vector<1x8xf32>
    %cst_203 = arith.constant dense<0xFF800000> : vector<1xf32>
    %288 = vector.multi_reduction <maximumf>, %287, %cst_203 [1] : vector<1x8xf32> to vector<1xf32>
    %289 = vector.shape_cast %288 : vector<1xf32> to vector<1x1xf32>
    %290 = vector.broadcast %289 : vector<1x1xf32> to vector<1x8xf32>
    %291 = arith.subf %287, %290 : vector<1x8xf32>
    %292 = math.exp %291 : vector<1x8xf32>
    %cst_204 = arith.constant dense<0.000000e+00> : vector<1xf32>
    %293 = vector.multi_reduction <add>, %292, %cst_204 [1] : vector<1x8xf32> to vector<1xf32>
    %294 = vector.shape_cast %293 : vector<1xf32> to vector<1x1xf32>
    %295 = tpu.reciprocal %294 {approx = true} : vector<1x1xf32> -> vector<1x1xf32>
    %296 = vector.broadcast %295 : vector<1x1xf32> to vector<1x8xf32>
    %297 = arith.mulf %292, %296 : vector<1x8xf32>
    %c9 = arith.constant 9 : index
    %c0_205 = arith.constant 0 : index
    %298 = vector.load %arg15[%c9, %c0_205] : memref<16x8xf32, #tpu.memory_space<vmem>>, vector<1x8xf32>
    tpu.vector_store %arg15[%c9, %c0_205], %297 {strides = array<i32>} : memref<16x8xf32, #tpu.memory_space<vmem>>, vector<1x8xf32>,
    %cst_206 = arith.constant dense<0.000000e+00> : vector<1x16xf32>
    %299 = tpu.matmul %297, %282, %cst_206 {dimension_numbers = #tpu.dot_dimension_numbers<[1], [0], [0], [1], [0, 0, 1, 1], [], []>} : vector<1x8xf32>, vector<8x16xf32>, vector<1x16xf32> -> vector<1x16xf32>
    %c0_207 = arith.constant 0 : index
    %c0_208 = arith.constant 0 : index
    %300 = vector.load %arg10[%c0_207, %c0_208] : memref<16x8xf32, #tpu.memory_space<vmem>>, vector<16x8xf32>
    %cst_209 = arith.constant dense<0.000000e+00> : vector<1x8xf32>
    %301 = tpu.matmul %299, %300, %cst_209 {dimension_numbers = #tpu.dot_dimension_numbers<[1], [0], [0], [1], [0, 0, 1, 1], [], []>} : vector<1x16xf32>, vector<16x8xf32>, vector<1x8xf32> -> vector<1x8xf32>
    %c0_210 = arith.constant 0 : index
    %c0_211 = arith.constant 0 : index
    %302 = vector.load %arg11[%c0_210, %c0_211] : memref<1x8xf32, #tpu.memory_space<vmem>>, vector<1x8xf32>
    %303 = arith.addf %301, %302 : vector<1x8xf32>
    %cst_212 = arith.constant 0.000000e+00 : f32
    %304 = vector.broadcast %cst_212 : f32 to vector<1x8xf32>
    %305 = arith.maximumf %303, %304 : vector<1x8xf32>
    %c0_213 = arith.constant 0 : index
    %c0_214 = arith.constant 0 : index
    %306 = vector.load %arg12[%c0_213, %c0_214] : memref<8x4xf32, #tpu.memory_space<vmem>>, vector<8x4xf32>
    %cst_215 = arith.constant dense<0.000000e+00> : vector<1x4xf32>
    %307 = tpu.matmul %305, %306, %cst_215 {dimension_numbers = #tpu.dot_dimension_numbers<[1], [0], [0], [1], [0, 0, 1, 1], [], []>} : vector<1x8xf32>, vector<8x4xf32>, vector<1x4xf32> -> vector<1x4xf32>
    %c0_216 = arith.constant 0 : index
    %c0_217 = arith.constant 0 : index
    %308 = vector.load %arg13[%c0_216, %c0_217] : memref<1x4xf32, #tpu.memory_space<vmem>>, vector<1x4xf32>
    %309 = arith.addf %307, %308 : vector<1x4xf32>
    %c9_218 = arith.constant 9 : index
    %c0_219 = arith.constant 0 : index
    %310 = vector.load %arg14[%c9_218, %c0_219] : memref<16x4xf32, #tpu.memory_space<vmem>>, vector<1x4xf32>
    tpu.vector_store %arg14[%c9_218, %c0_219], %309 {strides = array<i32>} : memref<16x4xf32, #tpu.memory_space<vmem>>, vector<1x4xf32>,
    %311 = vector.extract_strided_slice %12 {offsets = [80, 0], sizes = [8, 16], strides = [1, 1]} : vector<128x16xf32> to vector<8x16xf32>
    %312 = vector.extract_strided_slice %19 {offsets = [80, 0], sizes = [8, 8], strides = [1, 1]} : vector<128x8xf32> to vector<8x8xf32>
    %cst_220 = arith.constant dense<0.000000e+00> : vector<1x8xf32>
    %313 = tpu.matmul %20, %312, %cst_220 {dimension_numbers = #tpu.dot_dimension_numbers<[1], [1], [0], [0], [0, 0, 1, 0], [], []>} : vector<1x8xf32>, vector<8x8xf32>, vector<1x8xf32> -> vector<1x8xf32>
    %c0_221 = arith.constant 0 : index
    %c0_222 = arith.constant 0 : index
    %314 = vector.load %arg9[%c0_221, %c0_222] : memref<1x1xf32, #tpu.memory_space<vmem>>, vector<1x1xf32>
    %315 = vector.broadcast %314 : vector<1x1xf32> to vector<1x8xf32>
    %316 = arith.addf %313, %315 : vector<1x8xf32>
    %cst_223 = arith.constant dense<0xFF800000> : vector<1xf32>
    %317 = vector.multi_reduction <maximumf>, %316, %cst_223 [1] : vector<1x8xf32> to vector<1xf32>
    %318 = vector.shape_cast %317 : vector<1xf32> to vector<1x1xf32>
    %319 = vector.broadcast %318 : vector<1x1xf32> to vector<1x8xf32>
    %320 = arith.subf %316, %319 : vector<1x8xf32>
    %321 = math.exp %320 : vector<1x8xf32>
    %cst_224 = arith.constant dense<0.000000e+00> : vector<1xf32>
    %322 = vector.multi_reduction <add>, %321, %cst_224 [1] : vector<1x8xf32> to vector<1xf32>
    %323 = vector.shape_cast %322 : vector<1xf32> to vector<1x1xf32>
    %324 = tpu.reciprocal %323 {approx = true} : vector<1x1xf32> -> vector<1x1xf32>
    %325 = vector.broadcast %324 : vector<1x1xf32> to vector<1x8xf32>
    %326 = arith.mulf %321, %325 : vector<1x8xf32>
    %c10 = arith.constant 10 : index
    %c0_225 = arith.constant 0 : index
    %327 = vector.load %arg15[%c10, %c0_225] : memref<16x8xf32, #tpu.memory_space<vmem>>, vector<1x8xf32>
    tpu.vector_store %arg15[%c10, %c0_225], %326 {strides = array<i32>} : memref<16x8xf32, #tpu.memory_space<vmem>>, vector<1x8xf32>,
    %cst_226 = arith.constant dense<0.000000e+00> : vector<1x16xf32>
    %328 = tpu.matmul %326, %311, %cst_226 {dimension_numbers = #tpu.dot_dimension_numbers<[1], [0], [0], [1], [0, 0, 1, 1], [], []>} : vector<1x8xf32>, vector<8x16xf32>, vector<1x16xf32> -> vector<1x16xf32>
    %c0_227 = arith.constant 0 : index
    %c0_228 = arith.constant 0 : index
    %329 = vector.load %arg10[%c0_227, %c0_228] : memref<16x8xf32, #tpu.memory_space<vmem>>, vector<16x8xf32>
    %cst_229 = arith.constant dense<0.000000e+00> : vector<1x8xf32>
    %330 = tpu.matmul %328, %329, %cst_229 {dimension_numbers = #tpu.dot_dimension_numbers<[1], [0], [0], [1], [0, 0, 1, 1], [], []>} : vector<1x16xf32>, vector<16x8xf32>, vector<1x8xf32> -> vector<1x8xf32>
    %c0_230 = arith.constant 0 : index
    %c0_231 = arith.constant 0 : index
    %331 = vector.load %arg11[%c0_230, %c0_231] : memref<1x8xf32, #tpu.memory_space<vmem>>, vector<1x8xf32>
    %332 = arith.addf %330, %331 : vector<1x8xf32>
    %cst_232 = arith.constant 0.000000e+00 : f32
    %333 = vector.broadcast %cst_232 : f32 to vector<1x8xf32>
    %334 = arith.maximumf %332, %333 : vector<1x8xf32>
    %c0_233 = arith.constant 0 : index
    %c0_234 = arith.constant 0 : index
    %335 = vector.load %arg12[%c0_233, %c0_234] : memref<8x4xf32, #tpu.memory_space<vmem>>, vector<8x4xf32>
    %cst_235 = arith.constant dense<0.000000e+00> : vector<1x4xf32>
    %336 = tpu.matmul %334, %335, %cst_235 {dimension_numbers = #tpu.dot_dimension_numbers<[1], [0], [0], [1], [0, 0, 1, 1], [], []>} : vector<1x8xf32>, vector<8x4xf32>, vector<1x4xf32> -> vector<1x4xf32>
    %c0_236 = arith.constant 0 : index
    %c0_237 = arith.constant 0 : index
    %337 = vector.load %arg13[%c0_236, %c0_237] : memref<1x4xf32, #tpu.memory_space<vmem>>, vector<1x4xf32>
    %338 = arith.addf %336, %337 : vector<1x4xf32>
    %c10_238 = arith.constant 10 : index
    %c0_239 = arith.constant 0 : index
    %339 = vector.load %arg14[%c10_238, %c0_239] : memref<16x4xf32, #tpu.memory_space<vmem>>, vector<1x4xf32>
    tpu.vector_store %arg14[%c10_238, %c0_239], %338 {strides = array<i32>} : memref<16x4xf32, #tpu.memory_space<vmem>>, vector<1x4xf32>,
    %340 = vector.extract_strided_slice %12 {offsets = [88, 0], sizes = [8, 16], strides = [1, 1]} : vector<128x16xf32> to vector<8x16xf32>
    %341 = vector.extract_strided_slice %19 {offsets = [88, 0], sizes = [8, 8], strides = [1, 1]} : vector<128x8xf32> to vector<8x8xf32>
    %cst_240 = arith.constant dense<0.000000e+00> : vector<1x8xf32>
    %342 = tpu.matmul %20, %341, %cst_240 {dimension_numbers = #tpu.dot_dimension_numbers<[1], [1], [0], [0], [0, 0, 1, 0], [], []>} : vector<1x8xf32>, vector<8x8xf32>, vector<1x8xf32> -> vector<1x8xf32>
    %c0_241 = arith.constant 0 : index
    %c0_242 = arith.constant 0 : index
    %343 = vector.load %arg9[%c0_241, %c0_242] : memref<1x1xf32, #tpu.memory_space<vmem>>, vector<1x1xf32>
    %344 = vector.broadcast %343 : vector<1x1xf32> to vector<1x8xf32>
    %345 = arith.addf %342, %344 : vector<1x8xf32>
    %cst_243 = arith.constant dense<0xFF800000> : vector<1xf32>
    %346 = vector.multi_reduction <maximumf>, %345, %cst_243 [1] : vector<1x8xf32> to vector<1xf32>
    %347 = vector.shape_cast %346 : vector<1xf32> to vector<1x1xf32>
    %348 = vector.broadcast %347 : vector<1x1xf32> to vector<1x8xf32>
    %349 = arith.subf %345, %348 : vector<1x8xf32>
    %350 = math.exp %349 : vector<1x8xf32>
    %cst_244 = arith.constant dense<0.000000e+00> : vector<1xf32>
    %351 = vector.multi_reduction <add>, %350, %cst_244 [1] : vector<1x8xf32> to vector<1xf32>
    %352 = vector.shape_cast %351 : vector<1xf32> to vector<1x1xf32>
    %353 = tpu.reciprocal %352 {approx = true} : vector<1x1xf32> -> vector<1x1xf32>
    %354 = vector.broadcast %353 : vector<1x1xf32> to vector<1x8xf32>
    %355 = arith.mulf %350, %354 : vector<1x8xf32>
    %c11 = arith.constant 11 : index
    %c0_245 = arith.constant 0 : index
    %356 = vector.load %arg15[%c11, %c0_245] : memref<16x8xf32, #tpu.memory_space<vmem>>, vector<1x8xf32>
    tpu.vector_store %arg15[%c11, %c0_245], %355 {strides = array<i32>} : memref<16x8xf32, #tpu.memory_space<vmem>>, vector<1x8xf32>,
    %cst_246 = arith.constant dense<0.000000e+00> : vector<1x16xf32>
    %357 = tpu.matmul %355, %340, %cst_246 {dimension_numbers = #tpu.dot_dimension_numbers<[1], [0], [0], [1], [0, 0, 1, 1], [], []>} : vector<1x8xf32>, vector<8x16xf32>, vector<1x16xf32> -> vector<1x16xf32>
    %c0_247 = arith.constant 0 : index
    %c0_248 = arith.constant 0 : index
    %358 = vector.load %arg10[%c0_247, %c0_248] : memref<16x8xf32, #tpu.memory_space<vmem>>, vector<16x8xf32>
    %cst_249 = arith.constant dense<0.000000e+00> : vector<1x8xf32>
    %359 = tpu.matmul %357, %358, %cst_249 {dimension_numbers = #tpu.dot_dimension_numbers<[1], [0], [0], [1], [0, 0, 1, 1], [], []>} : vector<1x16xf32>, vector<16x8xf32>, vector<1x8xf32> -> vector<1x8xf32>
    %c0_250 = arith.constant 0 : index
    %c0_251 = arith.constant 0 : index
    %360 = vector.load %arg11[%c0_250, %c0_251] : memref<1x8xf32, #tpu.memory_space<vmem>>, vector<1x8xf32>
    %361 = arith.addf %359, %360 : vector<1x8xf32>
    %cst_252 = arith.constant 0.000000e+00 : f32
    %362 = vector.broadcast %cst_252 : f32 to vector<1x8xf32>
    %363 = arith.maximumf %361, %362 : vector<1x8xf32>
    %c0_253 = arith.constant 0 : index
    %c0_254 = arith.constant 0 : index
    %364 = vector.load %arg12[%c0_253, %c0_254] : memref<8x4xf32, #tpu.memory_space<vmem>>, vector<8x4xf32>
    %cst_255 = arith.constant dense<0.000000e+00> : vector<1x4xf32>
    %365 = tpu.matmul %363, %364, %cst_255 {dimension_numbers = #tpu.dot_dimension_numbers<[1], [0], [0], [1], [0, 0, 1, 1], [], []>} : vector<1x8xf32>, vector<8x4xf32>, vector<1x4xf32> -> vector<1x4xf32>
    %c0_256 = arith.constant 0 : index
    %c0_257 = arith.constant 0 : index
    %366 = vector.load %arg13[%c0_256, %c0_257] : memref<1x4xf32, #tpu.memory_space<vmem>>, vector<1x4xf32>
    %367 = arith.addf %365, %366 : vector<1x4xf32>
    %c11_258 = arith.constant 11 : index
    %c0_259 = arith.constant 0 : index
    %368 = vector.load %arg14[%c11_258, %c0_259] : memref<16x4xf32, #tpu.memory_space<vmem>>, vector<1x4xf32>
    tpu.vector_store %arg14[%c11_258, %c0_259], %367 {strides = array<i32>} : memref<16x4xf32, #tpu.memory_space<vmem>>, vector<1x4xf32>,
    %369 = vector.extract_strided_slice %12 {offsets = [96, 0], sizes = [8, 16], strides = [1, 1]} : vector<128x16xf32> to vector<8x16xf32>
    %370 = vector.extract_strided_slice %19 {offsets = [96, 0], sizes = [8, 8], strides = [1, 1]} : vector<128x8xf32> to vector<8x8xf32>
    %cst_260 = arith.constant dense<0.000000e+00> : vector<1x8xf32>
    %371 = tpu.matmul %20, %370, %cst_260 {dimension_numbers = #tpu.dot_dimension_numbers<[1], [1], [0], [0], [0, 0, 1, 0], [], []>} : vector<1x8xf32>, vector<8x8xf32>, vector<1x8xf32> -> vector<1x8xf32>
    %c0_261 = arith.constant 0 : index
    %c0_262 = arith.constant 0 : index
    %372 = vector.load %arg9[%c0_261, %c0_262] : memref<1x1xf32, #tpu.memory_space<vmem>>, vector<1x1xf32>
    %373 = vector.broadcast %372 : vector<1x1xf32> to vector<1x8xf32>
    %374 = arith.addf %371, %373 : vector<1x8xf32>
    %cst_263 = arith.constant dense<0xFF800000> : vector<1xf32>
    %375 = vector.multi_reduction <maximumf>, %374, %cst_263 [1] : vector<1x8xf32> to vector<1xf32>
    %376 = vector.shape_cast %375 : vector<1xf32> to vector<1x1xf32>
    %377 = vector.broadcast %376 : vector<1x1xf32> to vector<1x8xf32>
    %378 = arith.subf %374, %377 : vector<1x8xf32>
    %379 = math.exp %378 : vector<1x8xf32>
    %cst_264 = arith.constant dense<0.000000e+00> : vector<1xf32>
    %380 = vector.multi_reduction <add>, %379, %cst_264 [1] : vector<1x8xf32> to vector<1xf32>
    %381 = vector.shape_cast %380 : vector<1xf32> to vector<1x1xf32>
    %382 = tpu.reciprocal %381 {approx = true} : vector<1x1xf32> -> vector<1x1xf32>
    %383 = vector.broadcast %382 : vector<1x1xf32> to vector<1x8xf32>
    %384 = arith.mulf %379, %383 : vector<1x8xf32>
    %c12 = arith.constant 12 : index
    %c0_265 = arith.constant 0 : index
    %385 = vector.load %arg15[%c12, %c0_265] : memref<16x8xf32, #tpu.memory_space<vmem>>, vector<1x8xf32>
    tpu.vector_store %arg15[%c12, %c0_265], %384 {strides = array<i32>} : memref<16x8xf32, #tpu.memory_space<vmem>>, vector<1x8xf32>,
    %cst_266 = arith.constant dense<0.000000e+00> : vector<1x16xf32>
    %386 = tpu.matmul %384, %369, %cst_266 {dimension_numbers = #tpu.dot_dimension_numbers<[1], [0], [0], [1], [0, 0, 1, 1], [], []>} : vector<1x8xf32>, vector<8x16xf32>, vector<1x16xf32> -> vector<1x16xf32>
    %c0_267 = arith.constant 0 : index
    %c0_268 = arith.constant 0 : index
    %387 = vector.load %arg10[%c0_267, %c0_268] : memref<16x8xf32, #tpu.memory_space<vmem>>, vector<16x8xf32>
    %cst_269 = arith.constant dense<0.000000e+00> : vector<1x8xf32>
    %388 = tpu.matmul %386, %387, %cst_269 {dimension_numbers = #tpu.dot_dimension_numbers<[1], [0], [0], [1], [0, 0, 1, 1], [], []>} : vector<1x16xf32>, vector<16x8xf32>, vector<1x8xf32> -> vector<1x8xf32>
    %c0_270 = arith.constant 0 : index
    %c0_271 = arith.constant 0 : index
    %389 = vector.load %arg11[%c0_270, %c0_271] : memref<1x8xf32, #tpu.memory_space<vmem>>, vector<1x8xf32>
    %390 = arith.addf %388, %389 : vector<1x8xf32>
    %cst_272 = arith.constant 0.000000e+00 : f32
    %391 = vector.broadcast %cst_272 : f32 to vector<1x8xf32>
    %392 = arith.maximumf %390, %391 : vector<1x8xf32>
    %c0_273 = arith.constant 0 : index
    %c0_274 = arith.constant 0 : index
    %393 = vector.load %arg12[%c0_273, %c0_274] : memref<8x4xf32, #tpu.memory_space<vmem>>, vector<8x4xf32>
    %cst_275 = arith.constant dense<0.000000e+00> : vector<1x4xf32>
    %394 = tpu.matmul %392, %393, %cst_275 {dimension_numbers = #tpu.dot_dimension_numbers<[1], [0], [0], [1], [0, 0, 1, 1], [], []>} : vector<1x8xf32>, vector<8x4xf32>, vector<1x4xf32> -> vector<1x4xf32>
    %c0_276 = arith.constant 0 : index
    %c0_277 = arith.constant 0 : index
    %395 = vector.load %arg13[%c0_276, %c0_277] : memref<1x4xf32, #tpu.memory_space<vmem>>, vector<1x4xf32>
    %396 = arith.addf %394, %395 : vector<1x4xf32>
    %c12_278 = arith.constant 12 : index
    %c0_279 = arith.constant 0 : index
    %397 = vector.load %arg14[%c12_278, %c0_279] : memref<16x4xf32, #tpu.memory_space<vmem>>, vector<1x4xf32>
    tpu.vector_store %arg14[%c12_278, %c0_279], %396 {strides = array<i32>} : memref<16x4xf32, #tpu.memory_space<vmem>>, vector<1x4xf32>,
    %398 = vector.extract_strided_slice %12 {offsets = [104, 0], sizes = [8, 16], strides = [1, 1]} : vector<128x16xf32> to vector<8x16xf32>
    %399 = vector.extract_strided_slice %19 {offsets = [104, 0], sizes = [8, 8], strides = [1, 1]} : vector<128x8xf32> to vector<8x8xf32>
    %cst_280 = arith.constant dense<0.000000e+00> : vector<1x8xf32>
    %400 = tpu.matmul %20, %399, %cst_280 {dimension_numbers = #tpu.dot_dimension_numbers<[1], [1], [0], [0], [0, 0, 1, 0], [], []>} : vector<1x8xf32>, vector<8x8xf32>, vector<1x8xf32> -> vector<1x8xf32>
    %c0_281 = arith.constant 0 : index
    %c0_282 = arith.constant 0 : index
    %401 = vector.load %arg9[%c0_281, %c0_282] : memref<1x1xf32, #tpu.memory_space<vmem>>, vector<1x1xf32>
    %402 = vector.broadcast %401 : vector<1x1xf32> to vector<1x8xf32>
    %403 = arith.addf %400, %402 : vector<1x8xf32>
    %cst_283 = arith.constant dense<0xFF800000> : vector<1xf32>
    %404 = vector.multi_reduction <maximumf>, %403, %cst_283 [1] : vector<1x8xf32> to vector<1xf32>
    %405 = vector.shape_cast %404 : vector<1xf32> to vector<1x1xf32>
    %406 = vector.broadcast %405 : vector<1x1xf32> to vector<1x8xf32>
    %407 = arith.subf %403, %406 : vector<1x8xf32>
    %408 = math.exp %407 : vector<1x8xf32>
    %cst_284 = arith.constant dense<0.000000e+00> : vector<1xf32>
    %409 = vector.multi_reduction <add>, %408, %cst_284 [1] : vector<1x8xf32> to vector<1xf32>
    %410 = vector.shape_cast %409 : vector<1xf32> to vector<1x1xf32>
    %411 = tpu.reciprocal %410 {approx = true} : vector<1x1xf32> -> vector<1x1xf32>
    %412 = vector.broadcast %411 : vector<1x1xf32> to vector<1x8xf32>
    %413 = arith.mulf %408, %412 : vector<1x8xf32>
    %c13 = arith.constant 13 : index
    %c0_285 = arith.constant 0 : index
    %414 = vector.load %arg15[%c13, %c0_285] : memref<16x8xf32, #tpu.memory_space<vmem>>, vector<1x8xf32>
    tpu.vector_store %arg15[%c13, %c0_285], %413 {strides = array<i32>} : memref<16x8xf32, #tpu.memory_space<vmem>>, vector<1x8xf32>,
    %cst_286 = arith.constant dense<0.000000e+00> : vector<1x16xf32>
    %415 = tpu.matmul %413, %398, %cst_286 {dimension_numbers = #tpu.dot_dimension_numbers<[1], [0], [0], [1], [0, 0, 1, 1], [], []>} : vector<1x8xf32>, vector<8x16xf32>, vector<1x16xf32> -> vector<1x16xf32>
    %c0_287 = arith.constant 0 : index
    %c0_288 = arith.constant 0 : index
    %416 = vector.load %arg10[%c0_287, %c0_288] : memref<16x8xf32, #tpu.memory_space<vmem>>, vector<16x8xf32>
    %cst_289 = arith.constant dense<0.000000e+00> : vector<1x8xf32>
    %417 = tpu.matmul %415, %416, %cst_289 {dimension_numbers = #tpu.dot_dimension_numbers<[1], [0], [0], [1], [0, 0, 1, 1], [], []>} : vector<1x16xf32>, vector<16x8xf32>, vector<1x8xf32> -> vector<1x8xf32>
    %c0_290 = arith.constant 0 : index
    %c0_291 = arith.constant 0 : index
    %418 = vector.load %arg11[%c0_290, %c0_291] : memref<1x8xf32, #tpu.memory_space<vmem>>, vector<1x8xf32>
    %419 = arith.addf %417, %418 : vector<1x8xf32>
    %cst_292 = arith.constant 0.000000e+00 : f32
    %420 = vector.broadcast %cst_292 : f32 to vector<1x8xf32>
    %421 = arith.maximumf %419, %420 : vector<1x8xf32>
    %c0_293 = arith.constant 0 : index
    %c0_294 = arith.constant 0 : index
    %422 = vector.load %arg12[%c0_293, %c0_294] : memref<8x4xf32, #tpu.memory_space<vmem>>, vector<8x4xf32>
    %cst_295 = arith.constant dense<0.000000e+00> : vector<1x4xf32>
    %423 = tpu.matmul %421, %422, %cst_295 {dimension_numbers = #tpu.dot_dimension_numbers<[1], [0], [0], [1], [0, 0, 1, 1], [], []>} : vector<1x8xf32>, vector<8x4xf32>, vector<1x4xf32> -> vector<1x4xf32>
    %c0_296 = arith.constant 0 : index
    %c0_297 = arith.constant 0 : index
    %424 = vector.load %arg13[%c0_296, %c0_297] : memref<1x4xf32, #tpu.memory_space<vmem>>, vector<1x4xf32>
    %425 = arith.addf %423, %424 : vector<1x4xf32>
    %c13_298 = arith.constant 13 : index
    %c0_299 = arith.constant 0 : index
    %426 = vector.load %arg14[%c13_298, %c0_299] : memref<16x4xf32, #tpu.memory_space<vmem>>, vector<1x4xf32>
    tpu.vector_store %arg14[%c13_298, %c0_299], %425 {strides = array<i32>} : memref<16x4xf32, #tpu.memory_space<vmem>>, vector<1x4xf32>,
    %427 = vector.extract_strided_slice %12 {offsets = [112, 0], sizes = [8, 16], strides = [1, 1]} : vector<128x16xf32> to vector<8x16xf32>
    %428 = vector.extract_strided_slice %19 {offsets = [112, 0], sizes = [8, 8], strides = [1, 1]} : vector<128x8xf32> to vector<8x8xf32>
    %cst_300 = arith.constant dense<0.000000e+00> : vector<1x8xf32>
    %429 = tpu.matmul %20, %428, %cst_300 {dimension_numbers = #tpu.dot_dimension_numbers<[1], [1], [0], [0], [0, 0, 1, 0], [], []>} : vector<1x8xf32>, vector<8x8xf32>, vector<1x8xf32> -> vector<1x8xf32>
    %c0_301 = arith.constant 0 : index
    %c0_302 = arith.constant 0 : index
    %430 = vector.load %arg9[%c0_301, %c0_302] : memref<1x1xf32, #tpu.memory_space<vmem>>, vector<1x1xf32>
    %431 = vector.broadcast %430 : vector<1x1xf32> to vector<1x8xf32>
    %432 = arith.addf %429, %431 : vector<1x8xf32>
    %cst_303 = arith.constant dense<0xFF800000> : vector<1xf32>
    %433 = vector.multi_reduction <maximumf>, %432, %cst_303 [1] : vector<1x8xf32> to vector<1xf32>
    %434 = vector.shape_cast %433 : vector<1xf32> to vector<1x1xf32>
    %435 = vector.broadcast %434 : vector<1x1xf32> to vector<1x8xf32>
    %436 = arith.subf %432, %435 : vector<1x8xf32>
    %437 = math.exp %436 : vector<1x8xf32>
    %cst_304 = arith.constant dense<0.000000e+00> : vector<1xf32>
    %438 = vector.multi_reduction <add>, %437, %cst_304 [1] : vector<1x8xf32> to vector<1xf32>
    %439 = vector.shape_cast %438 : vector<1xf32> to vector<1x1xf32>
    %440 = tpu.reciprocal %439 {approx = true} : vector<1x1xf32> -> vector<1x1xf32>
    %441 = vector.broadcast %440 : vector<1x1xf32> to vector<1x8xf32>
    %442 = arith.mulf %437, %441 : vector<1x8xf32>
    %c14 = arith.constant 14 : index
    %c0_305 = arith.constant 0 : index
    %443 = vector.load %arg15[%c14, %c0_305] : memref<16x8xf32, #tpu.memory_space<vmem>>, vector<1x8xf32>
    tpu.vector_store %arg15[%c14, %c0_305], %442 {strides = array<i32>} : memref<16x8xf32, #tpu.memory_space<vmem>>, vector<1x8xf32>,
    %cst_306 = arith.constant dense<0.000000e+00> : vector<1x16xf32>
    %444 = tpu.matmul %442, %427, %cst_306 {dimension_numbers = #tpu.dot_dimension_numbers<[1], [0], [0], [1], [0, 0, 1, 1], [], []>} : vector<1x8xf32>, vector<8x16xf32>, vector<1x16xf32> -> vector<1x16xf32>
    %c0_307 = arith.constant 0 : index
    %c0_308 = arith.constant 0 : index
    %445 = vector.load %arg10[%c0_307, %c0_308] : memref<16x8xf32, #tpu.memory_space<vmem>>, vector<16x8xf32>
    %cst_309 = arith.constant dense<0.000000e+00> : vector<1x8xf32>
    %446 = tpu.matmul %444, %445, %cst_309 {dimension_numbers = #tpu.dot_dimension_numbers<[1], [0], [0], [1], [0, 0, 1, 1], [], []>} : vector<1x16xf32>, vector<16x8xf32>, vector<1x8xf32> -> vector<1x8xf32>
    %c0_310 = arith.constant 0 : index
    %c0_311 = arith.constant 0 : index
    %447 = vector.load %arg11[%c0_310, %c0_311] : memref<1x8xf32, #tpu.memory_space<vmem>>, vector<1x8xf32>
    %448 = arith.addf %446, %447 : vector<1x8xf32>
    %cst_312 = arith.constant 0.000000e+00 : f32
    %449 = vector.broadcast %cst_312 : f32 to vector<1x8xf32>
    %450 = arith.maximumf %448, %449 : vector<1x8xf32>
    %c0_313 = arith.constant 0 : index
    %c0_314 = arith.constant 0 : index
    %451 = vector.load %arg12[%c0_313, %c0_314] : memref<8x4xf32, #tpu.memory_space<vmem>>, vector<8x4xf32>
    %cst_315 = arith.constant dense<0.000000e+00> : vector<1x4xf32>
    %452 = tpu.matmul %450, %451, %cst_315 {dimension_numbers = #tpu.dot_dimension_numbers<[1], [0], [0], [1], [0, 0, 1, 1], [], []>} : vector<1x8xf32>, vector<8x4xf32>, vector<1x4xf32> -> vector<1x4xf32>
    %c0_316 = arith.constant 0 : index
    %c0_317 = arith.constant 0 : index
    %453 = vector.load %arg13[%c0_316, %c0_317] : memref<1x4xf32, #tpu.memory_space<vmem>>, vector<1x4xf32>
    %454 = arith.addf %452, %453 : vector<1x4xf32>
    %c14_318 = arith.constant 14 : index
    %c0_319 = arith.constant 0 : index
    %455 = vector.load %arg14[%c14_318, %c0_319] : memref<16x4xf32, #tpu.memory_space<vmem>>, vector<1x4xf32>
    tpu.vector_store %arg14[%c14_318, %c0_319], %454 {strides = array<i32>} : memref<16x4xf32, #tpu.memory_space<vmem>>, vector<1x4xf32>,
    %456 = vector.extract_strided_slice %12 {offsets = [120, 0], sizes = [8, 16], strides = [1, 1]} : vector<128x16xf32> to vector<8x16xf32>
    %457 = vector.extract_strided_slice %19 {offsets = [120, 0], sizes = [8, 8], strides = [1, 1]} : vector<128x8xf32> to vector<8x8xf32>
    %cst_320 = arith.constant dense<0.000000e+00> : vector<1x8xf32>
    %458 = tpu.matmul %20, %457, %cst_320 {dimension_numbers = #tpu.dot_dimension_numbers<[1], [1], [0], [0], [0, 0, 1, 0], [], []>} : vector<1x8xf32>, vector<8x8xf32>, vector<1x8xf32> -> vector<1x8xf32>
    %c0_321 = arith.constant 0 : index
    %c0_322 = arith.constant 0 : index
    %459 = vector.load %arg9[%c0_321, %c0_322] : memref<1x1xf32, #tpu.memory_space<vmem>>, vector<1x1xf32>
    %460 = vector.broadcast %459 : vector<1x1xf32> to vector<1x8xf32>
    %461 = arith.addf %458, %460 : vector<1x8xf32>
    %cst_323 = arith.constant dense<0xFF800000> : vector<1xf32>
    %462 = vector.multi_reduction <maximumf>, %461, %cst_323 [1] : vector<1x8xf32> to vector<1xf32>
    %463 = vector.shape_cast %462 : vector<1xf32> to vector<1x1xf32>
    %464 = vector.broadcast %463 : vector<1x1xf32> to vector<1x8xf32>
    %465 = arith.subf %461, %464 : vector<1x8xf32>
    %466 = math.exp %465 : vector<1x8xf32>
    %cst_324 = arith.constant dense<0.000000e+00> : vector<1xf32>
    %467 = vector.multi_reduction <add>, %466, %cst_324 [1] : vector<1x8xf32> to vector<1xf32>
    %468 = vector.shape_cast %467 : vector<1xf32> to vector<1x1xf32>
    %469 = tpu.reciprocal %468 {approx = true} : vector<1x1xf32> -> vector<1x1xf32>
    %470 = vector.broadcast %469 : vector<1x1xf32> to vector<1x8xf32>
    %471 = arith.mulf %466, %470 : vector<1x8xf32>
    %c15 = arith.constant 15 : index
    %c0_325 = arith.constant 0 : index
    %472 = vector.load %arg15[%c15, %c0_325] : memref<16x8xf32, #tpu.memory_space<vmem>>, vector<1x8xf32>
    tpu.vector_store %arg15[%c15, %c0_325], %471 {strides = array<i32>} : memref<16x8xf32, #tpu.memory_space<vmem>>, vector<1x8xf32>,
    %cst_326 = arith.constant dense<0.000000e+00> : vector<1x16xf32>
    %473 = tpu.matmul %471, %456, %cst_326 {dimension_numbers = #tpu.dot_dimension_numbers<[1], [0], [0], [1], [0, 0, 1, 1], [], []>} : vector<1x8xf32>, vector<8x16xf32>, vector<1x16xf32> -> vector<1x16xf32>
    %c0_327 = arith.constant 0 : index
    %c0_328 = arith.constant 0 : index
    %474 = vector.load %arg10[%c0_327, %c0_328] : memref<16x8xf32, #tpu.memory_space<vmem>>, vector<16x8xf32>
    %cst_329 = arith.constant dense<0.000000e+00> : vector<1x8xf32>
    %475 = tpu.matmul %473, %474, %cst_329 {dimension_numbers = #tpu.dot_dimension_numbers<[1], [0], [0], [1], [0, 0, 1, 1], [], []>} : vector<1x16xf32>, vector<16x8xf32>, vector<1x8xf32> -> vector<1x8xf32>
    %c0_330 = arith.constant 0 : index
    %c0_331 = arith.constant 0 : index
    %476 = vector.load %arg11[%c0_330, %c0_331] : memref<1x8xf32, #tpu.memory_space<vmem>>, vector<1x8xf32>
    %477 = arith.addf %475, %476 : vector<1x8xf32>
    %cst_332 = arith.constant 0.000000e+00 : f32
    %478 = vector.broadcast %cst_332 : f32 to vector<1x8xf32>
    %479 = arith.maximumf %477, %478 : vector<1x8xf32>
    %c0_333 = arith.constant 0 : index
    %c0_334 = arith.constant 0 : index
    %480 = vector.load %arg12[%c0_333, %c0_334] : memref<8x4xf32, #tpu.memory_space<vmem>>, vector<8x4xf32>
    %cst_335 = arith.constant dense<0.000000e+00> : vector<1x4xf32>
    %481 = tpu.matmul %479, %480, %cst_335 {dimension_numbers = #tpu.dot_dimension_numbers<[1], [0], [0], [1], [0, 0, 1, 1], [], []>} : vector<1x8xf32>, vector<8x4xf32>, vector<1x4xf32> -> vector<1x4xf32>
    %c0_336 = arith.constant 0 : index
    %c0_337 = arith.constant 0 : index
    %482 = vector.load %arg13[%c0_336, %c0_337] : memref<1x4xf32, #tpu.memory_space<vmem>>, vector<1x4xf32>
    %483 = arith.addf %481, %482 : vector<1x4xf32>
    %c15_338 = arith.constant 15 : index
    %c0_339 = arith.constant 0 : index
    %484 = vector.load %arg14[%c15_338, %c0_339] : memref<16x4xf32, #tpu.memory_space<vmem>>, vector<1x4xf32>
    tpu.vector_store %arg14[%c15_338, %c0_339], %483 {strides = array<i32>} : memref<16x4xf32, #tpu.memory_space<vmem>>, vector<1x4xf32>,
    return
  }
  func.func @transform_0(%arg0: i32) -> (i32, i32) {
    %c0_i32 = arith.constant 0 : i32
    %c0_i32_0 = arith.constant 0 : i32
    return %arg0, %c0_i32 : i32, i32
  }
  func.func @transform_1(%arg0: i32) -> (i32, i32) {
    %c0_i32 = arith.constant 0 : i32
    %c0_i32_0 = arith.constant 0 : i32
    %c0_i32_1 = arith.constant 0 : i32
    return %c0_i32, %c0_i32_0 : i32, i32
  }
  func.func @transform_2(%arg0: i32) -> (i32, i32) {
    %c0_i32 = arith.constant 0 : i32
    %c0_i32_0 = arith.constant 0 : i32
    %c0_i32_1 = arith.constant 0 : i32
    return %c0_i32, %c0_i32_0 : i32, i32
  }
  func.func @transform_3(%arg0: i32) -> (i32, i32) {
    %c0_i32 = arith.constant 0 : i32
    %c0_i32_0 = arith.constant 0 : i32
    %c0_i32_1 = arith.constant 0 : i32
    return %c0_i32, %c0_i32_0 : i32, i32
  }
  func.func @transform_4(%arg0: i32) -> (i32, i32) {
    %c0_i32 = arith.constant 0 : i32
    %c0_i32_0 = arith.constant 0 : i32
    %c0_i32_1 = arith.constant 0 : i32
    return %c0_i32, %c0_i32_0 : i32, i32
  }
  func.func @transform_5(%arg0: i32) -> (i32, i32) {
    %c0_i32 = arith.constant 0 : i32
    %c0_i32_0 = arith.constant 0 : i32
    %c0_i32_1 = arith.constant 0 : i32
    return %c0_i32, %c0_i32_0 : i32, i32
  }
  func.func @transform_6(%arg0: i32) -> (i32, i32) {
    %c0_i32 = arith.constant 0 : i32
    %c0_i32_0 = arith.constant 0 : i32
    %c0_i32_1 = arith.constant 0 : i32
    return %c0_i32, %c0_i32_0 : i32, i32
  }
  func.func @transform_7(%arg0: i32) -> (i32, i32) {
    %c0_i32 = arith.constant 0 : i32
    %c0_i32_0 = arith.constant 0 : i32
    %c0_i32_1 = arith.constant 0 : i32
    return %c0_i32, %c0_i32_0 : i32, i32
  }
  func.func @transform_8(%arg0: i32) -> (i32, i32) {
    %c0_i32 = arith.constant 0 : i32
    %c0_i32_0 = arith.constant 0 : i32
    %c0_i32_1 = arith.constant 0 : i32
    return %c0_i32, %c0_i32_0 : i32, i32
  }
  func.func @transform_9(%arg0: i32) -> (i32, i32) {
    %c0_i32 = arith.constant 0 : i32
    %c0_i32_0 = arith.constant 0 : i32
    %c0_i32_1 = arith.constant 0 : i32
    return %c0_i32, %c0_i32_0 : i32, i32
  }
  func.func @transform_10(%arg0: i32) -> (i32, i32) {
    %c0_i32 = arith.constant 0 : i32
    %c0_i32_0 = arith.constant 0 : i32
    %c0_i32_1 = arith.constant 0 : i32
    return %c0_i32, %c0_i32_0 : i32, i32
  }
  func.func @transform_11(%arg0: i32) -> (i32, i32) {
    %c0_i32 = arith.constant 0 : i32
    %c0_i32_0 = arith.constant 0 : i32
    %c0_i32_1 = arith.constant 0 : i32
    return %c0_i32, %c0_i32_0 : i32, i32
  }
  func.func @transform_12(%arg0: i32) -> (i32, i32) {
    %c0_i32 = arith.constant 0 : i32
    %c0_i32_0 = arith.constant 0 : i32
    %c0_i32_1 = arith.constant 0 : i32
    return %c0_i32, %c0_i32_0 : i32, i32
  }
  func.func @transform_13(%arg0: i32) -> (i32, i32) {
    %c0_i32 = arith.constant 0 : i32
    %c0_i32_0 = arith.constant 0 : i32
    return %arg0, %c0_i32 : i32, i32
  }
  func.func @transform_14(%arg0: i32) -> (i32, i32) {
    %c0_i32 = arith.constant 0 : i32
    %c0_i32_0 = arith.constant 0 : i32
    return %arg0, %c0_i32 : i32, i32
  }
}

</mosaic_0001>

<llo_original>
// kernel: tpu_custom_call.1
$region0: #{tpu_custom_call.1}
  #allocation0 [shape = 'u32[]', space=smem, size = 0x4, offset = 0x4, fixed_abs, tag = 'smem constant byte address 0x4 - core index']
  #allocation1 [shape = 'u32[144,128]{1,0:T(1,128)}', space=vmem, size = 0x12000, scoped, tag = 'internal scratch']
  #allocation2 [shape = 'f32[1,1]{1,0:T(1,128)S(1)}', space=vmem, size = 0x200, scoped, tag = 'scoped memory for tpu_custom_call.1']
  %s0 = inlined_call_operand.vmem [shape: bf16[256,784], index: 0, kind: input, shape index: {}]
  %s1 = inlined_call_operand.vmem [shape: bf16[784,128], index: 1, kind: input, shape index: {}]
  %s2 = inlined_call_operand.vmem [shape: f32[1,128], index: 2, kind: input, shape index: {}]
  %s3 = inlined_call_operand.vmem [shape: f32[128,16], index: 3, kind: input, shape index: {}]
  %s4 = inlined_call_operand.vmem [shape: f32[1,16], index: 4, kind: input, shape index: {}]
  %s5 = inlined_call_operand.vmem [shape: f32[16,8], index: 5, kind: input, shape index: {}]
  %s6 = inlined_call_operand.vmem [shape: f32[1,8], index: 6, kind: input, shape index: {}]
  %s7 = inlined_call_operand.vmem [shape: f32[1,8], index: 7, kind: input, shape index: {}]
  %s8 = inlined_call_operand.<no memory space> [shape: f32[1,1], index: 8, kind: input, shape index: {}]
  %s9 = inlined_call_operand.vmem [shape: f32[16,8], index: 9, kind: input, shape index: {}]
  %s10 = inlined_call_operand.vmem [shape: f32[1,8], index: 10, kind: input, shape index: {}]
  %s11 = inlined_call_operand.vmem [shape: f32[8,4], index: 11, kind: input, shape index: {}]
  %s12 = inlined_call_operand.vmem [shape: f32[1,4], index: 12, kind: input, shape index: {}]
  %s13 = inlined_call_operand.vmem [shape: f32[32,4], index: 13, kind: output, shape index: {0}]
  %s14 = inlined_call_operand.vmem [shape: f32[32,8], index: 14, kind: output, shape index: {1}]
  %15 = xla_tuple %s13, %s14
  %s16 = sld [smem:[#allocation0]]
  $region93: #{tpu_custom_call.1} parent=0
    _
  %s18 = ssub.s32 1, %s16
  %s19 = scalar_select 0, %s18, %s16
  %v20 = vstv %s8
  %21 = vst [vmem:[#allocation2] sm:$0x1] %v20
  loop: start=0, step=1, limit=4
  $region2: #{tpu_custom_call.1} parent=0 // loop_pre_header
    _
  $region3: #{tpu_custom_call.1} parent=0 // loop_header
    %s23 = sphi 0, %s27
    %p24 = scmp.ge.s32.totalorder %s23, 4
    %s33 = sphi 0, %s35
    %s36 = sphi 0, %s33
    %s37 = sphi 0, %s36
    %s53 = sphi 0, %s37
    %s57 = sphi 0, %s57
    %s59 = sphi 0, %s57
    %s60 = sphi 0, %s59
    %s74 = sphi 0, %s60
    %s78 = sphi 0, %s78
    %s80 = sphi 0, %s78
    %s81 = sphi 0, %s80
    %s95 = sphi 0, %s81
    %s99 = sphi 0, %s99
    %s101 = sphi 0, %s99
    %s102 = sphi 0, %s101
    %s116 = sphi 0, %s102
    %s120 = sphi 0, %s120
    %s122 = sphi 0, %s120
    %s123 = sphi 0, %s122
    %s137 = sphi 0, %s123
    %s141 = sphi 0, %s141
    %s143 = sphi 0, %s141
    %s144 = sphi 0, %s143
    %s158 = sphi 0, %s144
    %s162 = sphi 0, %s162
    %s164 = sphi 0, %s162
    %s165 = sphi 0, %s164
    %s179 = sphi 0, %s165
    %s183 = sphi 0, %s183
    %s185 = sphi 0, %s183
    %s186 = sphi 0, %s185
    %s200 = sphi 0, %s186
    %s204 = sphi 0, %s204
    %s206 = sphi 0, %s204
    %s207 = sphi 0, %s206
    %s221 = sphi 0, %s207
    %s225 = sphi 0, %s225
    %s227 = sphi 0, %s225
    %s228 = sphi 0, %s227
    %s242 = sphi 0, %s228
    %s246 = sphi 0, %s246
    %s248 = sphi 0, %s246
    %s249 = sphi 0, %s248
    %s263 = sphi 0, %s249
    %s267 = sphi 0, %s267
    %s269 = sphi 0, %s267
    %s270 = sphi 0, %s269
    %s284 = sphi 0, %s270
    %s288 = sphi 0, %s288
    %s290 = sphi 0, %s288
    %s291 = sphi 0, %s290
    %s305 = sphi 0, %s291
    %s311 = sphi 0, %s313
    %s314 = sphi 0, %s311
    %s315 = sphi 0, %s314
    %s331 = sphi 0, %s315
    %s337 = sphi 0, %s339
    %s340 = sphi 0, %s337
    %s341 = sphi 0, %s340
    %s357 = sphi 0, %s341
  $region4: #{tpu_custom_call.1} parent=0 // loop_header_branch
    %26 = sbr.rel (%p24) target = $region8
  $region5: #{tpu_custom_call.1} parent=0 // loop_body
    %s28 = ssub.s32 %s23, 1
    %s29 = ssub.s32 %s23, 2
    %s30 = sadd.s32 %s23, 1
    %s31 = ssub.s32 %s23, %s30
    %p32 = scmp.eq.s32.totalorder %s31, 0
    %s34 = sadd.s32 %s33, 1
    %s35 = scalar_select %p32, %s33, %s34
    %p38 = pneg %p32
    %p39 = scmp.eq.s32.totalorder %s23, 1
    %p40 = por %p38, %p39
    %p41 = scmp.ne.s32.totalorder %s33, %s36
    %p42 = scmp.eq.s32.totalorder %s23, 0
    %p43 = por %p41, %p42
    %p44 = scmp.ne.s32.totalorder %s33, %s36
    %p45 = scmp.eq.s32.totalorder %s28, 1
    %p46 = por %p44, %p45
    %p47 = scmp.ne.s32.totalorder %s36, %s37
    %p48 = scmp.eq.s32.totalorder %s28, 0
    %p49 = por %p47, %p48
    %p50 = scmp.ne.s32.totalorder %s36, %s37
    %p51 = scmp.eq.s32.totalorder %s29, 1
    %p52 = por %p50, %p51
    %p54 = scmp.ne.s32.totalorder %s37, %s53
    %p55 = scmp.eq.s32.totalorder %s29, 0
    %p56 = por %p54, %p55
    %s58 = sadd.s32 %s57, 1
    %p61 = scmp.eq.s32.totalorder %s23, 1
    %p62 = scmp.ne.s32.totalorder %s57, %s59
    %p63 = scmp.eq.s32.totalorder %s23, 0
    %p64 = por %p62, %p63
    %p65 = scmp.ne.s32.totalorder %s57, %s59
    %p66 = scmp.eq.s32.totalorder %s28, 1
    %p67 = por %p65, %p66
    %p68 = scmp.ne.s32.totalorder %s59, %s60
    %p69 = scmp.eq.s32.totalorder %s28, 0
    %p70 = por %p68, %p69
    %p71 = scmp.ne.s32.totalorder %s59, %s60
    %p72 = scmp.eq.s32.totalorder %s29, 1
    %p73 = por %p71, %p72
    %p75 = scmp.ne.s32.totalorder %s60, %s74
    %p76 = scmp.eq.s32.totalorder %s29, 0
    %p77 = por %p75, %p76
    %s79 = sadd.s32 %s78, 1
    %p82 = scmp.eq.s32.totalorder %s23, 1
    %p83 = scmp.ne.s32.totalorder %s78, %s80
    %p84 = scmp.eq.s32.totalorder %s23, 0
    %p85 = por %p83, %p84
    %p86 = scmp.ne.s32.totalorder %s78, %s80
    %p87 = scmp.eq.s32.totalorder %s28, 1
    %p88 = por %p86, %p87
    %p89 = scmp.ne.s32.totalorder %s80, %s81
    %p90 = scmp.eq.s32.totalorder %s28, 0
    %p91 = por %p89, %p90
    %p92 = scmp.ne.s32.totalorder %s80, %s81
    %p93 = scmp.eq.s32.totalorder %s29, 1
    %p94 = por %p92, %p93
    %p96 = scmp.ne.s32.totalorder %s81, %s95
    %p97 = scmp.eq.s32.totalorder %s29, 0
    %p98 = por %p96, %p97
    %s100 = sadd.s32 %s99, 1
    %p103 = scmp.eq.s32.totalorder %s23, 1
    %p104 = scmp.ne.s32.totalorder %s99, %s101
    %p105 = scmp.eq.s32.totalorder %s23, 0
    %p106 = por %p104, %p105
    %p107 = scmp.ne.s32.totalorder %s99, %s101
    %p108 = scmp.eq.s32.totalorder %s28, 1
    %p109 = por %p107, %p108
    %p110 = scmp.ne.s32.totalorder %s101, %s102
    %p111 = scmp.eq.s32.totalorder %s28, 0
    %p112 = por %p110, %p111
    %p113 = scmp.ne.s32.totalorder %s101, %s102
    %p114 = scmp.eq.s32.totalorder %s29, 1
    %p115 = por %p113, %p114
    %p117 = scmp.ne.s32.totalorder %s102, %s116
    %p118 = scmp.eq.s32.totalorder %s29, 0
    %p119 = por %p117, %p118
    %s121 = sadd.s32 %s120, 1
    %p124 = scmp.eq.s32.totalorder %s23, 1
    %p125 = scmp.ne.s32.totalorder %s120, %s122
    %p126 = scmp.eq.s32.totalorder %s23, 0
    %p127 = por %p125, %p126
    %p128 = scmp.ne.s32.totalorder %s120, %s122
    %p129 = scmp.eq.s32.totalorder %s28, 1
    %p130 = por %p128, %p129
    %p131 = scmp.ne.s32.totalorder %s122, %s123
    %p132 = scmp.eq.s32.totalorder %s28, 0
    %p133 = por %p131, %p132
    %p134 = scmp.ne.s32.totalorder %s122, %s123
    %p135 = scmp.eq.s32.totalorder %s29, 1
    %p136 = por %p134, %p135
    %p138 = scmp.ne.s32.totalorder %s123, %s137
    %p139 = scmp.eq.s32.totalorder %s29, 0
    %p140 = por %p138, %p139
    %s142 = sadd.s32 %s141, 1
    %p145 = scmp.eq.s32.totalorder %s23, 1
    %p146 = scmp.ne.s32.totalorder %s141, %s143
    %p147 = scmp.eq.s32.totalorder %s23, 0
    %p148 = por %p146, %p147
    %p149 = scmp.ne.s32.totalorder %s141, %s143
    %p150 = scmp.eq.s32.totalorder %s28, 1
    %p151 = por %p149, %p150
    %p152 = scmp.ne.s32.totalorder %s143, %s144
    %p153 = scmp.eq.s32.totalorder %s28, 0
    %p154 = por %p152, %p153
    %p155 = scmp.ne.s32.totalorder %s143, %s144
    %p156 = scmp.eq.s32.totalorder %s29, 1
    %p157 = por %p155, %p156
    %p159 = scmp.ne.s32.totalorder %s144, %s158
    %p160 = scmp.eq.s32.totalorder %s29, 0
    %p161 = por %p159, %p160
    %s163 = sadd.s32 %s162, 1
    %p166 = scmp.eq.s32.totalorder %s23, 1
    %p167 = scmp.ne.s32.totalorder %s162, %s164
    %p168 = scmp.eq.s32.totalorder %s23, 0
    %p169 = por %p167, %p168
    %p170 = scmp.ne.s32.totalorder %s162, %s164
    %p171 = scmp.eq.s32.totalorder %s28, 1
    %p172 = por %p170, %p171
    %p173 = scmp.ne.s32.totalorder %s164, %s165
    %p174 = scmp.eq.s32.totalorder %s28, 0
    %p175 = por %p173, %p174
    %p176 = scmp.ne.s32.totalorder %s164, %s165
    %p177 = scmp.eq.s32.totalorder %s29, 1
    %p178 = por %p176, %p177
    %p180 = scmp.ne.s32.totalorder %s165, %s179
    %p181 = scmp.eq.s32.totalorder %s29, 0
    %p182 = por %p180, %p181
    %s184 = sadd.s32 %s183, 1
    %p187 = scmp.eq.s32.totalorder %s23, 1
    %p188 = scmp.ne.s32.totalorder %s183, %s185
    %p189 = scmp.eq.s32.totalorder %s23, 0
    %p190 = por %p188, %p189
    %p191 = scmp.ne.s32.totalorder %s183, %s185
    %p192 = scmp.eq.s32.totalorder %s28, 1
    %p193 = por %p191, %p192
    %p194 = scmp.ne.s32.totalorder %s185, %s186
    %p195 = scmp.eq.s32.totalorder %s28, 0
    %p196 = por %p194, %p195
    %p197 = scmp.ne.s32.totalorder %s185, %s186
    %p198 = scmp.eq.s32.totalorder %s29, 1
    %p199 = por %p197, %p198
    %p201 = scmp.ne.s32.totalorder %s186, %s200
    %p202 = scmp.eq.s32.totalorder %s29, 0
    %p203 = por %p201, %p202
    %s205 = sadd.s32 %s204, 1
    %p208 = scmp.eq.s32.totalorder %s23, 1
    %p209 = scmp.ne.s32.totalorder %s204, %s206
    %p210 = scmp.eq.s32.totalorder %s23, 0
    %p211 = por %p209, %p210
    %p212 = scmp.ne.s32.totalorder %s204, %s206
    %p213 = scmp.eq.s32.totalorder %s28, 1
    %p214 = por %p212, %p213
    %p215 = scmp.ne.s32.totalorder %s206, %s207
    %p216 = scmp.eq.s32.totalorder %s28, 0
    %p217 = por %p215, %p216
    %p218 = scmp.ne.s32.totalorder %s206, %s207
    %p219 = scmp.eq.s32.totalorder %s29, 1
    %p220 = por %p218, %p219
    %p222 = scmp.ne.s32.totalorder %s207, %s221
    %p223 = scmp.eq.s32.totalorder %s29, 0
    %p224 = por %p222, %p223
    %s226 = sadd.s32 %s225, 1
    %p229 = scmp.eq.s32.totalorder %s23, 1
    %p230 = scmp.ne.s32.totalorder %s225, %s227
    %p231 = scmp.eq.s32.totalorder %s23, 0
    %p232 = por %p230, %p231
    %p233 = scmp.ne.s32.totalorder %s225, %s227
    %p234 = scmp.eq.s32.totalorder %s28, 1
    %p235 = por %p233, %p234
    %p236 = scmp.ne.s32.totalorder %s227, %s228
    %p237 = scmp.eq.s32.totalorder %s28, 0
    %p238 = por %p236, %p237
    %p239 = scmp.ne.s32.totalorder %s227, %s228
    %p240 = scmp.eq.s32.totalorder %s29, 1
    %p241 = por %p239, %p240
    %p243 = scmp.ne.s32.totalorder %s228, %s242
    %p244 = scmp.eq.s32.totalorder %s29, 0
    %p245 = por %p243, %p244
    %s247 = sadd.s32 %s246, 1
    %p250 = scmp.eq.s32.totalorder %s23, 1
    %p251 = scmp.ne.s32.totalorder %s246, %s248
    %p252 = scmp.eq.s32.totalorder %s23, 0
    %p253 = por %p251, %p252
    %p254 = scmp.ne.s32.totalorder %s246, %s248
    %p255 = scmp.eq.s32.totalorder %s28, 1
    %p256 = por %p254, %p255
    %p257 = scmp.ne.s32.totalorder %s248, %s249
    %p258 = scmp.eq.s32.totalorder %s28, 0
    %p259 = por %p257, %p258
    %p260 = scmp.ne.s32.totalorder %s248, %s249
    %p261 = scmp.eq.s32.totalorder %s29, 1
    %p262 = por %p260, %p261
    %p264 = scmp.ne.s32.totalorder %s249, %s263
    %p265 = scmp.eq.s32.totalorder %s29, 0
    %p266 = por %p264, %p265
    %s268 = sadd.s32 %s267, 1
    %p271 = scmp.eq.s32.totalorder %s23, 1
    %p272 = scmp.ne.s32.totalorder %s267, %s269
    %p273 = scmp.eq.s32.totalorder %s23, 0
    %p274 = por %p272, %p273
    %p275 = scmp.ne.s32.totalorder %s267, %s269
    %p276 = scmp.eq.s32.totalorder %s28, 1
    %p277 = por %p275, %p276
    %p278 = scmp.ne.s32.totalorder %s269, %s270
    %p279 = scmp.eq.s32.totalorder %s28, 0
    %p280 = por %p278, %p279
    %p281 = scmp.ne.s32.totalorder %s269, %s270
    %p282 = scmp.eq.s32.totalorder %s29, 1
    %p283 = por %p281, %p282
    %p285 = scmp.ne.s32.totalorder %s270, %s284
    %p286 = scmp.eq.s32.totalorder %s29, 0
    %p287 = por %p285, %p286
    %s289 = sadd.s32 %s288, 1
    %p292 = scmp.eq.s32.totalorder %s23, 1
    %p293 = scmp.ne.s32.totalorder %s288, %s290
    %p294 = scmp.eq.s32.totalorder %s23, 0
    %p295 = por %p293, %p294
    %p296 = scmp.ne.s32.totalorder %s288, %s290
    %p297 = scmp.eq.s32.totalorder %s28, 1
    %p298 = por %p296, %p297
    %p299 = scmp.ne.s32.totalorder %s290, %s291
    %p300 = scmp.eq.s32.totalorder %s28, 0
    %p301 = por %p299, %p300
    %p302 = scmp.ne.s32.totalorder %s290, %s291
    %p303 = scmp.eq.s32.totalorder %s29, 1
    %p304 = por %p302, %p303
    %p306 = scmp.ne.s32.totalorder %s291, %s305
    %p307 = scmp.eq.s32.totalorder %s29, 0
    %p308 = por %p306, %p307
    %s309 = ssub.s32 %s23, %s30
    %p310 = scmp.eq.s32.totalorder %s309, 0
    %s312 = sadd.s32 %s311, 1
    %s313 = scalar_select %p310, %s311, %s312
    %p316 = pneg %p310
    %p317 = scmp.eq.s32.totalorder %s23, 1
    %p318 = por %p316, %p317
    %p319 = scmp.ne.s32.totalorder %s311, %s314
    %p320 = scmp.eq.s32.totalorder %s23, 0
    %p321 = por %p319, %p320
    %p322 = scmp.ne.s32.totalorder %s311, %s314
    %p323 = scmp.eq.s32.totalorder %s28, 1
    %p324 = por %p322, %p323
    %p325 = scmp.ne.s32.totalorder %s314, %s315
    %p326 = scmp.eq.s32.totalorder %s28, 0
    %p327 = por %p325, %p326
    %p328 = scmp.ne.s32.totalorder %s314, %s315
    %p329 = scmp.eq.s32.totalorder %s29, 1
    %p330 = por %p328, %p329
    %p332 = scmp.ne.s32.totalorder %s315, %s331
    %p333 = scmp.eq.s32.totalorder %s29, 0
    %p334 = por %p332, %p333
    %s335 = ssub.s32 %s23, %s30
    %p336 = scmp.eq.s32.totalorder %s335, 0
    %s338 = sadd.s32 %s337, 1
    %s339 = scalar_select %p336, %s337, %s338
    %p342 = pneg %p336
    %p343 = scmp.eq.s32.totalorder %s23, 1
    %p344 = por %p342, %p343
    %p345 = scmp.ne.s32.totalorder %s337, %s340
    %p346 = scmp.eq.s32.totalorder %s23, 0
    %p347 = por %p345, %p346
    %p348 = scmp.ne.s32.totalorder %s337, %s340
    %p349 = scmp.eq.s32.totalorder %s28, 1
    %p350 = por %p348, %p349
    %p351 = scmp.ne.s32.totalorder %s340, %s341
    %p352 = scmp.eq.s32.totalorder %s28, 0
    %p353 = por %p351, %p352
    %p354 = scmp.ne.s32.totalorder %s340, %s341
    %p355 = scmp.eq.s32.totalorder %s29, 1
    %p356 = por %p354, %p355
    %p358 = scmp.ne.s32.totalorder %s341, %s357
    %p359 = scmp.eq.s32.totalorder %s29, 0
    %p360 = por %p358, %p359
    %p361 = scmp.le.s32.totalorder 1, %s23
    %p362 = scmp.lt.s32.totalorder %s23, 3
    %p363 = pnand %p361, %p362
    %p364 = pneg %p363
    // Predicated region
    $region9: #{tpu_custom_call.1} parent=5 // pred_check
      _
    $region10: #{tpu_custom_call.1} parent=5 // pred_check_branch
      %366 = sbr.rel (%p363) target = $region12
    $region11: #{tpu_custom_call.1} parent=5 // pred_region
      %s367 = ssub.s32 %s23, 1
      // Predicated region
      $region13: #{tpu_custom_call.1} parent=11 // pred_check
        %p368 = pneg %p70
      $region14: #{tpu_custom_call.1} parent=11 // pred_check_branch
        %370 = sbr.rel (%p368) target = $region16
      $region15: #{tpu_custom_call.1} parent=11 // pred_region
        _
      $region16: #{tpu_custom_call.1} parent=11 // pred_fallthru
        _
      // Predicated region
      $region17: #{tpu_custom_call.1} parent=11 // pred_check
        %p371 = pneg %p91
      $region18: #{tpu_custom_call.1} parent=11 // pred_check_branch
        %373 = sbr.rel (%p371) target = $region20
      $region19: #{tpu_custom_call.1} parent=11 // pred_region
        _
      $region20: #{tpu_custom_call.1} parent=11 // pred_fallthru
        _
      // Predicated region
      $region21: #{tpu_custom_call.1} parent=11 // pred_check
        %p374 = pneg %p112
      $region22: #{tpu_custom_call.1} parent=11 // pred_check_branch
        %376 = sbr.rel (%p374) target = $region24
      $region23: #{tpu_custom_call.1} parent=11 // pred_region
        _
      $region24: #{tpu_custom_call.1} parent=11 // pred_fallthru
        _
      // Predicated region
      $region25: #{tpu_custom_call.1} parent=11 // pred_check
        %p377 = pneg %p133
      $region26: #{tpu_custom_call.1} parent=11 // pred_check_branch
        %379 = sbr.rel (%p377) target = $region28
      $region27: #{tpu_custom_call.1} parent=11 // pred_region
        _
      $region28: #{tpu_custom_call.1} parent=11 // pred_fallthru
        _
      // Predicated region
      $region29: #{tpu_custom_call.1} parent=11 // pred_check
        %p380 = pneg %p154
      $region30: #{tpu_custom_call.1} parent=11 // pred_check_branch
        %382 = sbr.rel (%p380) target = $region32
      $region31: #{tpu_custom_call.1} parent=11 // pred_region
        _
      $region32: #{tpu_custom_call.1} parent=11 // pred_fallthru
        _
      // Predicated region
      $region33: #{tpu_custom_call.1} parent=11 // pred_check
        %p383 = pneg %p175
      $region34: #{tpu_custom_call.1} parent=11 // pred_check_branch
        %385 = sbr.rel (%p383) target = $region36
      $region35: #{tpu_custom_call.1} parent=11 // pred_region
        _
      $region36: #{tpu_custom_call.1} parent=11 // pred_fallthru
        _
      // Predicated region
      $region37: #{tpu_custom_call.1} parent=11 // pred_check
        %p386 = pneg %p196
      $region38: #{tpu_custom_call.1} parent=11 // pred_check_branch
        %388 = sbr.rel (%p386) target = $region40
      $region39: #{tpu_custom_call.1} parent=11 // pred_region
        _
      $region40: #{tpu_custom_call.1} parent=11 // pred_fallthru
        _
      // Predicated region
      $region41: #{tpu_custom_call.1} parent=11 // pred_check
        %p389 = pneg %p217
      $region42: #{tpu_custom_call.1} parent=11 // pred_check_branch
        %391 = sbr.rel (%p389) target = $region44
      $region43: #{tpu_custom_call.1} parent=11 // pred_region
        _
      $region44: #{tpu_custom_call.1} parent=11 // pred_fallthru
        _
      // Predicated region
      $region45: #{tpu_custom_call.1} parent=11 // pred_check
        %p392 = pneg %p238
      $region46: #{tpu_custom_call.1} parent=11 // pred_check_branch
        %394 = sbr.rel (%p392) target = $region48
      $region47: #{tpu_custom_call.1} parent=11 // pred_region
        _
      $region48: #{tpu_custom_call.1} parent=11 // pred_fallthru
        _
      // Predicated region
      $region49: #{tpu_custom_call.1} parent=11 // pred_check
        %p395 = pneg %p259
      $region50: #{tpu_custom_call.1} parent=11 // pred_check_branch
        %397 = sbr.rel (%p395) target = $region52
      $region51: #{tpu_custom_call.1} parent=11 // pred_region
        _
      $region52: #{tpu_custom_call.1} parent=11 // pred_fallthru
        _
      // Predicated region
      $region53: #{tpu_custom_call.1} parent=11 // pred_check
        %p398 = pneg %p280
      $region54: #{tpu_custom_call.1} parent=11 // pred_check_branch
        %400 = sbr.rel (%p398) target = $region56
      $region55: #{tpu_custom_call.1} parent=11 // pred_region
        _
      $region56: #{tpu_custom_call.1} parent=11 // pred_fallthru
        _
      // Predicated region
      $region57: #{tpu_custom_call.1} parent=11 // pred_check
        %p401 = pneg %p301
      $region58: #{tpu_custom_call.1} parent=11 // pred_check_branch
        %403 = sbr.rel (%p401) target = $region60
      $region59: #{tpu_custom_call.1} parent=11 // pred_region
        _
      $region60: #{tpu_custom_call.1} parent=11 // pred_fallthru
        _
    $region12: #{tpu_custom_call.1} parent=5 // pred_fallthru
      _
    %p404 = scmp.lt.s32.totalorder %s23, 2
    // Predicated region
    $region61: #{tpu_custom_call.1} parent=5 // pred_check
      %p405 = pneg %p404
    $region62: #{tpu_custom_call.1} parent=5 // pred_check_branch
      %407 = sbr.rel (%p405) target = $region64
    $region63: #{tpu_custom_call.1} parent=5 // pred_region
      // Predicated region
      $region65: #{tpu_custom_call.1} parent=63 // pred_check
        %p408 = pneg %p43
      $region66: #{tpu_custom_call.1} parent=63 // pred_check_branch
        %410 = sbr.rel (%p408) target = $region68
      $region67: #{tpu_custom_call.1} parent=63 // pred_region
        %s411 = smul.u32 16, %s23
        %p412 = scmp.lt.s32.totalorder %s411, 31
        %s413 = scalar_select %p412, %s411, 31
        %s414 = smul.addr %s413, 7
        %s415 = smul.addr %s414, 4
        %s416 = scalar_lea.vmem %s0, %s415
        %s417 = smul.u32 16, %s23
      $region68: #{tpu_custom_call.1} parent=63 // pred_fallthru
        _
    $region64: #{tpu_custom_call.1} parent=5 // pred_fallthru
      _
    %p418 = scmp.le.s32.totalorder 1, %s23
    %p419 = scmp.lt.s32.totalorder %s23, 3
    %p420 = pnand %p418, %p419
    %p421 = pneg %p420
    // Predicated region
    $region69: #{tpu_custom_call.1} parent=5 // pred_check
      _
    $region70: #{tpu_custom_call.1} parent=5 // pred_check_branch
      %423 = sbr.rel (%p420) target = $region72
    $region71: #{tpu_custom_call.1} parent=5 // pred_region
      %s424 = ssub.s32 %s23, 1
      %s425 = smul.u32 16, %s28
      %p426 = scmp.lt.s32.totalorder %s425, 31
      %s427 = scalar_select %p426, %s425, 31
      %s428 = smul.addr %s427, 7
      %s429 = smul.addr %s428, 4
      %s430 = scalar_lea.vmem %s0, %s429
      %p431 = pneg %p49
      %p432 = pneg %p46
      %p433 = pneg %p70
      %p434 = pneg %p67
      %p435 = pneg %p91
      %p436 = pneg %p88
      %p437 = pneg %p112
      %p438 = pneg %p109
      %p439 = pneg %p133
      %p440 = pneg %p130
      %p441 = pneg %p154
      %p442 = pneg %p151
      %p443 = pneg %p175
      %p444 = pneg %p172
      %p445 = pneg %p196
      %p446 = pneg %p193
      %p447 = pneg %p217
      %p448 = pneg %p214
      %p449 = pneg %p238
      %p450 = pneg %p235
      %p451 = pneg %p259
      %p452 = pneg %p256
      %p453 = pneg %p280
      %p454 = pneg %p277
      %p455 = pneg %p301
      %p456 = pneg %p298
      %p457 = pneg %p327
      %p458 = pneg %p324
      %s459 = smul.u32 2, %s28
      %p460 = scmp.lt.s32.totalorder %s459, 3
      %s461 = scalar_select %p460, %s459, 3
      %s462 = smul.addr %s461, 8
      %s463 = scalar_lea.vmem %s13, %s462
      %p464 = pneg %p353
      %p465 = pneg %p350
      %s466 = smul.u32 2, %s28
      %p467 = scmp.lt.s32.totalorder %s466, 3
      %s468 = scalar_select %p467, %s466, 3
      %s469 = smul.addr %s468, 8
      %s470 = scalar_lea.vmem %s14, %s469
      %s471 = smul.u32 16, %s28
      %p472 = scmp.lt.s32.totalorder %s471, 31
      %s473 = scalar_select %p472, %s471, 31
      %s474 = smul.addr %s473, 7
      %s475 = smul.addr %s474, 4
      %s476 = scalar_lea.vmem %s0, %s475
      %s477 = smul.u32 16, %s28
      %s478 = smul.u32 2, %s28
      %p479 = scmp.lt.s32.totalorder %s478, 3
      %s480 = scalar_select %p479, %s478, 3
      %s481 = smul.addr %s480, 8
      %s482 = scalar_lea.vmem %s13, %s481
      %s483 = smul.u32 2, %s28
      %s484 = smul.u32 2, %s28
      %p485 = scmp.lt.s32.totalorder %s484, 3
      %s486 = scalar_select %p485, %s484, 3
      %s487 = smul.addr %s486, 8
      %s488 = scalar_lea.vmem %s14, %s487
      %s489 = smul.u32 2, %s28
      %v491 = vld [vmem:[%s476] sm:$0xff]
      %v492 = vld [vmem:[%s476 + $0x8] sm:$0xff]
      %v493 = vld [vmem:[%s476 + $0x10] sm:$0xff]
      %v494 = vld [vmem:[%s476 + $0x18] sm:$0xf]
      %v495 = vld [vmem:[%s476 + $0x1c] sm:$0xff]
      %v496 = vld [vmem:[%s476 + $0x24] sm:$0xff]
      %v497 = vld [vmem:[%s476 + $0x2c] sm:$0xff]
      %v498 = vld [vmem:[%s476 + $0x34] sm:$0xf]
      %v499 = vld [vmem:[%s476 + $0x38] sm:$0xff]
      %v500 = vld [vmem:[%s476 + $0x40] sm:$0xff]
      %v501 = vld [vmem:[%s476 + $0x48] sm:$0xff]
      %v502 = vld [vmem:[%s476 + $0x50] sm:$0xf]
      %v503 = vld [vmem:[%s476 + $0x54] sm:$0xff]
      %v504 = vld [vmem:[%s476 + $0x5c] sm:$0xff]
      %v505 = vld [vmem:[%s476 + $0x64] sm:$0xff]
      %v506 = vld [vmem:[%s476 + $0x6c] sm:$0xf]
      %v507 = vld [vmem:[%s476 + $0x70] sm:$0xff]
      %v508 = vld [vmem:[%s476 + $0x78] sm:$0xff]
      %v509 = vld [vmem:[%s476 + $0x80] sm:$0xff]
      %v510 = vld [vmem:[%s476 + $0x88] sm:$0xf]
      %v511 = vld [vmem:[%s476 + $0x8c] sm:$0xff]
      %v512 = vld [vmem:[%s476 + $0x94] sm:$0xff]
      %v513 = vld [vmem:[%s476 + $0x9c] sm:$0xff]
      %v514 = vld [vmem:[%s476 + $0xa4] sm:$0xf]
      %v515 = vld [vmem:[%s476 + $0xa8] sm:$0xff]
      %v516 = vld [vmem:[%s476 + $0xb0] sm:$0xff]
      %v517 = vld [vmem:[%s476 + $0xb8] sm:$0xff]
      %v518 = vld [vmem:[%s476 + $0xc0] sm:$0xf]
      %v519 = vld [vmem:[%s476 + $0xc4] sm:$0xff]
      %v520 = vld [vmem:[%s476 + $0xcc] sm:$0xff]
      %v521 = vld [vmem:[%s476 + $0xd4] sm:$0xff]
      %v522 = vld [vmem:[%s476 + $0xdc] sm:$0xf]
      %v523 = vld [vmem:[%s476 + $0xe0] sm:$0xff]
      %v524 = vld [vmem:[%s476 + $0xe8] sm:$0xff]
      %v525 = vld [vmem:[%s476 + $0xf0] sm:$0xff]
      %v526 = vld [vmem:[%s476 + $0xf8] sm:$0xf]
      %v527 = vld [vmem:[%s476 + $0xfc] sm:$0xff]
      %v528 = vld [vmem:[%s476 + $0x104] sm:$0xff]
      %v529 = vld [vmem:[%s476 + $0x10c] sm:$0xff]
      %v530 = vld [vmem:[%s476 + $0x114] sm:$0xf]
      %v531 = vld [vmem:[%s476 + $0x118] sm:$0xff]
      %v532 = vld [vmem:[%s476 + $0x120] sm:$0xff]
      %v533 = vld [vmem:[%s476 + $0x128] sm:$0xff]
      %v534 = vld [vmem:[%s476 + $0x130] sm:$0xf]
      %v535 = vld [vmem:[%s476 + $0x134] sm:$0xff]
      %v536 = vld [vmem:[%s476 + $0x13c] sm:$0xff]
      %v537 = vld [vmem:[%s476 + $0x144] sm:$0xff]
      %v538 = vld [vmem:[%s476 + $0x14c] sm:$0xf]
      %v539 = vld [vmem:[%s476 + $0x150] sm:$0xff]
      %v540 = vld [vmem:[%s476 + $0x158] sm:$0xff]
      %v541 = vld [vmem:[%s476 + $0x160] sm:$0xff]
      %v542 = vld [vmem:[%s476 + $0x168] sm:$0xf]
      %v543 = vld [vmem:[%s476 + $0x16c] sm:$0xff]
      %v544 = vld [vmem:[%s476 + $0x174] sm:$0xff]
      %v545 = vld [vmem:[%s476 + $0x17c] sm:$0xff]
      %v546 = vld [vmem:[%s476 + $0x184] sm:$0xf]
      %v547 = vld [vmem:[%s476 + $0x188] sm:$0xff]
      %v548 = vld [vmem:[%s476 + $0x190] sm:$0xff]
      %v549 = vld [vmem:[%s476 + $0x198] sm:$0xff]
      %v550 = vld [vmem:[%s476 + $0x1a0] sm:$0xf]
      %v551 = vld [vmem:[%s476 + $0x1a4] sm:$0xff]
      %v552 = vld [vmem:[%s476 + $0x1ac] sm:$0xff]
      %v553 = vld [vmem:[%s476 + $0x1b4] sm:$0xff]
      %v554 = vld [vmem:[%s476 + $0x1bc] sm:$0xf]
      %v555 = vld [vmem:[%s1] sm:$0xf]
      %v556 = vld [vmem:[%s1 + $0x4] sm:$0xf]
      %v557 = vld [vmem:[%s1 + $0x8] sm:$0xf]
      %v558 = vld [vmem:[%s1 + $0xc] sm:$0xf]
      %v559 = vld [vmem:[%s1 + $0x10] sm:$0xf]
      %v560 = vld [vmem:[%s1 + $0x14] sm:$0xf]
      %v561 = vld [vmem:[%s1 + $0x18] sm:$0xf]
      %v562 = vld [vmem:[%s1 + $0x1c] sm:$0xf]
      %v563 = vld [vmem:[%s1 + $0x20] sm:$0xf]
      %v564 = vld [vmem:[%s1 + $0x24] sm:$0xf]
      %v565 = vld [vmem:[%s1 + $0x28] sm:$0xf]
      %v566 = vld [vmem:[%s1 + $0x2c] sm:$0xf]
      %v567 = vld [vmem:[%s1 + $0x30] sm:$0xf]
      %v568 = vld [vmem:[%s1 + $0x34] sm:$0xf]
      %v569 = vld [vmem:[%s1 + $0x38] sm:$0xf]
      %v570 = vld [vmem:[%s1 + $0x3c] sm:$0xf]
      %v571 = vld [vmem:[%s1 + $0x40] sm:$0xf]
      %v572 = vld [vmem:[%s1 + $0x44] sm:$0xf]
      %v573 = vld [vmem:[%s1 + $0x48] sm:$0xf]
      %v574 = vld [vmem:[%s1 + $0x4c] sm:$0xf]
      %v575 = vld [vmem:[%s1 + $0x50] sm:$0xf]
      %v576 = vld [vmem:[%s1 + $0x54] sm:$0xf]
      %v577 = vld [vmem:[%s1 + $0x58] sm:$0xf]
      %v578 = vld [vmem:[%s1 + $0x5c] sm:$0xf]
      %v579 = vld [vmem:[%s1 + $0x60] sm:$0xf]
      %v580 = vld [vmem:[%s1 + $0x64] sm:$0xf]
      %v581 = vld [vmem:[%s1 + $0x68] sm:$0xf]
      %v582 = vld [vmem:[%s1 + $0x6c] sm:$0xf]
      %v583 = vld [vmem:[%s1 + $0x70] sm:$0xf]
      %v584 = vld [vmem:[%s1 + $0x74] sm:$0xf]
      %v585 = vld [vmem:[%s1 + $0x78] sm:$0xf]
      %v586 = vld [vmem:[%s1 + $0x7c] sm:$0xf]
      %v587 = vld [vmem:[%s1 + $0x80] sm:$0xf]
      %v588 = vld [vmem:[%s1 + $0x84] sm:$0xf]
      %v589 = vld [vmem:[%s1 + $0x88] sm:$0xf]
      %v590 = vld [vmem:[%s1 + $0x8c] sm:$0xf]
      %v591 = vld [vmem:[%s1 + $0x90] sm:$0xf]
      %v592 = vld [vmem:[%s1 + $0x94] sm:$0xf]
      %v593 = vld [vmem:[%s1 + $0x98] sm:$0xf]
      %v594 = vld [vmem:[%s1 + $0x9c] sm:$0xf]
      %v595 = vld [vmem:[%s1 + $0xa0] sm:$0xf]
      %v596 = vld [vmem:[%s1 + $0xa4] sm:$0xf]
      %v597 = vld [vmem:[%s1 + $0xa8] sm:$0xf]
      %v598 = vld [vmem:[%s1 + $0xac] sm:$0xf]
      %v599 = vld [vmem:[%s1 + $0xb0] sm:$0xf]
      %v600 = vld [vmem:[%s1 + $0xb4] sm:$0xf]
      %v601 = vld [vmem:[%s1 + $0xb8] sm:$0xf]
      %v602 = vld [vmem:[%s1 + $0xbc] sm:$0xf]
      %v603 = vld [vmem:[%s1 + $0xc0] sm:$0xf]
      %v604 = vld [vmem:[%s1 + $0xc4] sm:$0xf]
      %v605 = vld [vmem:[%s1 + $0xc8] sm:$0xf]
      %v606 = vld [vmem:[%s1 + $0xcc] sm:$0xf]
      %v607 = vld [vmem:[%s1 + $0xd0] sm:$0xf]
      %v608 = vld [vmem:[%s1 + $0xd4] sm:$0xf]
      %v609 = vld [vmem:[%s1 + $0xd8] sm:$0xf]
      %v610 = vld [vmem:[%s1 + $0xdc] sm:$0xf]
      %v611 = vld [vmem:[%s1 + $0xe0] sm:$0xf]
      %v612 = vld [vmem:[%s1 + $0xe4] sm:$0xf]
      %v613 = vld [vmem:[%s1 + $0xe8] sm:$0xf]
      %v614 = vld [vmem:[%s1 + $0xec] sm:$0xf]
      %v615 = vld [vmem:[%s1 + $0xf0] sm:$0xf]
      %v616 = vld [vmem:[%s1 + $0xf4] sm:$0xf]
      %v617 = vld [vmem:[%s1 + $0xf8] sm:$0xf]
      %v618 = vld [vmem:[%s1 + $0xfc] sm:$0xf]
      %v619 = vld [vmem:[%s1 + $0x100] sm:$0xf]
      %v620 = vld [vmem:[%s1 + $0x104] sm:$0xf]
      %v621 = vld [vmem:[%s1 + $0x108] sm:$0xf]
      %v622 = vld [vmem:[%s1 + $0x10c] sm:$0xf]
      %v623 = vld [vmem:[%s1 + $0x110] sm:$0xf]
      %v624 = vld [vmem:[%s1 + $0x114] sm:$0xf]
      %v625 = vld [vmem:[%s1 + $0x118] sm:$0xf]
      %v626 = vld [vmem:[%s1 + $0x11c] sm:$0xf]
      %v627 = vld [vmem:[%s1 + $0x120] sm:$0xf]
      %v628 = vld [vmem:[%s1 + $0x124] sm:$0xf]
      %v629 = vld [vmem:[%s1 + $0x128] sm:$0xf]
      %v630 = vld [vmem:[%s1 + $0x12c] sm:$0xf]
      %v631 = vld [vmem:[%s1 + $0x130] sm:$0xf]
      %v632 = vld [vmem:[%s1 + $0x134] sm:$0xf]
      %v633 = vld [vmem:[%s1 + $0x138] sm:$0xf]
      %v634 = vld [vmem:[%s1 + $0x13c] sm:$0xf]
      %v635 = vld [vmem:[%s1 + $0x140] sm:$0xf]
      %v636 = vld [vmem:[%s1 + $0x144] sm:$0xf]
      %v637 = vld [vmem:[%s1 + $0x148] sm:$0xf]
      %v638 = vld [vmem:[%s1 + $0x14c] sm:$0xf]
      %v639 = vld [vmem:[%s1 + $0x150] sm:$0xf]
      %v640 = vld [vmem:[%s1 + $0x154] sm:$0xf]
      %v641 = vld [vmem:[%s1 + $0x158] sm:$0xf]
      %v642 = vld [vmem:[%s1 + $0x15c] sm:$0xf]
      %v643 = vld [vmem:[%s1 + $0x160] sm:$0xf]
      %v644 = vld [vmem:[%s1 + $0x164] sm:$0xf]
      %v645 = vld [vmem:[%s1 + $0x168] sm:$0xf]
      %v646 = vld [vmem:[%s1 + $0x16c] sm:$0xf]
      %v647 = vld [vmem:[%s1 + $0x170] sm:$0xf]
      %v648 = vld [vmem:[%s1 + $0x174] sm:$0xf]
      %v649 = vld [vmem:[%s1 + $0x178] sm:$0xf]
      %v650 = vld [vmem:[%s1 + $0x17c] sm:$0xf]
      %v651 = vld [vmem:[%s1 + $0x180] sm:$0xf]
      %v652 = vld [vmem:[%s1 + $0x184] sm:$0xf]
      %v653 = vld [vmem:[%s2] sm:$0x1]
      %v655 = vlaneseq
      %v656 = vshrl.u32 %v655, 7
      %v657 = vsub.s32 0, %v656
      %v658 = vrot.slane %v653, %v657
      %v724 = vunpack.c.l.b16 %v491
      %v725 = vunpack.c.h.b16 %v491
      %v726 = vunpack.c.l.b16 %v492
      %v727 = vunpack.c.h.b16 %v492
      %v728 = vunpack.c.l.b16 %v493
      %v729 = vunpack.c.h.b16 %v493
      %v730 = vunpack.c.l.b16 %v494
      %v731 = vunpack.c.l.b16 %v495
      %v732 = vunpack.c.h.b16 %v495
      %v733 = vunpack.c.l.b16 %v496
      %v734 = vunpack.c.h.b16 %v496
      %v735 = vunpack.c.l.b16 %v497
      %v736 = vunpack.c.h.b16 %v497
      %v737 = vunpack.c.l.b16 %v498
      %v738 = vunpack.c.l.b16 %v499
      %v739 = vunpack.c.h.b16 %v499
      %v740 = vunpack.c.l.b16 %v500
      %v741 = vunpack.c.h.b16 %v500
      %v742 = vunpack.c.l.b16 %v501
      %v743 = vunpack.c.h.b16 %v501
      %v744 = vunpack.c.l.b16 %v502
      %v745 = vunpack.c.l.b16 %v503
      %v746 = vunpack.c.h.b16 %v503
      %v747 = vunpack.c.l.b16 %v504
      %v748 = vunpack.c.h.b16 %v504
      %v749 = vunpack.c.l.b16 %v505
      %v750 = vunpack.c.h.b16 %v505
      %v751 = vunpack.c.l.b16 %v506
      %v752 = vunpack.c.l.b16 %v507
      %v753 = vunpack.c.h.b16 %v507
      %v754 = vunpack.c.l.b16 %v508
      %v755 = vunpack.c.h.b16 %v508
      %v756 = vunpack.c.l.b16 %v509
      %v757 = vunpack.c.h.b16 %v509
      %v758 = vunpack.c.l.b16 %v510
      %v759 = vunpack.c.l.b16 %v511
      %v760 = vunpack.c.h.b16 %v511
      %v761 = vunpack.c.l.b16 %v512
      %v762 = vunpack.c.h.b16 %v512
      %v763 = vunpack.c.l.b16 %v513
      %v764 = vunpack.c.h.b16 %v513
      %v765 = vunpack.c.l.b16 %v514
      %v766 = vunpack.c.l.b16 %v515
      %v767 = vunpack.c.h.b16 %v515
      %v768 = vunpack.c.l.b16 %v516
      %v769 = vunpack.c.h.b16 %v516
      %v770 = vunpack.c.l.b16 %v517
      %v771 = vunpack.c.h.b16 %v517
      %v772 = vunpack.c.l.b16 %v518
      %v773 = vunpack.c.l.b16 %v519
      %v774 = vunpack.c.h.b16 %v519
      %v775 = vunpack.c.l.b16 %v520
      %v776 = vunpack.c.h.b16 %v520
      %v777 = vunpack.c.l.b16 %v521
      %v778 = vunpack.c.h.b16 %v521
      %v779 = vunpack.c.l.b16 %v522
      %v780 = vunpack.c.l.b16 %v523
      %v781 = vunpack.c.h.b16 %v523
      %v782 = vunpack.c.l.b16 %v524
      %v783 = vunpack.c.h.b16 %v524
      %v784 = vunpack.c.l.b16 %v525
      %v785 = vunpack.c.h.b16 %v525
      %v786 = vunpack.c.l.b16 %v526
      %v787 = vunpack.c.l.b16 %v527
      %v788 = vunpack.c.h.b16 %v527
      %v789 = vunpack.c.l.b16 %v528
      %v790 = vunpack.c.h.b16 %v528
      %v791 = vunpack.c.l.b16 %v529
      %v792 = vunpack.c.h.b16 %v529
      %v793 = vunpack.c.l.b16 %v530
      %v794 = vunpack.c.l.b16 %v531
      %v795 = vunpack.c.h.b16 %v531
      %v796 = vunpack.c.l.b16 %v532
      %v797 = vunpack.c.h.b16 %v532
      %v798 = vunpack.c.l.b16 %v533
      %v799 = vunpack.c.h.b16 %v533
      %v800 = vunpack.c.l.b16 %v534
      %v801 = vunpack.c.l.b16 %v535
      %v802 = vunpack.c.h.b16 %v535
      %v803 = vunpack.c.l.b16 %v536
      %v804 = vunpack.c.h.b16 %v536
      %v805 = vunpack.c.l.b16 %v537
      %v806 = vunpack.c.h.b16 %v537
      %v807 = vunpack.c.l.b16 %v538
      %v808 = vunpack.c.l.b16 %v539
      %v809 = vunpack.c.h.b16 %v539
      %v810 = vunpack.c.l.b16 %v540
      %v811 = vunpack.c.h.b16 %v540
      %v812 = vunpack.c.l.b16 %v541
      %v813 = vunpack.c.h.b16 %v541
      %v814 = vunpack.c.l.b16 %v542
      %v815 = vunpack.c.l.b16 %v543
      %v816 = vunpack.c.h.b16 %v543
      %v817 = vunpack.c.l.b16 %v544
      %v818 = vunpack.c.h.b16 %v544
      %v819 = vunpack.c.l.b16 %v545
      %v820 = vunpack.c.h.b16 %v545
      %v821 = vunpack.c.l.b16 %v546
      %v822 = vunpack.c.l.b16 %v547
      %v823 = vunpack.c.h.b16 %v547
      %v824 = vunpack.c.l.b16 %v548
      %v825 = vunpack.c.h.b16 %v548
      %v826 = vunpack.c.l.b16 %v549
      %v827 = vunpack.c.h.b16 %v549
      %v828 = vunpack.c.l.b16 %v550
      %v829 = vunpack.c.l.b16 %v551
      %v830 = vunpack.c.h.b16 %v551
      %v831 = vunpack.c.l.b16 %v552
      %v832 = vunpack.c.h.b16 %v552
      %v833 = vunpack.c.l.b16 %v553
      %v834 = vunpack.c.h.b16 %v553
      %v835 = vunpack.c.l.b16 %v554
      %v836 = vpack.c.b16 %v731, %v724
      %v837 = vpack.c.b16 %v732, %v725
      %v838 = vpack.c.b16 %v733, %v726
      %v839 = vpack.c.b16 %v734, %v727
      %v840 = vpack.c.b16 %v735, %v728
      %v841 = vpack.c.b16 %v736, %v729
      %v842 = vpack.c.b16 %v737, %v730
      %v843 = vpack.c.b16 %v745, %v738
      %v844 = vpack.c.b16 %v746, %v739
      %v845 = vpack.c.b16 %v747, %v740
      %v846 = vpack.c.b16 %v748, %v741
      %v847 = vpack.c.b16 %v749, %v742
      %v848 = vpack.c.b16 %v750, %v743
      %v849 = vpack.c.b16 %v751, %v744
      %v850 = vpack.c.b16 %v759, %v752
      %v851 = vpack.c.b16 %v760, %v753
      %v852 = vpack.c.b16 %v761, %v754
      %v853 = vpack.c.b16 %v762, %v755
      %v854 = vpack.c.b16 %v763, %v756
      %v855 = vpack.c.b16 %v764, %v757
      %v856 = vpack.c.b16 %v765, %v758
      %v857 = vpack.c.b16 %v773, %v766
      %v858 = vpack.c.b16 %v774, %v767
      %v859 = vpack.c.b16 %v775, %v768
      %v860 = vpack.c.b16 %v776, %v769
      %v861 = vpack.c.b16 %v777, %v770
      %v862 = vpack.c.b16 %v778, %v771
      %v863 = vpack.c.b16 %v779, %v772
      %v864 = vpack.c.b16 %v787, %v780
      %v865 = vpack.c.b16 %v788, %v781
      %v866 = vpack.c.b16 %v789, %v782
      %v867 = vpack.c.b16 %v790, %v783
      %v868 = vpack.c.b16 %v791, %v784
      %v869 = vpack.c.b16 %v792, %v785
      %v870 = vpack.c.b16 %v793, %v786
      %v871 = vpack.c.b16 %v801, %v794
      %v872 = vpack.c.b16 %v802, %v795
      %v873 = vpack.c.b16 %v803, %v796
      %v874 = vpack.c.b16 %v804, %v797
      %v875 = vpack.c.b16 %v805, %v798
      %v876 = vpack.c.b16 %v806, %v799
      %v877 = vpack.c.b16 %v807, %v800
      %v878 = vpack.c.b16 %v815, %v808
      %v879 = vpack.c.b16 %v816, %v809
      %v880 = vpack.c.b16 %v817, %v810
      %v881 = vpack.c.b16 %v818, %v811
      %v882 = vpack.c.b16 %v819, %v812
      %v883 = vpack.c.b16 %v820, %v813
      %v884 = vpack.c.b16 %v821, %v814
      %v885 = vpack.c.b16 %v829, %v822
      %v886 = vpack.c.b16 %v830, %v823
      %v887 = vpack.c.b16 %v831, %v824
      %v888 = vpack.c.b16 %v832, %v825
      %v889 = vpack.c.b16 %v833, %v826
      %v890 = vpack.c.b16 %v834, %v827
      %v891 = vpack.c.b16 %v835, %v828
      %v1038 = vunpack.c.l.b16 %v555
      %v1039 = vunpack.c.l.b16 %v556
      %v1040 = vunpack.c.l.b16 %v557
      %v1041 = vunpack.c.l.b16 %v558
      %v1042 = vunpack.c.l.b16 %v559
      %v1043 = vunpack.c.l.b16 %v560
      %v1044 = vunpack.c.l.b16 %v561
      %v1045 = vunpack.c.l.b16 %v562
      %v1046 = vunpack.c.l.b16 %v563
      %v1047 = vunpack.c.l.b16 %v564
      %v1048 = vunpack.c.l.b16 %v565
      %v1049 = vunpack.c.l.b16 %v566
      %v1050 = vunpack.c.l.b16 %v567
      %v1051 = vunpack.c.l.b16 %v568
      %v1052 = vunpack.c.l.b16 %v569
      %v1053 = vunpack.c.l.b16 %v570
      %v1054 = vunpack.c.l.b16 %v571
      %v1055 = vunpack.c.l.b16 %v572
      %v1056 = vunpack.c.l.b16 %v573
      %v1057 = vunpack.c.l.b16 %v574
      %v1058 = vunpack.c.l.b16 %v575
      %v1059 = vunpack.c.l.b16 %v576
      %v1060 = vunpack.c.l.b16 %v577
      %v1061 = vunpack.c.l.b16 %v578
      %v1062 = vunpack.c.l.b16 %v579
      %v1063 = vunpack.c.l.b16 %v580
      %v1064 = vunpack.c.l.b16 %v581
      %v1065 = vunpack.c.l.b16 %v582
      %v1066 = vunpack.c.l.b16 %v583
      %v1067 = vunpack.c.l.b16 %v584
      %v1068 = vunpack.c.l.b16 %v585
      %v1069 = vunpack.c.l.b16 %v586
      %v1070 = vunpack.c.l.b16 %v587
      %v1071 = vunpack.c.l.b16 %v588
      %v1072 = vunpack.c.l.b16 %v589
      %v1073 = vunpack.c.l.b16 %v590
      %v1074 = vunpack.c.l.b16 %v591
      %v1075 = vunpack.c.l.b16 %v592
      %v1076 = vunpack.c.l.b16 %v593
      %v1077 = vunpack.c.l.b16 %v594
      %v1078 = vunpack.c.l.b16 %v595
      %v1079 = vunpack.c.l.b16 %v596
      %v1080 = vunpack.c.l.b16 %v597
      %v1081 = vunpack.c.l.b16 %v598
      %v1082 = vunpack.c.l.b16 %v599
      %v1083 = vunpack.c.l.b16 %v600
      %v1084 = vunpack.c.l.b16 %v601
      %v1085 = vunpack.c.l.b16 %v602
      %v1086 = vunpack.c.l.b16 %v603
      %v1087 = vunpack.c.l.b16 %v604
      %v1088 = vunpack.c.l.b16 %v605
      %v1089 = vunpack.c.l.b16 %v606
      %v1090 = vunpack.c.l.b16 %v607
      %v1091 = vunpack.c.l.b16 %v608
      %v1092 = vunpack.c.l.b16 %v609
      %v1093 = vunpack.c.l.b16 %v610
      %v1094 = vunpack.c.l.b16 %v611
      %v1095 = vunpack.c.l.b16 %v612
      %v1096 = vunpack.c.l.b16 %v613
      %v1097 = vunpack.c.l.b16 %v614
      %v1098 = vunpack.c.l.b16 %v615
      %v1099 = vunpack.c.l.b16 %v616
      %v1100 = vunpack.c.l.b16 %v617
      %v1101 = vunpack.c.l.b16 %v618
      %v1102 = vunpack.c.l.b16 %v619
      %v1103 = vunpack.c.l.b16 %v620
      %v1104 = vunpack.c.l.b16 %v621
      %v1105 = vunpack.c.l.b16 %v622
      %v1106 = vunpack.c.l.b16 %v623
      %v1107 = vunpack.c.l.b16 %v624
      %v1108 = vunpack.c.l.b16 %v625
      %v1109 = vunpack.c.l.b16 %v626
      %v1110 = vunpack.c.l.b16 %v627
      %v1111 = vunpack.c.l.b16 %v628
      %v1112 = vunpack.c.l.b16 %v629
      %v1113 = vunpack.c.l.b16 %v630
      %v1114 = vunpack.c.l.b16 %v631
      %v1115 = vunpack.c.l.b16 %v632
      %v1116 = vunpack.c.l.b16 %v633
      %v1117 = vunpack.c.l.b16 %v634
      %v1118 = vunpack.c.l.b16 %v635
      %v1119 = vunpack.c.l.b16 %v636
      %v1120 = vunpack.c.l.b16 %v637
      %v1121 = vunpack.c.l.b16 %v638
      %v1122 = vunpack.c.l.b16 %v639
      %v1123 = vunpack.c.l.b16 %v640
      %v1124 = vunpack.c.l.b16 %v641
      %v1125 = vunpack.c.l.b16 %v642
      %v1126 = vunpack.c.l.b16 %v643
      %v1127 = vunpack.c.l.b16 %v644
      %v1128 = vunpack.c.l.b16 %v645
      %v1129 = vunpack.c.l.b16 %v646
      %v1130 = vunpack.c.l.b16 %v647
      %v1131 = vunpack.c.l.b16 %v648
      %v1132 = vunpack.c.l.b16 %v649
      %v1133 = vunpack.c.l.b16 %v650
      %v1134 = vunpack.c.l.b16 %v651
      %v1135 = vunpack.c.l.b16 %v652
      %v1136 = vpack.c.b16 %v1039, %v1038
      %v1137 = vpack.c.b16 %v1041, %v1040
      %v1138 = vpack.c.b16 %v1043, %v1042
      %v1139 = vpack.c.b16 %v1045, %v1044
      %v1140 = vpack.c.b16 %v1047, %v1046
      %v1141 = vpack.c.b16 %v1049, %v1048
      %v1142 = vpack.c.b16 %v1051, %v1050
      %v1143 = vpack.c.b16 %v1053, %v1052
      %v1144 = vpack.c.b16 %v1055, %v1054
      %v1145 = vpack.c.b16 %v1057, %v1056
      %v1146 = vpack.c.b16 %v1059, %v1058
      %v1147 = vpack.c.b16 %v1061, %v1060
      %v1148 = vpack.c.b16 %v1063, %v1062
      %v1149 = vpack.c.b16 %v1065, %v1064
      %v1150 = vpack.c.b16 %v1067, %v1066
      %v1151 = vpack.c.b16 %v1069, %v1068
      %v1152 = vpack.c.b16 %v1071, %v1070
      %v1153 = vpack.c.b16 %v1073, %v1072
      %v1154 = vpack.c.b16 %v1075, %v1074
      %v1155 = vpack.c.b16 %v1077, %v1076
      %v1156 = vpack.c.b16 %v1079, %v1078
      %v1157 = vpack.c.b16 %v1081, %v1080
      %v1158 = vpack.c.b16 %v1083, %v1082
      %v1159 = vpack.c.b16 %v1085, %v1084
      %v1160 = vpack.c.b16 %v1087, %v1086
      %v1161 = vpack.c.b16 %v1089, %v1088
      %v1162 = vpack.c.b16 %v1091, %v1090
      %v1163 = vpack.c.b16 %v1093, %v1092
      %v1164 = vpack.c.b16 %v1095, %v1094
      %v1165 = vpack.c.b16 %v1097, %v1096
      %v1166 = vpack.c.b16 %v1099, %v1098
      %v1167 = vpack.c.b16 %v1101, %v1100
      %v1168 = vpack.c.b16 %v1103, %v1102
      %v1169 = vpack.c.b16 %v1105, %v1104
      %v1170 = vpack.c.b16 %v1107, %v1106
      %v1171 = vpack.c.b16 %v1109, %v1108
      %v1172 = vpack.c.b16 %v1111, %v1110
      %v1173 = vpack.c.b16 %v1113, %v1112
      %v1174 = vpack.c.b16 %v1115, %v1114
      %v1175 = vpack.c.b16 %v1117, %v1116
      %v1176 = vpack.c.b16 %v1119, %v1118
      %v1177 = vpack.c.b16 %v1121, %v1120
      %v1178 = vpack.c.b16 %v1123, %v1122
      %v1179 = vpack.c.b16 %v1125, %v1124
      %v1180 = vpack.c.b16 %v1127, %v1126
      %v1181 = vpack.c.b16 %v1129, %v1128
      %v1182 = vpack.c.b16 %v1131, %v1130
      %v1183 = vpack.c.b16 %v1133, %v1132
      %v1184 = vpack.c.b16 %v1135, %v1134
      %vm1234 = vcmask 130048
      %v1236 = vsel %vm1234, %v842, 0
      %v1239 = vsel %vm1234, %v849, 0
      %v1242 = vsel %vm1234, %v856, 0
      %v1245 = vsel %vm1234, %v863, 0
      %v1248 = vsel %vm1234, %v870, 0
      %v1251 = vsel %vm1234, %v877, 0
      %v1254 = vsel %vm1234, %v884, 0
      %v1257 = vsel %vm1234, %v891, 0
      %1259 = vmatprep.subr.bf16.mxu0 0
      %1260 = vmatpush1.bf16.msra.mxu0 %v1136
      %1261 = vmatprep.subr.bf16.mxu0 0
      %1262 = vmatpush1.bf16.msra.mxu0 %v1137
      %1263 = vmatprep.subr.bf16.mxu0 0
      %1264 = vmatpush1.bf16.msra.mxu0 %v1138
      %1265 = vmatprep.subr.bf16.mxu0 0
      %1266 = vmatpush1.bf16.msra.mxu0 %v1139
      %1267 = vmatprep.subr.bf16.mxu0 0
      %1268 = vmatpush1.bf16.msra.mxu0 %v1140
      %1269 = vmatprep.subr.bf16.mxu0 0
      %1270 = vmatpush1.bf16.msra.mxu0 %v1141
      %1271 = vmatprep.subr.bf16.mxu0 0
      %1272 = vmatpush1.bf16.msra.mxu0 %v1142
      %1273 = vmatprep.subr.bf16.mxu0 0
      %1274 = vmatpush1.bf16.msra.mxu0 %v1143
      %1275 = vmatprep.subr.bf16.mxu0 0
      %1276 = vmatpush1.bf16.msra.mxu0 %v1144
      %1277 = vmatprep.subr.bf16.mxu0 0
      %1278 = vmatpush1.bf16.msra.mxu0 %v1145
      %1279 = vmatprep.subr.bf16.mxu0 0
      %1280 = vmatpush1.bf16.msra.mxu0 %v1146
      %1281 = vmatprep.subr.bf16.mxu0 0
      %1282 = vmatpush1.bf16.msra.mxu0 %v1147
      %1283 = vmatprep.subr.bf16.mxu0 0
      %1284 = vmatpush1.bf16.msra.mxu0 %v1148
      %1285 = vmatprep.subr.bf16.mxu0 0
      %1286 = vmatpush1.bf16.msra.mxu0 %v1149
      %1287 = vmatprep.subr.bf16.mxu0 0
      %1288 = vmatpush1.bf16.msra.mxu0 %v1150
      %1289 = vmatprep.subr.bf16.mxu0 0
      %1290 = vmatpush1.bf16.msra.mxu0 %v1151
      %1291 = vmatprep.mubr.bf16.mxu0 %v837
      %1292 = vmatmul.mubr.bf16.gmra.mrb[0].mxu0 %v836
      %v1293 = vpop.f32.mrb[0].mxu0
      %v1294 = vadd.f32 %v658, %v1293
      %v1295 = vpop.f32.mrb[0].mxu0
      %v1296 = vpop.f32.mrb[0].mxu0
      %v1297 = vadd.f32 %v658, %v1296
      %v1298 = vpop.f32.mrb[0].mxu0
      %1299 = vmatprep.mubr.bf16.mxu0 %v844
      %1300 = vmatmul.mubr.bf16.gmra.mrb[0].mxu0 %v843
      %v1301 = vpop.f32.mrb[0].mxu0
      %v1302 = vadd.f32 %v658, %v1301
      %v1303 = vpop.f32.mrb[0].mxu0
      %v1304 = vpop.f32.mrb[0].mxu0
      %v1305 = vadd.f32 %v658, %v1304
      %v1306 = vpop.f32.mrb[0].mxu0
      %1307 = vmatprep.mubr.bf16.mxu0 %v851
      %1308 = vmatmul.mubr.bf16.gmra.mrb[0].mxu0 %v850
      %v1309 = vpop.f32.mrb[0].mxu0
      %v1310 = vadd.f32 %v658, %v1309
      %v1311 = vpop.f32.mrb[0].mxu0
      %v1312 = vpop.f32.mrb[0].mxu0
      %v1313 = vadd.f32 %v658, %v1312
      %v1314 = vpop.f32.mrb[0].mxu0
      %1315 = vmatprep.mubr.bf16.mxu0 %v858
      %1316 = vmatmul.mubr.bf16.gmra.mrb[0].mxu0 %v857
      %v1317 = vpop.f32.mrb[0].mxu0
      %v1318 = vadd.f32 %v658, %v1317
      %v1319 = vpop.f32.mrb[0].mxu0
      %v1320 = vpop.f32.mrb[0].mxu0
      %v1321 = vadd.f32 %v658, %v1320
      %v1322 = vpop.f32.mrb[0].mxu0
      %1323 = vmatprep.mubr.bf16.mxu0 %v865
      %1324 = vmatmul.mubr.bf16.gmra.mrb[0].mxu0 %v864
      %v1325 = vpop.f32.mrb[0].mxu0
      %v1326 = vadd.f32 %v658, %v1325
      %v1327 = vpop.f32.mrb[0].mxu0
      %v1328 = vpop.f32.mrb[0].mxu0
      %v1329 = vadd.f32 %v658, %v1328
      %v1330 = vpop.f32.mrb[0].mxu0
      %1331 = vmatprep.mubr.bf16.mxu0 %v872
      %1332 = vmatmul.mubr.bf16.gmra.mrb[0].mxu0 %v871
      %v1333 = vpop.f32.mrb[0].mxu0
      %v1334 = vadd.f32 %v658, %v1333
      %v1335 = vpop.f32.mrb[0].mxu0
      %v1336 = vpop.f32.mrb[0].mxu0
      %v1337 = vadd.f32 %v658, %v1336
      %v1338 = vpop.f32.mrb[0].mxu0
      %1339 = vmatprep.mubr.bf16.mxu0 %v879
      %1340 = vmatmul.mubr.bf16.gmra.mrb[0].mxu0 %v878
      %v1341 = vpop.f32.mrb[0].mxu0
      %v1342 = vadd.f32 %v658, %v1341
      %v1343 = vpop.f32.mrb[0].mxu0
      %v1344 = vpop.f32.mrb[0].mxu0
      %v1345 = vadd.f32 %v658, %v1344
      %v1346 = vpop.f32.mrb[0].mxu0
      %1347 = vmatprep.mubr.bf16.mxu0 %v886
      %1348 = vmatmul.mubr.bf16.gmra.mrb[0].mxu0 %v885
      %v1349 = vpop.f32.mrb[0].mxu0
      %v1350 = vadd.f32 %v658, %v1349
      %v1351 = vpop.f32.mrb[0].mxu0
      %v1352 = vpop.f32.mrb[0].mxu0
      %v1353 = vadd.f32 %v658, %v1352
      %v1354 = vpop.f32.mrb[0].mxu0
      %1355 = vdwg.mxu0
      %1356 = vmatprep.subr.bf16.mxu0 0
      %1357 = vmatpush1.bf16.msra.mxu0 %v1152
      %1358 = vmatprep.subr.bf16.mxu0 0
      %1359 = vmatpush1.bf16.msra.mxu0 %v1153
      %1360 = vmatprep.subr.bf16.mxu0 0
      %1361 = vmatpush1.bf16.msra.mxu0 %v1154
      %1362 = vmatprep.subr.bf16.mxu0 0
      %1363 = vmatpush1.bf16.msra.mxu0 %v1155
      %1364 = vmatprep.subr.bf16.mxu0 0
      %1365 = vmatpush1.bf16.msra.mxu0 %v1156
      %1366 = vmatprep.subr.bf16.mxu0 0
      %1367 = vmatpush1.bf16.msra.mxu0 %v1157
      %1368 = vmatprep.subr.bf16.mxu0 0
      %1369 = vmatpush1.bf16.msra.mxu0 %v1158
      %1370 = vmatprep.subr.bf16.mxu0 0
      %1371 = vmatpush1.bf16.msra.mxu0 %v1159
      %1372 = vmatprep.subr.bf16.mxu0 0
      %1373 = vmatpush1.bf16.msra.mxu0 %v1160
      %1374 = vmatprep.subr.bf16.mxu0 0
      %1375 = vmatpush1.bf16.msra.mxu0 %v1161
      %1376 = vmatprep.subr.bf16.mxu0 0
      %1377 = vmatpush1.bf16.msra.mxu0 %v1162
      %1378 = vmatprep.subr.bf16.mxu0 0
      %1379 = vmatpush1.bf16.msra.mxu0 %v1163
      %1380 = vmatprep.subr.bf16.mxu0 0
      %1381 = vmatpush1.bf16.msra.mxu0 %v1164
      %1382 = vmatprep.subr.bf16.mxu0 0
      %1383 = vmatpush1.bf16.msra.mxu0 %v1165
      %1384 = vmatprep.subr.bf16.mxu0 0
      %1385 = vmatpush1.bf16.msra.mxu0 %v1166
      %1386 = vmatprep.subr.bf16.mxu0 0
      %1387 = vmatpush1.bf16.msra.mxu0 %v1167
      %1388 = vmatprep.mubr.bf16.mxu0 %v839
      %1389 = vmatmul.mubr.bf16.gmra.mrb[0].mxu0 %v838
      %v1390 = vpop.f32.mrb[0].mxu0
      %v1391 = vadd.f32 %v1294, %v1390
      %v1392 = vpop.f32.mrb[0].mxu0
      %v1393 = vpop.f32.mrb[0].mxu0
      %v1394 = vadd.f32 %v1297, %v1393
      %v1395 = vpop.f32.mrb[0].mxu0
      %1396 = vmatprep.mubr.bf16.mxu0 %v846
      %1397 = vmatmul.mubr.bf16.gmra.mrb[0].mxu0 %v845
      %v1398 = vpop.f32.mrb[0].mxu0
      %v1399 = vadd.f32 %v1302, %v1398
      %v1400 = vpop.f32.mrb[0].mxu0
      %v1401 = vpop.f32.mrb[0].mxu0
      %v1402 = vadd.f32 %v1305, %v1401
      %v1403 = vpop.f32.mrb[0].mxu0
      %1404 = vmatprep.mubr.bf16.mxu0 %v853
      %1405 = vmatmul.mubr.bf16.gmra.mrb[0].mxu0 %v852
      %v1406 = vpop.f32.mrb[0].mxu0
      %v1407 = vadd.f32 %v1310, %v1406
      %v1408 = vpop.f32.mrb[0].mxu0
      %v1409 = vpop.f32.mrb[0].mxu0
      %v1410 = vadd.f32 %v1313, %v1409
      %v1411 = vpop.f32.mrb[0].mxu0
      %1412 = vmatprep.mubr.bf16.mxu0 %v860
      %1413 = vmatmul.mubr.bf16.gmra.mrb[0].mxu0 %v859
      %v1414 = vpop.f32.mrb[0].mxu0
      %v1415 = vadd.f32 %v1318, %v1414
      %v1416 = vpop.f32.mrb[0].mxu0
      %v1417 = vpop.f32.mrb[0].mxu0
      %v1418 = vadd.f32 %v1321, %v1417
      %v1419 = vpop.f32.mrb[0].mxu0
      %1420 = vmatprep.mubr.bf16.mxu0 %v867
      %1421 = vmatmul.mubr.bf16.gmra.mrb[0].mxu0 %v866
      %v1422 = vpop.f32.mrb[0].mxu0
      %v1423 = vadd.f32 %v1326, %v1422
      %v1424 = vpop.f32.mrb[0].mxu0
      %v1425 = vpop.f32.mrb[0].mxu0
      %v1426 = vadd.f32 %v1329, %v1425
      %v1427 = vpop.f32.mrb[0].mxu0
      %1428 = vmatprep.mubr.bf16.mxu0 %v874
      %1429 = vmatmul.mubr.bf16.gmra.mrb[0].mxu0 %v873
      %v1430 = vpop.f32.mrb[0].mxu0
      %v1431 = vadd.f32 %v1334, %v1430
      %v1432 = vpop.f32.mrb[0].mxu0
      %v1433 = vpop.f32.mrb[0].mxu0
      %v1434 = vadd.f32 %v1337, %v1433
      %v1435 = vpop.f32.mrb[0].mxu0
      %1436 = vmatprep.mubr.bf16.mxu0 %v881
      %1437 = vmatmul.mubr.bf16.gmra.mrb[0].mxu0 %v880
      %v1438 = vpop.f32.mrb[0].mxu0
      %v1439 = vadd.f32 %v1342, %v1438
      %v1440 = vpop.f32.mrb[0].mxu0
      %v1441 = vpop.f32.mrb[0].mxu0
      %v1442 = vadd.f32 %v1345, %v1441
      %v1443 = vpop.f32.mrb[0].mxu0
      %1444 = vmatprep.mubr.bf16.mxu0 %v888
      %1445 = vmatmul.mubr.bf16.gmra.mrb[0].mxu0 %v887
      %v1446 = vpop.f32.mrb[0].mxu0
      %v1447 = vadd.f32 %v1350, %v1446
      %v1448 = vpop.f32.mrb[0].mxu0
      %v1449 = vpop.f32.mrb[0].mxu0
      %v1450 = vadd.f32 %v1353, %v1449
      %v1451 = vpop.f32.mrb[0].mxu0
      %1452 = vdwg.mxu0
      %1453 = vmatprep.subr.bf16.mxu0 0
      %1454 = vmatpush1.bf16.msra.mxu0 %v1168
      %1455 = vmatprep.subr.bf16.mxu0 0
      %1456 = vmatpush1.bf16.msra.mxu0 %v1169
      %1457 = vmatprep.subr.bf16.mxu0 0
      %1458 = vmatpush1.bf16.msra.mxu0 %v1170
      %1459 = vmatprep.subr.bf16.mxu0 0
      %1460 = vmatpush1.bf16.msra.mxu0 %v1171
      %1461 = vmatprep.subr.bf16.mxu0 0
      %1462 = vmatpush1.bf16.msra.mxu0 %v1172
      %1463 = vmatprep.subr.bf16.mxu0 0
      %1464 = vmatpush1.bf16.msra.mxu0 %v1173
      %1465 = vmatprep.subr.bf16.mxu0 0
      %1466 = vmatpush1.bf16.msra.mxu0 %v1174
      %1467 = vmatprep.subr.bf16.mxu0 0
      %1468 = vmatpush1.bf16.msra.mxu0 %v1175
      %1469 = vmatprep.subr.bf16.mxu0 0
      %1470 = vmatpush1.bf16.msra.mxu0 %v1176
      %1471 = vmatprep.subr.bf16.mxu0 0
      %1472 = vmatpush1.bf16.msra.mxu0 %v1177
      %1473 = vmatprep.subr.bf16.mxu0 0
      %1474 = vmatpush1.bf16.msra.mxu0 %v1178
      %1475 = vmatprep.subr.bf16.mxu0 0
      %1476 = vmatpush1.bf16.msra.mxu0 %v1179
      %1477 = vmatprep.subr.bf16.mxu0 0
      %1478 = vmatpush1.bf16.msra.mxu0 %v1180
      %1479 = vmatprep.subr.bf16.mxu0 0
      %1480 = vmatpush1.bf16.msra.mxu0 %v1181
      %1481 = vmatprep.subr.bf16.mxu0 0
      %1482 = vmatpush1.bf16.msra.mxu0 %v1182
      %1483 = vmatprep.subr.bf16.mxu0 0
      %1484 = vmatpush1.bf16.msra.mxu0 %v1183
      %1485 = vmatprep.mubr.bf16.mxu0 %v841
      %1486 = vmatmul.mubr.bf16.gmra.mrb[0].mxu0 %v840
      %v1487 = vpop.f32.mrb[0].mxu0
      %v1488 = vadd.f32 %v1391, %v1487
      %v1489 = vpop.f32.mrb[0].mxu0
      %v1490 = vpop.f32.mrb[0].mxu0
      %v1491 = vadd.f32 %v1394, %v1490
      %v1492 = vpop.f32.mrb[0].mxu0
      %1493 = vmatprep.mubr.bf16.mxu0 %v848
      %1494 = vmatmul.mubr.bf16.gmra.mrb[0].mxu0 %v847
      %v1495 = vpop.f32.mrb[0].mxu0
      %v1496 = vadd.f32 %v1399, %v1495
      %v1497 = vpop.f32.mrb[0].mxu0
      %v1498 = vpop.f32.mrb[0].mxu0
      %v1499 = vadd.f32 %v1402, %v1498
      %v1500 = vpop.f32.mrb[0].mxu0
      %1501 = vmatprep.mubr.bf16.mxu0 %v855
      %1502 = vmatmul.mubr.bf16.gmra.mrb[0].mxu0 %v854
      %v1503 = vpop.f32.mrb[0].mxu0
      %v1504 = vadd.f32 %v1407, %v1503
      %v1505 = vpop.f32.mrb[0].mxu0
      %v1506 = vpop.f32.mrb[0].mxu0
      %v1507 = vadd.f32 %v1410, %v1506
      %v1508 = vpop.f32.mrb[0].mxu0
      %1509 = vmatprep.mubr.bf16.mxu0 %v862
      %1510 = vmatmul.mubr.bf16.gmra.mrb[0].mxu0 %v861
      %v1511 = vpop.f32.mrb[0].mxu0
      %v1512 = vadd.f32 %v1415, %v1511
      %v1513 = vpop.f32.mrb[0].mxu0
      %v1514 = vpop.f32.mrb[0].mxu0
      %v1515 = vadd.f32 %v1418, %v1514
      %v1516 = vpop.f32.mrb[0].mxu0
      %1517 = vmatprep.mubr.bf16.mxu0 %v869
      %1518 = vmatmul.mubr.bf16.gmra.mrb[0].mxu0 %v868
      %v1519 = vpop.f32.mrb[0].mxu0
      %v1520 = vadd.f32 %v1423, %v1519
      %v1521 = vpop.f32.mrb[0].mxu0
      %v1522 = vpop.f32.mrb[0].mxu0
      %v1523 = vadd.f32 %v1426, %v1522
      %v1524 = vpop.f32.mrb[0].mxu0
      %1525 = vmatprep.mubr.bf16.mxu0 %v876
      %1526 = vmatmul.mubr.bf16.gmra.mrb[0].mxu0 %v875
      %v1527 = vpop.f32.mrb[0].mxu0
      %v1528 = vadd.f32 %v1431, %v1527
      %v1529 = vpop.f32.mrb[0].mxu0
      %v1530 = vpop.f32.mrb[0].mxu0
      %v1531 = vadd.f32 %v1434, %v1530
      %v1532 = vpop.f32.mrb[0].mxu0
      %1533 = vmatprep.mubr.bf16.mxu0 %v883
      %1534 = vmatmul.mubr.bf16.gmra.mrb[0].mxu0 %v882
      %v1535 = vpop.f32.mrb[0].mxu0
      %v1536 = vadd.f32 %v1439, %v1535
      %v1537 = vpop.f32.mrb[0].mxu0
      %v1538 = vpop.f32.mrb[0].mxu0
      %v1539 = vadd.f32 %v1442, %v1538
      %v1540 = vpop.f32.mrb[0].mxu0
      %1541 = vmatprep.mubr.bf16.mxu0 %v890
      %1542 = vmatmul.mubr.bf16.gmra.mrb[0].mxu0 %v889
      %v1543 = vpop.f32.mrb[0].mxu0
      %v1544 = vadd.f32 %v1447, %v1543
      %v1545 = vpop.f32.mrb[0].mxu0
      %v1546 = vpop.f32.mrb[0].mxu0
      %v1547 = vadd.f32 %v1450, %v1546
      %v1548 = vpop.f32.mrb[0].mxu0
      %1549 = vdwg.mxu0
      %1550 = vmatprep.subr.bf16.mxu0 0
      %1551 = vmatpush1.bf16.msra.mxu0 %v1184
      %1552 = vmatprep.subr.bf16.mxu0 0
      %1553 = vmatpush1.bf16.msra.mxu0 0
      %1554 = vmatprep.subr.bf16.mxu0 0
      %1555 = vmatpush1.bf16.msra.mxu0 0
      %1556 = vmatprep.subr.bf16.mxu0 0
      %1557 = vmatpush1.bf16.msra.mxu0 0
      %1558 = vmatprep.subr.bf16.mxu0 0
      %1559 = vmatpush1.bf16.msra.mxu0 0
      %1560 = vmatprep.subr.bf16.mxu0 0
      %1561 = vmatpush1.bf16.msra.mxu0 0
      %1562 = vmatprep.subr.bf16.mxu0 0
      %1563 = vmatpush1.bf16.msra.mxu0 0
      %1564 = vmatprep.subr.bf16.mxu0 0
      %1565 = vmatpush1.bf16.msra.mxu0 0
      %1566 = vmatprep.subr.bf16.mxu0 0
      %1567 = vmatpush1.bf16.msra.mxu0 0
      %1568 = vmatprep.subr.bf16.mxu0 0
      %1569 = vmatpush1.bf16.msra.mxu0 0
      %1570 = vmatprep.subr.bf16.mxu0 0
      %1571 = vmatpush1.bf16.msra.mxu0 0
      %1572 = vmatprep.subr.bf16.mxu0 0
      %1573 = vmatpush1.bf16.msra.mxu0 0
      %1574 = vmatprep.subr.bf16.mxu0 0
      %1575 = vmatpush1.bf16.msra.mxu0 0
      %1576 = vmatprep.subr.bf16.mxu0 0
      %1577 = vmatpush1.bf16.msra.mxu0 0
      %1578 = vmatprep.subr.bf16.mxu0 0
      %1579 = vmatpush1.bf16.msra.mxu0 0
      %1580 = vmatprep.subr.bf16.mxu0 0
      %1581 = vmatpush1.bf16.msra.mxu0 0
      %1582 = vmatprep.mubr.bf16.mxu0 0
      %1583 = vmatmul.mubr.bf16.gmra.mrb[0].mxu0 %v1236
      %v1584 = vpop.f32.mrb[0].mxu0
      %v1585 = vadd.f32 %v1488, %v1584
      %v1586 = vpop.f32.mrb[0].mxu0
      %v1587 = vpop.f32.mrb[0].mxu0
      %v1588 = vadd.f32 %v1491, %v1587
      %v1589 = vpop.f32.mrb[0].mxu0
      %1590 = vmatprep.mubr.bf16.mxu0 0
      %1591 = vmatmul.mubr.bf16.gmra.mrb[0].mxu0 %v1239
      %v1592 = vpop.f32.mrb[0].mxu0
      %v1593 = vadd.f32 %v1496, %v1592
      %v1594 = vpop.f32.mrb[0].mxu0
      %v1595 = vpop.f32.mrb[0].mxu0
      %v1596 = vadd.f32 %v1499, %v1595
      %v1597 = vpop.f32.mrb[0].mxu0
      %1598 = vmatprep.mubr.bf16.mxu0 0
      %1599 = vmatmul.mubr.bf16.gmra.mrb[0].mxu0 %v1242
      %v1600 = vpop.f32.mrb[0].mxu0
      %v1601 = vadd.f32 %v1504, %v1600
      %v1602 = vpop.f32.mrb[0].mxu0
      %v1603 = vpop.f32.mrb[0].mxu0
      %v1604 = vadd.f32 %v1507, %v1603
      %v1605 = vpop.f32.mrb[0].mxu0
      %1606 = vmatprep.mubr.bf16.mxu0 0
      %1607 = vmatmul.mubr.bf16.gmra.mrb[0].mxu0 %v1245
      %v1608 = vpop.f32.mrb[0].mxu0
      %v1609 = vadd.f32 %v1512, %v1608
      %v1610 = vpop.f32.mrb[0].mxu0
      %v1611 = vpop.f32.mrb[0].mxu0
      %v1612 = vadd.f32 %v1515, %v1611
      %v1613 = vpop.f32.mrb[0].mxu0
      %1614 = vmatprep.mubr.bf16.mxu0 0
      %1615 = vmatmul.mubr.bf16.gmra.mrb[0].mxu0 %v1248
      %v1616 = vpop.f32.mrb[0].mxu0
      %v1617 = vadd.f32 %v1520, %v1616
      %v1618 = vpop.f32.mrb[0].mxu0
      %v1619 = vpop.f32.mrb[0].mxu0
      %v1620 = vadd.f32 %v1523, %v1619
      %v1621 = vpop.f32.mrb[0].mxu0
      %1622 = vmatprep.mubr.bf16.mxu0 0
      %1623 = vmatmul.mubr.bf16.gmra.mrb[0].mxu0 %v1251
      %v1624 = vpop.f32.mrb[0].mxu0
      %v1625 = vadd.f32 %v1528, %v1624
      %v1626 = vpop.f32.mrb[0].mxu0
      %v1627 = vpop.f32.mrb[0].mxu0
      %v1628 = vadd.f32 %v1531, %v1627
      %v1629 = vpop.f32.mrb[0].mxu0
      %1630 = vmatprep.mubr.bf16.mxu0 0
      %1631 = vmatmul.mubr.bf16.gmra.mrb[0].mxu0 %v1254
      %v1632 = vpop.f32.mrb[0].mxu0
      %v1633 = vadd.f32 %v1536, %v1632
      %v1634 = vpop.f32.mrb[0].mxu0
      %v1635 = vpop.f32.mrb[0].mxu0
      %v1636 = vadd.f32 %v1539, %v1635
      %v1637 = vpop.f32.mrb[0].mxu0
      %1638 = vmatprep.mubr.bf16.mxu0 0
      %1639 = vmatmul.mubr.bf16.gmra.mrb[0].mxu0 %v1257
      %v1640 = vpop.f32.mrb[0].mxu0
      %v1641 = vadd.f32 %v1544, %v1640
      %v1642 = vpop.f32.mrb[0].mxu0
      %v1643 = vpop.f32.mrb[0].mxu0
      %v1644 = vadd.f32 %v1547, %v1643
      %v1645 = vpop.f32.mrb[0].mxu0
      %1646 = vdwg.mxu0
      %v1647 = vmax.f32 %v1585, 0.0
      %v1648 = vmax.f32 %v1588, 0.0
      %v1649 = vmax.f32 %v1593, 0.0
      %v1650 = vmax.f32 %v1596, 0.0
      %v1651 = vmax.f32 %v1601, 0.0
      %v1652 = vmax.f32 %v1604, 0.0
      %v1653 = vmax.f32 %v1609, 0.0
      %v1654 = vmax.f32 %v1612, 0.0
      %v1655 = vmax.f32 %v1617, 0.0
      %v1656 = vmax.f32 %v1620, 0.0
      %v1657 = vmax.f32 %v1625, 0.0
      %v1658 = vmax.f32 %v1628, 0.0
      %v1659 = vmax.f32 %v1633, 0.0
      %v1660 = vmax.f32 %v1636, 0.0
      %v1661 = vmax.f32 %v1641, 0.0
      %v1662 = vmax.f32 %v1644, 0.0
      %v1663 = vld [vmem:[%s3] sm:$0xff]
      %v1664 = vld [vmem:[%s3 + $0x8] sm:$0xff]
      %v1665 = vld [vmem:[%s3 + $0x10] sm:$0xff]
      %v1666 = vld [vmem:[%s3 + $0x18] sm:$0xff]
      %v1667 = vld [vmem:[%s3 + $0x20] sm:$0xff]
      %v1668 = vld [vmem:[%s3 + $0x28] sm:$0xff]
      %v1669 = vld [vmem:[%s3 + $0x30] sm:$0xff]
      %v1670 = vld [vmem:[%s3 + $0x38] sm:$0xff]
      %v1671 = vld [vmem:[%s3 + $0x40] sm:$0xff]
      %v1672 = vld [vmem:[%s3 + $0x48] sm:$0xff]
      %v1673 = vld [vmem:[%s3 + $0x50] sm:$0xff]
      %v1674 = vld [vmem:[%s3 + $0x58] sm:$0xff]
      %v1675 = vld [vmem:[%s3 + $0x60] sm:$0xff]
      %v1676 = vld [vmem:[%s3 + $0x68] sm:$0xff]
      %v1677 = vld [vmem:[%s3 + $0x70] sm:$0xff]
      %v1678 = vld [vmem:[%s3 + $0x78] sm:$0xff]
      %v1679 = vld [vmem:[%s4] sm:$0x1]
      %v1681 = vlaneseq
      %v1682 = vshrl.u32 %v1681, 7
      %v1683 = vsub.s32 0, %v1682
      %v1684 = vrot.slane %v1679, %v1683
      %1686 = vmatprep.subr.mxu0 0.0
      %1687 = vmatpush1.msra.mxu0 %v1663
      %1688 = vmatprep.subr.mxu0 0.0
      %1689 = vmatpush1.msra.mxu0 %v1664
      %1690 = vmatprep.subr.mxu0 0.0
      %1691 = vmatpush1.msra.mxu0 %v1665
      %1692 = vmatprep.subr.mxu0 0.0
      %1693 = vmatpush1.msra.mxu0 %v1666
      %1694 = vmatprep.subr.mxu0 0.0
      %1695 = vmatpush1.msra.mxu0 %v1667
      %1696 = vmatprep.subr.mxu0 0.0
      %1697 = vmatpush1.msra.mxu0 %v1668
      %1698 = vmatprep.subr.mxu0 0.0
      %1699 = vmatpush1.msra.mxu0 %v1669
      %1700 = vmatprep.subr.mxu0 0.0
      %1701 = vmatpush1.msra.mxu0 %v1670
      %1702 = vmatprep.subr.mxu0 0.0
      %1703 = vmatpush1.msra.mxu0 %v1671
      %1704 = vmatprep.subr.mxu0 0.0
      %1705 = vmatpush1.msra.mxu0 %v1672
      %1706 = vmatprep.subr.mxu0 0.0
      %1707 = vmatpush1.msra.mxu0 %v1673
      %1708 = vmatprep.subr.mxu0 0.0
      %1709 = vmatpush1.msra.mxu0 %v1674
      %1710 = vmatprep.subr.mxu0 0.0
      %1711 = vmatpush1.msra.mxu0 %v1675
      %1712 = vmatprep.subr.mxu0 0.0
      %1713 = vmatpush1.msra.mxu0 %v1676
      %1714 = vmatprep.subr.mxu0 0.0
      %1715 = vmatpush1.msra.mxu0 %v1677
      %1716 = vmatprep.subr.mxu0 0.0
      %1717 = vmatpush1.msra.mxu0 %v1678
      %1718 = vmatprep.subr.mxu0 0.0
      %1719 = vmatpush1.msra.mxu0 0.0
      %1720 = vmatprep.subr.mxu0 0.0
      %1721 = vmatpush1.msra.mxu0 0.0
      %1722 = vmatprep.subr.mxu0 0.0
      %1723 = vmatpush1.msra.mxu0 0.0
      %1724 = vmatprep.subr.mxu0 0.0
      %1725 = vmatpush1.msra.mxu0 0.0
      %1726 = vmatprep.subr.mxu0 0.0
      %1727 = vmatpush1.msra.mxu0 0.0
      %1728 = vmatprep.subr.mxu0 0.0
      %1729 = vmatpush1.msra.mxu0 0.0
      %1730 = vmatprep.subr.mxu0 0.0
      %1731 = vmatpush1.msra.mxu0 0.0
      %1732 = vmatprep.subr.mxu0 0.0
      %1733 = vmatpush1.msra.mxu0 0.0
      %1734 = vmatprep.subr.mxu0 0.0
      %1735 = vmatpush1.msra.mxu0 0.0
      %1736 = vmatprep.subr.mxu0 0.0
      %1737 = vmatpush1.msra.mxu0 0.0
      %1738 = vmatprep.subr.mxu0 0.0
      %1739 = vmatpush1.msra.mxu0 0.0
      %1740 = vmatprep.subr.mxu0 0.0
      %1741 = vmatpush1.msra.mxu0 0.0
      %1742 = vmatprep.subr.mxu0 0.0
      %1743 = vmatpush1.msra.mxu0 0.0
      %1744 = vmatprep.subr.mxu0 0.0
      %1745 = vmatpush1.msra.mxu0 0.0
      %1746 = vmatprep.subr.mxu0 0.0
      %1747 = vmatpush1.msra.mxu0 0.0
      %1748 = vmatprep.subr.mxu0 0.0
      %1749 = vmatpush1.msra.mxu0 0.0
      %1750 = vmatprep.mubr.f32.mxu0 0.0
      %1751 = vmatmul.mubr.f32.gmra.mrb[0].mxu0 %v1647
      %v1752 = vpop.f32.mrb[0].mxu0
      %v1753 = vadd.f32 %v1684, %v1752
      %v1754 = vpop.f32.mrb[0].mxu0
      %1755 = vmatprep.mubr.f32.mxu0 0.0
      %1756 = vmatmul.mubr.f32.gmra.mrb[0].mxu0 %v1648
      %v1757 = vpop.f32.mrb[0].mxu0
      %v1758 = vadd.f32 %v1684, %v1757
      %v1759 = vpop.f32.mrb[0].mxu0
      %1760 = vmatprep.mubr.f32.mxu0 0.0
      %1761 = vmatmul.mubr.f32.gmra.mrb[0].mxu0 %v1649
      %v1762 = vpop.f32.mrb[0].mxu0
      %v1763 = vadd.f32 %v1684, %v1762
      %v1764 = vpop.f32.mrb[0].mxu0
      %1765 = vmatprep.mubr.f32.mxu0 0.0
      %1766 = vmatmul.mubr.f32.gmra.mrb[0].mxu0 %v1650
      %v1767 = vpop.f32.mrb[0].mxu0
      %v1768 = vadd.f32 %v1684, %v1767
      %v1769 = vpop.f32.mrb[0].mxu0
      %1770 = vmatprep.mubr.f32.mxu0 0.0
      %1771 = vmatmul.mubr.f32.gmra.mrb[0].mxu0 %v1651
      %v1772 = vpop.f32.mrb[0].mxu0
      %v1773 = vadd.f32 %v1684, %v1772
      %v1774 = vpop.f32.mrb[0].mxu0
      %1775 = vmatprep.mubr.f32.mxu0 0.0
      %1776 = vmatmul.mubr.f32.gmra.mrb[0].mxu0 %v1652
      %v1777 = vpop.f32.mrb[0].mxu0
      %v1778 = vadd.f32 %v1684, %v1777
      %v1779 = vpop.f32.mrb[0].mxu0
      %1780 = vmatprep.mubr.f32.mxu0 0.0
      %1781 = vmatmul.mubr.f32.gmra.mrb[0].mxu0 %v1653
      %v1782 = vpop.f32.mrb[0].mxu0
      %v1783 = vadd.f32 %v1684, %v1782
      %v1784 = vpop.f32.mrb[0].mxu0
      %1785 = vmatprep.mubr.f32.mxu0 0.0
      %1786 = vmatmul.mubr.f32.gmra.mrb[0].mxu0 %v1654
      %v1787 = vpop.f32.mrb[0].mxu0
      %v1788 = vadd.f32 %v1684, %v1787
      %v1789 = vpop.f32.mrb[0].mxu0
      %1790 = vmatprep.mubr.f32.mxu0 0.0
      %1791 = vmatmul.mubr.f32.gmra.mrb[0].mxu0 %v1655
      %v1792 = vpop.f32.mrb[0].mxu0
      %v1793 = vadd.f32 %v1684, %v1792
      %v1794 = vpop.f32.mrb[0].mxu0
      %1795 = vmatprep.mubr.f32.mxu0 0.0
      %1796 = vmatmul.mubr.f32.gmra.mrb[0].mxu0 %v1656
      %v1797 = vpop.f32.mrb[0].mxu0
      %v1798 = vadd.f32 %v1684, %v1797
      %v1799 = vpop.f32.mrb[0].mxu0
      %1800 = vmatprep.mubr.f32.mxu0 0.0
      %1801 = vmatmul.mubr.f32.gmra.mrb[0].mxu0 %v1657
      %v1802 = vpop.f32.mrb[0].mxu0
      %v1803 = vadd.f32 %v1684, %v1802
      %v1804 = vpop.f32.mrb[0].mxu0
      %1805 = vmatprep.mubr.f32.mxu0 0.0
      %1806 = vmatmul.mubr.f32.gmra.mrb[0].mxu0 %v1658
      %v1807 = vpop.f32.mrb[0].mxu0
      %v1808 = vadd.f32 %v1684, %v1807
      %v1809 = vpop.f32.mrb[0].mxu0
      %1810 = vmatprep.mubr.f32.mxu0 0.0
      %1811 = vmatmul.mubr.f32.gmra.mrb[0].mxu0 %v1659
      %v1812 = vpop.f32.mrb[0].mxu0
      %v1813 = vadd.f32 %v1684, %v1812
      %v1814 = vpop.f32.mrb[0].mxu0
      %1815 = vmatprep.mubr.f32.mxu0 0.0
      %1816 = vmatmul.mubr.f32.gmra.mrb[0].mxu0 %v1660
      %v1817 = vpop.f32.mrb[0].mxu0
      %v1818 = vadd.f32 %v1684, %v1817
      %v1819 = vpop.f32.mrb[0].mxu0
      %1820 = vmatprep.mubr.f32.mxu0 0.0
      %1821 = vmatmul.mubr.f32.gmra.mrb[0].mxu0 %v1661
      %v1822 = vpop.f32.mrb[0].mxu0
      %v1823 = vadd.f32 %v1684, %v1822
      %v1824 = vpop.f32.mrb[0].mxu0
      %1825 = vmatprep.mubr.f32.mxu0 0.0
      %1826 = vmatmul.mubr.f32.gmra.mrb[0].mxu0 %v1662
      %v1827 = vpop.f32.mrb[0].mxu0
      %v1828 = vadd.f32 %v1684, %v1827
      %v1829 = vpop.f32.mrb[0].mxu0
      %1830 = vdwg.mxu0
      %v1831 = vld [vmem:[%s5] sm:$0xff]
      %v1832 = vld [vmem:[%s5 + $0x8] sm:$0xff]
      %v1833 = vld [vmem:[%s6] sm:$0x1]
      %v1835 = vlaneseq
      %v1836 = vshrl.u32 %v1835, 7
      %v1837 = vsub.s32 0, %v1836
      %v1838 = vrot.slane %v1833, %v1837
      %v1841 = vsel %vm1234, %v1753, 0
      %v1844 = vsel %vm1234, %v1758, 0
      %v1847 = vsel %vm1234, %v1763, 0
      %v1850 = vsel %vm1234, %v1768, 0
      %v1853 = vsel %vm1234, %v1773, 0
      %v1856 = vsel %vm1234, %v1778, 0
      %v1859 = vsel %vm1234, %v1783, 0
      %v1862 = vsel %vm1234, %v1788, 0
      %v1865 = vsel %vm1234, %v1793, 0
      %v1868 = vsel %vm1234, %v1798, 0
      %v1871 = vsel %vm1234, %v1803, 0
      %v1874 = vsel %vm1234, %v1808, 0
      %v1877 = vsel %vm1234, %v1813, 0
      %v1880 = vsel %vm1234, %v1818, 0
      %v1883 = vsel %vm1234, %v1823, 0
      %v1886 = vsel %vm1234, %v1828, 0
      %1888 = vmatprep.subr.mxu0 0.0
      %1889 = vmatpush1.msra.mxu0 %v1831
      %1890 = vmatprep.subr.mxu0 0.0
      %1891 = vmatpush1.msra.mxu0 %v1832
      %1892 = vmatprep.subr.mxu0 0.0
      %1893 = vmatpush1.msra.mxu0 0.0
      %1894 = vmatprep.subr.mxu0 0.0
      %1895 = vmatpush1.msra.mxu0 0.0
      %1896 = vmatprep.subr.mxu0 0.0
      %1897 = vmatpush1.msra.mxu0 0.0
      %1898 = vmatprep.subr.mxu0 0.0
      %1899 = vmatpush1.msra.mxu0 0.0
      %1900 = vmatprep.subr.mxu0 0.0
      %1901 = vmatpush1.msra.mxu0 0.0
      %1902 = vmatprep.subr.mxu0 0.0
      %1903 = vmatpush1.msra.mxu0 0.0
      %1904 = vmatprep.subr.mxu0 0.0
      %1905 = vmatpush1.msra.mxu0 0.0
      %1906 = vmatprep.subr.mxu0 0.0
      %1907 = vmatpush1.msra.mxu0 0.0
      %1908 = vmatprep.subr.mxu0 0.0
      %1909 = vmatpush1.msra.mxu0 0.0
      %1910 = vmatprep.subr.mxu0 0.0
      %1911 = vmatpush1.msra.mxu0 0.0
      %1912 = vmatprep.subr.mxu0 0.0
      %1913 = vmatpush1.msra.mxu0 0.0
      %1914 = vmatprep.subr.mxu0 0.0
      %1915 = vmatpush1.msra.mxu0 0.0
      %1916 = vmatprep.subr.mxu0 0.0
      %1917 = vmatpush1.msra.mxu0 0.0
      %1918 = vmatprep.subr.mxu0 0.0
      %1919 = vmatpush1.msra.mxu0 0.0
      %1920 = vmatprep.subr.mxu0 0.0
      %1921 = vmatpush1.msra.mxu0 0.0
      %1922 = vmatprep.subr.mxu0 0.0
      %1923 = vmatpush1.msra.mxu0 0.0
      %1924 = vmatprep.subr.mxu0 0.0
      %1925 = vmatpush1.msra.mxu0 0.0
      %1926 = vmatprep.subr.mxu0 0.0
      %1927 = vmatpush1.msra.mxu0 0.0
      %1928 = vmatprep.subr.mxu0 0.0
      %1929 = vmatpush1.msra.mxu0 0.0
      %1930 = vmatprep.subr.mxu0 0.0
      %1931 = vmatpush1.msra.mxu0 0.0
      %1932 = vmatprep.subr.mxu0 0.0
      %1933 = vmatpush1.msra.mxu0 0.0
      %1934 = vmatprep.subr.mxu0 0.0
      %1935 = vmatpush1.msra.mxu0 0.0
      %1936 = vmatprep.subr.mxu0 0.0
      %1937 = vmatpush1.msra.mxu0 0.0
      %1938 = vmatprep.subr.mxu0 0.0
      %1939 = vmatpush1.msra.mxu0 0.0
      %1940 = vmatprep.subr.mxu0 0.0
      %1941 = vmatpush1.msra.mxu0 0.0
      %1942 = vmatprep.subr.mxu0 0.0
      %1943 = vmatpush1.msra.mxu0 0.0
      %1944 = vmatprep.subr.mxu0 0.0
      %1945 = vmatpush1.msra.mxu0 0.0
      %1946 = vmatprep.subr.mxu0 0.0
      %1947 = vmatpush1.msra.mxu0 0.0
      %1948 = vmatprep.subr.mxu0 0.0
      %1949 = vmatpush1.msra.mxu0 0.0
      %1950 = vmatprep.subr.mxu0 0.0
      %1951 = vmatpush1.msra.mxu0 0.0
      %1952 = vmatprep.mubr.f32.mxu0 0.0
      %1953 = vmatmul.mubr.f32.gmra.mrb[0].mxu0 %v1841
      %v1954 = vpop.f32.mrb[0].mxu0
      %v1955 = vadd.f32 %v1838, %v1954
      %v1956 = vpop.f32.mrb[0].mxu0
      %1957 = vmatprep.mubr.f32.mxu0 0.0
      %1958 = vmatmul.mubr.f32.gmra.mrb[0].mxu0 %v1844
      %v1959 = vpop.f32.mrb[0].mxu0
      %v1960 = vadd.f32 %v1838, %v1959
      %v1961 = vpop.f32.mrb[0].mxu0
      %1962 = vmatprep.mubr.f32.mxu0 0.0
      %1963 = vmatmul.mubr.f32.gmra.mrb[0].mxu0 %v1847
      %v1964 = vpop.f32.mrb[0].mxu0
      %v1965 = vadd.f32 %v1838, %v1964
      %v1966 = vpop.f32.mrb[0].mxu0
      %1967 = vmatprep.mubr.f32.mxu0 0.0
      %1968 = vmatmul.mubr.f32.gmra.mrb[0].mxu0 %v1850
      %v1969 = vpop.f32.mrb[0].mxu0
      %v1970 = vadd.f32 %v1838, %v1969
      %v1971 = vpop.f32.mrb[0].mxu0
      %1972 = vmatprep.mubr.f32.mxu0 0.0
      %1973 = vmatmul.mubr.f32.gmra.mrb[0].mxu0 %v1853
      %v1974 = vpop.f32.mrb[0].mxu0
      %v1975 = vadd.f32 %v1838, %v1974
      %v1976 = vpop.f32.mrb[0].mxu0
      %1977 = vmatprep.mubr.f32.mxu0 0.0
      %1978 = vmatmul.mubr.f32.gmra.mrb[0].mxu0 %v1856
      %v1979 = vpop.f32.mrb[0].mxu0
      %v1980 = vadd.f32 %v1838, %v1979
      %v1981 = vpop.f32.mrb[0].mxu0
      %1982 = vmatprep.mubr.f32.mxu0 0.0
      %1983 = vmatmul.mubr.f32.gmra.mrb[0].mxu0 %v1859
      %v1984 = vpop.f32.mrb[0].mxu0
      %v1985 = vadd.f32 %v1838, %v1984
      %v1986 = vpop.f32.mrb[0].mxu0
      %1987 = vmatprep.mubr.f32.mxu0 0.0
      %1988 = vmatmul.mubr.f32.gmra.mrb[0].mxu0 %v1862
      %v1989 = vpop.f32.mrb[0].mxu0
      %v1990 = vadd.f32 %v1838, %v1989
      %v1991 = vpop.f32.mrb[0].mxu0
      %1992 = vmatprep.mubr.f32.mxu0 0.0
      %1993 = vmatmul.mubr.f32.gmra.mrb[0].mxu0 %v1865
      %v1994 = vpop.f32.mrb[0].mxu0
      %v1995 = vadd.f32 %v1838, %v1994
      %v1996 = vpop.f32.mrb[0].mxu0
      %1997 = vmatprep.mubr.f32.mxu0 0.0
      %1998 = vmatmul.mubr.f32.gmra.mrb[0].mxu0 %v1868
      %v1999 = vpop.f32.mrb[0].mxu0
      %v2000 = vadd.f32 %v1838, %v1999
      %v2001 = vpop.f32.mrb[0].mxu0
      %2002 = vmatprep.mubr.f32.mxu0 0.0
      %2003 = vmatmul.mubr.f32.gmra.mrb[0].mxu0 %v1871
      %v2004 = vpop.f32.mrb[0].mxu0
      %v2005 = vadd.f32 %v1838, %v2004
      %v2006 = vpop.f32.mrb[0].mxu0
      %2007 = vmatprep.mubr.f32.mxu0 0.0
      %2008 = vmatmul.mubr.f32.gmra.mrb[0].mxu0 %v1874
      %v2009 = vpop.f32.mrb[0].mxu0
      %v2010 = vadd.f32 %v1838, %v2009
      %v2011 = vpop.f32.mrb[0].mxu0
      %2012 = vmatprep.mubr.f32.mxu0 0.0
      %2013 = vmatmul.mubr.f32.gmra.mrb[0].mxu0 %v1877
      %v2014 = vpop.f32.mrb[0].mxu0
      %v2015 = vadd.f32 %v1838, %v2014
      %v2016 = vpop.f32.mrb[0].mxu0
      %2017 = vmatprep.mubr.f32.mxu0 0.0
      %2018 = vmatmul.mubr.f32.gmra.mrb[0].mxu0 %v1880
      %v2019 = vpop.f32.mrb[0].mxu0
      %v2020 = vadd.f32 %v1838, %v2019
      %v2021 = vpop.f32.mrb[0].mxu0
      %2022 = vmatprep.mubr.f32.mxu0 0.0
      %2023 = vmatmul.mubr.f32.gmra.mrb[0].mxu0 %v1883
      %v2024 = vpop.f32.mrb[0].mxu0
      %v2025 = vadd.f32 %v1838, %v2024
      %v2026 = vpop.f32.mrb[0].mxu0
      %2027 = vmatprep.mubr.f32.mxu0 0.0
      %2028 = vmatmul.mubr.f32.gmra.mrb[0].mxu0 %v1886
      %v2029 = vpop.f32.mrb[0].mxu0
      %v2030 = vadd.f32 %v1838, %v2029
      %v2031 = vpop.f32.mrb[0].mxu0
      %2032 = vdwg.mxu0
      %v2033 = vmax.f32 %v1955, 0.0
      %v2034 = vmax.f32 %v1960, 0.0
      %v2035 = vmax.f32 %v1965, 0.0
      %v2036 = vmax.f32 %v1970, 0.0
      %v2037 = vmax.f32 %v1975, 0.0
      %v2038 = vmax.f32 %v1980, 0.0
      %v2039 = vmax.f32 %v1985, 0.0
      %v2040 = vmax.f32 %v1990, 0.0
      %v2041 = vmax.f32 %v1995, 0.0
      %v2042 = vmax.f32 %v2000, 0.0
      %v2043 = vmax.f32 %v2005, 0.0
      %v2044 = vmax.f32 %v2010, 0.0
      %v2045 = vmax.f32 %v2015, 0.0
      %v2046 = vmax.f32 %v2020, 0.0
      %v2047 = vmax.f32 %v2025, 0.0
      %v2048 = vmax.f32 %v2030, 0.0
      %v2049 = vld [vmem:[%s7] sm:$0x1]
      %v2050 = vld [vmem:[#allocation2] sm:$0x1]
      %2052 = vset.pattern.permute.xlu0 0
      %2053 = vperm.xlu0 %2052, %v2050
      %v2054 = vpop.permute.xlu0 %2053
      %v2056 = vlaneseq
      %v2057 = vshrl.u32 %v2056, 7
      %v2058 = vsub.s32 0, %v2057
      %v2059 = vrot.slane %v2054, %v2058
      %vm2060 = vcmask 64512
      %v2062 = vsel %vm2060, %v2049, 0
      %v2065 = vsel %vm2060, %v2033, 0
      %2067 = vmatprep.subr.mxu0 0.0
      %2068 = vmatpush1.xpose.msra.mxu0 %v2065
      %2069 = vmatprep.subr.mxu0 0.0
      %2070 = vmatpush1.xpose.msra.mxu0 0.0
      %2071 = vmatprep.subr.mxu0 0.0
      %2072 = vmatpush1.xpose.msra.mxu0 0.0
      %2073 = vmatprep.subr.mxu0 0.0
      %2074 = vmatpush1.xpose.msra.mxu0 0.0
      %2075 = vmatprep.subr.mxu0 0.0
      %2076 = vmatpush1.xpose.msra.mxu0 0.0
      %2077 = vmatprep.subr.mxu0 0.0
      %2078 = vmatpush1.xpose.msra.mxu0 0.0
      %2079 = vmatprep.subr.mxu0 0.0
      %2080 = vmatpush1.xpose.msra.mxu0 0.0
      %2081 = vmatprep.subr.mxu0 0.0
      %2082 = vmatpush1.xpose.msra.mxu0 0.0
      %2083 = vmatprep.subr.mxu0 0.0
      %2084 = vmatpush1.xpose.msra.mxu0 0.0
      %2085 = vmatprep.subr.mxu0 0.0
      %2086 = vmatpush1.xpose.msra.mxu0 0.0
      %2087 = vmatprep.subr.mxu0 0.0
      %2088 = vmatpush1.xpose.msra.mxu0 0.0
      %2089 = vmatprep.subr.mxu0 0.0
      %2090 = vmatpush1.xpose.msra.mxu0 0.0
      %2091 = vmatprep.subr.mxu0 0.0
      %2092 = vmatpush1.xpose.msra.mxu0 0.0
      %2093 = vmatprep.subr.mxu0 0.0
      %2094 = vmatpush1.xpose.msra.mxu0 0.0
      %2095 = vmatprep.subr.mxu0 0.0
      %2096 = vmatpush1.xpose.msra.mxu0 0.0
      %2097 = vmatprep.subr.mxu0 0.0
      %2098 = vmatpush1.xpose.msra.mxu0 0.0
      %2099 = vmatprep.subr.mxu0 0.0
      %2100 = vmatpush1.xpose.msra.mxu0 0.0
      %2101 = vmatprep.subr.mxu0 0.0
      %2102 = vmatpush1.xpose.msra.mxu0 0.0
      %2103 = vmatprep.subr.mxu0 0.0
      %2104 = vmatpush1.xpose.msra.mxu0 0.0
      %2105 = vmatprep.subr.mxu0 0.0
      %2106 = vmatpush1.xpose.msra.mxu0 0.0
      %2107 = vmatprep.subr.mxu0 0.0
      %2108 = vmatpush1.xpose.msra.mxu0 0.0
      %2109 = vmatprep.subr.mxu0 0.0
      %2110 = vmatpush1.xpose.msra.mxu0 0.0
      %2111 = vmatprep.subr.mxu0 0.0
      %2112 = vmatpush1.xpose.msra.mxu0 0.0
      %2113 = vmatprep.subr.mxu0 0.0
      %2114 = vmatpush1.xpose.msra.mxu0 0.0
      %2115 = vmatprep.subr.mxu0 0.0
      %2116 = vmatpush1.xpose.msra.mxu0 0.0
      %2117 = vmatprep.subr.mxu0 0.0
      %2118 = vmatpush1.xpose.msra.mxu0 0.0
      %2119 = vmatprep.subr.mxu0 0.0
      %2120 = vmatpush1.xpose.msra.mxu0 0.0
      %2121 = vmatprep.subr.mxu0 0.0
      %2122 = vmatpush1.xpose.msra.mxu0 0.0
      %2123 = vmatprep.subr.mxu0 0.0
      %2124 = vmatpush1.xpose.msra.mxu0 0.0
      %2125 = vmatprep.subr.mxu0 0.0
      %2126 = vmatpush1.xpose.msra.mxu0 0.0
      %2127 = vmatprep.subr.mxu0 0.0
      %2128 = vmatpush1.xpose.msra.mxu0 0.0
      %2129 = vmatprep.subr.mxu0 0.0
      %2130 = vmatpush1.xpose.msra.mxu0 0.0
      %2131 = vmatprep.mubr.f32.mxu0 0.0
      %2132 = vmatmul.mubr.f32.gmra.mrb[0].mxu0 %v2062
      %v2133 = vpop.f32.mrb[0].mxu0
      %v2134 = vadd.f32 %v2059, %v2133
      %v2135 = vpop.f32.mrb[0].mxu0
      %2136 = vdwg.mxu0
      %vm2137 = vcmask 57344
      %v2138 = vsel %vm2137, %v2134, -inf
      %2139 = vmax.xlane.f32.xlu0 %v2138
      %v2140 = vpop.xlane.xlu0 %2139
      %v2141 = vsub.f32 %v2134, %v2140
      %v2142 = vmul.f32 %v2141, 1.442695
      %v2143 = vpow.pop %v2142
      %v2144 = vsel %vm2137, %v2143, 0.0
      %2145 = vadd.xlane.f32.xlu0 %v2144
      %v2146 = vpop.xlane.xlu0 %2145
      %v2147 = vrcp.pop %v2146
      %v2148 = vmul.f32 %v2143, %v2147
      %2149 = vst.msk [vmem:[%s488] sm:$0x1] %vm2137, %v2148
      %v2151 = vsel %vm2060, %v2148, 0
      %2153 = vmatprep.subr.mxu0 0.0
      %2154 = vmatpush1.msra.mxu0 %v1753
      %2155 = vmatprep.subr.mxu0 0.0
      %2156 = vmatpush1.msra.mxu0 0.0
      %2157 = vmatprep.subr.mxu0 0.0
      %2158 = vmatpush1.msra.mxu0 0.0
      %2159 = vmatprep.subr.mxu0 0.0
      %2160 = vmatpush1.msra.mxu0 0.0
      %2161 = vmatprep.subr.mxu0 0.0
      %2162 = vmatpush1.msra.mxu0 0.0
      %2163 = vmatprep.subr.mxu0 0.0
      %2164 = vmatpush1.msra.mxu0 0.0
      %2165 = vmatprep.subr.mxu0 0.0
      %2166 = vmatpush1.msra.mxu0 0.0
      %2167 = vmatprep.subr.mxu0 0.0
      %2168 = vmatpush1.msra.mxu0 0.0
      %2169 = vmatprep.subr.mxu0 0.0
      %2170 = vmatpush1.msra.mxu0 0.0
      %2171 = vmatprep.subr.mxu0 0.0
      %2172 = vmatpush1.msra.mxu0 0.0
      %2173 = vmatprep.subr.mxu0 0.0
      %2174 = vmatpush1.msra.mxu0 0.0
      %2175 = vmatprep.subr.mxu0 0.0
      %2176 = vmatpush1.msra.mxu0 0.0
      %2177 = vmatprep.subr.mxu0 0.0
      %2178 = vmatpush1.msra.mxu0 0.0
      %2179 = vmatprep.subr.mxu0 0.0
      %2180 = vmatpush1.msra.mxu0 0.0
      %2181 = vmatprep.subr.mxu0 0.0
      %2182 = vmatpush1.msra.mxu0 0.0
      %2183 = vmatprep.subr.mxu0 0.0
      %2184 = vmatpush1.msra.mxu0 0.0
      %2185 = vmatprep.subr.mxu0 0.0
      %2186 = vmatpush1.msra.mxu0 0.0
      %2187 = vmatprep.subr.mxu0 0.0
      %2188 = vmatpush1.msra.mxu0 0.0
      %2189 = vmatprep.subr.mxu0 0.0
      %2190 = vmatpush1.msra.mxu0 0.0
      %2191 = vmatprep.subr.mxu0 0.0
      %2192 = vmatpush1.msra.mxu0 0.0
      %2193 = vmatprep.subr.mxu0 0.0
      %2194 = vmatpush1.msra.mxu0 0.0
      %2195 = vmatprep.subr.mxu0 0.0
      %2196 = vmatpush1.msra.mxu0 0.0
      %2197 = vmatprep.subr.mxu0 0.0
      %2198 = vmatpush1.msra.mxu0 0.0
      %2199 = vmatprep.subr.mxu0 0.0
      %2200 = vmatpush1.msra.mxu0 0.0
      %2201 = vmatprep.subr.mxu0 0.0
      %2202 = vmatpush1.msra.mxu0 0.0
      %2203 = vmatprep.subr.mxu0 0.0
      %2204 = vmatpush1.msra.mxu0 0.0
      %2205 = vmatprep.subr.mxu0 0.0
      %2206 = vmatpush1.msra.mxu0 0.0
      %2207 = vmatprep.subr.mxu0 0.0
      %2208 = vmatpush1.msra.mxu0 0.0
      %2209 = vmatprep.subr.mxu0 0.0
      %2210 = vmatpush1.msra.mxu0 0.0
      %2211 = vmatprep.subr.mxu0 0.0
      %2212 = vmatpush1.msra.mxu0 0.0
      %2213 = vmatprep.subr.mxu0 0.0
      %2214 = vmatpush1.msra.mxu0 0.0
      %2215 = vmatprep.subr.mxu0 0.0
      %2216 = vmatpush1.msra.mxu0 0.0
      %2217 = vmatprep.mubr.f32.mxu0 0.0
      %2218 = vmatmul.mubr.f32.gmra.mrb[0].mxu0 %v2151
      %v2219 = vpop.f32.mrb[0].mxu0
      %v2220 = vadd.f32 0.0, %v2219
      %v2221 = vpop.f32.mrb[0].mxu0
      %2222 = vdwg.mxu0
      %v2223 = vld [vmem:[%s9] sm:$0xff]
      %v2224 = vld [vmem:[%s9 + $0x8] sm:$0xff]
      %v2225 = vld [vmem:[%s10] sm:$0x1]
      %v2227 = vsel %vm1234, %v2220, 0
      %2229 = vmatprep.subr.mxu0 0.0
      %2230 = vmatpush1.msra.mxu0 %v2223
      %2231 = vmatprep.subr.mxu0 0.0
      %2232 = vmatpush1.msra.mxu0 %v2224
      %2233 = vmatprep.subr.mxu0 0.0
      %2234 = vmatpush1.msra.mxu0 0.0
      %2235 = vmatprep.subr.mxu0 0.0
      %2236 = vmatpush1.msra.mxu0 0.0
      %2237 = vmatprep.subr.mxu0 0.0
      %2238 = vmatpush1.msra.mxu0 0.0
      %2239 = vmatprep.subr.mxu0 0.0
      %2240 = vmatpush1.msra.mxu0 0.0
      %2241 = vmatprep.subr.mxu0 0.0
      %2242 = vmatpush1.msra.mxu0 0.0
      %2243 = vmatprep.subr.mxu0 0.0
      %2244 = vmatpush1.msra.mxu0 0.0
      %2245 = vmatprep.subr.mxu0 0.0
      %2246 = vmatpush1.msra.mxu0 0.0
      %2247 = vmatprep.subr.mxu0 0.0
      %2248 = vmatpush1.msra.mxu0 0.0
      %2249 = vmatprep.subr.mxu0 0.0
      %2250 = vmatpush1.msra.mxu0 0.0
      %2251 = vmatprep.subr.mxu0 0.0
      %2252 = vmatpush1.msra.mxu0 0.0
      %2253 = vmatprep.subr.mxu0 0.0
      %2254 = vmatpush1.msra.mxu0 0.0
      %2255 = vmatprep.subr.mxu0 0.0
      %2256 = vmatpush1.msra.mxu0 0.0
      %2257 = vmatprep.subr.mxu0 0.0
      %2258 = vmatpush1.msra.mxu0 0.0
      %2259 = vmatprep.subr.mxu0 0.0
      %2260 = vmatpush1.msra.mxu0 0.0
      %2261 = vmatprep.subr.mxu0 0.0
      %2262 = vmatpush1.msra.mxu0 0.0
      %2263 = vmatprep.subr.mxu0 0.0
      %2264 = vmatpush1.msra.mxu0 0.0
      %2265 = vmatprep.subr.mxu0 0.0
      %2266 = vmatpush1.msra.mxu0 0.0
      %2267 = vmatprep.subr.mxu0 0.0
      %2268 = vmatpush1.msra.mxu0 0.0
      %2269 = vmatprep.subr.mxu0 0.0
      %2270 = vmatpush1.msra.mxu0 0.0
      %2271 = vmatprep.subr.mxu0 0.0
      %2272 = vmatpush1.msra.mxu0 0.0
      %2273 = vmatprep.subr.mxu0 0.0
      %2274 = vmatpush1.msra.mxu0 0.0
      %2275 = vmatprep.subr.mxu0 0.0
      %2276 = vmatpush1.msra.mxu0 0.0
      %2277 = vmatprep.subr.mxu0 0.0
      %2278 = vmatpush1.msra.mxu0 0.0
      %2279 = vmatprep.subr.mxu0 0.0
      %2280 = vmatpush1.msra.mxu0 0.0
      %2281 = vmatprep.subr.mxu0 0.0
      %2282 = vmatpush1.msra.mxu0 0.0
      %2283 = vmatprep.subr.mxu0 0.0
      %2284 = vmatpush1.msra.mxu0 0.0
      %2285 = vmatprep.subr.mxu0 0.0
      %2286 = vmatpush1.msra.mxu0 0.0
      %2287 = vmatprep.subr.mxu0 0.0
      %2288 = vmatpush1.msra.mxu0 0.0
      %2289 = vmatprep.subr.mxu0 0.0
      %2290 = vmatpush1.msra.mxu0 0.0
      %2291 = vmatprep.subr.mxu0 0.0
      %2292 = vmatpush1.msra.mxu0 0.0
      %2293 = vmatprep.mubr.f32.mxu0 0.0
      %2294 = vmatmul.mubr.f32.gmra.mrb[0].mxu0 %v2227
      %v2295 = vpop.f32.mrb[0].mxu0
      %v2296 = vadd.f32 %v2225, %v2295
      %v2297 = vpop.f32.mrb[0].mxu0
      %2298 = vdwg.mxu0
      %v2299 = vmax.f32 %v2296, 0.0
      %v2300 = vld [vmem:[%s11] sm:$0xff]
      %v2301 = vld [vmem:[%s12] sm:$0x1]
      %v2303 = vsel %vm2060, %v2299, 0
      %2305 = vmatprep.subr.mxu0 0.0
      %2306 = vmatpush1.msra.mxu0 %v2300
      %2307 = vmatprep.subr.mxu0 0.0
      %2308 = vmatpush1.msra.mxu0 0.0
      %2309 = vmatprep.subr.mxu0 0.0
      %2310 = vmatpush1.msra.mxu0 0.0
      %2311 = vmatprep.subr.mxu0 0.0
      %2312 = vmatpush1.msra.mxu0 0.0
      %2313 = vmatprep.subr.mxu0 0.0
      %2314 = vmatpush1.msra.mxu0 0.0
      %2315 = vmatprep.subr.mxu0 0.0
      %2316 = vmatpush1.msra.mxu0 0.0
      %2317 = vmatprep.subr.mxu0 0.0
      %2318 = vmatpush1.msra.mxu0 0.0
      %2319 = vmatprep.subr.mxu0 0.0
      %2320 = vmatpush1.msra.mxu0 0.0
      %2321 = vmatprep.subr.mxu0 0.0
      %2322 = vmatpush1.msra.mxu0 0.0
      %2323 = vmatprep.subr.mxu0 0.0
      %2324 = vmatpush1.msra.mxu0 0.0
      %2325 = vmatprep.subr.mxu0 0.0
      %2326 = vmatpush1.msra.mxu0 0.0
      %2327 = vmatprep.subr.mxu0 0.0
      %2328 = vmatpush1.msra.mxu0 0.0
      %2329 = vmatprep.subr.mxu0 0.0
      %2330 = vmatpush1.msra.mxu0 0.0
      %2331 = vmatprep.subr.mxu0 0.0
      %2332 = vmatpush1.msra.mxu0 0.0
      %2333 = vmatprep.subr.mxu0 0.0
      %2334 = vmatpush1.msra.mxu0 0.0
      %2335 = vmatprep.subr.mxu0 0.0
      %2336 = vmatpush1.msra.mxu0 0.0
      %2337 = vmatprep.subr.mxu0 0.0
      %2338 = vmatpush1.msra.mxu0 0.0
      %2339 = vmatprep.subr.mxu0 0.0
      %2340 = vmatpush1.msra.mxu0 0.0
      %2341 = vmatprep.subr.mxu0 0.0
      %2342 = vmatpush1.msra.mxu0 0.0
      %2343 = vmatprep.subr.mxu0 0.0
      %2344 = vmatpush1.msra.mxu0 0.0
      %2345 = vmatprep.subr.mxu0 0.0
      %2346 = vmatpush1.msra.mxu0 0.0
      %2347 = vmatprep.subr.mxu0 0.0
      %2348 = vmatpush1.msra.mxu0 0.0
      %2349 = vmatprep.subr.mxu0 0.0
      %2350 = vmatpush1.msra.mxu0 0.0
      %2351 = vmatprep.subr.mxu0 0.0
      %2352 = vmatpush1.msra.mxu0 0.0
      %2353 = vmatprep.subr.mxu0 0.0
      %2354 = vmatpush1.msra.mxu0 0.0
      %2355 = vmatprep.subr.mxu0 0.0
      %2356 = vmatpush1.msra.mxu0 0.0
      %2357 = vmatprep.subr.mxu0 0.0
      %2358 = vmatpush1.msra.mxu0 0.0
      %2359 = vmatprep.subr.mxu0 0.0
      %2360 = vmatpush1.msra.mxu0 0.0
      %2361 = vmatprep.subr.mxu0 0.0
      %2362 = vmatpush1.msra.mxu0 0.0
      %2363 = vmatprep.subr.mxu0 0.0
      %2364 = vmatpush1.msra.mxu0 0.0
      %2365 = vmatprep.subr.mxu0 0.0
      %2366 = vmatpush1.msra.mxu0 0.0
      %2367 = vmatprep.subr.mxu0 0.0
      %2368 = vmatpush1.msra.mxu0 0.0
      %2369 = vmatprep.mubr.f32.mxu0 0.0
      %2370 = vmatmul.mubr.f32.gmra.mrb[0].mxu0 %v2303
      %v2371 = vpop.f32.mrb[0].mxu0
      %v2372 = vadd.f32 %v2301, %v2371
      %v2373 = vpop.f32.mrb[0].mxu0
      %2374 = vdwg.mxu0
      %vm2375 = vcmask 24576
      %2376 = vst.msk [vmem:[%s482] sm:$0x1] %vm2375, %v2372
      %v2377 = vld [vmem:[#allocation2] sm:$0x1]
      %2379 = vset.pattern.permute.xlu0 0
      %2380 = vperm.xlu0 %2379, %v2377
      %v2381 = vpop.permute.xlu0 %2380
      %v2383 = vlaneseq
      %v2384 = vshrl.u32 %v2383, 7
      %v2385 = vsub.s32 0, %v2384
      %v2386 = vrot.slane %v2381, %v2385
      %v2388 = vsel %vm2060, %v2034, 0
      %2390 = vmatprep.subr.mxu0 0.0
      %2391 = vmatpush1.xpose.msra.mxu0 %v2388
      %2392 = vmatprep.subr.mxu0 0.0
      %2393 = vmatpush1.xpose.msra.mxu0 0.0
      %2394 = vmatprep.subr.mxu0 0.0
      %2395 = vmatpush1.xpose.msra.mxu0 0.0
      %2396 = vmatprep.subr.mxu0 0.0
      %2397 = vmatpush1.xpose.msra.mxu0 0.0
      %2398 = vmatprep.subr.mxu0 0.0
      %2399 = vmatpush1.xpose.msra.mxu0 0.0
      %2400 = vmatprep.subr.mxu0 0.0
      %2401 = vmatpush1.xpose.msra.mxu0 0.0
      %2402 = vmatprep.subr.mxu0 0.0
      %2403 = vmatpush1.xpose.msra.mxu0 0.0
      %2404 = vmatprep.subr.mxu0 0.0
      %2405 = vmatpush1.xpose.msra.mxu0 0.0
      %2406 = vmatprep.subr.mxu0 0.0
      %2407 = vmatpush1.xpose.msra.mxu0 0.0
      %2408 = vmatprep.subr.mxu0 0.0
      %2409 = vmatpush1.xpose.msra.mxu0 0.0
      %2410 = vmatprep.subr.mxu0 0.0
      %2411 = vmatpush1.xpose.msra.mxu0 0.0
      %2412 = vmatprep.subr.mxu0 0.0
      %2413 = vmatpush1.xpose.msra.mxu0 0.0
      %2414 = vmatprep.subr.mxu0 0.0
      %2415 = vmatpush1.xpose.msra.mxu0 0.0
      %2416 = vmatprep.subr.mxu0 0.0
      %2417 = vmatpush1.xpose.msra.mxu0 0.0
      %2418 = vmatprep.subr.mxu0 0.0
      %2419 = vmatpush1.xpose.msra.mxu0 0.0
      %2420 = vmatprep.subr.mxu0 0.0
      %2421 = vmatpush1.xpose.msra.mxu0 0.0
      %2422 = vmatprep.subr.mxu0 0.0
      %2423 = vmatpush1.xpose.msra.mxu0 0.0
      %2424 = vmatprep.subr.mxu0 0.0
      %2425 = vmatpush1.xpose.msra.mxu0 0.0
      %2426 = vmatprep.subr.mxu0 0.0
      %2427 = vmatpush1.xpose.msra.mxu0 0.0
      %2428 = vmatprep.subr.mxu0 0.0
      %2429 = vmatpush1.xpose.msra.mxu0 0.0
      %2430 = vmatprep.subr.mxu0 0.0
      %2431 = vmatpush1.xpose.msra.mxu0 0.0
      %2432 = vmatprep.subr.mxu0 0.0
      %2433 = vmatpush1.xpose.msra.mxu0 0.0
      %2434 = vmatprep.subr.mxu0 0.0
      %2435 = vmatpush1.xpose.msra.mxu0 0.0
      %2436 = vmatprep.subr.mxu0 0.0
      %2437 = vmatpush1.xpose.msra.mxu0 0.0
      %2438 = vmatprep.subr.mxu0 0.0
      %2439 = vmatpush1.xpose.msra.mxu0 0.0
      %2440 = vmatprep.subr.mxu0 0.0
      %2441 = vmatpush1.xpose.msra.mxu0 0.0
      %2442 = vmatprep.subr.mxu0 0.0
      %2443 = vmatpush1.xpose.msra.mxu0 0.0
      %2444 = vmatprep.subr.mxu0 0.0
      %2445 = vmatpush1.xpose.msra.mxu0 0.0
      %2446 = vmatprep.subr.mxu0 0.0
      %2447 = vmatpush1.xpose.msra.mxu0 0.0
      %2448 = vmatprep.subr.mxu0 0.0
      %2449 = vmatpush1.xpose.msra.mxu0 0.0
      %2450 = vmatprep.subr.mxu0 0.0
      %2451 = vmatpush1.xpose.msra.mxu0 0.0
      %2452 = vmatprep.subr.mxu0 0.0
      %2453 = vmatpush1.xpose.msra.mxu0 0.0
      %2454 = vmatprep.mubr.f32.mxu0 0.0
      %2455 = vmatmul.mubr.f32.gmra.mrb[0].mxu0 %v2062
      %v2456 = vpop.f32.mrb[0].mxu0
      %v2457 = vadd.f32 %v2386, %v2456
      %v2458 = vpop.f32.mrb[0].mxu0
      %2459 = vdwg.mxu0
      %v2460 = vsel %vm2137, %v2457, -inf
      %2461 = vmax.xlane.f32.xlu0 %v2460
      %v2462 = vpop.xlane.xlu0 %2461
      %v2463 = vsub.f32 %v2457, %v2462
      %v2464 = vmul.f32 %v2463, 1.442695
      %v2465 = vpow.pop %v2464
      %v2466 = vsel %vm2137, %v2465, 0.0
      %2467 = vadd.xlane.f32.xlu0 %v2466
      %v2468 = vpop.xlane.xlu0 %2467
      %v2469 = vrcp.pop %v2468
      %v2470 = vmul.f32 %v2465, %v2469
      %2471 = vst.msk [vmem:[%s488 + $0x1] sm:$0x1] %vm2137, %v2470
      %v2473 = vsel %vm2060, %v2470, 0
      %2475 = vmatprep.subr.mxu0 0.0
      %2476 = vmatpush1.msra.mxu0 %v1758
      %2477 = vmatprep.subr.mxu0 0.0
      %2478 = vmatpush1.msra.mxu0 0.0
      %2479 = vmatprep.subr.mxu0 0.0
      %2480 = vmatpush1.msra.mxu0 0.0
      %2481 = vmatprep.subr.mxu0 0.0
      %2482 = vmatpush1.msra.mxu0 0.0
      %2483 = vmatprep.subr.mxu0 0.0
      %2484 = vmatpush1.msra.mxu0 0.0
      %2485 = vmatprep.subr.mxu0 0.0
      %2486 = vmatpush1.msra.mxu0 0.0
      %2487 = vmatprep.subr.mxu0 0.0
      %2488 = vmatpush1.msra.mxu0 0.0
      %2489 = vmatprep.subr.mxu0 0.0
      %2490 = vmatpush1.msra.mxu0 0.0
      %2491 = vmatprep.subr.mxu0 0.0
      %2492 = vmatpush1.msra.mxu0 0.0
      %2493 = vmatprep.subr.mxu0 0.0
      %2494 = vmatpush1.msra.mxu0 0.0
      %2495 = vmatprep.subr.mxu0 0.0
      %2496 = vmatpush1.msra.mxu0 0.0
      %2497 = vmatprep.subr.mxu0 0.0
      %2498 = vmatpush1.msra.mxu0 0.0
      %2499 = vmatprep.subr.mxu0 0.0
      %2500 = vmatpush1.msra.mxu0 0.0
      %2501 = vmatprep.subr.mxu0 0.0
      %2502 = vmatpush1.msra.mxu0 0.0
      %2503 = vmatprep.subr.mxu0 0.0
      %2504 = vmatpush1.msra.mxu0 0.0
      %2505 = vmatprep.subr.mxu0 0.0
      %2506 = vmatpush1.msra.mxu0 0.0
      %2507 = vmatprep.subr.mxu0 0.0
      %2508 = vmatpush1.msra.mxu0 0.0
      %2509 = vmatprep.subr.mxu0 0.0
      %2510 = vmatpush1.msra.mxu0 0.0
      %2511 = vmatprep.subr.mxu0 0.0
      %2512 = vmatpush1.msra.mxu0 0.0
      %2513 = vmatprep.subr.mxu0 0.0
      %2514 = vmatpush1.msra.mxu0 0.0
      %2515 = vmatprep.subr.mxu0 0.0
      %2516 = vmatpush1.msra.mxu0 0.0
      %2517 = vmatprep.subr.mxu0 0.0
      %2518 = vmatpush1.msra.mxu0 0.0
      %2519 = vmatprep.subr.mxu0 0.0
      %2520 = vmatpush1.msra.mxu0 0.0
      %2521 = vmatprep.subr.mxu0 0.0
      %2522 = vmatpush1.msra.mxu0 0.0
      %2523 = vmatprep.subr.mxu0 0.0
      %2524 = vmatpush1.msra.mxu0 0.0
      %2525 = vmatprep.subr.mxu0 0.0
      %2526 = vmatpush1.msra.mxu0 0.0
      %2527 = vmatprep.subr.mxu0 0.0
      %2528 = vmatpush1.msra.mxu0 0.0
      %2529 = vmatprep.subr.mxu0 0.0
      %2530 = vmatpush1.msra.mxu0 0.0
      %2531 = vmatprep.subr.mxu0 0.0
      %2532 = vmatpush1.msra.mxu0 0.0
      %2533 = vmatprep.subr.mxu0 0.0
      %2534 = vmatpush1.msra.mxu0 0.0
      %2535 = vmatprep.subr.mxu0 0.0
      %2536 = vmatpush1.msra.mxu0 0.0
      %2537 = vmatprep.subr.mxu0 0.0
      %2538 = vmatpush1.msra.mxu0 0.0
      %2539 = vmatprep.mubr.f32.mxu0 0.0
      %2540 = vmatmul.mubr.f32.gmra.mrb[0].mxu0 %v2473
      %v2541 = vpop.f32.mrb[0].mxu0
      %v2542 = vadd.f32 0.0, %v2541
      %v2543 = vpop.f32.mrb[0].mxu0
      %2544 = vdwg.mxu0
      %v2545 = vld [vmem:[%s9] sm:$0xff]
      %v2546 = vld [vmem:[%s9 + $0x8] sm:$0xff]
      %v2547 = vld [vmem:[%s10] sm:$0x1]
      %v2549 = vsel %vm1234, %v2542, 0
      %2551 = vmatprep.subr.mxu0 0.0
      %2552 = vmatpush1.msra.mxu0 %v2545
      %2553 = vmatprep.subr.mxu0 0.0
      %2554 = vmatpush1.msra.mxu0 %v2546
      %2555 = vmatprep.subr.mxu0 0.0
      %2556 = vmatpush1.msra.mxu0 0.0
      %2557 = vmatprep.subr.mxu0 0.0
      %2558 = vmatpush1.msra.mxu0 0.0
      %2559 = vmatprep.subr.mxu0 0.0
      %2560 = vmatpush1.msra.mxu0 0.0
      %2561 = vmatprep.subr.mxu0 0.0
      %2562 = vmatpush1.msra.mxu0 0.0
      %2563 = vmatprep.subr.mxu0 0.0
      %2564 = vmatpush1.msra.mxu0 0.0
      %2565 = vmatprep.subr.mxu0 0.0
      %2566 = vmatpush1.msra.mxu0 0.0
      %2567 = vmatprep.subr.mxu0 0.0
      %2568 = vmatpush1.msra.mxu0 0.0
      %2569 = vmatprep.subr.mxu0 0.0
      %2570 = vmatpush1.msra.mxu0 0.0
      %2571 = vmatprep.subr.mxu0 0.0
      %2572 = vmatpush1.msra.mxu0 0.0
      %2573 = vmatprep.subr.mxu0 0.0
      %2574 = vmatpush1.msra.mxu0 0.0
      %2575 = vmatprep.subr.mxu0 0.0
      %2576 = vmatpush1.msra.mxu0 0.0
      %2577 = vmatprep.subr.mxu0 0.0
      %2578 = vmatpush1.msra.mxu0 0.0
      %2579 = vmatprep.subr.mxu0 0.0
      %2580 = vmatpush1.msra.mxu0 0.0
      %2581 = vmatprep.subr.mxu0 0.0
      %2582 = vmatpush1.msra.mxu0 0.0
      %2583 = vmatprep.subr.mxu0 0.0
      %2584 = vmatpush1.msra.mxu0 0.0
      %2585 = vmatprep.subr.mxu0 0.0
      %2586 = vmatpush1.msra.mxu0 0.0
      %2587 = vmatprep.subr.mxu0 0.0
      %2588 = vmatpush1.msra.mxu0 0.0
      %2589 = vmatprep.subr.mxu0 0.0
      %2590 = vmatpush1.msra.mxu0 0.0
      %2591 = vmatprep.subr.mxu0 0.0
      %2592 = vmatpush1.msra.mxu0 0.0
      %2593 = vmatprep.subr.mxu0 0.0
      %2594 = vmatpush1.msra.mxu0 0.0
      %2595 = vmatprep.subr.mxu0 0.0
      %2596 = vmatpush1.msra.mxu0 0.0
      %2597 = vmatprep.subr.mxu0 0.0
      %2598 = vmatpush1.msra.mxu0 0.0
      %2599 = vmatprep.subr.mxu0 0.0
      %2600 = vmatpush1.msra.mxu0 0.0
      %2601 = vmatprep.subr.mxu0 0.0
      %2602 = vmatpush1.msra.mxu0 0.0
      %2603 = vmatprep.subr.mxu0 0.0
      %2604 = vmatpush1.msra.mxu0 0.0
      %2605 = vmatprep.subr.mxu0 0.0
      %2606 = vmatpush1.msra.mxu0 0.0
      %2607 = vmatprep.subr.mxu0 0.0
      %2608 = vmatpush1.msra.mxu0 0.0
      %2609 = vmatprep.subr.mxu0 0.0
      %2610 = vmatpush1.msra.mxu0 0.0
      %2611 = vmatprep.subr.mxu0 0.0
      %2612 = vmatpush1.msra.mxu0 0.0
      %2613 = vmatprep.subr.mxu0 0.0
      %2614 = vmatpush1.msra.mxu0 0.0
      %2615 = vmatprep.mubr.f32.mxu0 0.0
      %2616 = vmatmul.mubr.f32.gmra.mrb[0].mxu0 %v2549
      %v2617 = vpop.f32.mrb[0].mxu0
      %v2618 = vadd.f32 %v2547, %v2617
      %v2619 = vpop.f32.mrb[0].mxu0
      %2620 = vdwg.mxu0
      %v2621 = vmax.f32 %v2618, 0.0
      %v2622 = vld [vmem:[%s11] sm:$0xff]
      %v2623 = vld [vmem:[%s12] sm:$0x1]
      %v2625 = vsel %vm2060, %v2621, 0
      %2627 = vmatprep.subr.mxu0 0.0
      %2628 = vmatpush1.msra.mxu0 %v2622
      %2629 = vmatprep.subr.mxu0 0.0
      %2630 = vmatpush1.msra.mxu0 0.0
      %2631 = vmatprep.subr.mxu0 0.0
      %2632 = vmatpush1.msra.mxu0 0.0
      %2633 = vmatprep.subr.mxu0 0.0
      %2634 = vmatpush1.msra.mxu0 0.0
      %2635 = vmatprep.subr.mxu0 0.0
      %2636 = vmatpush1.msra.mxu0 0.0
      %2637 = vmatprep.subr.mxu0 0.0
      %2638 = vmatpush1.msra.mxu0 0.0
      %2639 = vmatprep.subr.mxu0 0.0
      %2640 = vmatpush1.msra.mxu0 0.0
      %2641 = vmatprep.subr.mxu0 0.0
      %2642 = vmatpush1.msra.mxu0 0.0
      %2643 = vmatprep.subr.mxu0 0.0
      %2644 = vmatpush1.msra.mxu0 0.0
      %2645 = vmatprep.subr.mxu0 0.0
      %2646 = vmatpush1.msra.mxu0 0.0
      %2647 = vmatprep.subr.mxu0 0.0
      %2648 = vmatpush1.msra.mxu0 0.0
      %2649 = vmatprep.subr.mxu0 0.0
      %2650 = vmatpush1.msra.mxu0 0.0
      %2651 = vmatprep.subr.mxu0 0.0
      %2652 = vmatpush1.msra.mxu0 0.0
      %2653 = vmatprep.subr.mxu0 0.0
      %2654 = vmatpush1.msra.mxu0 0.0
      %2655 = vmatprep.subr.mxu0 0.0
      %2656 = vmatpush1.msra.mxu0 0.0
      %2657 = vmatprep.subr.mxu0 0.0
      %2658 = vmatpush1.msra.mxu0 0.0
      %2659 = vmatprep.subr.mxu0 0.0
      %2660 = vmatpush1.msra.mxu0 0.0
      %2661 = vmatprep.subr.mxu0 0.0
      %2662 = vmatpush1.msra.mxu0 0.0
      %2663 = vmatprep.subr.mxu0 0.0
      %2664 = vmatpush1.msra.mxu0 0.0
      %2665 = vmatprep.subr.mxu0 0.0
      %2666 = vmatpush1.msra.mxu0 0.0
      %2667 = vmatprep.subr.mxu0 0.0
      %2668 = vmatpush1.msra.mxu0 0.0
      %2669 = vmatprep.subr.mxu0 0.0
      %2670 = vmatpush1.msra.mxu0 0.0
      %2671 = vmatprep.subr.mxu0 0.0
      %2672 = vmatpush1.msra.mxu0 0.0
      %2673 = vmatprep.subr.mxu0 0.0
      %2674 = vmatpush1.msra.mxu0 0.0
      %2675 = vmatprep.subr.mxu0 0.0
      %2676 = vmatpush1.msra.mxu0 0.0
      %2677 = vmatprep.subr.mxu0 0.0
      %2678 = vmatpush1.msra.mxu0 0.0
      %2679 = vmatprep.subr.mxu0 0.0
      %2680 = vmatpush1.msra.mxu0 0.0
      %2681 = vmatprep.subr.mxu0 0.0
      %2682 = vmatpush1.msra.mxu0 0.0
      %2683 = vmatprep.subr.mxu0 0.0
      %2684 = vmatpush1.msra.mxu0 0.0
      %2685 = vmatprep.subr.mxu0 0.0
      %2686 = vmatpush1.msra.mxu0 0.0
      %2687 = vmatprep.subr.mxu0 0.0
      %2688 = vmatpush1.msra.mxu0 0.0
      %2689 = vmatprep.subr.mxu0 0.0
      %2690 = vmatpush1.msra.mxu0 0.0
      %2691 = vmatprep.mubr.f32.mxu0 0.0
      %2692 = vmatmul.mubr.f32.gmra.mrb[0].mxu0 %v2625
      %v2693 = vpop.f32.mrb[0].mxu0
      %v2694 = vadd.f32 %v2623, %v2693
      %v2695 = vpop.f32.mrb[0].mxu0
      %2696 = vdwg.mxu0
      %2697 = vst.msk [vmem:[%s482 + $0x1] sm:$0x1] %vm2375, %v2694
      %v2698 = vld [vmem:[#allocation2] sm:$0x1]
      %2700 = vset.pattern.permute.xlu0 0
      %2701 = vperm.xlu0 %2700, %v2698
      %v2702 = vpop.permute.xlu0 %2701
      %v2704 = vlaneseq
      %v2705 = vshrl.u32 %v2704, 7
      %v2706 = vsub.s32 0, %v2705
      %v2707 = vrot.slane %v2702, %v2706
      %v2709 = vsel %vm2060, %v2035, 0
      %2711 = vmatprep.subr.mxu0 0.0
      %2712 = vmatpush1.xpose.msra.mxu0 %v2709
      %2713 = vmatprep.subr.mxu0 0.0
      %2714 = vmatpush1.xpose.msra.mxu0 0.0
      %2715 = vmatprep.subr.mxu0 0.0
      %2716 = vmatpush1.xpose.msra.mxu0 0.0
      %2717 = vmatprep.subr.mxu0 0.0
      %2718 = vmatpush1.xpose.msra.mxu0 0.0
      %2719 = vmatprep.subr.mxu0 0.0
      %2720 = vmatpush1.xpose.msra.mxu0 0.0
      %2721 = vmatprep.subr.mxu0 0.0
      %2722 = vmatpush1.xpose.msra.mxu0 0.0
      %2723 = vmatprep.subr.mxu0 0.0
      %2724 = vmatpush1.xpose.msra.mxu0 0.0
      %2725 = vmatprep.subr.mxu0 0.0
      %2726 = vmatpush1.xpose.msra.mxu0 0.0
      %2727 = vmatprep.subr.mxu0 0.0
      %2728 = vmatpush1.xpose.msra.mxu0 0.0
      %2729 = vmatprep.subr.mxu0 0.0
      %2730 = vmatpush1.xpose.msra.mxu0 0.0
      %2731 = vmatprep.subr.mxu0 0.0
      %2732 = vmatpush1.xpose.msra.mxu0 0.0
      %2733 = vmatprep.subr.mxu0 0.0
      %2734 = vmatpush1.xpose.msra.mxu0 0.0
      %2735 = vmatprep.subr.mxu0 0.0
      %2736 = vmatpush1.xpose.msra.mxu0 0.0
      %2737 = vmatprep.subr.mxu0 0.0
      %2738 = vmatpush1.xpose.msra.mxu0 0.0
      %2739 = vmatprep.subr.mxu0 0.0
      %2740 = vmatpush1.xpose.msra.mxu0 0.0
      %2741 = vmatprep.subr.mxu0 0.0
      %2742 = vmatpush1.xpose.msra.mxu0 0.0
      %2743 = vmatprep.subr.mxu0 0.0
      %2744 = vmatpush1.xpose.msra.mxu0 0.0
      %2745 = vmatprep.subr.mxu0 0.0
      %2746 = vmatpush1.xpose.msra.mxu0 0.0
      %2747 = vmatprep.subr.mxu0 0.0
      %2748 = vmatpush1.xpose.msra.mxu0 0.0
      %2749 = vmatprep.subr.mxu0 0.0
      %2750 = vmatpush1.xpose.msra.mxu0 0.0
      %2751 = vmatprep.subr.mxu0 0.0
      %2752 = vmatpush1.xpose.msra.mxu0 0.0
      %2753 = vmatprep.subr.mxu0 0.0
      %2754 = vmatpush1.xpose.msra.mxu0 0.0
      %2755 = vmatprep.subr.mxu0 0.0
      %2756 = vmatpush1.xpose.msra.mxu0 0.0
      %2757 = vmatprep.subr.mxu0 0.0
      %2758 = vmatpush1.xpose.msra.mxu0 0.0
      %2759 = vmatprep.subr.mxu0 0.0
      %2760 = vmatpush1.xpose.msra.mxu0 0.0
      %2761 = vmatprep.subr.mxu0 0.0
      %2762 = vmatpush1.xpose.msra.mxu0 0.0
      %2763 = vmatprep.subr.mxu0 0.0
      %2764 = vmatpush1.xpose.msra.mxu0 0.0
      %2765 = vmatprep.subr.mxu0 0.0
      %2766 = vmatpush1.xpose.msra.mxu0 0.0
      %2767 = vmatprep.subr.mxu0 0.0
      %2768 = vmatpush1.xpose.msra.mxu0 0.0
      %2769 = vmatprep.subr.mxu0 0.0
      %2770 = vmatpush1.xpose.msra.mxu0 0.0
      %2771 = vmatprep.subr.mxu0 0.0
      %2772 = vmatpush1.xpose.msra.mxu0 0.0
      %2773 = vmatprep.subr.mxu0 0.0
      %2774 = vmatpush1.xpose.msra.mxu0 0.0
      %2775 = vmatprep.mubr.f32.mxu0 0.0
      %2776 = vmatmul.mubr.f32.gmra.mrb[0].mxu0 %v2062
      %v2777 = vpop.f32.mrb[0].mxu0
      %v2778 = vadd.f32 %v2707, %v2777
      %v2779 = vpop.f32.mrb[0].mxu0
      %2780 = vdwg.mxu0
      %v2781 = vsel %vm2137, %v2778, -inf
      %2782 = vmax.xlane.f32.xlu0 %v2781
      %v2783 = vpop.xlane.xlu0 %2782
      %v2784 = vsub.f32 %v2778, %v2783
      %v2785 = vmul.f32 %v2784, 1.442695
      %v2786 = vpow.pop %v2785
      %v2787 = vsel %vm2137, %v2786, 0.0
      %2788 = vadd.xlane.f32.xlu0 %v2787
      %v2789 = vpop.xlane.xlu0 %2788
      %v2790 = vrcp.pop %v2789
      %v2791 = vmul.f32 %v2786, %v2790
      %2792 = vst.msk [vmem:[%s488 + $0x2] sm:$0x1] %vm2137, %v2791
      %v2794 = vsel %vm2060, %v2791, 0
      %2796 = vmatprep.subr.mxu0 0.0
      %2797 = vmatpush1.msra.mxu0 %v1763
      %2798 = vmatprep.subr.mxu0 0.0
      %2799 = vmatpush1.msra.mxu0 0.0
      %2800 = vmatprep.subr.mxu0 0.0
      %2801 = vmatpush1.msra.mxu0 0.0
      %2802 = vmatprep.subr.mxu0 0.0
      %2803 = vmatpush1.msra.mxu0 0.0
      %2804 = vmatprep.subr.mxu0 0.0
      %2805 = vmatpush1.msra.mxu0 0.0
      %2806 = vmatprep.subr.mxu0 0.0
      %2807 = vmatpush1.msra.mxu0 0.0
      %2808 = vmatprep.subr.mxu0 0.0
      %2809 = vmatpush1.msra.mxu0 0.0
      %2810 = vmatprep.subr.mxu0 0.0
      %2811 = vmatpush1.msra.mxu0 0.0
      %2812 = vmatprep.subr.mxu0 0.0
      %2813 = vmatpush1.msra.mxu0 0.0
      %2814 = vmatprep.subr.mxu0 0.0
      %2815 = vmatpush1.msra.mxu0 0.0
      %2816 = vmatprep.subr.mxu0 0.0
      %2817 = vmatpush1.msra.mxu0 0.0
      %2818 = vmatprep.subr.mxu0 0.0
      %2819 = vmatpush1.msra.mxu0 0.0
      %2820 = vmatprep.subr.mxu0 0.0
      %2821 = vmatpush1.msra.mxu0 0.0
      %2822 = vmatprep.subr.mxu0 0.0
      %2823 = vmatpush1.msra.mxu0 0.0
      %2824 = vmatprep.subr.mxu0 0.0
      %2825 = vmatpush1.msra.mxu0 0.0
      %2826 = vmatprep.subr.mxu0 0.0
      %2827 = vmatpush1.msra.mxu0 0.0
      %2828 = vmatprep.subr.mxu0 0.0
      %2829 = vmatpush1.msra.mxu0 0.0
      %2830 = vmatprep.subr.mxu0 0.0
      %2831 = vmatpush1.msra.mxu0 0.0
      %2832 = vmatprep.subr.mxu0 0.0
      %2833 = vmatpush1.msra.mxu0 0.0
      %2834 = vmatprep.subr.mxu0 0.0
      %2835 = vmatpush1.msra.mxu0 0.0
      %2836 = vmatprep.subr.mxu0 0.0
      %2837 = vmatpush1.msra.mxu0 0.0
      %2838 = vmatprep.subr.mxu0 0.0
      %2839 = vmatpush1.msra.mxu0 0.0
      %2840 = vmatprep.subr.mxu0 0.0
      %2841 = vmatpush1.msra.mxu0 0.0
      %2842 = vmatprep.subr.mxu0 0.0
      %2843 = vmatpush1.msra.mxu0 0.0
      %2844 = vmatprep.subr.mxu0 0.0
      %2845 = vmatpush1.msra.mxu0 0.0
      %2846 = vmatprep.subr.mxu0 0.0
      %2847 = vmatpush1.msra.mxu0 0.0
      %2848 = vmatprep.subr.mxu0 0.0
      %2849 = vmatpush1.msra.mxu0 0.0
      %2850 = vmatprep.subr.mxu0 0.0
      %2851 = vmatpush1.msra.mxu0 0.0
      %2852 = vmatprep.subr.mxu0 0.0
      %2853 = vmatpush1.msra.mxu0 0.0
      %2854 = vmatprep.subr.mxu0 0.0
      %2855 = vmatpush1.msra.mxu0 0.0
      %2856 = vmatprep.subr.mxu0 0.0
      %2857 = vmatpush1.msra.mxu0 0.0
      %2858 = vmatprep.subr.mxu0 0.0
      %2859 = vmatpush1.msra.mxu0 0.0
      %2860 = vmatprep.mubr.f32.mxu0 0.0
      %2861 = vmatmul.mubr.f32.gmra.mrb[0].mxu0 %v2794
      %v2862 = vpop.f32.mrb[0].mxu0
      %v2863 = vadd.f32 0.0, %v2862
      %v2864 = vpop.f32.mrb[0].mxu0
      %2865 = vdwg.mxu0
      %v2866 = vld [vmem:[%s9] sm:$0xff]
      %v2867 = vld [vmem:[%s9 + $0x8] sm:$0xff]
      %v2868 = vld [vmem:[%s10] sm:$0x1]
      %v2870 = vsel %vm1234, %v2863, 0
      %2872 = vmatprep.subr.mxu0 0.0
      %2873 = vmatpush1.msra.mxu0 %v2866
      %2874 = vmatprep.subr.mxu0 0.0
      %2875 = vmatpush1.msra.mxu0 %v2867
      %2876 = vmatprep.subr.mxu0 0.0
      %2877 = vmatpush1.msra.mxu0 0.0
      %2878 = vmatprep.subr.mxu0 0.0
      %2879 = vmatpush1.msra.mxu0 0.0
      %2880 = vmatprep.subr.mxu0 0.0
      %2881 = vmatpush1.msra.mxu0 0.0
      %2882 = vmatprep.subr.mxu0 0.0
      %2883 = vmatpush1.msra.mxu0 0.0
      %2884 = vmatprep.subr.mxu0 0.0
      %2885 = vmatpush1.msra.mxu0 0.0
      %2886 = vmatprep.subr.mxu0 0.0
      %2887 = vmatpush1.msra.mxu0 0.0
      %2888 = vmatprep.subr.mxu0 0.0
      %2889 = vmatpush1.msra.mxu0 0.0
      %2890 = vmatprep.subr.mxu0 0.0
      %2891 = vmatpush1.msra.mxu0 0.0
      %2892 = vmatprep.subr.mxu0 0.0
      %2893 = vmatpush1.msra.mxu0 0.0
      %2894 = vmatprep.subr.mxu0 0.0
      %2895 = vmatpush1.msra.mxu0 0.0
      %2896 = vmatprep.subr.mxu0 0.0
      %2897 = vmatpush1.msra.mxu0 0.0
      %2898 = vmatprep.subr.mxu0 0.0
      %2899 = vmatpush1.msra.mxu0 0.0
      %2900 = vmatprep.subr.mxu0 0.0
      %2901 = vmatpush1.msra.mxu0 0.0
      %2902 = vmatprep.subr.mxu0 0.0
      %2903 = vmatpush1.msra.mxu0 0.0
      %2904 = vmatprep.subr.mxu0 0.0
      %2905 = vmatpush1.msra.mxu0 0.0
      %2906 = vmatprep.subr.mxu0 0.0
      %2907 = vmatpush1.msra.mxu0 0.0
      %2908 = vmatprep.subr.mxu0 0.0
      %2909 = vmatpush1.msra.mxu0 0.0
      %2910 = vmatprep.subr.mxu0 0.0
      %2911 = vmatpush1.msra.mxu0 0.0
      %2912 = vmatprep.subr.mxu0 0.0
      %2913 = vmatpush1.msra.mxu0 0.0
      %2914 = vmatprep.subr.mxu0 0.0
      %2915 = vmatpush1.msra.mxu0 0.0
      %2916 = vmatprep.subr.mxu0 0.0
      %2917 = vmatpush1.msra.mxu0 0.0
      %2918 = vmatprep.subr.mxu0 0.0
      %2919 = vmatpush1.msra.mxu0 0.0
      %2920 = vmatprep.subr.mxu0 0.0
      %2921 = vmatpush1.msra.mxu0 0.0
      %2922 = vmatprep.subr.mxu0 0.0
      %2923 = vmatpush1.msra.mxu0 0.0
      %2924 = vmatprep.subr.mxu0 0.0
      %2925 = vmatpush1.msra.mxu0 0.0
      %2926 = vmatprep.subr.mxu0 0.0
      %2927 = vmatpush1.msra.mxu0 0.0
      %2928 = vmatprep.subr.mxu0 0.0
      %2929 = vmatpush1.msra.mxu0 0.0
      %2930 = vmatprep.subr.mxu0 0.0
      %2931 = vmatpush1.msra.mxu0 0.0
      %2932 = vmatprep.subr.mxu0 0.0
      %2933 = vmatpush1.msra.mxu0 0.0
      %2934 = vmatprep.subr.mxu0 0.0
      %2935 = vmatpush1.msra.mxu0 0.0
      %2936 = vmatprep.mubr.f32.mxu0 0.0
      %2937 = vmatmul.mubr.f32.gmra.mrb[0].mxu0 %v2870
      %v2938 = vpop.f32.mrb[0].mxu0
      %v2939 = vadd.f32 %v2868, %v2938
      %v2940 = vpop.f32.mrb[0].mxu0
      %2941 = vdwg.mxu0
      %v2942 = vmax.f32 %v2939, 0.0
      %v2943 = vld [vmem:[%s11] sm:$0xff]
      %v2944 = vld [vmem:[%s12] sm:$0x1]
      %v2946 = vsel %vm2060, %v2942, 0
      %2948 = vmatprep.subr.mxu0 0.0
      %2949 = vmatpush1.msra.mxu0 %v2943
      %2950 = vmatprep.subr.mxu0 0.0
      %2951 = vmatpush1.msra.mxu0 0.0
      %2952 = vmatprep.subr.mxu0 0.0
      %2953 = vmatpush1.msra.mxu0 0.0
      %2954 = vmatprep.subr.mxu0 0.0
      %2955 = vmatpush1.msra.mxu0 0.0
      %2956 = vmatprep.subr.mxu0 0.0
      %2957 = vmatpush1.msra.mxu0 0.0
      %2958 = vmatprep.subr.mxu0 0.0
      %2959 = vmatpush1.msra.mxu0 0.0
      %2960 = vmatprep.subr.mxu0 0.0
      %2961 = vmatpush1.msra.mxu0 0.0
      %2962 = vmatprep.subr.mxu0 0.0
      %2963 = vmatpush1.msra.mxu0 0.0
      %2964 = vmatprep.subr.mxu0 0.0
      %2965 = vmatpush1.msra.mxu0 0.0
      %2966 = vmatprep.subr.mxu0 0.0
      %2967 = vmatpush1.msra.mxu0 0.0
      %2968 = vmatprep.subr.mxu0 0.0
      %2969 = vmatpush1.msra.mxu0 0.0
      %2970 = vmatprep.subr.mxu0 0.0
      %2971 = vmatpush1.msra.mxu0 0.0
      %2972 = vmatprep.subr.mxu0 0.0
      %2973 = vmatpush1.msra.mxu0 0.0
      %2974 = vmatprep.subr.mxu0 0.0
      %2975 = vmatpush1.msra.mxu0 0.0
      %2976 = vmatprep.subr.mxu0 0.0
      %2977 = vmatpush1.msra.mxu0 0.0
      %2978 = vmatprep.subr.mxu0 0.0
      %2979 = vmatpush1.msra.mxu0 0.0
      %2980 = vmatprep.subr.mxu0 0.0
      %2981 = vmatpush1.msra.mxu0 0.0
      %2982 = vmatprep.subr.mxu0 0.0
      %2983 = vmatpush1.msra.mxu0 0.0
      %2984 = vmatprep.subr.mxu0 0.0
      %2985 = vmatpush1.msra.mxu0 0.0
      %2986 = vmatprep.subr.mxu0 0.0
      %2987 = vmatpush1.msra.mxu0 0.0
      %2988 = vmatprep.subr.mxu0 0.0
      %2989 = vmatpush1.msra.mxu0 0.0
      %2990 = vmatprep.subr.mxu0 0.0
      %2991 = vmatpush1.msra.mxu0 0.0
      %2992 = vmatprep.subr.mxu0 0.0
      %2993 = vmatpush1.msra.mxu0 0.0
      %2994 = vmatprep.subr.mxu0 0.0
      %2995 = vmatpush1.msra.mxu0 0.0
      %2996 = vmatprep.subr.mxu0 0.0
      %2997 = vmatpush1.msra.mxu0 0.0
      %2998 = vmatprep.subr.mxu0 0.0
      %2999 = vmatpush1.msra.mxu0 0.0
      %3000 = vmatprep.subr.mxu0 0.0
      %3001 = vmatpush1.msra.mxu0 0.0
      %3002 = vmatprep.subr.mxu0 0.0
      %3003 = vmatpush1.msra.mxu0 0.0
      %3004 = vmatprep.subr.mxu0 0.0
      %3005 = vmatpush1.msra.mxu0 0.0
      %3006 = vmatprep.subr.mxu0 0.0
      %3007 = vmatpush1.msra.mxu0 0.0
      %3008 = vmatprep.subr.mxu0 0.0
      %3009 = vmatpush1.msra.mxu0 0.0
      %3010 = vmatprep.subr.mxu0 0.0
      %3011 = vmatpush1.msra.mxu0 0.0
      %3012 = vmatprep.mubr.f32.mxu0 0.0
      %3013 = vmatmul.mubr.f32.gmra.mrb[0].mxu0 %v2946
      %v3014 = vpop.f32.mrb[0].mxu0
      %v3015 = vadd.f32 %v2944, %v3014
      %v3016 = vpop.f32.mrb[0].mxu0
      %3017 = vdwg.mxu0
      %3018 = vst.msk [vmem:[%s482 + $0x2] sm:$0x1] %vm2375, %v3015
      %v3019 = vld [vmem:[#allocation2] sm:$0x1]
      %3021 = vset.pattern.permute.xlu0 0
      %3022 = vperm.xlu0 %3021, %v3019
      %v3023 = vpop.permute.xlu0 %3022
      %v3025 = vlaneseq
      %v3026 = vshrl.u32 %v3025, 7
      %v3027 = vsub.s32 0, %v3026
      %v3028 = vrot.slane %v3023, %v3027
      %v3030 = vsel %vm2060, %v2036, 0
      %3032 = vmatprep.subr.mxu0 0.0
      %3033 = vmatpush1.xpose.msra.mxu0 %v3030
      %3034 = vmatprep.subr.mxu0 0.0
      %3035 = vmatpush1.xpose.msra.mxu0 0.0
      %3036 = vmatprep.subr.mxu0 0.0
      %3037 = vmatpush1.xpose.msra.mxu0 0.0
      %3038 = vmatprep.subr.mxu0 0.0
      %3039 = vmatpush1.xpose.msra.mxu0 0.0
      %3040 = vmatprep.subr.mxu0 0.0
      %3041 = vmatpush1.xpose.msra.mxu0 0.0
      %3042 = vmatprep.subr.mxu0 0.0
      %3043 = vmatpush1.xpose.msra.mxu0 0.0
      %3044 = vmatprep.subr.mxu0 0.0
      %3045 = vmatpush1.xpose.msra.mxu0 0.0
      %3046 = vmatprep.subr.mxu0 0.0
      %3047 = vmatpush1.xpose.msra.mxu0 0.0
      %3048 = vmatprep.subr.mxu0 0.0
      %3049 = vmatpush1.xpose.msra.mxu0 0.0
      %3050 = vmatprep.subr.mxu0 0.0
      %3051 = vmatpush1.xpose.msra.mxu0 0.0
      %3052 = vmatprep.subr.mxu0 0.0
      %3053 = vmatpush1.xpose.msra.mxu0 0.0
      %3054 = vmatprep.subr.mxu0 0.0
      %3055 = vmatpush1.xpose.msra.mxu0 0.0
      %3056 = vmatprep.subr.mxu0 0.0
      %3057 = vmatpush1.xpose.msra.mxu0 0.0
      %3058 = vmatprep.subr.mxu0 0.0
      %3059 = vmatpush1.xpose.msra.mxu0 0.0
      %3060 = vmatprep.subr.mxu0 0.0
      %3061 = vmatpush1.xpose.msra.mxu0 0.0
      %3062 = vmatprep.subr.mxu0 0.0
      %3063 = vmatpush1.xpose.msra.mxu0 0.0
      %3064 = vmatprep.subr.mxu0 0.0
      %3065 = vmatpush1.xpose.msra.mxu0 0.0
      %3066 = vmatprep.subr.mxu0 0.0
      %3067 = vmatpush1.xpose.msra.mxu0 0.0
      %3068 = vmatprep.subr.mxu0 0.0
      %3069 = vmatpush1.xpose.msra.mxu0 0.0
      %3070 = vmatprep.subr.mxu0 0.0
      %3071 = vmatpush1.xpose.msra.mxu0 0.0
      %3072 = vmatprep.subr.mxu0 0.0
      %3073 = vmatpush1.xpose.msra.mxu0 0.0
      %3074 = vmatprep.subr.mxu0 0.0
      %3075 = vmatpush1.xpose.msra.mxu0 0.0
      %3076 = vmatprep.subr.mxu0 0.0
      %3077 = vmatpush1.xpose.msra.mxu0 0.0
      %3078 = vmatprep.subr.mxu0 0.0
      %3079 = vmatpush1.xpose.msra.mxu0 0.0
      %3080 = vmatprep.subr.mxu0 0.0
      %3081 = vmatpush1.xpose.msra.mxu0 0.0
      %3082 = vmatprep.subr.mxu0 0.0
      %3083 = vmatpush1.xpose.msra.mxu0 0.0
      %3084 = vmatprep.subr.mxu0 0.0
      %3085 = vmatpush1.xpose.msra.mxu0 0.0
      %3086 = vmatprep.subr.mxu0 0.0
      %3087 = vmatpush1.xpose.msra.mxu0 0.0
      %3088 = vmatprep.subr.mxu0 0.0
      %3089 = vmatpush1.xpose.msra.mxu0 0.0
      %3090 = vmatprep.subr.mxu0 0.0
      %3091 = vmatpush1.xpose.msra.mxu0 0.0
      %3092 = vmatprep.subr.mxu0 0.0
      %3093 = vmatpush1.xpose.msra.mxu0 0.0
      %3094 = vmatprep.subr.mxu0 0.0
      %3095 = vmatpush1.xpose.msra.mxu0 0.0
      %3096 = vmatprep.mubr.f32.mxu0 0.0
      %3097 = vmatmul.mubr.f32.gmra.mrb[0].mxu0 %v2062
      %v3098 = vpop.f32.mrb[0].mxu0
      %v3099 = vadd.f32 %v3028, %v3098
      %v3100 = vpop.f32.mrb[0].mxu0
      %3101 = vdwg.mxu0
      %v3102 = vsel %vm2137, %v3099, -inf
      %3103 = vmax.xlane.f32.xlu0 %v3102
      %v3104 = vpop.xlane.xlu0 %3103
      %v3105 = vsub.f32 %v3099, %v3104
      %v3106 = vmul.f32 %v3105, 1.442695
      %v3107 = vpow.pop %v3106
      %v3108 = vsel %vm2137, %v3107, 0.0
      %3109 = vadd.xlane.f32.xlu0 %v3108
      %v3110 = vpop.xlane.xlu0 %3109
      %v3111 = vrcp.pop %v3110
      %v3112 = vmul.f32 %v3107, %v3111
      %3113 = vst.msk [vmem:[%s488 + $0x3] sm:$0x1] %vm2137, %v3112
      %v3115 = vsel %vm2060, %v3112, 0
      %3117 = vmatprep.subr.mxu0 0.0
      %3118 = vmatpush1.msra.mxu0 %v1768
      %3119 = vmatprep.subr.mxu0 0.0
      %3120 = vmatpush1.msra.mxu0 0.0
      %3121 = vmatprep.subr.mxu0 0.0
      %3122 = vmatpush1.msra.mxu0 0.0
      %3123 = vmatprep.subr.mxu0 0.0
      %3124 = vmatpush1.msra.mxu0 0.0
      %3125 = vmatprep.subr.mxu0 0.0
      %3126 = vmatpush1.msra.mxu0 0.0
      %3127 = vmatprep.subr.mxu0 0.0
      %3128 = vmatpush1.msra.mxu0 0.0
      %3129 = vmatprep.subr.mxu0 0.0
      %3130 = vmatpush1.msra.mxu0 0.0
      %3131 = vmatprep.subr.mxu0 0.0
      %3132 = vmatpush1.msra.mxu0 0.0
      %3133 = vmatprep.subr.mxu0 0.0
      %3134 = vmatpush1.msra.mxu0 0.0
      %3135 = vmatprep.subr.mxu0 0.0
      %3136 = vmatpush1.msra.mxu0 0.0
      %3137 = vmatprep.subr.mxu0 0.0
      %3138 = vmatpush1.msra.mxu0 0.0
      %3139 = vmatprep.subr.mxu0 0.0
      %3140 = vmatpush1.msra.mxu0 0.0
      %3141 = vmatprep.subr.mxu0 0.0
      %3142 = vmatpush1.msra.mxu0 0.0
      %3143 = vmatprep.subr.mxu0 0.0
      %3144 = vmatpush1.msra.mxu0 0.0
      %3145 = vmatprep.subr.mxu0 0.0
      %3146 = vmatpush1.msra.mxu0 0.0
      %3147 = vmatprep.subr.mxu0 0.0
      %3148 = vmatpush1.msra.mxu0 0.0
      %3149 = vmatprep.subr.mxu0 0.0
      %3150 = vmatpush1.msra.mxu0 0.0
      %3151 = vmatprep.subr.mxu0 0.0
      %3152 = vmatpush1.msra.mxu0 0.0
      %3153 = vmatprep.subr.mxu0 0.0
      %3154 = vmatpush1.msra.mxu0 0.0
      %3155 = vmatprep.subr.mxu0 0.0
      %3156 = vmatpush1.msra.mxu0 0.0
      %3157 = vmatprep.subr.mxu0 0.0
      %3158 = vmatpush1.msra.mxu0 0.0
      %3159 = vmatprep.subr.mxu0 0.0
      %3160 = vmatpush1.msra.mxu0 0.0
      %3161 = vmatprep.subr.mxu0 0.0
      %3162 = vmatpush1.msra.mxu0 0.0
      %3163 = vmatprep.subr.mxu0 0.0
      %3164 = vmatpush1.msra.mxu0 0.0
      %3165 = vmatprep.subr.mxu0 0.0
      %3166 = vmatpush1.msra.mxu0 0.0
      %3167 = vmatprep.subr.mxu0 0.0
      %3168 = vmatpush1.msra.mxu0 0.0
      %3169 = vmatprep.subr.mxu0 0.0
      %3170 = vmatpush1.msra.mxu0 0.0
      %3171 = vmatprep.subr.mxu0 0.0
      %3172 = vmatpush1.msra.mxu0 0.0
      %3173 = vmatprep.subr.mxu0 0.0
      %3174 = vmatpush1.msra.mxu0 0.0
      %3175 = vmatprep.subr.mxu0 0.0
      %3176 = vmatpush1.msra.mxu0 0.0
      %3177 = vmatprep.subr.mxu0 0.0
      %3178 = vmatpush1.msra.mxu0 0.0
      %3179 = vmatprep.subr.mxu0 0.0
      %3180 = vmatpush1.msra.mxu0 0.0
      %3181 = vmatprep.mubr.f32.mxu0 0.0
      %3182 = vmatmul.mubr.f32.gmra.mrb[0].mxu0 %v3115
      %v3183 = vpop.f32.mrb[0].mxu0
      %v3184 = vadd.f32 0.0, %v3183
      %v3185 = vpop.f32.mrb[0].mxu0
      %3186 = vdwg.mxu0
      %v3187 = vld [vmem:[%s9] sm:$0xff]
      %v3188 = vld [vmem:[%s9 + $0x8] sm:$0xff]
      %v3189 = vld [vmem:[%s10] sm:$0x1]
      %v3191 = vsel %vm1234, %v3184, 0
      %3193 = vmatprep.subr.mxu0 0.0
      %3194 = vmatpush1.msra.mxu0 %v3187
      %3195 = vmatprep.subr.mxu0 0.0
      %3196 = vmatpush1.msra.mxu0 %v3188
      %3197 = vmatprep.subr.mxu0 0.0
      %3198 = vmatpush1.msra.mxu0 0.0
      %3199 = vmatprep.subr.mxu0 0.0
      %3200 = vmatpush1.msra.mxu0 0.0
      %3201 = vmatprep.subr.mxu0 0.0
      %3202 = vmatpush1.msra.mxu0 0.0
      %3203 = vmatprep.subr.mxu0 0.0
      %3204 = vmatpush1.msra.mxu0 0.0
      %3205 = vmatprep.subr.mxu0 0.0
      %3206 = vmatpush1.msra.mxu0 0.0
      %3207 = vmatprep.subr.mxu0 0.0
      %3208 = vmatpush1.msra.mxu0 0.0
      %3209 = vmatprep.subr.mxu0 0.0
      %3210 = vmatpush1.msra.mxu0 0.0
      %3211 = vmatprep.subr.mxu0 0.0
      %3212 = vmatpush1.msra.mxu0 0.0
      %3213 = vmatprep.subr.mxu0 0.0
      %3214 = vmatpush1.msra.mxu0 0.0
      %3215 = vmatprep.subr.mxu0 0.0
      %3216 = vmatpush1.msra.mxu0 0.0
      %3217 = vmatprep.subr.mxu0 0.0
      %3218 = vmatpush1.msra.mxu0 0.0
      %3219 = vmatprep.subr.mxu0 0.0
      %3220 = vmatpush1.msra.mxu0 0.0
      %3221 = vmatprep.subr.mxu0 0.0
      %3222 = vmatpush1.msra.mxu0 0.0
      %3223 = vmatprep.subr.mxu0 0.0
      %3224 = vmatpush1.msra.mxu0 0.0
      %3225 = vmatprep.subr.mxu0 0.0
      %3226 = vmatpush1.msra.mxu0 0.0
      %3227 = vmatprep.subr.mxu0 0.0
      %3228 = vmatpush1.msra.mxu0 0.0
      %3229 = vmatprep.subr.mxu0 0.0
      %3230 = vmatpush1.msra.mxu0 0.0
      %3231 = vmatprep.subr.mxu0 0.0
      %3232 = vmatpush1.msra.mxu0 0.0
      %3233 = vmatprep.subr.mxu0 0.0
      %3234 = vmatpush1.msra.mxu0 0.0
      %3235 = vmatprep.subr.mxu0 0.0
      %3236 = vmatpush1.msra.mxu0 0.0
      %3237 = vmatprep.subr.mxu0 0.0
      %3238 = vmatpush1.msra.mxu0 0.0
      %3239 = vmatprep.subr.mxu0 0.0
      %3240 = vmatpush1.msra.mxu0 0.0
      %3241 = vmatprep.subr.mxu0 0.0
      %3242 = vmatpush1.msra.mxu0 0.0
      %3243 = vmatprep.subr.mxu0 0.0
      %3244 = vmatpush1.msra.mxu0 0.0
      %3245 = vmatprep.subr.mxu0 0.0
      %3246 = vmatpush1.msra.mxu0 0.0
      %3247 = vmatprep.subr.mxu0 0.0
      %3248 = vmatpush1.msra.mxu0 0.0
      %3249 = vmatprep.subr.mxu0 0.0
      %3250 = vmatpush1.msra.mxu0 0.0
      %3251 = vmatprep.subr.mxu0 0.0
      %3252 = vmatpush1.msra.mxu0 0.0
      %3253 = vmatprep.subr.mxu0 0.0
      %3254 = vmatpush1.msra.mxu0 0.0
      %3255 = vmatprep.subr.mxu0 0.0
      %3256 = vmatpush1.msra.mxu0 0.0
      %3257 = vmatprep.mubr.f32.mxu0 0.0
      %3258 = vmatmul.mubr.f32.gmra.mrb[0].mxu0 %v3191
      %v3259 = vpop.f32.mrb[0].mxu0
      %v3260 = vadd.f32 %v3189, %v3259
      %v3261 = vpop.f32.mrb[0].mxu0
      %3262 = vdwg.mxu0
      %v3263 = vmax.f32 %v3260, 0.0
      %v3264 = vld [vmem:[%s11] sm:$0xff]
      %v3265 = vld [vmem:[%s12] sm:$0x1]
      %v3267 = vsel %vm2060, %v3263, 0
      %3269 = vmatprep.subr.mxu0 0.0
      %3270 = vmatpush1.msra.mxu0 %v3264
      %3271 = vmatprep.subr.mxu0 0.0
      %3272 = vmatpush1.msra.mxu0 0.0
      %3273 = vmatprep.subr.mxu0 0.0
      %3274 = vmatpush1.msra.mxu0 0.0
      %3275 = vmatprep.subr.mxu0 0.0
      %3276 = vmatpush1.msra.mxu0 0.0
      %3277 = vmatprep.subr.mxu0 0.0
      %3278 = vmatpush1.msra.mxu0 0.0
      %3279 = vmatprep.subr.mxu0 0.0
      %3280 = vmatpush1.msra.mxu0 0.0
      %3281 = vmatprep.subr.mxu0 0.0
      %3282 = vmatpush1.msra.mxu0 0.0
      %3283 = vmatprep.subr.mxu0 0.0
      %3284 = vmatpush1.msra.mxu0 0.0
      %3285 = vmatprep.subr.mxu0 0.0
      %3286 = vmatpush1.msra.mxu0 0.0
      %3287 = vmatprep.subr.mxu0 0.0
      %3288 = vmatpush1.msra.mxu0 0.0
      %3289 = vmatprep.subr.mxu0 0.0
      %3290 = vmatpush1.msra.mxu0 0.0
      %3291 = vmatprep.subr.mxu0 0.0
      %3292 = vmatpush1.msra.mxu0 0.0
      %3293 = vmatprep.subr.mxu0 0.0
      %3294 = vmatpush1.msra.mxu0 0.0
      %3295 = vmatprep.subr.mxu0 0.0
      %3296 = vmatpush1.msra.mxu0 0.0
      %3297 = vmatprep.subr.mxu0 0.0
      %3298 = vmatpush1.msra.mxu0 0.0
      %3299 = vmatprep.subr.mxu0 0.0
      %3300 = vmatpush1.msra.mxu0 0.0
      %3301 = vmatprep.subr.mxu0 0.0
      %3302 = vmatpush1.msra.mxu0 0.0
      %3303 = vmatprep.subr.mxu0 0.0
      %3304 = vmatpush1.msra.mxu0 0.0
      %3305 = vmatprep.subr.mxu0 0.0
      %3306 = vmatpush1.msra.mxu0 0.0
      %3307 = vmatprep.subr.mxu0 0.0
      %3308 = vmatpush1.msra.mxu0 0.0
      %3309 = vmatprep.subr.mxu0 0.0
      %3310 = vmatpush1.msra.mxu0 0.0
      %3311 = vmatprep.subr.mxu0 0.0
      %3312 = vmatpush1.msra.mxu0 0.0
      %3313 = vmatprep.subr.mxu0 0.0
      %3314 = vmatpush1.msra.mxu0 0.0
      %3315 = vmatprep.subr.mxu0 0.0
      %3316 = vmatpush1.msra.mxu0 0.0
      %3317 = vmatprep.subr.mxu0 0.0
      %3318 = vmatpush1.msra.mxu0 0.0
      %3319 = vmatprep.subr.mxu0 0.0
      %3320 = vmatpush1.msra.mxu0 0.0
      %3321 = vmatprep.subr.mxu0 0.0
      %3322 = vmatpush1.msra.mxu0 0.0
      %3323 = vmatprep.subr.mxu0 0.0
      %3324 = vmatpush1.msra.mxu0 0.0
      %3325 = vmatprep.subr.mxu0 0.0
      %3326 = vmatpush1.msra.mxu0 0.0
      %3327 = vmatprep.subr.mxu0 0.0
      %3328 = vmatpush1.msra.mxu0 0.0
      %3329 = vmatprep.subr.mxu0 0.0
      %3330 = vmatpush1.msra.mxu0 0.0
      %3331 = vmatprep.subr.mxu0 0.0
      %3332 = vmatpush1.msra.mxu0 0.0
      %3333 = vmatprep.mubr.f32.mxu0 0.0
      %3334 = vmatmul.mubr.f32.gmra.mrb[0].mxu0 %v3267
      %v3335 = vpop.f32.mrb[0].mxu0
      %v3336 = vadd.f32 %v3265, %v3335
      %v3337 = vpop.f32.mrb[0].mxu0
      %3338 = vdwg.mxu0
      %3339 = vst.msk [vmem:[%s482 + $0x3] sm:$0x1] %vm2375, %v3336
      %v3340 = vld [vmem:[#allocation2] sm:$0x1]
      %3342 = vset.pattern.permute.xlu0 0
      %3343 = vperm.xlu0 %3342, %v3340
      %v3344 = vpop.permute.xlu0 %3343
      %v3346 = vlaneseq
      %v3347 = vshrl.u32 %v3346, 7
      %v3348 = vsub.s32 0, %v3347
      %v3349 = vrot.slane %v3344, %v3348
      %v3351 = vsel %vm2060, %v2037, 0
      %3353 = vmatprep.subr.mxu0 0.0
      %3354 = vmatpush1.xpose.msra.mxu0 %v3351
      %3355 = vmatprep.subr.mxu0 0.0
      %3356 = vmatpush1.xpose.msra.mxu0 0.0
      %3357 = vmatprep.subr.mxu0 0.0
      %3358 = vmatpush1.xpose.msra.mxu0 0.0
      %3359 = vmatprep.subr.mxu0 0.0
      %3360 = vmatpush1.xpose.msra.mxu0 0.0
      %3361 = vmatprep.subr.mxu0 0.0
      %3362 = vmatpush1.xpose.msra.mxu0 0.0
      %3363 = vmatprep.subr.mxu0 0.0
      %3364 = vmatpush1.xpose.msra.mxu0 0.0
      %3365 = vmatprep.subr.mxu0 0.0
      %3366 = vmatpush1.xpose.msra.mxu0 0.0
      %3367 = vmatprep.subr.mxu0 0.0
      %3368 = vmatpush1.xpose.msra.mxu0 0.0
      %3369 = vmatprep.subr.mxu0 0.0
      %3370 = vmatpush1.xpose.msra.mxu0 0.0
      %3371 = vmatprep.subr.mxu0 0.0
      %3372 = vmatpush1.xpose.msra.mxu0 0.0
      %3373 = vmatprep.subr.mxu0 0.0
      %3374 = vmatpush1.xpose.msra.mxu0 0.0
      %3375 = vmatprep.subr.mxu0 0.0
      %3376 = vmatpush1.xpose.msra.mxu0 0.0
      %3377 = vmatprep.subr.mxu0 0.0
      %3378 = vmatpush1.xpose.msra.mxu0 0.0
      %3379 = vmatprep.subr.mxu0 0.0
      %3380 = vmatpush1.xpose.msra.mxu0 0.0
      %3381 = vmatprep.subr.mxu0 0.0
      %3382 = vmatpush1.xpose.msra.mxu0 0.0
      %3383 = vmatprep.subr.mxu0 0.0
      %3384 = vmatpush1.xpose.msra.mxu0 0.0
      %3385 = vmatprep.subr.mxu0 0.0
      %3386 = vmatpush1.xpose.msra.mxu0 0.0
      %3387 = vmatprep.subr.mxu0 0.0
      %3388 = vmatpush1.xpose.msra.mxu0 0.0
      %3389 = vmatprep.subr.mxu0 0.0
      %3390 = vmatpush1.xpose.msra.mxu0 0.0
      %3391 = vmatprep.subr.mxu0 0.0
      %3392 = vmatpush1.xpose.msra.mxu0 0.0
      %3393 = vmatprep.subr.mxu0 0.0
      %3394 = vmatpush1.xpose.msra.mxu0 0.0
      %3395 = vmatprep.subr.mxu0 0.0
      %3396 = vmatpush1.xpose.msra.mxu0 0.0
      %3397 = vmatprep.subr.mxu0 0.0
      %3398 = vmatpush1.xpose.msra.mxu0 0.0
      %3399 = vmatprep.subr.mxu0 0.0
      %3400 = vmatpush1.xpose.msra.mxu0 0.0
      %3401 = vmatprep.subr.mxu0 0.0
      %3402 = vmatpush1.xpose.msra.mxu0 0.0
      %3403 = vmatprep.subr.mxu0 0.0
      %3404 = vmatpush1.xpose.msra.mxu0 0.0
      %3405 = vmatprep.subr.mxu0 0.0
      %3406 = vmatpush1.xpose.msra.mxu0 0.0
      %3407 = vmatprep.subr.mxu0 0.0
      %3408 = vmatpush1.xpose.msra.mxu0 0.0
      %3409 = vmatprep.subr.mxu0 0.0
      %3410 = vmatpush1.xpose.msra.mxu0 0.0
      %3411 = vmatprep.subr.mxu0 0.0
      %3412 = vmatpush1.xpose.msra.mxu0 0.0
      %3413 = vmatprep.subr.mxu0 0.0
      %3414 = vmatpush1.xpose.msra.mxu0 0.0
      %3415 = vmatprep.subr.mxu0 0.0
      %3416 = vmatpush1.xpose.msra.mxu0 0.0
      %3417 = vmatprep.mubr.f32.mxu0 0.0
      %3418 = vmatmul.mubr.f32.gmra.mrb[0].mxu0 %v2062
      %v3419 = vpop.f32.mrb[0].mxu0
      %v3420 = vadd.f32 %v3349, %v3419
      %v3421 = vpop.f32.mrb[0].mxu0
      %3422 = vdwg.mxu0
      %v3423 = vsel %vm2137, %v3420, -inf
      %3424 = vmax.xlane.f32.xlu0 %v3423
      %v3425 = vpop.xlane.xlu0 %3424
      %v3426 = vsub.f32 %v3420, %v3425
      %v3427 = vmul.f32 %v3426, 1.442695
      %v3428 = vpow.pop %v3427
      %v3429 = vsel %vm2137, %v3428, 0.0
      %3430 = vadd.xlane.f32.xlu0 %v3429
      %v3431 = vpop.xlane.xlu0 %3430
      %v3432 = vrcp.pop %v3431
      %v3433 = vmul.f32 %v3428, %v3432
      %3434 = vst.msk [vmem:[%s488 + $0x4] sm:$0x1] %vm2137, %v3433
      %v3436 = vsel %vm2060, %v3433, 0
      %3438 = vmatprep.subr.mxu0 0.0
      %3439 = vmatpush1.msra.mxu0 %v1773
      %3440 = vmatprep.subr.mxu0 0.0
      %3441 = vmatpush1.msra.mxu0 0.0
      %3442 = vmatprep.subr.mxu0 0.0
      %3443 = vmatpush1.msra.mxu0 0.0
      %3444 = vmatprep.subr.mxu0 0.0
      %3445 = vmatpush1.msra.mxu0 0.0
      %3446 = vmatprep.subr.mxu0 0.0
      %3447 = vmatpush1.msra.mxu0 0.0
      %3448 = vmatprep.subr.mxu0 0.0
      %3449 = vmatpush1.msra.mxu0 0.0
      %3450 = vmatprep.subr.mxu0 0.0
      %3451 = vmatpush1.msra.mxu0 0.0
      %3452 = vmatprep.subr.mxu0 0.0
      %3453 = vmatpush1.msra.mxu0 0.0
      %3454 = vmatprep.subr.mxu0 0.0
      %3455 = vmatpush1.msra.mxu0 0.0
      %3456 = vmatprep.subr.mxu0 0.0
      %3457 = vmatpush1.msra.mxu0 0.0
      %3458 = vmatprep.subr.mxu0 0.0
      %3459 = vmatpush1.msra.mxu0 0.0
      %3460 = vmatprep.subr.mxu0 0.0
      %3461 = vmatpush1.msra.mxu0 0.0
      %3462 = vmatprep.subr.mxu0 0.0
      %3463 = vmatpush1.msra.mxu0 0.0
      %3464 = vmatprep.subr.mxu0 0.0
      %3465 = vmatpush1.msra.mxu0 0.0
      %3466 = vmatprep.subr.mxu0 0.0
      %3467 = vmatpush1.msra.mxu0 0.0
      %3468 = vmatprep.subr.mxu0 0.0
      %3469 = vmatpush1.msra.mxu0 0.0
      %3470 = vmatprep.subr.mxu0 0.0
      %3471 = vmatpush1.msra.mxu0 0.0
      %3472 = vmatprep.subr.mxu0 0.0
      %3473 = vmatpush1.msra.mxu0 0.0
      %3474 = vmatprep.subr.mxu0 0.0
      %3475 = vmatpush1.msra.mxu0 0.0
      %3476 = vmatprep.subr.mxu0 0.0
      %3477 = vmatpush1.msra.mxu0 0.0
      %3478 = vmatprep.subr.mxu0 0.0
      %3479 = vmatpush1.msra.mxu0 0.0
      %3480 = vmatprep.subr.mxu0 0.0
      %3481 = vmatpush1.msra.mxu0 0.0
      %3482 = vmatprep.subr.mxu0 0.0
      %3483 = vmatpush1.msra.mxu0 0.0
      %3484 = vmatprep.subr.mxu0 0.0
      %3485 = vmatpush1.msra.mxu0 0.0
      %3486 = vmatprep.subr.mxu0 0.0
      %3487 = vmatpush1.msra.mxu0 0.0
      %3488 = vmatprep.subr.mxu0 0.0
      %3489 = vmatpush1.msra.mxu0 0.0
      %3490 = vmatprep.subr.mxu0 0.0
      %3491 = vmatpush1.msra.mxu0 0.0
      %3492 = vmatprep.subr.mxu0 0.0
      %3493 = vmatpush1.msra.mxu0 0.0
      %3494 = vmatprep.subr.mxu0 0.0
      %3495 = vmatpush1.msra.mxu0 0.0
      %3496 = vmatprep.subr.mxu0 0.0
      %3497 = vmatpush1.msra.mxu0 0.0
      %3498 = vmatprep.subr.mxu0 0.0
      %3499 = vmatpush1.msra.mxu0 0.0
      %3500 = vmatprep.subr.mxu0 0.0
      %3501 = vmatpush1.msra.mxu0 0.0
      %3502 = vmatprep.mubr.f32.mxu0 0.0
      %3503 = vmatmul.mubr.f32.gmra.mrb[0].mxu0 %v3436
      %v3504 = vpop.f32.mrb[0].mxu0
      %v3505 = vadd.f32 0.0, %v3504
      %v3506 = vpop.f32.mrb[0].mxu0
      %3507 = vdwg.mxu0
      %v3508 = vld [vmem:[%s9] sm:$0xff]
      %v3509 = vld [vmem:[%s9 + $0x8] sm:$0xff]
      %v3510 = vld [vmem:[%s10] sm:$0x1]
      %v3512 = vsel %vm1234, %v3505, 0
      %3514 = vmatprep.subr.mxu0 0.0
      %3515 = vmatpush1.msra.mxu0 %v3508
      %3516 = vmatprep.subr.mxu0 0.0
      %3517 = vmatpush1.msra.mxu0 %v3509
      %3518 = vmatprep.subr.mxu0 0.0
      %3519 = vmatpush1.msra.mxu0 0.0
      %3520 = vmatprep.subr.mxu0 0.0
      %3521 = vmatpush1.msra.mxu0 0.0
      %3522 = vmatprep.subr.mxu0 0.0
      %3523 = vmatpush1.msra.mxu0 0.0
      %3524 = vmatprep.subr.mxu0 0.0
      %3525 = vmatpush1.msra.mxu0 0.0
      %3526 = vmatprep.subr.mxu0 0.0
      %3527 = vmatpush1.msra.mxu0 0.0
      %3528 = vmatprep.subr.mxu0 0.0
      %3529 = vmatpush1.msra.mxu0 0.0
      %3530 = vmatprep.subr.mxu0 0.0
      %3531 = vmatpush1.msra.mxu0 0.0
      %3532 = vmatprep.subr.mxu0 0.0
      %3533 = vmatpush1.msra.mxu0 0.0
      %3534 = vmatprep.subr.mxu0 0.0
      %3535 = vmatpush1.msra.mxu0 0.0
      %3536 = vmatprep.subr.mxu0 0.0
      %3537 = vmatpush1.msra.mxu0 0.0
      %3538 = vmatprep.subr.mxu0 0.0
      %3539 = vmatpush1.msra.mxu0 0.0
      %3540 = vmatprep.subr.mxu0 0.0
      %3541 = vmatpush1.msra.mxu0 0.0
      %3542 = vmatprep.subr.mxu0 0.0
      %3543 = vmatpush1.msra.mxu0 0.0
      %3544 = vmatprep.subr.mxu0 0.0
      %3545 = vmatpush1.msra.mxu0 0.0
      %3546 = vmatprep.subr.mxu0 0.0
      %3547 = vmatpush1.msra.mxu0 0.0
      %3548 = vmatprep.subr.mxu0 0.0
      %3549 = vmatpush1.msra.mxu0 0.0
      %3550 = vmatprep.subr.mxu0 0.0
      %3551 = vmatpush1.msra.mxu0 0.0
      %3552 = vmatprep.subr.mxu0 0.0
      %3553 = vmatpush1.msra.mxu0 0.0
      %3554 = vmatprep.subr.mxu0 0.0
      %3555 = vmatpush1.msra.mxu0 0.0
      %3556 = vmatprep.subr.mxu0 0.0
      %3557 = vmatpush1.msra.mxu0 0.0
      %3558 = vmatprep.subr.mxu0 0.0
      %3559 = vmatpush1.msra.mxu0 0.0
      %3560 = vmatprep.subr.mxu0 0.0
      %3561 = vmatpush1.msra.mxu0 0.0
      %3562 = vmatprep.subr.mxu0 0.0
      %3563 = vmatpush1.msra.mxu0 0.0
      %3564 = vmatprep.subr.mxu0 0.0
      %3565 = vmatpush1.msra.mxu0 0.0
      %3566 = vmatprep.subr.mxu0 0.0
      %3567 = vmatpush1.msra.mxu0 0.0
      %3568 = vmatprep.subr.mxu0 0.0
      %3569 = vmatpush1.msra.mxu0 0.0
      %3570 = vmatprep.subr.mxu0 0.0
      %3571 = vmatpush1.msra.mxu0 0.0
      %3572 = vmatprep.subr.mxu0 0.0
      %3573 = vmatpush1.msra.mxu0 0.0
      %3574 = vmatprep.subr.mxu0 0.0
      %3575 = vmatpush1.msra.mxu0 0.0
      %3576 = vmatprep.subr.mxu0 0.0
      %3577 = vmatpush1.msra.mxu0 0.0
      %3578 = vmatprep.mubr.f32.mxu0 0.0
      %3579 = vmatmul.mubr.f32.gmra.mrb[0].mxu0 %v3512
      %v3580 = vpop.f32.mrb[0].mxu0
      %v3581 = vadd.f32 %v3510, %v3580
      %v3582 = vpop.f32.mrb[0].mxu0
      %3583 = vdwg.mxu0
      %v3584 = vmax.f32 %v3581, 0.0
      %v3585 = vld [vmem:[%s11] sm:$0xff]
      %v3586 = vld [vmem:[%s12] sm:$0x1]
      %v3588 = vsel %vm2060, %v3584, 0
      %3590 = vmatprep.subr.mxu0 0.0
      %3591 = vmatpush1.msra.mxu0 %v3585
      %3592 = vmatprep.subr.mxu0 0.0
      %3593 = vmatpush1.msra.mxu0 0.0
      %3594 = vmatprep.subr.mxu0 0.0
      %3595 = vmatpush1.msra.mxu0 0.0
      %3596 = vmatprep.subr.mxu0 0.0
      %3597 = vmatpush1.msra.mxu0 0.0
      %3598 = vmatprep.subr.mxu0 0.0
      %3599 = vmatpush1.msra.mxu0 0.0
      %3600 = vmatprep.subr.mxu0 0.0
      %3601 = vmatpush1.msra.mxu0 0.0
      %3602 = vmatprep.subr.mxu0 0.0
      %3603 = vmatpush1.msra.mxu0 0.0
      %3604 = vmatprep.subr.mxu0 0.0
      %3605 = vmatpush1.msra.mxu0 0.0
      %3606 = vmatprep.subr.mxu0 0.0
      %3607 = vmatpush1.msra.mxu0 0.0
      %3608 = vmatprep.subr.mxu0 0.0
      %3609 = vmatpush1.msra.mxu0 0.0
      %3610 = vmatprep.subr.mxu0 0.0
      %3611 = vmatpush1.msra.mxu0 0.0
      %3612 = vmatprep.subr.mxu0 0.0
      %3613 = vmatpush1.msra.mxu0 0.0
      %3614 = vmatprep.subr.mxu0 0.0
      %3615 = vmatpush1.msra.mxu0 0.0
      %3616 = vmatprep.subr.mxu0 0.0
      %3617 = vmatpush1.msra.mxu0 0.0
      %3618 = vmatprep.subr.mxu0 0.0
      %3619 = vmatpush1.msra.mxu0 0.0
      %3620 = vmatprep.subr.mxu0 0.0
      %3621 = vmatpush1.msra.mxu0 0.0
      %3622 = vmatprep.subr.mxu0 0.0
      %3623 = vmatpush1.msra.mxu0 0.0
      %3624 = vmatprep.subr.mxu0 0.0
      %3625 = vmatpush1.msra.mxu0 0.0
      %3626 = vmatprep.subr.mxu0 0.0
      %3627 = vmatpush1.msra.mxu0 0.0
      %3628 = vmatprep.subr.mxu0 0.0
      %3629 = vmatpush1.msra.mxu0 0.0
      %3630 = vmatprep.subr.mxu0 0.0
      %3631 = vmatpush1.msra.mxu0 0.0
      %3632 = vmatprep.subr.mxu0 0.0
      %3633 = vmatpush1.msra.mxu0 0.0
      %3634 = vmatprep.subr.mxu0 0.0
      %3635 = vmatpush1.msra.mxu0 0.0
      %3636 = vmatprep.subr.mxu0 0.0
      %3637 = vmatpush1.msra.mxu0 0.0
      %3638 = vmatprep.subr.mxu0 0.0
      %3639 = vmatpush1.msra.mxu0 0.0
      %3640 = vmatprep.subr.mxu0 0.0
      %3641 = vmatpush1.msra.mxu0 0.0
      %3642 = vmatprep.subr.mxu0 0.0
      %3643 = vmatpush1.msra.mxu0 0.0
      %3644 = vmatprep.subr.mxu0 0.0
      %3645 = vmatpush1.msra.mxu0 0.0
      %3646 = vmatprep.subr.mxu0 0.0
      %3647 = vmatpush1.msra.mxu0 0.0
      %3648 = vmatprep.subr.mxu0 0.0
      %3649 = vmatpush1.msra.mxu0 0.0
      %3650 = vmatprep.subr.mxu0 0.0
      %3651 = vmatpush1.msra.mxu0 0.0
      %3652 = vmatprep.subr.mxu0 0.0
      %3653 = vmatpush1.msra.mxu0 0.0
      %3654 = vmatprep.mubr.f32.mxu0 0.0
      %3655 = vmatmul.mubr.f32.gmra.mrb[0].mxu0 %v3588
      %v3656 = vpop.f32.mrb[0].mxu0
      %v3657 = vadd.f32 %v3586, %v3656
      %v3658 = vpop.f32.mrb[0].mxu0
      %3659 = vdwg.mxu0
      %3660 = vst.msk [vmem:[%s482 + $0x4] sm:$0x1] %vm2375, %v3657
      %v3661 = vld [vmem:[#allocation2] sm:$0x1]
      %3663 = vset.pattern.permute.xlu0 0
      %3664 = vperm.xlu0 %3663, %v3661
      %v3665 = vpop.permute.xlu0 %3664
      %v3667 = vlaneseq
      %v3668 = vshrl.u32 %v3667, 7
      %v3669 = vsub.s32 0, %v3668
      %v3670 = vrot.slane %v3665, %v3669
      %v3672 = vsel %vm2060, %v2038, 0
      %3674 = vmatprep.subr.mxu0 0.0
      %3675 = vmatpush1.xpose.msra.mxu0 %v3672
      %3676 = vmatprep.subr.mxu0 0.0
      %3677 = vmatpush1.xpose.msra.mxu0 0.0
      %3678 = vmatprep.subr.mxu0 0.0
      %3679 = vmatpush1.xpose.msra.mxu0 0.0
      %3680 = vmatprep.subr.mxu0 0.0
      %3681 = vmatpush1.xpose.msra.mxu0 0.0
      %3682 = vmatprep.subr.mxu0 0.0
      %3683 = vmatpush1.xpose.msra.mxu0 0.0
      %3684 = vmatprep.subr.mxu0 0.0
      %3685 = vmatpush1.xpose.msra.mxu0 0.0
      %3686 = vmatprep.subr.mxu0 0.0
      %3687 = vmatpush1.xpose.msra.mxu0 0.0
      %3688 = vmatprep.subr.mxu0 0.0
      %3689 = vmatpush1.xpose.msra.mxu0 0.0
      %3690 = vmatprep.subr.mxu0 0.0
      %3691 = vmatpush1.xpose.msra.mxu0 0.0
      %3692 = vmatprep.subr.mxu0 0.0
      %3693 = vmatpush1.xpose.msra.mxu0 0.0
      %3694 = vmatprep.subr.mxu0 0.0
      %3695 = vmatpush1.xpose.msra.mxu0 0.0
      %3696 = vmatprep.subr.mxu0 0.0
      %3697 = vmatpush1.xpose.msra.mxu0 0.0
      %3698 = vmatprep.subr.mxu0 0.0
      %3699 = vmatpush1.xpose.msra.mxu0 0.0
      %3700 = vmatprep.subr.mxu0 0.0
      %3701 = vmatpush1.xpose.msra.mxu0 0.0
      %3702 = vmatprep.subr.mxu0 0.0
      %3703 = vmatpush1.xpose.msra.mxu0 0.0
      %3704 = vmatprep.subr.mxu0 0.0
      %3705 = vmatpush1.xpose.msra.mxu0 0.0
      %3706 = vmatprep.subr.mxu0 0.0
      %3707 = vmatpush1.xpose.msra.mxu0 0.0
      %3708 = vmatprep.subr.mxu0 0.0
      %3709 = vmatpush1.xpose.msra.mxu0 0.0
      %3710 = vmatprep.subr.mxu0 0.0
      %3711 = vmatpush1.xpose.msra.mxu0 0.0
      %3712 = vmatprep.subr.mxu0 0.0
      %3713 = vmatpush1.xpose.msra.mxu0 0.0
      %3714 = vmatprep.subr.mxu0 0.0
      %3715 = vmatpush1.xpose.msra.mxu0 0.0
      %3716 = vmatprep.subr.mxu0 0.0
      %3717 = vmatpush1.xpose.msra.mxu0 0.0
      %3718 = vmatprep.subr.mxu0 0.0
      %3719 = vmatpush1.xpose.msra.mxu0 0.0
      %3720 = vmatprep.subr.mxu0 0.0
      %3721 = vmatpush1.xpose.msra.mxu0 0.0
      %3722 = vmatprep.subr.mxu0 0.0
      %3723 = vmatpush1.xpose.msra.mxu0 0.0
      %3724 = vmatprep.subr.mxu0 0.0
      %3725 = vmatpush1.xpose.msra.mxu0 0.0
      %3726 = vmatprep.subr.mxu0 0.0
      %3727 = vmatpush1.xpose.msra.mxu0 0.0
      %3728 = vmatprep.subr.mxu0 0.0
      %3729 = vmatpush1.xpose.msra.mxu0 0.0
      %3730 = vmatprep.subr.mxu0 0.0
      %3731 = vmatpush1.xpose.msra.mxu0 0.0
      %3732 = vmatprep.subr.mxu0 0.0
      %3733 = vmatpush1.xpose.msra.mxu0 0.0
      %3734 = vmatprep.subr.mxu0 0.0
      %3735 = vmatpush1.xpose.msra.mxu0 0.0
      %3736 = vmatprep.subr.mxu0 0.0
      %3737 = vmatpush1.xpose.msra.mxu0 0.0
      %3738 = vmatprep.mubr.f32.mxu0 0.0
      %3739 = vmatmul.mubr.f32.gmra.mrb[0].mxu0 %v2062
      %v3740 = vpop.f32.mrb[0].mxu0
      %v3741 = vadd.f32 %v3670, %v3740
      %v3742 = vpop.f32.mrb[0].mxu0
      %3743 = vdwg.mxu0
      %v3744 = vsel %vm2137, %v3741, -inf
      %3745 = vmax.xlane.f32.xlu0 %v3744
      %v3746 = vpop.xlane.xlu0 %3745
      %v3747 = vsub.f32 %v3741, %v3746
      %v3748 = vmul.f32 %v3747, 1.442695
      %v3749 = vpow.pop %v3748
      %v3750 = vsel %vm2137, %v3749, 0.0
      %3751 = vadd.xlane.f32.xlu0 %v3750
      %v3752 = vpop.xlane.xlu0 %3751
      %v3753 = vrcp.pop %v3752
      %v3754 = vmul.f32 %v3749, %v3753
      %3755 = vst.msk [vmem:[%s488 + $0x5] sm:$0x1] %vm2137, %v3754
      %v3757 = vsel %vm2060, %v3754, 0
      %3759 = vmatprep.subr.mxu0 0.0
      %3760 = vmatpush1.msra.mxu0 %v1778
      %3761 = vmatprep.subr.mxu0 0.0
      %3762 = vmatpush1.msra.mxu0 0.0
      %3763 = vmatprep.subr.mxu0 0.0
      %3764 = vmatpush1.msra.mxu0 0.0
      %3765 = vmatprep.subr.mxu0 0.0
      %3766 = vmatpush1.msra.mxu0 0.0
      %3767 = vmatprep.subr.mxu0 0.0
      %3768 = vmatpush1.msra.mxu0 0.0
      %3769 = vmatprep.subr.mxu0 0.0
      %3770 = vmatpush1.msra.mxu0 0.0
      %3771 = vmatprep.subr.mxu0 0.0
      %3772 = vmatpush1.msra.mxu0 0.0
      %3773 = vmatprep.subr.mxu0 0.0
      %3774 = vmatpush1.msra.mxu0 0.0
      %3775 = vmatprep.subr.mxu0 0.0
      %3776 = vmatpush1.msra.mxu0 0.0
      %3777 = vmatprep.subr.mxu0 0.0
      %3778 = vmatpush1.msra.mxu0 0.0
      %3779 = vmatprep.subr.mxu0 0.0
      %3780 = vmatpush1.msra.mxu0 0.0
      %3781 = vmatprep.subr.mxu0 0.0
      %3782 = vmatpush1.msra.mxu0 0.0
      %3783 = vmatprep.subr.mxu0 0.0
      %3784 = vmatpush1.msra.mxu0 0.0
      %3785 = vmatprep.subr.mxu0 0.0
      %3786 = vmatpush1.msra.mxu0 0.0
      %3787 = vmatprep.subr.mxu0 0.0
      %3788 = vmatpush1.msra.mxu0 0.0
      %3789 = vmatprep.subr.mxu0 0.0
      %3790 = vmatpush1.msra.mxu0 0.0
      %3791 = vmatprep.subr.mxu0 0.0
      %3792 = vmatpush1.msra.mxu0 0.0
      %3793 = vmatprep.subr.mxu0 0.0
      %3794 = vmatpush1.msra.mxu0 0.0
      %3795 = vmatprep.subr.mxu0 0.0
      %3796 = vmatpush1.msra.mxu0 0.0
      %3797 = vmatprep.subr.mxu0 0.0
      %3798 = vmatpush1.msra.mxu0 0.0
      %3799 = vmatprep.subr.mxu0 0.0
      %3800 = vmatpush1.msra.mxu0 0.0
      %3801 = vmatprep.subr.mxu0 0.0
      %3802 = vmatpush1.msra.mxu0 0.0
      %3803 = vmatprep.subr.mxu0 0.0
      %3804 = vmatpush1.msra.mxu0 0.0
      %3805 = vmatprep.subr.mxu0 0.0
      %3806 = vmatpush1.msra.mxu0 0.0
      %3807 = vmatprep.subr.mxu0 0.0
      %3808 = vmatpush1.msra.mxu0 0.0
      %3809 = vmatprep.subr.mxu0 0.0
      %3810 = vmatpush1.msra.mxu0 0.0
      %3811 = vmatprep.subr.mxu0 0.0
      %3812 = vmatpush1.msra.mxu0 0.0
      %3813 = vmatprep.subr.mxu0 0.0
      %3814 = vmatpush1.msra.mxu0 0.0
      %3815 = vmatprep.subr.mxu0 0.0
      %3816 = vmatpush1.msra.mxu0 0.0
      %3817 = vmatprep.subr.mxu0 0.0
      %3818 = vmatpush1.msra.mxu0 0.0
      %3819 = vmatprep.subr.mxu0 0.0
      %3820 = vmatpush1.msra.mxu0 0.0
      %3821 = vmatprep.subr.mxu0 0.0
      %3822 = vmatpush1.msra.mxu0 0.0
      %3823 = vmatprep.mubr.f32.mxu0 0.0
      %3824 = vmatmul.mubr.f32.gmra.mrb[0].mxu0 %v3757
      %v3825 = vpop.f32.mrb[0].mxu0
      %v3826 = vadd.f32 0.0, %v3825
      %v3827 = vpop.f32.mrb[0].mxu0
      %3828 = vdwg.mxu0
      %v3829 = vld [vmem:[%s9] sm:$0xff]
      %v3830 = vld [vmem:[%s9 + $0x8] sm:$0xff]
      %v3831 = vld [vmem:[%s10] sm:$0x1]
      %v3833 = vsel %vm1234, %v3826, 0
      %3835 = vmatprep.subr.mxu0 0.0
      %3836 = vmatpush1.msra.mxu0 %v3829
      %3837 = vmatprep.subr.mxu0 0.0
      %3838 = vmatpush1.msra.mxu0 %v3830
      %3839 = vmatprep.subr.mxu0 0.0
      %3840 = vmatpush1.msra.mxu0 0.0
      %3841 = vmatprep.subr.mxu0 0.0
      %3842 = vmatpush1.msra.mxu0 0.0
      %3843 = vmatprep.subr.mxu0 0.0
      %3844 = vmatpush1.msra.mxu0 0.0
      %3845 = vmatprep.subr.mxu0 0.0
      %3846 = vmatpush1.msra.mxu0 0.0
      %3847 = vmatprep.subr.mxu0 0.0
      %3848 = vmatpush1.msra.mxu0 0.0
      %3849 = vmatprep.subr.mxu0 0.0
      %3850 = vmatpush1.msra.mxu0 0.0
      %3851 = vmatprep.subr.mxu0 0.0
      %3852 = vmatpush1.msra.mxu0 0.0
      %3853 = vmatprep.subr.mxu0 0.0
      %3854 = vmatpush1.msra.mxu0 0.0
      %3855 = vmatprep.subr.mxu0 0.0
      %3856 = vmatpush1.msra.mxu0 0.0
      %3857 = vmatprep.subr.mxu0 0.0
      %3858 = vmatpush1.msra.mxu0 0.0
      %3859 = vmatprep.subr.mxu0 0.0
      %3860 = vmatpush1.msra.mxu0 0.0
      %3861 = vmatprep.subr.mxu0 0.0
      %3862 = vmatpush1.msra.mxu0 0.0
      %3863 = vmatprep.subr.mxu0 0.0
      %3864 = vmatpush1.msra.mxu0 0.0
      %3865 = vmatprep.subr.mxu0 0.0
      %3866 = vmatpush1.msra.mxu0 0.0
      %3867 = vmatprep.subr.mxu0 0.0
      %3868 = vmatpush1.msra.mxu0 0.0
      %3869 = vmatprep.subr.mxu0 0.0
      %3870 = vmatpush1.msra.mxu0 0.0
      %3871 = vmatprep.subr.mxu0 0.0
      %3872 = vmatpush1.msra.mxu0 0.0
      %3873 = vmatprep.subr.mxu0 0.0
      %3874 = vmatpush1.msra.mxu0 0.0
      %3875 = vmatprep.subr.mxu0 0.0
      %3876 = vmatpush1.msra.mxu0 0.0
      %3877 = vmatprep.subr.mxu0 0.0
      %3878 = vmatpush1.msra.mxu0 0.0
      %3879 = vmatprep.subr.mxu0 0.0
      %3880 = vmatpush1.msra.mxu0 0.0
      %3881 = vmatprep.subr.mxu0 0.0
      %3882 = vmatpush1.msra.mxu0 0.0
      %3883 = vmatprep.subr.mxu0 0.0
      %3884 = vmatpush1.msra.mxu0 0.0
      %3885 = vmatprep.subr.mxu0 0.0
      %3886 = vmatpush1.msra.mxu0 0.0
      %3887 = vmatprep.subr.mxu0 0.0
      %3888 = vmatpush1.msra.mxu0 0.0
      %3889 = vmatprep.subr.mxu0 0.0
      %3890 = vmatpush1.msra.mxu0 0.0
      %3891 = vmatprep.subr.mxu0 0.0
      %3892 = vmatpush1.msra.mxu0 0.0
      %3893 = vmatprep.subr.mxu0 0.0
      %3894 = vmatpush1.msra.mxu0 0.0
      %3895 = vmatprep.subr.mxu0 0.0
      %3896 = vmatpush1.msra.mxu0 0.0
      %3897 = vmatprep.subr.mxu0 0.0
      %3898 = vmatpush1.msra.mxu0 0.0
      %3899 = vmatprep.mubr.f32.mxu0 0.0
      %3900 = vmatmul.mubr.f32.gmra.mrb[0].mxu0 %v3833
      %v3901 = vpop.f32.mrb[0].mxu0
      %v3902 = vadd.f32 %v3831, %v3901
      %v3903 = vpop.f32.mrb[0].mxu0
      %3904 = vdwg.mxu0
      %v3905 = vmax.f32 %v3902, 0.0
      %v3906 = vld [vmem:[%s11] sm:$0xff]
      %v3907 = vld [vmem:[%s12] sm:$0x1]
      %v3909 = vsel %vm2060, %v3905, 0
      %3911 = vmatprep.subr.mxu0 0.0
      %3912 = vmatpush1.msra.mxu0 %v3906
      %3913 = vmatprep.subr.mxu0 0.0
      %3914 = vmatpush1.msra.mxu0 0.0
      %3915 = vmatprep.subr.mxu0 0.0
      %3916 = vmatpush1.msra.mxu0 0.0
      %3917 = vmatprep.subr.mxu0 0.0
      %3918 = vmatpush1.msra.mxu0 0.0
      %3919 = vmatprep.subr.mxu0 0.0
      %3920 = vmatpush1.msra.mxu0 0.0
      %3921 = vmatprep.subr.mxu0 0.0
      %3922 = vmatpush1.msra.mxu0 0.0
      %3923 = vmatprep.subr.mxu0 0.0
      %3924 = vmatpush1.msra.mxu0 0.0
      %3925 = vmatprep.subr.mxu0 0.0
      %3926 = vmatpush1.msra.mxu0 0.0
      %3927 = vmatprep.subr.mxu0 0.0
      %3928 = vmatpush1.msra.mxu0 0.0
      %3929 = vmatprep.subr.mxu0 0.0
      %3930 = vmatpush1.msra.mxu0 0.0
      %3931 = vmatprep.subr.mxu0 0.0
      %3932 = vmatpush1.msra.mxu0 0.0
      %3933 = vmatprep.subr.mxu0 0.0
      %3934 = vmatpush1.msra.mxu0 0.0
      %3935 = vmatprep.subr.mxu0 0.0
      %3936 = vmatpush1.msra.mxu0 0.0
      %3937 = vmatprep.subr.mxu0 0.0
      %3938 = vmatpush1.msra.mxu0 0.0
      %3939 = vmatprep.subr.mxu0 0.0
      %3940 = vmatpush1.msra.mxu0 0.0
      %3941 = vmatprep.subr.mxu0 0.0
      %3942 = vmatpush1.msra.mxu0 0.0
      %3943 = vmatprep.subr.mxu0 0.0
      %3944 = vmatpush1.msra.mxu0 0.0
      %3945 = vmatprep.subr.mxu0 0.0
      %3946 = vmatpush1.msra.mxu0 0.0
      %3947 = vmatprep.subr.mxu0 0.0
      %3948 = vmatpush1.msra.mxu0 0.0
      %3949 = vmatprep.subr.mxu0 0.0
      %3950 = vmatpush1.msra.mxu0 0.0
      %3951 = vmatprep.subr.mxu0 0.0
      %3952 = vmatpush1.msra.mxu0 0.0
      %3953 = vmatprep.subr.mxu0 0.0
      %3954 = vmatpush1.msra.mxu0 0.0
      %3955 = vmatprep.subr.mxu0 0.0
      %3956 = vmatpush1.msra.mxu0 0.0
      %3957 = vmatprep.subr.mxu0 0.0
      %3958 = vmatpush1.msra.mxu0 0.0
      %3959 = vmatprep.subr.mxu0 0.0
      %3960 = vmatpush1.msra.mxu0 0.0
      %3961 = vmatprep.subr.mxu0 0.0
      %3962 = vmatpush1.msra.mxu0 0.0
      %3963 = vmatprep.subr.mxu0 0.0
      %3964 = vmatpush1.msra.mxu0 0.0
      %3965 = vmatprep.subr.mxu0 0.0
      %3966 = vmatpush1.msra.mxu0 0.0
      %3967 = vmatprep.subr.mxu0 0.0
      %3968 = vmatpush1.msra.mxu0 0.0
      %3969 = vmatprep.subr.mxu0 0.0
      %3970 = vmatpush1.msra.mxu0 0.0
      %3971 = vmatprep.subr.mxu0 0.0
      %3972 = vmatpush1.msra.mxu0 0.0
      %3973 = vmatprep.subr.mxu0 0.0
      %3974 = vmatpush1.msra.mxu0 0.0
      %3975 = vmatprep.mubr.f32.mxu0 0.0
      %3976 = vmatmul.mubr.f32.gmra.mrb[0].mxu0 %v3909
      %v3977 = vpop.f32.mrb[0].mxu0
      %v3978 = vadd.f32 %v3907, %v3977
      %v3979 = vpop.f32.mrb[0].mxu0
      %3980 = vdwg.mxu0
      %3981 = vst.msk [vmem:[%s482 + $0x5] sm:$0x1] %vm2375, %v3978
      %v3982 = vld [vmem:[#allocation2] sm:$0x1]
      %3984 = vset.pattern.permute.xlu0 0
      %3985 = vperm.xlu0 %3984, %v3982
      %v3986 = vpop.permute.xlu0 %3985
      %v3988 = vlaneseq
      %v3989 = vshrl.u32 %v3988, 7
      %v3990 = vsub.s32 0, %v3989
      %v3991 = vrot.slane %v3986, %v3990
      %v3993 = vsel %vm2060, %v2039, 0
      %3995 = vmatprep.subr.mxu0 0.0
      %3996 = vmatpush1.xpose.msra.mxu0 %v3993
      %3997 = vmatprep.subr.mxu0 0.0
      %3998 = vmatpush1.xpose.msra.mxu0 0.0
      %3999 = vmatprep.subr.mxu0 0.0
      %4000 = vmatpush1.xpose.msra.mxu0 0.0
      %4001 = vmatprep.subr.mxu0 0.0
      %4002 = vmatpush1.xpose.msra.mxu0 0.0
      %4003 = vmatprep.subr.mxu0 0.0
      %4004 = vmatpush1.xpose.msra.mxu0 0.0
      %4005 = vmatprep.subr.mxu0 0.0
      %4006 = vmatpush1.xpose.msra.mxu0 0.0
      %4007 = vmatprep.subr.mxu0 0.0
      %4008 = vmatpush1.xpose.msra.mxu0 0.0
      %4009 = vmatprep.subr.mxu0 0.0
      %4010 = vmatpush1.xpose.msra.mxu0 0.0
      %4011 = vmatprep.subr.mxu0 0.0
      %4012 = vmatpush1.xpose.msra.mxu0 0.0
      %4013 = vmatprep.subr.mxu0 0.0
      %4014 = vmatpush1.xpose.msra.mxu0 0.0
      %4015 = vmatprep.subr.mxu0 0.0
      %4016 = vmatpush1.xpose.msra.mxu0 0.0
      %4017 = vmatprep.subr.mxu0 0.0
      %4018 = vmatpush1.xpose.msra.mxu0 0.0
      %4019 = vmatprep.subr.mxu0 0.0
      %4020 = vmatpush1.xpose.msra.mxu0 0.0
      %4021 = vmatprep.subr.mxu0 0.0
      %4022 = vmatpush1.xpose.msra.mxu0 0.0
      %4023 = vmatprep.subr.mxu0 0.0
      %4024 = vmatpush1.xpose.msra.mxu0 0.0
      %4025 = vmatprep.subr.mxu0 0.0
      %4026 = vmatpush1.xpose.msra.mxu0 0.0
      %4027 = vmatprep.subr.mxu0 0.0
      %4028 = vmatpush1.xpose.msra.mxu0 0.0
      %4029 = vmatprep.subr.mxu0 0.0
      %4030 = vmatpush1.xpose.msra.mxu0 0.0
      %4031 = vmatprep.subr.mxu0 0.0
      %4032 = vmatpush1.xpose.msra.mxu0 0.0
      %4033 = vmatprep.subr.mxu0 0.0
      %4034 = vmatpush1.xpose.msra.mxu0 0.0
      %4035 = vmatprep.subr.mxu0 0.0
      %4036 = vmatpush1.xpose.msra.mxu0 0.0
      %4037 = vmatprep.subr.mxu0 0.0
      %4038 = vmatpush1.xpose.msra.mxu0 0.0
      %4039 = vmatprep.subr.mxu0 0.0
      %4040 = vmatpush1.xpose.msra.mxu0 0.0
      %4041 = vmatprep.subr.mxu0 0.0
      %4042 = vmatpush1.xpose.msra.mxu0 0.0
      %4043 = vmatprep.subr.mxu0 0.0
      %4044 = vmatpush1.xpose.msra.mxu0 0.0
      %4045 = vmatprep.subr.mxu0 0.0
      %4046 = vmatpush1.xpose.msra.mxu0 0.0
      %4047 = vmatprep.subr.mxu0 0.0
      %4048 = vmatpush1.xpose.msra.mxu0 0.0
      %4049 = vmatprep.subr.mxu0 0.0
      %4050 = vmatpush1.xpose.msra.mxu0 0.0
      %4051 = vmatprep.subr.mxu0 0.0
      %4052 = vmatpush1.xpose.msra.mxu0 0.0
      %4053 = vmatprep.subr.mxu0 0.0
      %4054 = vmatpush1.xpose.msra.mxu0 0.0
      %4055 = vmatprep.subr.mxu0 0.0
      %4056 = vmatpush1.xpose.msra.mxu0 0.0
      %4057 = vmatprep.subr.mxu0 0.0
      %4058 = vmatpush1.xpose.msra.mxu0 0.0
      %4059 = vmatprep.mubr.f32.mxu0 0.0
      %4060 = vmatmul.mubr.f32.gmra.mrb[0].mxu0 %v2062
      %v4061 = vpop.f32.mrb[0].mxu0
      %v4062 = vadd.f32 %v3991, %v4061
      %v4063 = vpop.f32.mrb[0].mxu0
      %4064 = vdwg.mxu0
      %v4065 = vsel %vm2137, %v4062, -inf
      %4066 = vmax.xlane.f32.xlu0 %v4065
      %v4067 = vpop.xlane.xlu0 %4066
      %v4068 = vsub.f32 %v4062, %v4067
      %v4069 = vmul.f32 %v4068, 1.442695
      %v4070 = vpow.pop %v4069
      %v4071 = vsel %vm2137, %v4070, 0.0
      %4072 = vadd.xlane.f32.xlu0 %v4071
      %v4073 = vpop.xlane.xlu0 %4072
      %v4074 = vrcp.pop %v4073
      %v4075 = vmul.f32 %v4070, %v4074
      %4076 = vst.msk [vmem:[%s488 + $0x6] sm:$0x1] %vm2137, %v4075
      %v4078 = vsel %vm2060, %v4075, 0
      %4080 = vmatprep.subr.mxu0 0.0
      %4081 = vmatpush1.msra.mxu0 %v1783
      %4082 = vmatprep.subr.mxu0 0.0
      %4083 = vmatpush1.msra.mxu0 0.0
      %4084 = vmatprep.subr.mxu0 0.0
      %4085 = vmatpush1.msra.mxu0 0.0
      %4086 = vmatprep.subr.mxu0 0.0
      %4087 = vmatpush1.msra.mxu0 0.0
      %4088 = vmatprep.subr.mxu0 0.0
      %4089 = vmatpush1.msra.mxu0 0.0
      %4090 = vmatprep.subr.mxu0 0.0
      %4091 = vmatpush1.msra.mxu0 0.0
      %4092 = vmatprep.subr.mxu0 0.0
      %4093 = vmatpush1.msra.mxu0 0.0
      %4094 = vmatprep.subr.mxu0 0.0
      %4095 = vmatpush1.msra.mxu0 0.0
      %4096 = vmatprep.subr.mxu0 0.0
      %4097 = vmatpush1.msra.mxu0 0.0
      %4098 = vmatprep.subr.mxu0 0.0
      %4099 = vmatpush1.msra.mxu0 0.0
      %4100 = vmatprep.subr.mxu0 0.0
      %4101 = vmatpush1.msra.mxu0 0.0
      %4102 = vmatprep.subr.mxu0 0.0
      %4103 = vmatpush1.msra.mxu0 0.0
      %4104 = vmatprep.subr.mxu0 0.0
      %4105 = vmatpush1.msra.mxu0 0.0
      %4106 = vmatprep.subr.mxu0 0.0
      %4107 = vmatpush1.msra.mxu0 0.0
      %4108 = vmatprep.subr.mxu0 0.0
      %4109 = vmatpush1.msra.mxu0 0.0
      %4110 = vmatprep.subr.mxu0 0.0
      %4111 = vmatpush1.msra.mxu0 0.0
      %4112 = vmatprep.subr.mxu0 0.0
      %4113 = vmatpush1.msra.mxu0 0.0
      %4114 = vmatprep.subr.mxu0 0.0
      %4115 = vmatpush1.msra.mxu0 0.0
      %4116 = vmatprep.subr.mxu0 0.0
      %4117 = vmatpush1.msra.mxu0 0.0
      %4118 = vmatprep.subr.mxu0 0.0
      %4119 = vmatpush1.msra.mxu0 0.0
      %4120 = vmatprep.subr.mxu0 0.0
      %4121 = vmatpush1.msra.mxu0 0.0
      %4122 = vmatprep.subr.mxu0 0.0
      %4123 = vmatpush1.msra.mxu0 0.0
      %4124 = vmatprep.subr.mxu0 0.0
      %4125 = vmatpush1.msra.mxu0 0.0
      %4126 = vmatprep.subr.mxu0 0.0
      %4127 = vmatpush1.msra.mxu0 0.0
      %4128 = vmatprep.subr.mxu0 0.0
      %4129 = vmatpush1.msra.mxu0 0.0
      %4130 = vmatprep.subr.mxu0 0.0
      %4131 = vmatpush1.msra.mxu0 0.0
      %4132 = vmatprep.subr.mxu0 0.0
      %4133 = vmatpush1.msra.mxu0 0.0
      %4134 = vmatprep.subr.mxu0 0.0
      %4135 = vmatpush1.msra.mxu0 0.0
      %4136 = vmatprep.subr.mxu0 0.0
      %4137 = vmatpush1.msra.mxu0 0.0
      %4138 = vmatprep.subr.mxu0 0.0
      %4139 = vmatpush1.msra.mxu0 0.0
      %4140 = vmatprep.subr.mxu0 0.0
      %4141 = vmatpush1.msra.mxu0 0.0
      %4142 = vmatprep.subr.mxu0 0.0
      %4143 = vmatpush1.msra.mxu0 0.0
      %4144 = vmatprep.mubr.f32.mxu0 0.0
      %4145 = vmatmul.mubr.f32.gmra.mrb[0].mxu0 %v4078
      %v4146 = vpop.f32.mrb[0].mxu0
      %v4147 = vadd.f32 0.0, %v4146
      %v4148 = vpop.f32.mrb[0].mxu0
      %4149 = vdwg.mxu0
      %v4150 = vld [vmem:[%s9] sm:$0xff]
      %v4151 = vld [vmem:[%s9 + $0x8] sm:$0xff]
      %v4152 = vld [vmem:[%s10] sm:$0x1]
      %v4154 = vsel %vm1234, %v4147, 0
      %4156 = vmatprep.subr.mxu0 0.0
      %4157 = vmatpush1.msra.mxu0 %v4150
      %4158 = vmatprep.subr.mxu0 0.0
      %4159 = vmatpush1.msra.mxu0 %v4151
      %4160 = vmatprep.subr.mxu0 0.0
      %4161 = vmatpush1.msra.mxu0 0.0
      %4162 = vmatprep.subr.mxu0 0.0
      %4163 = vmatpush1.msra.mxu0 0.0
      %4164 = vmatprep.subr.mxu0 0.0
      %4165 = vmatpush1.msra.mxu0 0.0
      %4166 = vmatprep.subr.mxu0 0.0
      %4167 = vmatpush1.msra.mxu0 0.0
      %4168 = vmatprep.subr.mxu0 0.0
      %4169 = vmatpush1.msra.mxu0 0.0
      %4170 = vmatprep.subr.mxu0 0.0
      %4171 = vmatpush1.msra.mxu0 0.0
      %4172 = vmatprep.subr.mxu0 0.0
      %4173 = vmatpush1.msra.mxu0 0.0
      %4174 = vmatprep.subr.mxu0 0.0
      %4175 = vmatpush1.msra.mxu0 0.0
      %4176 = vmatprep.subr.mxu0 0.0
      %4177 = vmatpush1.msra.mxu0 0.0
      %4178 = vmatprep.subr.mxu0 0.0
      %4179 = vmatpush1.msra.mxu0 0.0
      %4180 = vmatprep.subr.mxu0 0.0
      %4181 = vmatpush1.msra.mxu0 0.0
      %4182 = vmatprep.subr.mxu0 0.0
      %4183 = vmatpush1.msra.mxu0 0.0
      %4184 = vmatprep.subr.mxu0 0.0
      %4185 = vmatpush1.msra.mxu0 0.0
      %4186 = vmatprep.subr.mxu0 0.0
      %4187 = vmatpush1.msra.mxu0 0.0
      %4188 = vmatprep.subr.mxu0 0.0
      %4189 = vmatpush1.msra.mxu0 0.0
      %4190 = vmatprep.subr.mxu0 0.0
      %4191 = vmatpush1.msra.mxu0 0.0
      %4192 = vmatprep.subr.mxu0 0.0
      %4193 = vmatpush1.msra.mxu0 0.0
      %4194 = vmatprep.subr.mxu0 0.0
      %4195 = vmatpush1.msra.mxu0 0.0
      %4196 = vmatprep.subr.mxu0 0.0
      %4197 = vmatpush1.msra.mxu0 0.0
      %4198 = vmatprep.subr.mxu0 0.0
      %4199 = vmatpush1.msra.mxu0 0.0
      %4200 = vmatprep.subr.mxu0 0.0
      %4201 = vmatpush1.msra.mxu0 0.0
      %4202 = vmatprep.subr.mxu0 0.0
      %4203 = vmatpush1.msra.mxu0 0.0
      %4204 = vmatprep.subr.mxu0 0.0
      %4205 = vmatpush1.msra.mxu0 0.0
      %4206 = vmatprep.subr.mxu0 0.0
      %4207 = vmatpush1.msra.mxu0 0.0
      %4208 = vmatprep.subr.mxu0 0.0
      %4209 = vmatpush1.msra.mxu0 0.0
      %4210 = vmatprep.subr.mxu0 0.0
      %4211 = vmatpush1.msra.mxu0 0.0
      %4212 = vmatprep.subr.mxu0 0.0
      %4213 = vmatpush1.msra.mxu0 0.0
      %4214 = vmatprep.subr.mxu0 0.0
      %4215 = vmatpush1.msra.mxu0 0.0
      %4216 = vmatprep.subr.mxu0 0.0
      %4217 = vmatpush1.msra.mxu0 0.0
      %4218 = vmatprep.subr.mxu0 0.0
      %4219 = vmatpush1.msra.mxu0 0.0
      %4220 = vmatprep.mubr.f32.mxu0 0.0
      %4221 = vmatmul.mubr.f32.gmra.mrb[0].mxu0 %v4154
      %v4222 = vpop.f32.mrb[0].mxu0
      %v4223 = vadd.f32 %v4152, %v4222
      %v4224 = vpop.f32.mrb[0].mxu0
      %4225 = vdwg.mxu0
      %v4226 = vmax.f32 %v4223, 0.0
      %v4227 = vld [vmem:[%s11] sm:$0xff]
      %v4228 = vld [vmem:[%s12] sm:$0x1]
      %v4230 = vsel %vm2060, %v4226, 0
      %4232 = vmatprep.subr.mxu0 0.0
      %4233 = vmatpush1.msra.mxu0 %v4227
      %4234 = vmatprep.subr.mxu0 0.0
      %4235 = vmatpush1.msra.mxu0 0.0
      %4236 = vmatprep.subr.mxu0 0.0
      %4237 = vmatpush1.msra.mxu0 0.0
      %4238 = vmatprep.subr.mxu0 0.0
      %4239 = vmatpush1.msra.mxu0 0.0
      %4240 = vmatprep.subr.mxu0 0.0
      %4241 = vmatpush1.msra.mxu0 0.0
      %4242 = vmatprep.subr.mxu0 0.0
      %4243 = vmatpush1.msra.mxu0 0.0
      %4244 = vmatprep.subr.mxu0 0.0
      %4245 = vmatpush1.msra.mxu0 0.0
      %4246 = vmatprep.subr.mxu0 0.0
      %4247 = vmatpush1.msra.mxu0 0.0
      %4248 = vmatprep.subr.mxu0 0.0
      %4249 = vmatpush1.msra.mxu0 0.0
      %4250 = vmatprep.subr.mxu0 0.0
      %4251 = vmatpush1.msra.mxu0 0.0
      %4252 = vmatprep.subr.mxu0 0.0
      %4253 = vmatpush1.msra.mxu0 0.0
      %4254 = vmatprep.subr.mxu0 0.0
      %4255 = vmatpush1.msra.mxu0 0.0
      %4256 = vmatprep.subr.mxu0 0.0
      %4257 = vmatpush1.msra.mxu0 0.0
      %4258 = vmatprep.subr.mxu0 0.0
      %4259 = vmatpush1.msra.mxu0 0.0
      %4260 = vmatprep.subr.mxu0 0.0
      %4261 = vmatpush1.msra.mxu0 0.0
      %4262 = vmatprep.subr.mxu0 0.0
      %4263 = vmatpush1.msra.mxu0 0.0
      %4264 = vmatprep.subr.mxu0 0.0
      %4265 = vmatpush1.msra.mxu0 0.0
      %4266 = vmatprep.subr.mxu0 0.0
      %4267 = vmatpush1.msra.mxu0 0.0
      %4268 = vmatprep.subr.mxu0 0.0
      %4269 = vmatpush1.msra.mxu0 0.0
      %4270 = vmatprep.subr.mxu0 0.0
      %4271 = vmatpush1.msra.mxu0 0.0
      %4272 = vmatprep.subr.mxu0 0.0
      %4273 = vmatpush1.msra.mxu0 0.0
      %4274 = vmatprep.subr.mxu0 0.0
      %4275 = vmatpush1.msra.mxu0 0.0
      %4276 = vmatprep.subr.mxu0 0.0
      %4277 = vmatpush1.msra.mxu0 0.0
      %4278 = vmatprep.subr.mxu0 0.0
      %4279 = vmatpush1.msra.mxu0 0.0
      %4280 = vmatprep.subr.mxu0 0.0
      %4281 = vmatpush1.msra.mxu0 0.0
      %4282 = vmatprep.subr.mxu0 0.0
      %4283 = vmatpush1.msra.mxu0 0.0
      %4284 = vmatprep.subr.mxu0 0.0
      %4285 = vmatpush1.msra.mxu0 0.0
      %4286 = vmatprep.subr.mxu0 0.0
      %4287 = vmatpush1.msra.mxu0 0.0
      %4288 = vmatprep.subr.mxu0 0.0
      %4289 = vmatpush1.msra.mxu0 0.0
      %4290 = vmatprep.subr.mxu0 0.0
      %4291 = vmatpush1.msra.mxu0 0.0
      %4292 = vmatprep.subr.mxu0 0.0
      %4293 = vmatpush1.msra.mxu0 0.0
      %4294 = vmatprep.subr.mxu0 0.0
      %4295 = vmatpush1.msra.mxu0 0.0
      %4296 = vmatprep.mubr.f32.mxu0 0.0
      %4297 = vmatmul.mubr.f32.gmra.mrb[0].mxu0 %v4230
      %v4298 = vpop.f32.mrb[0].mxu0
      %v4299 = vadd.f32 %v4228, %v4298
      %v4300 = vpop.f32.mrb[0].mxu0
      %4301 = vdwg.mxu0
      %4302 = vst.msk [vmem:[%s482 + $0x6] sm:$0x1] %vm2375, %v4299
      %v4303 = vld [vmem:[#allocation2] sm:$0x1]
      %4305 = vset.pattern.permute.xlu0 0
      %4306 = vperm.xlu0 %4305, %v4303
      %v4307 = vpop.permute.xlu0 %4306
      %v4309 = vlaneseq
      %v4310 = vshrl.u32 %v4309, 7
      %v4311 = vsub.s32 0, %v4310
      %v4312 = vrot.slane %v4307, %v4311
      %v4314 = vsel %vm2060, %v2040, 0
      %4316 = vmatprep.subr.mxu0 0.0
      %4317 = vmatpush1.xpose.msra.mxu0 %v4314
      %4318 = vmatprep.subr.mxu0 0.0
      %4319 = vmatpush1.xpose.msra.mxu0 0.0
      %4320 = vmatprep.subr.mxu0 0.0
      %4321 = vmatpush1.xpose.msra.mxu0 0.0
      %4322 = vmatprep.subr.mxu0 0.0
      %4323 = vmatpush1.xpose.msra.mxu0 0.0
      %4324 = vmatprep.subr.mxu0 0.0
      %4325 = vmatpush1.xpose.msra.mxu0 0.0
      %4326 = vmatprep.subr.mxu0 0.0
      %4327 = vmatpush1.xpose.msra.mxu0 0.0
      %4328 = vmatprep.subr.mxu0 0.0
      %4329 = vmatpush1.xpose.msra.mxu0 0.0
      %4330 = vmatprep.subr.mxu0 0.0
      %4331 = vmatpush1.xpose.msra.mxu0 0.0
      %4332 = vmatprep.subr.mxu0 0.0
      %4333 = vmatpush1.xpose.msra.mxu0 0.0
      %4334 = vmatprep.subr.mxu0 0.0
      %4335 = vmatpush1.xpose.msra.mxu0 0.0
      %4336 = vmatprep.subr.mxu0 0.0
      %4337 = vmatpush1.xpose.msra.mxu0 0.0
      %4338 = vmatprep.subr.mxu0 0.0
      %4339 = vmatpush1.xpose.msra.mxu0 0.0
      %4340 = vmatprep.subr.mxu0 0.0
      %4341 = vmatpush1.xpose.msra.mxu0 0.0
      %4342 = vmatprep.subr.mxu0 0.0
      %4343 = vmatpush1.xpose.msra.mxu0 0.0
      %4344 = vmatprep.subr.mxu0 0.0
      %4345 = vmatpush1.xpose.msra.mxu0 0.0
      %4346 = vmatprep.subr.mxu0 0.0
      %4347 = vmatpush1.xpose.msra.mxu0 0.0
      %4348 = vmatprep.subr.mxu0 0.0
      %4349 = vmatpush1.xpose.msra.mxu0 0.0
      %4350 = vmatprep.subr.mxu0 0.0
      %4351 = vmatpush1.xpose.msra.mxu0 0.0
      %4352 = vmatprep.subr.mxu0 0.0
      %4353 = vmatpush1.xpose.msra.mxu0 0.0
      %4354 = vmatprep.subr.mxu0 0.0
      %4355 = vmatpush1.xpose.msra.mxu0 0.0
      %4356 = vmatprep.subr.mxu0 0.0
      %4357 = vmatpush1.xpose.msra.mxu0 0.0
      %4358 = vmatprep.subr.mxu0 0.0
      %4359 = vmatpush1.xpose.msra.mxu0 0.0
      %4360 = vmatprep.subr.mxu0 0.0
      %4361 = vmatpush1.xpose.msra.mxu0 0.0
      %4362 = vmatprep.subr.mxu0 0.0
      %4363 = vmatpush1.xpose.msra.mxu0 0.0
      %4364 = vmatprep.subr.mxu0 0.0
      %4365 = vmatpush1.xpose.msra.mxu0 0.0
      %4366 = vmatprep.subr.mxu0 0.0
      %4367 = vmatpush1.xpose.msra.mxu0 0.0
      %4368 = vmatprep.subr.mxu0 0.0
      %4369 = vmatpush1.xpose.msra.mxu0 0.0
      %4370 = vmatprep.subr.mxu0 0.0
      %4371 = vmatpush1.xpose.msra.mxu0 0.0
      %4372 = vmatprep.subr.mxu0 0.0
      %4373 = vmatpush1.xpose.msra.mxu0 0.0
      %4374 = vmatprep.subr.mxu0 0.0
      %4375 = vmatpush1.xpose.msra.mxu0 0.0
      %4376 = vmatprep.subr.mxu0 0.0
      %4377 = vmatpush1.xpose.msra.mxu0 0.0
      %4378 = vmatprep.subr.mxu0 0.0
      %4379 = vmatpush1.xpose.msra.mxu0 0.0
      %4380 = vmatprep.mubr.f32.mxu0 0.0
      %4381 = vmatmul.mubr.f32.gmra.mrb[0].mxu0 %v2062
      %v4382 = vpop.f32.mrb[0].mxu0
      %v4383 = vadd.f32 %v4312, %v4382
      %v4384 = vpop.f32.mrb[0].mxu0
      %4385 = vdwg.mxu0
      %v4386 = vsel %vm2137, %v4383, -inf
      %4387 = vmax.xlane.f32.xlu0 %v4386
      %v4388 = vpop.xlane.xlu0 %4387
      %v4389 = vsub.f32 %v4383, %v4388
      %v4390 = vmul.f32 %v4389, 1.442695
      %v4391 = vpow.pop %v4390
      %v4392 = vsel %vm2137, %v4391, 0.0
      %4393 = vadd.xlane.f32.xlu0 %v4392
      %v4394 = vpop.xlane.xlu0 %4393
      %v4395 = vrcp.pop %v4394
      %v4396 = vmul.f32 %v4391, %v4395
      %4397 = vst.msk [vmem:[%s488 + $0x7] sm:$0x1] %vm2137, %v4396
      %v4399 = vsel %vm2060, %v4396, 0
      %4401 = vmatprep.subr.mxu0 0.0
      %4402 = vmatpush1.msra.mxu0 %v1788
      %4403 = vmatprep.subr.mxu0 0.0
      %4404 = vmatpush1.msra.mxu0 0.0
      %4405 = vmatprep.subr.mxu0 0.0
      %4406 = vmatpush1.msra.mxu0 0.0
      %4407 = vmatprep.subr.mxu0 0.0
      %4408 = vmatpush1.msra.mxu0 0.0
      %4409 = vmatprep.subr.mxu0 0.0
      %4410 = vmatpush1.msra.mxu0 0.0
      %4411 = vmatprep.subr.mxu0 0.0
      %4412 = vmatpush1.msra.mxu0 0.0
      %4413 = vmatprep.subr.mxu0 0.0
      %4414 = vmatpush1.msra.mxu0 0.0
      %4415 = vmatprep.subr.mxu0 0.0
      %4416 = vmatpush1.msra.mxu0 0.0
      %4417 = vmatprep.subr.mxu0 0.0
      %4418 = vmatpush1.msra.mxu0 0.0
      %4419 = vmatprep.subr.mxu0 0.0
      %4420 = vmatpush1.msra.mxu0 0.0
      %4421 = vmatprep.subr.mxu0 0.0
      %4422 = vmatpush1.msra.mxu0 0.0
      %4423 = vmatprep.subr.mxu0 0.0
      %4424 = vmatpush1.msra.mxu0 0.0
      %4425 = vmatprep.subr.mxu0 0.0
      %4426 = vmatpush1.msra.mxu0 0.0
      %4427 = vmatprep.subr.mxu0 0.0
      %4428 = vmatpush1.msra.mxu0 0.0
      %4429 = vmatprep.subr.mxu0 0.0
      %4430 = vmatpush1.msra.mxu0 0.0
      %4431 = vmatprep.subr.mxu0 0.0
      %4432 = vmatpush1.msra.mxu0 0.0
      %4433 = vmatprep.subr.mxu0 0.0
      %4434 = vmatpush1.msra.mxu0 0.0
      %4435 = vmatprep.subr.mxu0 0.0
      %4436 = vmatpush1.msra.mxu0 0.0
      %4437 = vmatprep.subr.mxu0 0.0
      %4438 = vmatpush1.msra.mxu0 0.0
      %4439 = vmatprep.subr.mxu0 0.0
      %4440 = vmatpush1.msra.mxu0 0.0
      %4441 = vmatprep.subr.mxu0 0.0
      %4442 = vmatpush1.msra.mxu0 0.0
      %4443 = vmatprep.subr.mxu0 0.0
      %4444 = vmatpush1.msra.mxu0 0.0
      %4445 = vmatprep.subr.mxu0 0.0
      %4446 = vmatpush1.msra.mxu0 0.0
      %4447 = vmatprep.subr.mxu0 0.0
      %4448 = vmatpush1.msra.mxu0 0.0
      %4449 = vmatprep.subr.mxu0 0.0
      %4450 = vmatpush1.msra.mxu0 0.0
      %4451 = vmatprep.subr.mxu0 0.0
      %4452 = vmatpush1.msra.mxu0 0.0
      %4453 = vmatprep.subr.mxu0 0.0
      %4454 = vmatpush1.msra.mxu0 0.0
      %4455 = vmatprep.subr.mxu0 0.0
      %4456 = vmatpush1.msra.mxu0 0.0
      %4457 = vmatprep.subr.mxu0 0.0
      %4458 = vmatpush1.msra.mxu0 0.0
      %4459 = vmatprep.subr.mxu0 0.0
      %4460 = vmatpush1.msra.mxu0 0.0
      %4461 = vmatprep.subr.mxu0 0.0
      %4462 = vmatpush1.msra.mxu0 0.0
      %4463 = vmatprep.subr.mxu0 0.0
      %4464 = vmatpush1.msra.mxu0 0.0
      %4465 = vmatprep.mubr.f32.mxu0 0.0
      %4466 = vmatmul.mubr.f32.gmra.mrb[0].mxu0 %v4399
      %v4467 = vpop.f32.mrb[0].mxu0
      %v4468 = vadd.f32 0.0, %v4467
      %v4469 = vpop.f32.mrb[0].mxu0
      %4470 = vdwg.mxu0
      %v4471 = vld [vmem:[%s9] sm:$0xff]
      %v4472 = vld [vmem:[%s9 + $0x8] sm:$0xff]
      %v4473 = vld [vmem:[%s10] sm:$0x1]
      %v4475 = vsel %vm1234, %v4468, 0
      %4477 = vmatprep.subr.mxu0 0.0
      %4478 = vmatpush1.msra.mxu0 %v4471
      %4479 = vmatprep.subr.mxu0 0.0
      %4480 = vmatpush1.msra.mxu0 %v4472
      %4481 = vmatprep.subr.mxu0 0.0
      %4482 = vmatpush1.msra.mxu0 0.0
      %4483 = vmatprep.subr.mxu0 0.0
      %4484 = vmatpush1.msra.mxu0 0.0
      %4485 = vmatprep.subr.mxu0 0.0
      %4486 = vmatpush1.msra.mxu0 0.0
      %4487 = vmatprep.subr.mxu0 0.0
      %4488 = vmatpush1.msra.mxu0 0.0
      %4489 = vmatprep.subr.mxu0 0.0
      %4490 = vmatpush1.msra.mxu0 0.0
      %4491 = vmatprep.subr.mxu0 0.0
      %4492 = vmatpush1.msra.mxu0 0.0
      %4493 = vmatprep.subr.mxu0 0.0
      %4494 = vmatpush1.msra.mxu0 0.0
      %4495 = vmatprep.subr.mxu0 0.0
      %4496 = vmatpush1.msra.mxu0 0.0
      %4497 = vmatprep.subr.mxu0 0.0
      %4498 = vmatpush1.msra.mxu0 0.0
      %4499 = vmatprep.subr.mxu0 0.0
      %4500 = vmatpush1.msra.mxu0 0.0
      %4501 = vmatprep.subr.mxu0 0.0
      %4502 = vmatpush1.msra.mxu0 0.0
      %4503 = vmatprep.subr.mxu0 0.0
      %4504 = vmatpush1.msra.mxu0 0.0
      %4505 = vmatprep.subr.mxu0 0.0
      %4506 = vmatpush1.msra.mxu0 0.0
      %4507 = vmatprep.subr.mxu0 0.0
      %4508 = vmatpush1.msra.mxu0 0.0
      %4509 = vmatprep.subr.mxu0 0.0
      %4510 = vmatpush1.msra.mxu0 0.0
      %4511 = vmatprep.subr.mxu0 0.0
      %4512 = vmatpush1.msra.mxu0 0.0
      %4513 = vmatprep.subr.mxu0 0.0
      %4514 = vmatpush1.msra.mxu0 0.0
      %4515 = vmatprep.subr.mxu0 0.0
      %4516 = vmatpush1.msra.mxu0 0.0
      %4517 = vmatprep.subr.mxu0 0.0
      %4518 = vmatpush1.msra.mxu0 0.0
      %4519 = vmatprep.subr.mxu0 0.0
      %4520 = vmatpush1.msra.mxu0 0.0
      %4521 = vmatprep.subr.mxu0 0.0
      %4522 = vmatpush1.msra.mxu0 0.0
      %4523 = vmatprep.subr.mxu0 0.0
      %4524 = vmatpush1.msra.mxu0 0.0
      %4525 = vmatprep.subr.mxu0 0.0
      %4526 = vmatpush1.msra.mxu0 0.0
      %4527 = vmatprep.subr.mxu0 0.0
      %4528 = vmatpush1.msra.mxu0 0.0
      %4529 = vmatprep.subr.mxu0 0.0
      %4530 = vmatpush1.msra.mxu0 0.0
      %4531 = vmatprep.subr.mxu0 0.0
      %4532 = vmatpush1.msra.mxu0 0.0
      %4533 = vmatprep.subr.mxu0 0.0
      %4534 = vmatpush1.msra.mxu0 0.0
      %4535 = vmatprep.subr.mxu0 0.0
      %4536 = vmatpush1.msra.mxu0 0.0
      %4537 = vmatprep.subr.mxu0 0.0
      %4538 = vmatpush1.msra.mxu0 0.0
      %4539 = vmatprep.subr.mxu0 0.0
      %4540 = vmatpush1.msra.mxu0 0.0
      %4541 = vmatprep.mubr.f32.mxu0 0.0
      %4542 = vmatmul.mubr.f32.gmra.mrb[0].mxu0 %v4475
      %v4543 = vpop.f32.mrb[0].mxu0
      %v4544 = vadd.f32 %v4473, %v4543
      %v4545 = vpop.f32.mrb[0].mxu0
      %4546 = vdwg.mxu0
      %v4547 = vmax.f32 %v4544, 0.0
      %v4548 = vld [vmem:[%s11] sm:$0xff]
      %v4549 = vld [vmem:[%s12] sm:$0x1]
      %v4551 = vsel %vm2060, %v4547, 0
      %4553 = vmatprep.subr.mxu0 0.0
      %4554 = vmatpush1.msra.mxu0 %v4548
      %4555 = vmatprep.subr.mxu0 0.0
      %4556 = vmatpush1.msra.mxu0 0.0
      %4557 = vmatprep.subr.mxu0 0.0
      %4558 = vmatpush1.msra.mxu0 0.0
      %4559 = vmatprep.subr.mxu0 0.0
      %4560 = vmatpush1.msra.mxu0 0.0
      %4561 = vmatprep.subr.mxu0 0.0
      %4562 = vmatpush1.msra.mxu0 0.0
      %4563 = vmatprep.subr.mxu0 0.0
      %4564 = vmatpush1.msra.mxu0 0.0
      %4565 = vmatprep.subr.mxu0 0.0
      %4566 = vmatpush1.msra.mxu0 0.0
      %4567 = vmatprep.subr.mxu0 0.0
      %4568 = vmatpush1.msra.mxu0 0.0
      %4569 = vmatprep.subr.mxu0 0.0
      %4570 = vmatpush1.msra.mxu0 0.0
      %4571 = vmatprep.subr.mxu0 0.0
      %4572 = vmatpush1.msra.mxu0 0.0
      %4573 = vmatprep.subr.mxu0 0.0
      %4574 = vmatpush1.msra.mxu0 0.0
      %4575 = vmatprep.subr.mxu0 0.0
      %4576 = vmatpush1.msra.mxu0 0.0
      %4577 = vmatprep.subr.mxu0 0.0
      %4578 = vmatpush1.msra.mxu0 0.0
      %4579 = vmatprep.subr.mxu0 0.0
      %4580 = vmatpush1.msra.mxu0 0.0
      %4581 = vmatprep.subr.mxu0 0.0
      %4582 = vmatpush1.msra.mxu0 0.0
      %4583 = vmatprep.subr.mxu0 0.0
      %4584 = vmatpush1.msra.mxu0 0.0
      %4585 = vmatprep.subr.mxu0 0.0
      %4586 = vmatpush1.msra.mxu0 0.0
      %4587 = vmatprep.subr.mxu0 0.0
      %4588 = vmatpush1.msra.mxu0 0.0
      %4589 = vmatprep.subr.mxu0 0.0
      %4590 = vmatpush1.msra.mxu0 0.0
      %4591 = vmatprep.subr.mxu0 0.0
      %4592 = vmatpush1.msra.mxu0 0.0
      %4593 = vmatprep.subr.mxu0 0.0
      %4594 = vmatpush1.msra.mxu0 0.0
      %4595 = vmatprep.subr.mxu0 0.0
      %4596 = vmatpush1.msra.mxu0 0.0
      %4597 = vmatprep.subr.mxu0 0.0
      %4598 = vmatpush1.msra.mxu0 0.0
      %4599 = vmatprep.subr.mxu0 0.0
      %4600 = vmatpush1.msra.mxu0 0.0
      %4601 = vmatprep.subr.mxu0 0.0
      %4602 = vmatpush1.msra.mxu0 0.0
      %4603 = vmatprep.subr.mxu0 0.0
      %4604 = vmatpush1.msra.mxu0 0.0
      %4605 = vmatprep.subr.mxu0 0.0
      %4606 = vmatpush1.msra.mxu0 0.0
      %4607 = vmatprep.subr.mxu0 0.0
      %4608 = vmatpush1.msra.mxu0 0.0
      %4609 = vmatprep.subr.mxu0 0.0
      %4610 = vmatpush1.msra.mxu0 0.0
      %4611 = vmatprep.subr.mxu0 0.0
      %4612 = vmatpush1.msra.mxu0 0.0
      %4613 = vmatprep.subr.mxu0 0.0
      %4614 = vmatpush1.msra.mxu0 0.0
      %4615 = vmatprep.subr.mxu0 0.0
      %4616 = vmatpush1.msra.mxu0 0.0
      %4617 = vmatprep.mubr.f32.mxu0 0.0
      %4618 = vmatmul.mubr.f32.gmra.mrb[0].mxu0 %v4551
      %v4619 = vpop.f32.mrb[0].mxu0
      %v4620 = vadd.f32 %v4549, %v4619
      %v4621 = vpop.f32.mrb[0].mxu0
      %4622 = vdwg.mxu0
      %4623 = vst.msk [vmem:[%s482 + $0x7] sm:$0x1] %vm2375, %v4620
      %v4624 = vld [vmem:[#allocation2] sm:$0x1]
      %4626 = vset.pattern.permute.xlu0 0
      %4627 = vperm.xlu0 %4626, %v4624
      %v4628 = vpop.permute.xlu0 %4627
      %v4630 = vlaneseq
      %v4631 = vshrl.u32 %v4630, 7
      %v4632 = vsub.s32 0, %v4631
      %v4633 = vrot.slane %v4628, %v4632
      %v4635 = vsel %vm2060, %v2041, 0
      %4637 = vmatprep.subr.mxu0 0.0
      %4638 = vmatpush1.xpose.msra.mxu0 %v4635
      %4639 = vmatprep.subr.mxu0 0.0
      %4640 = vmatpush1.xpose.msra.mxu0 0.0
      %4641 = vmatprep.subr.mxu0 0.0
      %4642 = vmatpush1.xpose.msra.mxu0 0.0
      %4643 = vmatprep.subr.mxu0 0.0
      %4644 = vmatpush1.xpose.msra.mxu0 0.0
      %4645 = vmatprep.subr.mxu0 0.0
      %4646 = vmatpush1.xpose.msra.mxu0 0.0
      %4647 = vmatprep.subr.mxu0 0.0
      %4648 = vmatpush1.xpose.msra.mxu0 0.0
      %4649 = vmatprep.subr.mxu0 0.0
      %4650 = vmatpush1.xpose.msra.mxu0 0.0
      %4651 = vmatprep.subr.mxu0 0.0
      %4652 = vmatpush1.xpose.msra.mxu0 0.0
      %4653 = vmatprep.subr.mxu0 0.0
      %4654 = vmatpush1.xpose.msra.mxu0 0.0
      %4655 = vmatprep.subr.mxu0 0.0
      %4656 = vmatpush1.xpose.msra.mxu0 0.0
      %4657 = vmatprep.subr.mxu0 0.0
      %4658 = vmatpush1.xpose.msra.mxu0 0.0
      %4659 = vmatprep.subr.mxu0 0.0
      %4660 = vmatpush1.xpose.msra.mxu0 0.0
      %4661 = vmatprep.subr.mxu0 0.0
      %4662 = vmatpush1.xpose.msra.mxu0 0.0
      %4663 = vmatprep.subr.mxu0 0.0
      %4664 = vmatpush1.xpose.msra.mxu0 0.0
      %4665 = vmatprep.subr.mxu0 0.0
      %4666 = vmatpush1.xpose.msra.mxu0 0.0
      %4667 = vmatprep.subr.mxu0 0.0
      %4668 = vmatpush1.xpose.msra.mxu0 0.0
      %4669 = vmatprep.subr.mxu0 0.0
      %4670 = vmatpush1.xpose.msra.mxu0 0.0
      %4671 = vmatprep.subr.mxu0 0.0
      %4672 = vmatpush1.xpose.msra.mxu0 0.0
      %4673 = vmatprep.subr.mxu0 0.0
      %4674 = vmatpush1.xpose.msra.mxu0 0.0
      %4675 = vmatprep.subr.mxu0 0.0
      %4676 = vmatpush1.xpose.msra.mxu0 0.0
      %4677 = vmatprep.subr.mxu0 0.0
      %4678 = vmatpush1.xpose.msra.mxu0 0.0
      %4679 = vmatprep.subr.mxu0 0.0
      %4680 = vmatpush1.xpose.msra.mxu0 0.0
      %4681 = vmatprep.subr.mxu0 0.0
      %4682 = vmatpush1.xpose.msra.mxu0 0.0
      %4683 = vmatprep.subr.mxu0 0.0
      %4684 = vmatpush1.xpose.msra.mxu0 0.0
      %4685 = vmatprep.subr.mxu0 0.0
      %4686 = vmatpush1.xpose.msra.mxu0 0.0
      %4687 = vmatprep.subr.mxu0 0.0
      %4688 = vmatpush1.xpose.msra.mxu0 0.0
      %4689 = vmatprep.subr.mxu0 0.0
      %4690 = vmatpush1.xpose.msra.mxu0 0.0
      %4691 = vmatprep.subr.mxu0 0.0
      %4692 = vmatpush1.xpose.msra.mxu0 0.0
      %4693 = vmatprep.subr.mxu0 0.0
      %4694 = vmatpush1.xpose.msra.mxu0 0.0
      %4695 = vmatprep.subr.mxu0 0.0
      %4696 = vmatpush1.xpose.msra.mxu0 0.0
      %4697 = vmatprep.subr.mxu0 0.0
      %4698 = vmatpush1.xpose.msra.mxu0 0.0
      %4699 = vmatprep.subr.mxu0 0.0
      %4700 = vmatpush1.xpose.msra.mxu0 0.0
      %4701 = vmatprep.mubr.f32.mxu0 0.0
      %4702 = vmatmul.mubr.f32.gmra.mrb[0].mxu0 %v2062
      %v4703 = vpop.f32.mrb[0].mxu0
      %v4704 = vadd.f32 %v4633, %v4703
      %v4705 = vpop.f32.mrb[0].mxu0
      %4706 = vdwg.mxu0
      %v4707 = vsel %vm2137, %v4704, -inf
      %4708 = vmax.xlane.f32.xlu0 %v4707
      %v4709 = vpop.xlane.xlu0 %4708
      %v4710 = vsub.f32 %v4704, %v4709
      %v4711 = vmul.f32 %v4710, 1.442695
      %v4712 = vpow.pop %v4711
      %v4713 = vsel %vm2137, %v4712, 0.0
      %4714 = vadd.xlane.f32.xlu0 %v4713
      %v4715 = vpop.xlane.xlu0 %4714
      %v4716 = vrcp.pop %v4715
      %v4717 = vmul.f32 %v4712, %v4716
      %4718 = vst.msk [vmem:[%s488 + $0x8] sm:$0x1] %vm2137, %v4717
      %v4720 = vsel %vm2060, %v4717, 0
      %4722 = vmatprep.subr.mxu0 0.0
      %4723 = vmatpush1.msra.mxu0 %v1793
      %4724 = vmatprep.subr.mxu0 0.0
      %4725 = vmatpush1.msra.mxu0 0.0
      %4726 = vmatprep.subr.mxu0 0.0
      %4727 = vmatpush1.msra.mxu0 0.0
      %4728 = vmatprep.subr.mxu0 0.0
      %4729 = vmatpush1.msra.mxu0 0.0
      %4730 = vmatprep.subr.mxu0 0.0
      %4731 = vmatpush1.msra.mxu0 0.0
      %4732 = vmatprep.subr.mxu0 0.0
      %4733 = vmatpush1.msra.mxu0 0.0
      %4734 = vmatprep.subr.mxu0 0.0
      %4735 = vmatpush1.msra.mxu0 0.0
      %4736 = vmatprep.subr.mxu0 0.0
      %4737 = vmatpush1.msra.mxu0 0.0
      %4738 = vmatprep.subr.mxu0 0.0
      %4739 = vmatpush1.msra.mxu0 0.0
      %4740 = vmatprep.subr.mxu0 0.0
      %4741 = vmatpush1.msra.mxu0 0.0
      %4742 = vmatprep.subr.mxu0 0.0
      %4743 = vmatpush1.msra.mxu0 0.0
      %4744 = vmatprep.subr.mxu0 0.0
      %4745 = vmatpush1.msra.mxu0 0.0
      %4746 = vmatprep.subr.mxu0 0.0
      %4747 = vmatpush1.msra.mxu0 0.0
      %4748 = vmatprep.subr.mxu0 0.0
      %4749 = vmatpush1.msra.mxu0 0.0
      %4750 = vmatprep.subr.mxu0 0.0
      %4751 = vmatpush1.msra.mxu0 0.0
      %4752 = vmatprep.subr.mxu0 0.0
      %4753 = vmatpush1.msra.mxu0 0.0
      %4754 = vmatprep.subr.mxu0 0.0
      %4755 = vmatpush1.msra.mxu0 0.0
      %4756 = vmatprep.subr.mxu0 0.0
      %4757 = vmatpush1.msra.mxu0 0.0
      %4758 = vmatprep.subr.mxu0 0.0
      %4759 = vmatpush1.msra.mxu0 0.0
      %4760 = vmatprep.subr.mxu0 0.0
      %4761 = vmatpush1.msra.mxu0 0.0
      %4762 = vmatprep.subr.mxu0 0.0
      %4763 = vmatpush1.msra.mxu0 0.0
      %4764 = vmatprep.subr.mxu0 0.0
      %4765 = vmatpush1.msra.mxu0 0.0
      %4766 = vmatprep.subr.mxu0 0.0
      %4767 = vmatpush1.msra.mxu0 0.0
      %4768 = vmatprep.subr.mxu0 0.0
      %4769 = vmatpush1.msra.mxu0 0.0
      %4770 = vmatprep.subr.mxu0 0.0
      %4771 = vmatpush1.msra.mxu0 0.0
      %4772 = vmatprep.subr.mxu0 0.0
      %4773 = vmatpush1.msra.mxu0 0.0
      %4774 = vmatprep.subr.mxu0 0.0
      %4775 = vmatpush1.msra.mxu0 0.0
      %4776 = vmatprep.subr.mxu0 0.0
      %4777 = vmatpush1.msra.mxu0 0.0
      %4778 = vmatprep.subr.mxu0 0.0
      %4779 = vmatpush1.msra.mxu0 0.0
      %4780 = vmatprep.subr.mxu0 0.0
      %4781 = vmatpush1.msra.mxu0 0.0
      %4782 = vmatprep.subr.mxu0 0.0
      %4783 = vmatpush1.msra.mxu0 0.0
      %4784 = vmatprep.subr.mxu0 0.0
      %4785 = vmatpush1.msra.mxu0 0.0
      %4786 = vmatprep.mubr.f32.mxu0 0.0
      %4787 = vmatmul.mubr.f32.gmra.mrb[0].mxu0 %v4720
      %v4788 = vpop.f32.mrb[0].mxu0
      %v4789 = vadd.f32 0.0, %v4788
      %v4790 = vpop.f32.mrb[0].mxu0
      %4791 = vdwg.mxu0
      %v4792 = vld [vmem:[%s9] sm:$0xff]
      %v4793 = vld [vmem:[%s9 + $0x8] sm:$0xff]
      %v4794 = vld [vmem:[%s10] sm:$0x1]
      %v4796 = vsel %vm1234, %v4789, 0
      %4798 = vmatprep.subr.mxu0 0.0
      %4799 = vmatpush1.msra.mxu0 %v4792
      %4800 = vmatprep.subr.mxu0 0.0
      %4801 = vmatpush1.msra.mxu0 %v4793
      %4802 = vmatprep.subr.mxu0 0.0
      %4803 = vmatpush1.msra.mxu0 0.0
      %4804 = vmatprep.subr.mxu0 0.0
      %4805 = vmatpush1.msra.mxu0 0.0
      %4806 = vmatprep.subr.mxu0 0.0
      %4807 = vmatpush1.msra.mxu0 0.0
      %4808 = vmatprep.subr.mxu0 0.0
      %4809 = vmatpush1.msra.mxu0 0.0
      %4810 = vmatprep.subr.mxu0 0.0
      %4811 = vmatpush1.msra.mxu0 0.0
      %4812 = vmatprep.subr.mxu0 0.0
      %4813 = vmatpush1.msra.mxu0 0.0
      %4814 = vmatprep.subr.mxu0 0.0
      %4815 = vmatpush1.msra.mxu0 0.0
      %4816 = vmatprep.subr.mxu0 0.0
      %4817 = vmatpush1.msra.mxu0 0.0
      %4818 = vmatprep.subr.mxu0 0.0
      %4819 = vmatpush1.msra.mxu0 0.0
      %4820 = vmatprep.subr.mxu0 0.0
      %4821 = vmatpush1.msra.mxu0 0.0
      %4822 = vmatprep.subr.mxu0 0.0
      %4823 = vmatpush1.msra.mxu0 0.0
      %4824 = vmatprep.subr.mxu0 0.0
      %4825 = vmatpush1.msra.mxu0 0.0
      %4826 = vmatprep.subr.mxu0 0.0
      %4827 = vmatpush1.msra.mxu0 0.0
      %4828 = vmatprep.subr.mxu0 0.0
      %4829 = vmatpush1.msra.mxu0 0.0
      %4830 = vmatprep.subr.mxu0 0.0
      %4831 = vmatpush1.msra.mxu0 0.0
      %4832 = vmatprep.subr.mxu0 0.0
      %4833 = vmatpush1.msra.mxu0 0.0
      %4834 = vmatprep.subr.mxu0 0.0
      %4835 = vmatpush1.msra.mxu0 0.0
      %4836 = vmatprep.subr.mxu0 0.0
      %4837 = vmatpush1.msra.mxu0 0.0
      %4838 = vmatprep.subr.mxu0 0.0
      %4839 = vmatpush1.msra.mxu0 0.0
      %4840 = vmatprep.subr.mxu0 0.0
      %4841 = vmatpush1.msra.mxu0 0.0
      %4842 = vmatprep.subr.mxu0 0.0
      %4843 = vmatpush1.msra.mxu0 0.0
      %4844 = vmatprep.subr.mxu0 0.0
      %4845 = vmatpush1.msra.mxu0 0.0
      %4846 = vmatprep.subr.mxu0 0.0
      %4847 = vmatpush1.msra.mxu0 0.0
      %4848 = vmatprep.subr.mxu0 0.0
      %4849 = vmatpush1.msra.mxu0 0.0
      %4850 = vmatprep.subr.mxu0 0.0
      %4851 = vmatpush1.msra.mxu0 0.0
      %4852 = vmatprep.subr.mxu0 0.0
      %4853 = vmatpush1.msra.mxu0 0.0
      %4854 = vmatprep.subr.mxu0 0.0
      %4855 = vmatpush1.msra.mxu0 0.0
      %4856 = vmatprep.subr.mxu0 0.0
      %4857 = vmatpush1.msra.mxu0 0.0
      %4858 = vmatprep.subr.mxu0 0.0
      %4859 = vmatpush1.msra.mxu0 0.0
      %4860 = vmatprep.subr.mxu0 0.0
      %4861 = vmatpush1.msra.mxu0 0.0
      %4862 = vmatprep.mubr.f32.mxu0 0.0
      %4863 = vmatmul.mubr.f32.gmra.mrb[0].mxu0 %v4796
      %v4864 = vpop.f32.mrb[0].mxu0
      %v4865 = vadd.f32 %v4794, %v4864
      %v4866 = vpop.f32.mrb[0].mxu0
      %4867 = vdwg.mxu0
      %v4868 = vmax.f32 %v4865, 0.0
      %v4869 = vld [vmem:[%s11] sm:$0xff]
      %v4870 = vld [vmem:[%s12] sm:$0x1]
      %v4872 = vsel %vm2060, %v4868, 0
      %4874 = vmatprep.subr.mxu0 0.0
      %4875 = vmatpush1.msra.mxu0 %v4869
      %4876 = vmatprep.subr.mxu0 0.0
      %4877 = vmatpush1.msra.mxu0 0.0
      %4878 = vmatprep.subr.mxu0 0.0
      %4879 = vmatpush1.msra.mxu0 0.0
      %4880 = vmatprep.subr.mxu0 0.0
      %4881 = vmatpush1.msra.mxu0 0.0
      %4882 = vmatprep.subr.mxu0 0.0
      %4883 = vmatpush1.msra.mxu0 0.0
      %4884 = vmatprep.subr.mxu0 0.0
      %4885 = vmatpush1.msra.mxu0 0.0
      %4886 = vmatprep.subr.mxu0 0.0
      %4887 = vmatpush1.msra.mxu0 0.0
      %4888 = vmatprep.subr.mxu0 0.0
      %4889 = vmatpush1.msra.mxu0 0.0
      %4890 = vmatprep.subr.mxu0 0.0
      %4891 = vmatpush1.msra.mxu0 0.0
      %4892 = vmatprep.subr.mxu0 0.0
      %4893 = vmatpush1.msra.mxu0 0.0
      %4894 = vmatprep.subr.mxu0 0.0
      %4895 = vmatpush1.msra.mxu0 0.0
      %4896 = vmatprep.subr.mxu0 0.0
      %4897 = vmatpush1.msra.mxu0 0.0
      %4898 = vmatprep.subr.mxu0 0.0
      %4899 = vmatpush1.msra.mxu0 0.0
      %4900 = vmatprep.subr.mxu0 0.0
      %4901 = vmatpush1.msra.mxu0 0.0
      %4902 = vmatprep.subr.mxu0 0.0
      %4903 = vmatpush1.msra.mxu0 0.0
      %4904 = vmatprep.subr.mxu0 0.0
      %4905 = vmatpush1.msra.mxu0 0.0
      %4906 = vmatprep.subr.mxu0 0.0
      %4907 = vmatpush1.msra.mxu0 0.0
      %4908 = vmatprep.subr.mxu0 0.0
      %4909 = vmatpush1.msra.mxu0 0.0
      %4910 = vmatprep.subr.mxu0 0.0
      %4911 = vmatpush1.msra.mxu0 0.0
      %4912 = vmatprep.subr.mxu0 0.0
      %4913 = vmatpush1.msra.mxu0 0.0
      %4914 = vmatprep.subr.mxu0 0.0
      %4915 = vmatpush1.msra.mxu0 0.0
      %4916 = vmatprep.subr.mxu0 0.0
      %4917 = vmatpush1.msra.mxu0 0.0
      %4918 = vmatprep.subr.mxu0 0.0
      %4919 = vmatpush1.msra.mxu0 0.0
      %4920 = vmatprep.subr.mxu0 0.0
      %4921 = vmatpush1.msra.mxu0 0.0
      %4922 = vmatprep.subr.mxu0 0.0
      %4923 = vmatpush1.msra.mxu0 0.0
      %4924 = vmatprep.subr.mxu0 0.0
      %4925 = vmatpush1.msra.mxu0 0.0
      %4926 = vmatprep.subr.mxu0 0.0
      %4927 = vmatpush1.msra.mxu0 0.0
      %4928 = vmatprep.subr.mxu0 0.0
      %4929 = vmatpush1.msra.mxu0 0.0
      %4930 = vmatprep.subr.mxu0 0.0
      %4931 = vmatpush1.msra.mxu0 0.0
      %4932 = vmatprep.subr.mxu0 0.0
      %4933 = vmatpush1.msra.mxu0 0.0
      %4934 = vmatprep.subr.mxu0 0.0
      %4935 = vmatpush1.msra.mxu0 0.0
      %4936 = vmatprep.subr.mxu0 0.0
      %4937 = vmatpush1.msra.mxu0 0.0
      %4938 = vmatprep.mubr.f32.mxu0 0.0
      %4939 = vmatmul.mubr.f32.gmra.mrb[0].mxu0 %v4872
      %v4940 = vpop.f32.mrb[0].mxu0
      %v4941 = vadd.f32 %v4870, %v4940
      %v4942 = vpop.f32.mrb[0].mxu0
      %4943 = vdwg.mxu0
      %4944 = vst.msk [vmem:[%s482 + $0x8] sm:$0x1] %vm2375, %v4941
      %v4945 = vld [vmem:[#allocation2] sm:$0x1]
      %4947 = vset.pattern.permute.xlu0 0
      %4948 = vperm.xlu0 %4947, %v4945
      %v4949 = vpop.permute.xlu0 %4948
      %v4951 = vlaneseq
      %v4952 = vshrl.u32 %v4951, 7
      %v4953 = vsub.s32 0, %v4952
      %v4954 = vrot.slane %v4949, %v4953
      %v4956 = vsel %vm2060, %v2042, 0
      %4958 = vmatprep.subr.mxu0 0.0
      %4959 = vmatpush1.xpose.msra.mxu0 %v4956
      %4960 = vmatprep.subr.mxu0 0.0
      %4961 = vmatpush1.xpose.msra.mxu0 0.0
      %4962 = vmatprep.subr.mxu0 0.0
      %4963 = vmatpush1.xpose.msra.mxu0 0.0
      %4964 = vmatprep.subr.mxu0 0.0
      %4965 = vmatpush1.xpose.msra.mxu0 0.0
      %4966 = vmatprep.subr.mxu0 0.0
      %4967 = vmatpush1.xpose.msra.mxu0 0.0
      %4968 = vmatprep.subr.mxu0 0.0
      %4969 = vmatpush1.xpose.msra.mxu0 0.0
      %4970 = vmatprep.subr.mxu0 0.0
      %4971 = vmatpush1.xpose.msra.mxu0 0.0
      %4972 = vmatprep.subr.mxu0 0.0
      %4973 = vmatpush1.xpose.msra.mxu0 0.0
      %4974 = vmatprep.subr.mxu0 0.0
      %4975 = vmatpush1.xpose.msra.mxu0 0.0
      %4976 = vmatprep.subr.mxu0 0.0
      %4977 = vmatpush1.xpose.msra.mxu0 0.0
      %4978 = vmatprep.subr.mxu0 0.0
      %4979 = vmatpush1.xpose.msra.mxu0 0.0
      %4980 = vmatprep.subr.mxu0 0.0
      %4981 = vmatpush1.xpose.msra.mxu0 0.0
      %4982 = vmatprep.subr.mxu0 0.0
      %4983 = vmatpush1.xpose.msra.mxu0 0.0
      %4984 = vmatprep.subr.mxu0 0.0
      %4985 = vmatpush1.xpose.msra.mxu0 0.0
      %4986 = vmatprep.subr.mxu0 0.0
      %4987 = vmatpush1.xpose.msra.mxu0 0.0
      %4988 = vmatprep.subr.mxu0 0.0
      %4989 = vmatpush1.xpose.msra.mxu0 0.0
      %4990 = vmatprep.subr.mxu0 0.0
      %4991 = vmatpush1.xpose.msra.mxu0 0.0
      %4992 = vmatprep.subr.mxu0 0.0
      %4993 = vmatpush1.xpose.msra.mxu0 0.0
      %4994 = vmatprep.subr.mxu0 0.0
      %4995 = vmatpush1.xpose.msra.mxu0 0.0
      %4996 = vmatprep.subr.mxu0 0.0
      %4997 = vmatpush1.xpose.msra.mxu0 0.0
      %4998 = vmatprep.subr.mxu0 0.0
      %4999 = vmatpush1.xpose.msra.mxu0 0.0
      %5000 = vmatprep.subr.mxu0 0.0
      %5001 = vmatpush1.xpose.msra.mxu0 0.0
      %5002 = vmatprep.subr.mxu0 0.0
      %5003 = vmatpush1.xpose.msra.mxu0 0.0
      %5004 = vmatprep.subr.mxu0 0.0
      %5005 = vmatpush1.xpose.msra.mxu0 0.0
      %5006 = vmatprep.subr.mxu0 0.0
      %5007 = vmatpush1.xpose.msra.mxu0 0.0
      %5008 = vmatprep.subr.mxu0 0.0
      %5009 = vmatpush1.xpose.msra.mxu0 0.0
      %5010 = vmatprep.subr.mxu0 0.0
      %5011 = vmatpush1.xpose.msra.mxu0 0.0
      %5012 = vmatprep.subr.mxu0 0.0
      %5013 = vmatpush1.xpose.msra.mxu0 0.0
      %5014 = vmatprep.subr.mxu0 0.0
      %5015 = vmatpush1.xpose.msra.mxu0 0.0
      %5016 = vmatprep.subr.mxu0 0.0
      %5017 = vmatpush1.xpose.msra.mxu0 0.0
      %5018 = vmatprep.subr.mxu0 0.0
      %5019 = vmatpush1.xpose.msra.mxu0 0.0
      %5020 = vmatprep.subr.mxu0 0.0
      %5021 = vmatpush1.xpose.msra.mxu0 0.0
      %5022 = vmatprep.mubr.f32.mxu0 0.0
      %5023 = vmatmul.mubr.f32.gmra.mrb[0].mxu0 %v2062
      %v5024 = vpop.f32.mrb[0].mxu0
      %v5025 = vadd.f32 %v4954, %v5024
      %v5026 = vpop.f32.mrb[0].mxu0
      %5027 = vdwg.mxu0
      %v5028 = vsel %vm2137, %v5025, -inf
      %5029 = vmax.xlane.f32.xlu0 %v5028
      %v5030 = vpop.xlane.xlu0 %5029
      %v5031 = vsub.f32 %v5025, %v5030
      %v5032 = vmul.f32 %v5031, 1.442695
      %v5033 = vpow.pop %v5032
      %v5034 = vsel %vm2137, %v5033, 0.0
      %5035 = vadd.xlane.f32.xlu0 %v5034
      %v5036 = vpop.xlane.xlu0 %5035
      %v5037 = vrcp.pop %v5036
      %v5038 = vmul.f32 %v5033, %v5037
      %5039 = vst.msk [vmem:[%s488 + $0x9] sm:$0x1] %vm2137, %v5038
      %v5041 = vsel %vm2060, %v5038, 0
      %5043 = vmatprep.subr.mxu0 0.0
      %5044 = vmatpush1.msra.mxu0 %v1798
      %5045 = vmatprep.subr.mxu0 0.0
      %5046 = vmatpush1.msra.mxu0 0.0
      %5047 = vmatprep.subr.mxu0 0.0
      %5048 = vmatpush1.msra.mxu0 0.0
      %5049 = vmatprep.subr.mxu0 0.0
      %5050 = vmatpush1.msra.mxu0 0.0
      %5051 = vmatprep.subr.mxu0 0.0
      %5052 = vmatpush1.msra.mxu0 0.0
      %5053 = vmatprep.subr.mxu0 0.0
      %5054 = vmatpush1.msra.mxu0 0.0
      %5055 = vmatprep.subr.mxu0 0.0
      %5056 = vmatpush1.msra.mxu0 0.0
      %5057 = vmatprep.subr.mxu0 0.0
      %5058 = vmatpush1.msra.mxu0 0.0
      %5059 = vmatprep.subr.mxu0 0.0
      %5060 = vmatpush1.msra.mxu0 0.0
      %5061 = vmatprep.subr.mxu0 0.0
      %5062 = vmatpush1.msra.mxu0 0.0
      %5063 = vmatprep.subr.mxu0 0.0
      %5064 = vmatpush1.msra.mxu0 0.0
      %5065 = vmatprep.subr.mxu0 0.0
      %5066 = vmatpush1.msra.mxu0 0.0
      %5067 = vmatprep.subr.mxu0 0.0
      %5068 = vmatpush1.msra.mxu0 0.0
      %5069 = vmatprep.subr.mxu0 0.0
      %5070 = vmatpush1.msra.mxu0 0.0
      %5071 = vmatprep.subr.mxu0 0.0
      %5072 = vmatpush1.msra.mxu0 0.0
      %5073 = vmatprep.subr.mxu0 0.0
      %5074 = vmatpush1.msra.mxu0 0.0
      %5075 = vmatprep.subr.mxu0 0.0
      %5076 = vmatpush1.msra.mxu0 0.0
      %5077 = vmatprep.subr.mxu0 0.0
      %5078 = vmatpush1.msra.mxu0 0.0
      %5079 = vmatprep.subr.mxu0 0.0
      %5080 = vmatpush1.msra.mxu0 0.0
      %5081 = vmatprep.subr.mxu0 0.0
      %5082 = vmatpush1.msra.mxu0 0.0
      %5083 = vmatprep.subr.mxu0 0.0
      %5084 = vmatpush1.msra.mxu0 0.0
      %5085 = vmatprep.subr.mxu0 0.0
      %5086 = vmatpush1.msra.mxu0 0.0
      %5087 = vmatprep.subr.mxu0 0.0
      %5088 = vmatpush1.msra.mxu0 0.0
      %5089 = vmatprep.subr.mxu0 0.0
      %5090 = vmatpush1.msra.mxu0 0.0
      %5091 = vmatprep.subr.mxu0 0.0
      %5092 = vmatpush1.msra.mxu0 0.0
      %5093 = vmatprep.subr.mxu0 0.0
      %5094 = vmatpush1.msra.mxu0 0.0
      %5095 = vmatprep.subr.mxu0 0.0
      %5096 = vmatpush1.msra.mxu0 0.0
      %5097 = vmatprep.subr.mxu0 0.0
      %5098 = vmatpush1.msra.mxu0 0.0
      %5099 = vmatprep.subr.mxu0 0.0
      %5100 = vmatpush1.msra.mxu0 0.0
      %5101 = vmatprep.subr.mxu0 0.0
      %5102 = vmatpush1.msra.mxu0 0.0
      %5103 = vmatprep.subr.mxu0 0.0
      %5104 = vmatpush1.msra.mxu0 0.0
      %5105 = vmatprep.subr.mxu0 0.0
      %5106 = vmatpush1.msra.mxu0 0.0
      %5107 = vmatprep.mubr.f32.mxu0 0.0
      %5108 = vmatmul.mubr.f32.gmra.mrb[0].mxu0 %v5041
      %v5109 = vpop.f32.mrb[0].mxu0
      %v5110 = vadd.f32 0.0, %v5109
      %v5111 = vpop.f32.mrb[0].mxu0
      %5112 = vdwg.mxu0
      %v5113 = vld [vmem:[%s9] sm:$0xff]
      %v5114 = vld [vmem:[%s9 + $0x8] sm:$0xff]
      %v5115 = vld [vmem:[%s10] sm:$0x1]
      %v5117 = vsel %vm1234, %v5110, 0
      %5119 = vmatprep.subr.mxu0 0.0
      %5120 = vmatpush1.msra.mxu0 %v5113
      %5121 = vmatprep.subr.mxu0 0.0
      %5122 = vmatpush1.msra.mxu0 %v5114
      %5123 = vmatprep.subr.mxu0 0.0
      %5124 = vmatpush1.msra.mxu0 0.0
      %5125 = vmatprep.subr.mxu0 0.0
      %5126 = vmatpush1.msra.mxu0 0.0
      %5127 = vmatprep.subr.mxu0 0.0
      %5128 = vmatpush1.msra.mxu0 0.0
      %5129 = vmatprep.subr.mxu0 0.0
      %5130 = vmatpush1.msra.mxu0 0.0
      %5131 = vmatprep.subr.mxu0 0.0
      %5132 = vmatpush1.msra.mxu0 0.0
      %5133 = vmatprep.subr.mxu0 0.0
      %5134 = vmatpush1.msra.mxu0 0.0
      %5135 = vmatprep.subr.mxu0 0.0
      %5136 = vmatpush1.msra.mxu0 0.0
      %5137 = vmatprep.subr.mxu0 0.0
      %5138 = vmatpush1.msra.mxu0 0.0
      %5139 = vmatprep.subr.mxu0 0.0
      %5140 = vmatpush1.msra.mxu0 0.0
      %5141 = vmatprep.subr.mxu0 0.0
      %5142 = vmatpush1.msra.mxu0 0.0
      %5143 = vmatprep.subr.mxu0 0.0
      %5144 = vmatpush1.msra.mxu0 0.0
      %5145 = vmatprep.subr.mxu0 0.0
      %5146 = vmatpush1.msra.mxu0 0.0
      %5147 = vmatprep.subr.mxu0 0.0
      %5148 = vmatpush1.msra.mxu0 0.0
      %5149 = vmatprep.subr.mxu0 0.0
      %5150 = vmatpush1.msra.mxu0 0.0
      %5151 = vmatprep.subr.mxu0 0.0
      %5152 = vmatpush1.msra.mxu0 0.0
      %5153 = vmatprep.subr.mxu0 0.0
      %5154 = vmatpush1.msra.mxu0 0.0
      %5155 = vmatprep.subr.mxu0 0.0
      %5156 = vmatpush1.msra.mxu0 0.0
      %5157 = vmatprep.subr.mxu0 0.0
      %5158 = vmatpush1.msra.mxu0 0.0
      %5159 = vmatprep.subr.mxu0 0.0
      %5160 = vmatpush1.msra.mxu0 0.0
      %5161 = vmatprep.subr.mxu0 0.0
      %5162 = vmatpush1.msra.mxu0 0.0
      %5163 = vmatprep.subr.mxu0 0.0
      %5164 = vmatpush1.msra.mxu0 0.0
      %5165 = vmatprep.subr.mxu0 0.0
      %5166 = vmatpush1.msra.mxu0 0.0
      %5167 = vmatprep.subr.mxu0 0.0
      %5168 = vmatpush1.msra.mxu0 0.0
      %5169 = vmatprep.subr.mxu0 0.0
      %5170 = vmatpush1.msra.mxu0 0.0
      %5171 = vmatprep.subr.mxu0 0.0
      %5172 = vmatpush1.msra.mxu0 0.0
      %5173 = vmatprep.subr.mxu0 0.0
      %5174 = vmatpush1.msra.mxu0 0.0
      %5175 = vmatprep.subr.mxu0 0.0
      %5176 = vmatpush1.msra.mxu0 0.0
      %5177 = vmatprep.subr.mxu0 0.0
      %5178 = vmatpush1.msra.mxu0 0.0
      %5179 = vmatprep.subr.mxu0 0.0
      %5180 = vmatpush1.msra.mxu0 0.0
      %5181 = vmatprep.subr.mxu0 0.0
      %5182 = vmatpush1.msra.mxu0 0.0
      %5183 = vmatprep.mubr.f32.mxu0 0.0
      %5184 = vmatmul.mubr.f32.gmra.mrb[0].mxu0 %v5117
      %v5185 = vpop.f32.mrb[0].mxu0
      %v5186 = vadd.f32 %v5115, %v5185
      %v5187 = vpop.f32.mrb[0].mxu0
      %5188 = vdwg.mxu0
      %v5189 = vmax.f32 %v5186, 0.0
      %v5190 = vld [vmem:[%s11] sm:$0xff]
      %v5191 = vld [vmem:[%s12] sm:$0x1]
      %v5193 = vsel %vm2060, %v5189, 0
      %5195 = vmatprep.subr.mxu0 0.0
      %5196 = vmatpush1.msra.mxu0 %v5190
      %5197 = vmatprep.subr.mxu0 0.0
      %5198 = vmatpush1.msra.mxu0 0.0
      %5199 = vmatprep.subr.mxu0 0.0
      %5200 = vmatpush1.msra.mxu0 0.0
      %5201 = vmatprep.subr.mxu0 0.0
      %5202 = vmatpush1.msra.mxu0 0.0
      %5203 = vmatprep.subr.mxu0 0.0
      %5204 = vmatpush1.msra.mxu0 0.0
      %5205 = vmatprep.subr.mxu0 0.0
      %5206 = vmatpush1.msra.mxu0 0.0
      %5207 = vmatprep.subr.mxu0 0.0
      %5208 = vmatpush1.msra.mxu0 0.0
      %5209 = vmatprep.subr.mxu0 0.0
      %5210 = vmatpush1.msra.mxu0 0.0
      %5211 = vmatprep.subr.mxu0 0.0
      %5212 = vmatpush1.msra.mxu0 0.0
      %5213 = vmatprep.subr.mxu0 0.0
      %5214 = vmatpush1.msra.mxu0 0.0
      %5215 = vmatprep.subr.mxu0 0.0
      %5216 = vmatpush1.msra.mxu0 0.0
      %5217 = vmatprep.subr.mxu0 0.0
      %5218 = vmatpush1.msra.mxu0 0.0
      %5219 = vmatprep.subr.mxu0 0.0
      %5220 = vmatpush1.msra.mxu0 0.0
      %5221 = vmatprep.subr.mxu0 0.0
      %5222 = vmatpush1.msra.mxu0 0.0
      %5223 = vmatprep.subr.mxu0 0.0
      %5224 = vmatpush1.msra.mxu0 0.0
      %5225 = vmatprep.subr.mxu0 0.0
      %5226 = vmatpush1.msra.mxu0 0.0
      %5227 = vmatprep.subr.mxu0 0.0
      %5228 = vmatpush1.msra.mxu0 0.0
      %5229 = vmatprep.subr.mxu0 0.0
      %5230 = vmatpush1.msra.mxu0 0.0
      %5231 = vmatprep.subr.mxu0 0.0
      %5232 = vmatpush1.msra.mxu0 0.0
      %5233 = vmatprep.subr.mxu0 0.0
      %5234 = vmatpush1.msra.mxu0 0.0
      %5235 = vmatprep.subr.mxu0 0.0
      %5236 = vmatpush1.msra.mxu0 0.0
      %5237 = vmatprep.subr.mxu0 0.0
      %5238 = vmatpush1.msra.mxu0 0.0
      %5239 = vmatprep.subr.mxu0 0.0
      %5240 = vmatpush1.msra.mxu0 0.0
      %5241 = vmatprep.subr.mxu0 0.0
      %5242 = vmatpush1.msra.mxu0 0.0
      %5243 = vmatprep.subr.mxu0 0.0
      %5244 = vmatpush1.msra.mxu0 0.0
      %5245 = vmatprep.subr.mxu0 0.0
      %5246 = vmatpush1.msra.mxu0 0.0
      %5247 = vmatprep.subr.mxu0 0.0
      %5248 = vmatpush1.msra.mxu0 0.0
      %5249 = vmatprep.subr.mxu0 0.0
      %5250 = vmatpush1.msra.mxu0 0.0
      %5251 = vmatprep.subr.mxu0 0.0
      %5252 = vmatpush1.msra.mxu0 0.0
      %5253 = vmatprep.subr.mxu0 0.0
      %5254 = vmatpush1.msra.mxu0 0.0
      %5255 = vmatprep.subr.mxu0 0.0
      %5256 = vmatpush1.msra.mxu0 0.0
      %5257 = vmatprep.subr.mxu0 0.0
      %5258 = vmatpush1.msra.mxu0 0.0
      %5259 = vmatprep.mubr.f32.mxu0 0.0
      %5260 = vmatmul.mubr.f32.gmra.mrb[0].mxu0 %v5193
      %v5261 = vpop.f32.mrb[0].mxu0
      %v5262 = vadd.f32 %v5191, %v5261
      %v5263 = vpop.f32.mrb[0].mxu0
      %5264 = vdwg.mxu0
      %5265 = vst.msk [vmem:[%s482 + $0x9] sm:$0x1] %vm2375, %v5262
      %v5266 = vld [vmem:[#allocation2] sm:$0x1]
      %5268 = vset.pattern.permute.xlu0 0
      %5269 = vperm.xlu0 %5268, %v5266
      %v5270 = vpop.permute.xlu0 %5269
      %v5272 = vlaneseq
      %v5273 = vshrl.u32 %v5272, 7
      %v5274 = vsub.s32 0, %v5273
      %v5275 = vrot.slane %v5270, %v5274
      %v5277 = vsel %vm2060, %v2043, 0
      %5279 = vmatprep.subr.mxu0 0.0
      %5280 = vmatpush1.xpose.msra.mxu0 %v5277
      %5281 = vmatprep.subr.mxu0 0.0
      %5282 = vmatpush1.xpose.msra.mxu0 0.0
      %5283 = vmatprep.subr.mxu0 0.0
      %5284 = vmatpush1.xpose.msra.mxu0 0.0
      %5285 = vmatprep.subr.mxu0 0.0
      %5286 = vmatpush1.xpose.msra.mxu0 0.0
      %5287 = vmatprep.subr.mxu0 0.0
      %5288 = vmatpush1.xpose.msra.mxu0 0.0
      %5289 = vmatprep.subr.mxu0 0.0
      %5290 = vmatpush1.xpose.msra.mxu0 0.0
      %5291 = vmatprep.subr.mxu0 0.0
      %5292 = vmatpush1.xpose.msra.mxu0 0.0
      %5293 = vmatprep.subr.mxu0 0.0
      %5294 = vmatpush1.xpose.msra.mxu0 0.0
      %5295 = vmatprep.subr.mxu0 0.0
      %5296 = vmatpush1.xpose.msra.mxu0 0.0
      %5297 = vmatprep.subr.mxu0 0.0
      %5298 = vmatpush1.xpose.msra.mxu0 0.0
      %5299 = vmatprep.subr.mxu0 0.0
      %5300 = vmatpush1.xpose.msra.mxu0 0.0
      %5301 = vmatprep.subr.mxu0 0.0
      %5302 = vmatpush1.xpose.msra.mxu0 0.0
      %5303 = vmatprep.subr.mxu0 0.0
      %5304 = vmatpush1.xpose.msra.mxu0 0.0
      %5305 = vmatprep.subr.mxu0 0.0
      %5306 = vmatpush1.xpose.msra.mxu0 0.0
      %5307 = vmatprep.subr.mxu0 0.0
      %5308 = vmatpush1.xpose.msra.mxu0 0.0
      %5309 = vmatprep.subr.mxu0 0.0
      %5310 = vmatpush1.xpose.msra.mxu0 0.0
      %5311 = vmatprep.subr.mxu0 0.0
      %5312 = vmatpush1.xpose.msra.mxu0 0.0
      %5313 = vmatprep.subr.mxu0 0.0
      %5314 = vmatpush1.xpose.msra.mxu0 0.0
      %5315 = vmatprep.subr.mxu0 0.0
      %5316 = vmatpush1.xpose.msra.mxu0 0.0
      %5317 = vmatprep.subr.mxu0 0.0
      %5318 = vmatpush1.xpose.msra.mxu0 0.0
      %5319 = vmatprep.subr.mxu0 0.0
      %5320 = vmatpush1.xpose.msra.mxu0 0.0
      %5321 = vmatprep.subr.mxu0 0.0
      %5322 = vmatpush1.xpose.msra.mxu0 0.0
      %5323 = vmatprep.subr.mxu0 0.0
      %5324 = vmatpush1.xpose.msra.mxu0 0.0
      %5325 = vmatprep.subr.mxu0 0.0
      %5326 = vmatpush1.xpose.msra.mxu0 0.0
      %5327 = vmatprep.subr.mxu0 0.0
      %5328 = vmatpush1.xpose.msra.mxu0 0.0
      %5329 = vmatprep.subr.mxu0 0.0
      %5330 = vmatpush1.xpose.msra.mxu0 0.0
      %5331 = vmatprep.subr.mxu0 0.0
      %5332 = vmatpush1.xpose.msra.mxu0 0.0
      %5333 = vmatprep.subr.mxu0 0.0
      %5334 = vmatpush1.xpose.msra.mxu0 0.0
      %5335 = vmatprep.subr.mxu0 0.0
      %5336 = vmatpush1.xpose.msra.mxu0 0.0
      %5337 = vmatprep.subr.mxu0 0.0
      %5338 = vmatpush1.xpose.msra.mxu0 0.0
      %5339 = vmatprep.subr.mxu0 0.0
      %5340 = vmatpush1.xpose.msra.mxu0 0.0
      %5341 = vmatprep.subr.mxu0 0.0
      %5342 = vmatpush1.xpose.msra.mxu0 0.0
      %5343 = vmatprep.mubr.f32.mxu0 0.0
      %5344 = vmatmul.mubr.f32.gmra.mrb[0].mxu0 %v2062
      %v5345 = vpop.f32.mrb[0].mxu0
      %v5346 = vadd.f32 %v5275, %v5345
      %v5347 = vpop.f32.mrb[0].mxu0
      %5348 = vdwg.mxu0
      %v5349 = vsel %vm2137, %v5346, -inf
      %5350 = vmax.xlane.f32.xlu0 %v5349
      %v5351 = vpop.xlane.xlu0 %5350
      %v5352 = vsub.f32 %v5346, %v5351
      %v5353 = vmul.f32 %v5352, 1.442695
      %v5354 = vpow.pop %v5353
      %v5355 = vsel %vm2137, %v5354, 0.0
      %5356 = vadd.xlane.f32.xlu0 %v5355
      %v5357 = vpop.xlane.xlu0 %5356
      %v5358 = vrcp.pop %v5357
      %v5359 = vmul.f32 %v5354, %v5358
      %5360 = vst.msk [vmem:[%s488 + $0xa] sm:$0x1] %vm2137, %v5359
      %v5362 = vsel %vm2060, %v5359, 0
      %5364 = vmatprep.subr.mxu0 0.0
      %5365 = vmatpush1.msra.mxu0 %v1803
      %5366 = vmatprep.subr.mxu0 0.0
      %5367 = vmatpush1.msra.mxu0 0.0
      %5368 = vmatprep.subr.mxu0 0.0
      %5369 = vmatpush1.msra.mxu0 0.0
      %5370 = vmatprep.subr.mxu0 0.0
      %5371 = vmatpush1.msra.mxu0 0.0
      %5372 = vmatprep.subr.mxu0 0.0
      %5373 = vmatpush1.msra.mxu0 0.0
      %5374 = vmatprep.subr.mxu0 0.0
      %5375 = vmatpush1.msra.mxu0 0.0
      %5376 = vmatprep.subr.mxu0 0.0
      %5377 = vmatpush1.msra.mxu0 0.0
      %5378 = vmatprep.subr.mxu0 0.0
      %5379 = vmatpush1.msra.mxu0 0.0
      %5380 = vmatprep.subr.mxu0 0.0
      %5381 = vmatpush1.msra.mxu0 0.0
      %5382 = vmatprep.subr.mxu0 0.0
      %5383 = vmatpush1.msra.mxu0 0.0
      %5384 = vmatprep.subr.mxu0 0.0
      %5385 = vmatpush1.msra.mxu0 0.0
      %5386 = vmatprep.subr.mxu0 0.0
      %5387 = vmatpush1.msra.mxu0 0.0
      %5388 = vmatprep.subr.mxu0 0.0
      %5389 = vmatpush1.msra.mxu0 0.0
      %5390 = vmatprep.subr.mxu0 0.0
      %5391 = vmatpush1.msra.mxu0 0.0
      %5392 = vmatprep.subr.mxu0 0.0
      %5393 = vmatpush1.msra.mxu0 0.0
      %5394 = vmatprep.subr.mxu0 0.0
      %5395 = vmatpush1.msra.mxu0 0.0
      %5396 = vmatprep.subr.mxu0 0.0
      %5397 = vmatpush1.msra.mxu0 0.0
      %5398 = vmatprep.subr.mxu0 0.0
      %5399 = vmatpush1.msra.mxu0 0.0
      %5400 = vmatprep.subr.mxu0 0.0
      %5401 = vmatpush1.msra.mxu0 0.0
      %5402 = vmatprep.subr.mxu0 0.0
      %5403 = vmatpush1.msra.mxu0 0.0
      %5404 = vmatprep.subr.mxu0 0.0
      %5405 = vmatpush1.msra.mxu0 0.0
      %5406 = vmatprep.subr.mxu0 0.0
      %5407 = vmatpush1.msra.mxu0 0.0
      %5408 = vmatprep.subr.mxu0 0.0
      %5409 = vmatpush1.msra.mxu0 0.0
      %5410 = vmatprep.subr.mxu0 0.0
      %5411 = vmatpush1.msra.mxu0 0.0
      %5412 = vmatprep.subr.mxu0 0.0
      %5413 = vmatpush1.msra.mxu0 0.0
      %5414 = vmatprep.subr.mxu0 0.0
      %5415 = vmatpush1.msra.mxu0 0.0
      %5416 = vmatprep.subr.mxu0 0.0
      %5417 = vmatpush1.msra.mxu0 0.0
      %5418 = vmatprep.subr.mxu0 0.0
      %5419 = vmatpush1.msra.mxu0 0.0
      %5420 = vmatprep.subr.mxu0 0.0
      %5421 = vmatpush1.msra.mxu0 0.0
      %5422 = vmatprep.subr.mxu0 0.0
      %5423 = vmatpush1.msra.mxu0 0.0
      %5424 = vmatprep.subr.mxu0 0.0
      %5425 = vmatpush1.msra.mxu0 0.0
      %5426 = vmatprep.subr.mxu0 0.0
      %5427 = vmatpush1.msra.mxu0 0.0
      %5428 = vmatprep.mubr.f32.mxu0 0.0
      %5429 = vmatmul.mubr.f32.gmra.mrb[0].mxu0 %v5362
      %v5430 = vpop.f32.mrb[0].mxu0
      %v5431 = vadd.f32 0.0, %v5430
      %v5432 = vpop.f32.mrb[0].mxu0
      %5433 = vdwg.mxu0
      %v5434 = vld [vmem:[%s9] sm:$0xff]
      %v5435 = vld [vmem:[%s9 + $0x8] sm:$0xff]
      %v5436 = vld [vmem:[%s10] sm:$0x1]
      %v5438 = vsel %vm1234, %v5431, 0
      %5440 = vmatprep.subr.mxu0 0.0
      %5441 = vmatpush1.msra.mxu0 %v5434
      %5442 = vmatprep.subr.mxu0 0.0
      %5443 = vmatpush1.msra.mxu0 %v5435
      %5444 = vmatprep.subr.mxu0 0.0
      %5445 = vmatpush1.msra.mxu0 0.0
      %5446 = vmatprep.subr.mxu0 0.0
      %5447 = vmatpush1.msra.mxu0 0.0
      %5448 = vmatprep.subr.mxu0 0.0
      %5449 = vmatpush1.msra.mxu0 0.0
      %5450 = vmatprep.subr.mxu0 0.0
      %5451 = vmatpush1.msra.mxu0 0.0
      %5452 = vmatprep.subr.mxu0 0.0
      %5453 = vmatpush1.msra.mxu0 0.0
      %5454 = vmatprep.subr.mxu0 0.0
      %5455 = vmatpush1.msra.mxu0 0.0
      %5456 = vmatprep.subr.mxu0 0.0
      %5457 = vmatpush1.msra.mxu0 0.0
      %5458 = vmatprep.subr.mxu0 0.0
      %5459 = vmatpush1.msra.mxu0 0.0
      %5460 = vmatprep.subr.mxu0 0.0
      %5461 = vmatpush1.msra.mxu0 0.0
      %5462 = vmatprep.subr.mxu0 0.0
      %5463 = vmatpush1.msra.mxu0 0.0
      %5464 = vmatprep.subr.mxu0 0.0
      %5465 = vmatpush1.msra.mxu0 0.0
      %5466 = vmatprep.subr.mxu0 0.0
      %5467 = vmatpush1.msra.mxu0 0.0
      %5468 = vmatprep.subr.mxu0 0.0
      %5469 = vmatpush1.msra.mxu0 0.0
      %5470 = vmatprep.subr.mxu0 0.0
      %5471 = vmatpush1.msra.mxu0 0.0
      %5472 = vmatprep.subr.mxu0 0.0
      %5473 = vmatpush1.msra.mxu0 0.0
      %5474 = vmatprep.subr.mxu0 0.0
      %5475 = vmatpush1.msra.mxu0 0.0
      %5476 = vmatprep.subr.mxu0 0.0
      %5477 = vmatpush1.msra.mxu0 0.0
      %5478 = vmatprep.subr.mxu0 0.0
      %5479 = vmatpush1.msra.mxu0 0.0
      %5480 = vmatprep.subr.mxu0 0.0
      %5481 = vmatpush1.msra.mxu0 0.0
      %5482 = vmatprep.subr.mxu0 0.0
      %5483 = vmatpush1.msra.mxu0 0.0
      %5484 = vmatprep.subr.mxu0 0.0
      %5485 = vmatpush1.msra.mxu0 0.0
      %5486 = vmatprep.subr.mxu0 0.0
      %5487 = vmatpush1.msra.mxu0 0.0
      %5488 = vmatprep.subr.mxu0 0.0
      %5489 = vmatpush1.msra.mxu0 0.0
      %5490 = vmatprep.subr.mxu0 0.0
      %5491 = vmatpush1.msra.mxu0 0.0
      %5492 = vmatprep.subr.mxu0 0.0
      %5493 = vmatpush1.msra.mxu0 0.0
      %5494 = vmatprep.subr.mxu0 0.0
      %5495 = vmatpush1.msra.mxu0 0.0
      %5496 = vmatprep.subr.mxu0 0.0
      %5497 = vmatpush1.msra.mxu0 0.0
      %5498 = vmatprep.subr.mxu0 0.0
      %5499 = vmatpush1.msra.mxu0 0.0
      %5500 = vmatprep.subr.mxu0 0.0
      %5501 = vmatpush1.msra.mxu0 0.0
      %5502 = vmatprep.subr.mxu0 0.0
      %5503 = vmatpush1.msra.mxu0 0.0
      %5504 = vmatprep.mubr.f32.mxu0 0.0
      %5505 = vmatmul.mubr.f32.gmra.mrb[0].mxu0 %v5438
      %v5506 = vpop.f32.mrb[0].mxu0
      %v5507 = vadd.f32 %v5436, %v5506
      %v5508 = vpop.f32.mrb[0].mxu0
      %5509 = vdwg.mxu0
      %v5510 = vmax.f32 %v5507, 0.0
      %v5511 = vld [vmem:[%s11] sm:$0xff]
      %v5512 = vld [vmem:[%s12] sm:$0x1]
      %v5514 = vsel %vm2060, %v5510, 0
      %5516 = vmatprep.subr.mxu0 0.0
      %5517 = vmatpush1.msra.mxu0 %v5511
      %5518 = vmatprep.subr.mxu0 0.0
      %5519 = vmatpush1.msra.mxu0 0.0
      %5520 = vmatprep.subr.mxu0 0.0
      %5521 = vmatpush1.msra.mxu0 0.0
      %5522 = vmatprep.subr.mxu0 0.0
      %5523 = vmatpush1.msra.mxu0 0.0
      %5524 = vmatprep.subr.mxu0 0.0
      %5525 = vmatpush1.msra.mxu0 0.0
      %5526 = vmatprep.subr.mxu0 0.0
      %5527 = vmatpush1.msra.mxu0 0.0
      %5528 = vmatprep.subr.mxu0 0.0
      %5529 = vmatpush1.msra.mxu0 0.0
      %5530 = vmatprep.subr.mxu0 0.0
      %5531 = vmatpush1.msra.mxu0 0.0
      %5532 = vmatprep.subr.mxu0 0.0
      %5533 = vmatpush1.msra.mxu0 0.0
      %5534 = vmatprep.subr.mxu0 0.0
      %5535 = vmatpush1.msra.mxu0 0.0
      %5536 = vmatprep.subr.mxu0 0.0
      %5537 = vmatpush1.msra.mxu0 0.0
      %5538 = vmatprep.subr.mxu0 0.0
      %5539 = vmatpush1.msra.mxu0 0.0
      %5540 = vmatprep.subr.mxu0 0.0
      %5541 = vmatpush1.msra.mxu0 0.0
      %5542 = vmatprep.subr.mxu0 0.0
      %5543 = vmatpush1.msra.mxu0 0.0
      %5544 = vmatprep.subr.mxu0 0.0
      %5545 = vmatpush1.msra.mxu0 0.0
      %5546 = vmatprep.subr.mxu0 0.0
      %5547 = vmatpush1.msra.mxu0 0.0
      %5548 = vmatprep.subr.mxu0 0.0
      %5549 = vmatpush1.msra.mxu0 0.0
      %5550 = vmatprep.subr.mxu0 0.0
      %5551 = vmatpush1.msra.mxu0 0.0
      %5552 = vmatprep.subr.mxu0 0.0
      %5553 = vmatpush1.msra.mxu0 0.0
      %5554 = vmatprep.subr.mxu0 0.0
      %5555 = vmatpush1.msra.mxu0 0.0
      %5556 = vmatprep.subr.mxu0 0.0
      %5557 = vmatpush1.msra.mxu0 0.0
      %5558 = vmatprep.subr.mxu0 0.0
      %5559 = vmatpush1.msra.mxu0 0.0
      %5560 = vmatprep.subr.mxu0 0.0
      %5561 = vmatpush1.msra.mxu0 0.0
      %5562 = vmatprep.subr.mxu0 0.0
      %5563 = vmatpush1.msra.mxu0 0.0
      %5564 = vmatprep.subr.mxu0 0.0
      %5565 = vmatpush1.msra.mxu0 0.0
      %5566 = vmatprep.subr.mxu0 0.0
      %5567 = vmatpush1.msra.mxu0 0.0
      %5568 = vmatprep.subr.mxu0 0.0
      %5569 = vmatpush1.msra.mxu0 0.0
      %5570 = vmatprep.subr.mxu0 0.0
      %5571 = vmatpush1.msra.mxu0 0.0
      %5572 = vmatprep.subr.mxu0 0.0
      %5573 = vmatpush1.msra.mxu0 0.0
      %5574 = vmatprep.subr.mxu0 0.0
      %5575 = vmatpush1.msra.mxu0 0.0
      %5576 = vmatprep.subr.mxu0 0.0
      %5577 = vmatpush1.msra.mxu0 0.0
      %5578 = vmatprep.subr.mxu0 0.0
      %5579 = vmatpush1.msra.mxu0 0.0
      %5580 = vmatprep.mubr.f32.mxu0 0.0
      %5581 = vmatmul.mubr.f32.gmra.mrb[0].mxu0 %v5514
      %v5582 = vpop.f32.mrb[0].mxu0
      %v5583 = vadd.f32 %v5512, %v5582
      %v5584 = vpop.f32.mrb[0].mxu0
      %5585 = vdwg.mxu0
      %5586 = vst.msk [vmem:[%s482 + $0xa] sm:$0x1] %vm2375, %v5583
      %v5587 = vld [vmem:[#allocation2] sm:$0x1]
      %5589 = vset.pattern.permute.xlu0 0
      %5590 = vperm.xlu0 %5589, %v5587
      %v5591 = vpop.permute.xlu0 %5590
      %v5593 = vlaneseq
      %v5594 = vshrl.u32 %v5593, 7
      %v5595 = vsub.s32 0, %v5594
      %v5596 = vrot.slane %v5591, %v5595
      %v5598 = vsel %vm2060, %v2044, 0
      %5600 = vmatprep.subr.mxu0 0.0
      %5601 = vmatpush1.xpose.msra.mxu0 %v5598
      %5602 = vmatprep.subr.mxu0 0.0
      %5603 = vmatpush1.xpose.msra.mxu0 0.0
      %5604 = vmatprep.subr.mxu0 0.0
      %5605 = vmatpush1.xpose.msra.mxu0 0.0
      %5606 = vmatprep.subr.mxu0 0.0
      %5607 = vmatpush1.xpose.msra.mxu0 0.0
      %5608 = vmatprep.subr.mxu0 0.0
      %5609 = vmatpush1.xpose.msra.mxu0 0.0
      %5610 = vmatprep.subr.mxu0 0.0
      %5611 = vmatpush1.xpose.msra.mxu0 0.0
      %5612 = vmatprep.subr.mxu0 0.0
      %5613 = vmatpush1.xpose.msra.mxu0 0.0
      %5614 = vmatprep.subr.mxu0 0.0
      %5615 = vmatpush1.xpose.msra.mxu0 0.0
      %5616 = vmatprep.subr.mxu0 0.0
      %5617 = vmatpush1.xpose.msra.mxu0 0.0
      %5618 = vmatprep.subr.mxu0 0.0
      %5619 = vmatpush1.xpose.msra.mxu0 0.0
      %5620 = vmatprep.subr.mxu0 0.0
      %5621 = vmatpush1.xpose.msra.mxu0 0.0
      %5622 = vmatprep.subr.mxu0 0.0
      %5623 = vmatpush1.xpose.msra.mxu0 0.0
      %5624 = vmatprep.subr.mxu0 0.0
      %5625 = vmatpush1.xpose.msra.mxu0 0.0
      %5626 = vmatprep.subr.mxu0 0.0
      %5627 = vmatpush1.xpose.msra.mxu0 0.0
      %5628 = vmatprep.subr.mxu0 0.0
      %5629 = vmatpush1.xpose.msra.mxu0 0.0
      %5630 = vmatprep.subr.mxu0 0.0
      %5631 = vmatpush1.xpose.msra.mxu0 0.0
      %5632 = vmatprep.subr.mxu0 0.0
      %5633 = vmatpush1.xpose.msra.mxu0 0.0
      %5634 = vmatprep.subr.mxu0 0.0
      %5635 = vmatpush1.xpose.msra.mxu0 0.0
      %5636 = vmatprep.subr.mxu0 0.0
      %5637 = vmatpush1.xpose.msra.mxu0 0.0
      %5638 = vmatprep.subr.mxu0 0.0
      %5639 = vmatpush1.xpose.msra.mxu0 0.0
      %5640 = vmatprep.subr.mxu0 0.0
      %5641 = vmatpush1.xpose.msra.mxu0 0.0
      %5642 = vmatprep.subr.mxu0 0.0
      %5643 = vmatpush1.xpose.msra.mxu0 0.0
      %5644 = vmatprep.subr.mxu0 0.0
      %5645 = vmatpush1.xpose.msra.mxu0 0.0
      %5646 = vmatprep.subr.mxu0 0.0
      %5647 = vmatpush1.xpose.msra.mxu0 0.0
      %5648 = vmatprep.subr.mxu0 0.0
      %5649 = vmatpush1.xpose.msra.mxu0 0.0
      %5650 = vmatprep.subr.mxu0 0.0
      %5651 = vmatpush1.xpose.msra.mxu0 0.0
      %5652 = vmatprep.subr.mxu0 0.0
      %5653 = vmatpush1.xpose.msra.mxu0 0.0
      %5654 = vmatprep.subr.mxu0 0.0
      %5655 = vmatpush1.xpose.msra.mxu0 0.0
      %5656 = vmatprep.subr.mxu0 0.0
      %5657 = vmatpush1.xpose.msra.mxu0 0.0
      %5658 = vmatprep.subr.mxu0 0.0
      %5659 = vmatpush1.xpose.msra.mxu0 0.0
      %5660 = vmatprep.subr.mxu0 0.0
      %5661 = vmatpush1.xpose.msra.mxu0 0.0
      %5662 = vmatprep.subr.mxu0 0.0
      %5663 = vmatpush1.xpose.msra.mxu0 0.0
      %5664 = vmatprep.mubr.f32.mxu0 0.0
      %5665 = vmatmul.mubr.f32.gmra.mrb[0].mxu0 %v2062
      %v5666 = vpop.f32.mrb[0].mxu0
      %v5667 = vadd.f32 %v5596, %v5666
      %v5668 = vpop.f32.mrb[0].mxu0
      %5669 = vdwg.mxu0
      %v5670 = vsel %vm2137, %v5667, -inf
      %5671 = vmax.xlane.f32.xlu0 %v5670
      %v5672 = vpop.xlane.xlu0 %5671
      %v5673 = vsub.f32 %v5667, %v5672
      %v5674 = vmul.f32 %v5673, 1.442695
      %v5675 = vpow.pop %v5674
      %v5676 = vsel %vm2137, %v5675, 0.0
      %5677 = vadd.xlane.f32.xlu0 %v5676
      %v5678 = vpop.xlane.xlu0 %5677
      %v5679 = vrcp.pop %v5678
      %v5680 = vmul.f32 %v5675, %v5679
      %5681 = vst.msk [vmem:[%s488 + $0xb] sm:$0x1] %vm2137, %v5680
      %v5683 = vsel %vm2060, %v5680, 0
      %5685 = vmatprep.subr.mxu0 0.0
      %5686 = vmatpush1.msra.mxu0 %v1808
      %5687 = vmatprep.subr.mxu0 0.0
      %5688 = vmatpush1.msra.mxu0 0.0
      %5689 = vmatprep.subr.mxu0 0.0
      %5690 = vmatpush1.msra.mxu0 0.0
      %5691 = vmatprep.subr.mxu0 0.0
      %5692 = vmatpush1.msra.mxu0 0.0
      %5693 = vmatprep.subr.mxu0 0.0
      %5694 = vmatpush1.msra.mxu0 0.0
      %5695 = vmatprep.subr.mxu0 0.0
      %5696 = vmatpush1.msra.mxu0 0.0
      %5697 = vmatprep.subr.mxu0 0.0
      %5698 = vmatpush1.msra.mxu0 0.0
      %5699 = vmatprep.subr.mxu0 0.0
      %5700 = vmatpush1.msra.mxu0 0.0
      %5701 = vmatprep.subr.mxu0 0.0
      %5702 = vmatpush1.msra.mxu0 0.0
      %5703 = vmatprep.subr.mxu0 0.0
      %5704 = vmatpush1.msra.mxu0 0.0
      %5705 = vmatprep.subr.mxu0 0.0
      %5706 = vmatpush1.msra.mxu0 0.0
      %5707 = vmatprep.subr.mxu0 0.0
      %5708 = vmatpush1.msra.mxu0 0.0
      %5709 = vmatprep.subr.mxu0 0.0
      %5710 = vmatpush1.msra.mxu0 0.0
      %5711 = vmatprep.subr.mxu0 0.0
      %5712 = vmatpush1.msra.mxu0 0.0
      %5713 = vmatprep.subr.mxu0 0.0
      %5714 = vmatpush1.msra.mxu0 0.0
      %5715 = vmatprep.subr.mxu0 0.0
      %5716 = vmatpush1.msra.mxu0 0.0
      %5717 = vmatprep.subr.mxu0 0.0
      %5718 = vmatpush1.msra.mxu0 0.0
      %5719 = vmatprep.subr.mxu0 0.0
      %5720 = vmatpush1.msra.mxu0 0.0
      %5721 = vmatprep.subr.mxu0 0.0
      %5722 = vmatpush1.msra.mxu0 0.0
      %5723 = vmatprep.subr.mxu0 0.0
      %5724 = vmatpush1.msra.mxu0 0.0
      %5725 = vmatprep.subr.mxu0 0.0
      %5726 = vmatpush1.msra.mxu0 0.0
      %5727 = vmatprep.subr.mxu0 0.0
      %5728 = vmatpush1.msra.mxu0 0.0
      %5729 = vmatprep.subr.mxu0 0.0
      %5730 = vmatpush1.msra.mxu0 0.0
      %5731 = vmatprep.subr.mxu0 0.0
      %5732 = vmatpush1.msra.mxu0 0.0
      %5733 = vmatprep.subr.mxu0 0.0
      %5734 = vmatpush1.msra.mxu0 0.0
      %5735 = vmatprep.subr.mxu0 0.0
      %5736 = vmatpush1.msra.mxu0 0.0
      %5737 = vmatprep.subr.mxu0 0.0
      %5738 = vmatpush1.msra.mxu0 0.0
      %5739 = vmatprep.subr.mxu0 0.0
      %5740 = vmatpush1.msra.mxu0 0.0
      %5741 = vmatprep.subr.mxu0 0.0
      %5742 = vmatpush1.msra.mxu0 0.0
      %5743 = vmatprep.subr.mxu0 0.0
      %5744 = vmatpush1.msra.mxu0 0.0
      %5745 = vmatprep.subr.mxu0 0.0
      %5746 = vmatpush1.msra.mxu0 0.0
      %5747 = vmatprep.subr.mxu0 0.0
      %5748 = vmatpush1.msra.mxu0 0.0
      %5749 = vmatprep.mubr.f32.mxu0 0.0
      %5750 = vmatmul.mubr.f32.gmra.mrb[0].mxu0 %v5683
      %v5751 = vpop.f32.mrb[0].mxu0
      %v5752 = vadd.f32 0.0, %v5751
      %v5753 = vpop.f32.mrb[0].mxu0
      %5754 = vdwg.mxu0
      %v5755 = vld [vmem:[%s9] sm:$0xff]
      %v5756 = vld [vmem:[%s9 + $0x8] sm:$0xff]
      %v5757 = vld [vmem:[%s10] sm:$0x1]
      %v5759 = vsel %vm1234, %v5752, 0
      %5761 = vmatprep.subr.mxu0 0.0
      %5762 = vmatpush1.msra.mxu0 %v5755
      %5763 = vmatprep.subr.mxu0 0.0
      %5764 = vmatpush1.msra.mxu0 %v5756
      %5765 = vmatprep.subr.mxu0 0.0
      %5766 = vmatpush1.msra.mxu0 0.0
      %5767 = vmatprep.subr.mxu0 0.0
      %5768 = vmatpush1.msra.mxu0 0.0
      %5769 = vmatprep.subr.mxu0 0.0
      %5770 = vmatpush1.msra.mxu0 0.0
      %5771 = vmatprep.subr.mxu0 0.0
      %5772 = vmatpush1.msra.mxu0 0.0
      %5773 = vmatprep.subr.mxu0 0.0
      %5774 = vmatpush1.msra.mxu0 0.0
      %5775 = vmatprep.subr.mxu0 0.0
      %5776 = vmatpush1.msra.mxu0 0.0
      %5777 = vmatprep.subr.mxu0 0.0
      %5778 = vmatpush1.msra.mxu0 0.0
      %5779 = vmatprep.subr.mxu0 0.0
      %5780 = vmatpush1.msra.mxu0 0.0
      %5781 = vmatprep.subr.mxu0 0.0
      %5782 = vmatpush1.msra.mxu0 0.0
      %5783 = vmatprep.subr.mxu0 0.0
      %5784 = vmatpush1.msra.mxu0 0.0
      %5785 = vmatprep.subr.mxu0 0.0
      %5786 = vmatpush1.msra.mxu0 0.0
      %5787 = vmatprep.subr.mxu0 0.0
      %5788 = vmatpush1.msra.mxu0 0.0
      %5789 = vmatprep.subr.mxu0 0.0
      %5790 = vmatpush1.msra.mxu0 0.0
      %5791 = vmatprep.subr.mxu0 0.0
      %5792 = vmatpush1.msra.mxu0 0.0
      %5793 = vmatprep.subr.mxu0 0.0
      %5794 = vmatpush1.msra.mxu0 0.0
      %5795 = vmatprep.subr.mxu0 0.0
      %5796 = vmatpush1.msra.mxu0 0.0
      %5797 = vmatprep.subr.mxu0 0.0
      %5798 = vmatpush1.msra.mxu0 0.0
      %5799 = vmatprep.subr.mxu0 0.0
      %5800 = vmatpush1.msra.mxu0 0.0
      %5801 = vmatprep.subr.mxu0 0.0
      %5802 = vmatpush1.msra.mxu0 0.0
      %5803 = vmatprep.subr.mxu0 0.0
      %5804 = vmatpush1.msra.mxu0 0.0
      %5805 = vmatprep.subr.mxu0 0.0
      %5806 = vmatpush1.msra.mxu0 0.0
      %5807 = vmatprep.subr.mxu0 0.0
      %5808 = vmatpush1.msra.mxu0 0.0
      %5809 = vmatprep.subr.mxu0 0.0
      %5810 = vmatpush1.msra.mxu0 0.0
      %5811 = vmatprep.subr.mxu0 0.0
      %5812 = vmatpush1.msra.mxu0 0.0
      %5813 = vmatprep.subr.mxu0 0.0
      %5814 = vmatpush1.msra.mxu0 0.0
      %5815 = vmatprep.subr.mxu0 0.0
      %5816 = vmatpush1.msra.mxu0 0.0
      %5817 = vmatprep.subr.mxu0 0.0
      %5818 = vmatpush1.msra.mxu0 0.0
      %5819 = vmatprep.subr.mxu0 0.0
      %5820 = vmatpush1.msra.mxu0 0.0
      %5821 = vmatprep.subr.mxu0 0.0
      %5822 = vmatpush1.msra.mxu0 0.0
      %5823 = vmatprep.subr.mxu0 0.0
      %5824 = vmatpush1.msra.mxu0 0.0
      %5825 = vmatprep.mubr.f32.mxu0 0.0
      %5826 = vmatmul.mubr.f32.gmra.mrb[0].mxu0 %v5759
      %v5827 = vpop.f32.mrb[0].mxu0
      %v5828 = vadd.f32 %v5757, %v5827
      %v5829 = vpop.f32.mrb[0].mxu0
      %5830 = vdwg.mxu0
      %v5831 = vmax.f32 %v5828, 0.0
      %v5832 = vld [vmem:[%s11] sm:$0xff]
      %v5833 = vld [vmem:[%s12] sm:$0x1]
      %v5835 = vsel %vm2060, %v5831, 0
      %5837 = vmatprep.subr.mxu0 0.0
      %5838 = vmatpush1.msra.mxu0 %v5832
      %5839 = vmatprep.subr.mxu0 0.0
      %5840 = vmatpush1.msra.mxu0 0.0
      %5841 = vmatprep.subr.mxu0 0.0
      %5842 = vmatpush1.msra.mxu0 0.0
      %5843 = vmatprep.subr.mxu0 0.0
      %5844 = vmatpush1.msra.mxu0 0.0
      %5845 = vmatprep.subr.mxu0 0.0
      %5846 = vmatpush1.msra.mxu0 0.0
      %5847 = vmatprep.subr.mxu0 0.0
      %5848 = vmatpush1.msra.mxu0 0.0
      %5849 = vmatprep.subr.mxu0 0.0
      %5850 = vmatpush1.msra.mxu0 0.0
      %5851 = vmatprep.subr.mxu0 0.0
      %5852 = vmatpush1.msra.mxu0 0.0
      %5853 = vmatprep.subr.mxu0 0.0
      %5854 = vmatpush1.msra.mxu0 0.0
      %5855 = vmatprep.subr.mxu0 0.0
      %5856 = vmatpush1.msra.mxu0 0.0
      %5857 = vmatprep.subr.mxu0 0.0
      %5858 = vmatpush1.msra.mxu0 0.0
      %5859 = vmatprep.subr.mxu0 0.0
      %5860 = vmatpush1.msra.mxu0 0.0
      %5861 = vmatprep.subr.mxu0 0.0
      %5862 = vmatpush1.msra.mxu0 0.0
      %5863 = vmatprep.subr.mxu0 0.0
      %5864 = vmatpush1.msra.mxu0 0.0
      %5865 = vmatprep.subr.mxu0 0.0
      %5866 = vmatpush1.msra.mxu0 0.0
      %5867 = vmatprep.subr.mxu0 0.0
      %5868 = vmatpush1.msra.mxu0 0.0
      %5869 = vmatprep.subr.mxu0 0.0
      %5870 = vmatpush1.msra.mxu0 0.0
      %5871 = vmatprep.subr.mxu0 0.0
      %5872 = vmatpush1.msra.mxu0 0.0
      %5873 = vmatprep.subr.mxu0 0.0
      %5874 = vmatpush1.msra.mxu0 0.0
      %5875 = vmatprep.subr.mxu0 0.0
      %5876 = vmatpush1.msra.mxu0 0.0
      %5877 = vmatprep.subr.mxu0 0.0
      %5878 = vmatpush1.msra.mxu0 0.0
      %5879 = vmatprep.subr.mxu0 0.0
      %5880 = vmatpush1.msra.mxu0 0.0
      %5881 = vmatprep.subr.mxu0 0.0
      %5882 = vmatpush1.msra.mxu0 0.0
      %5883 = vmatprep.subr.mxu0 0.0
      %5884 = vmatpush1.msra.mxu0 0.0
      %5885 = vmatprep.subr.mxu0 0.0
      %5886 = vmatpush1.msra.mxu0 0.0
      %5887 = vmatprep.subr.mxu0 0.0
      %5888 = vmatpush1.msra.mxu0 0.0
      %5889 = vmatprep.subr.mxu0 0.0
      %5890 = vmatpush1.msra.mxu0 0.0
      %5891 = vmatprep.subr.mxu0 0.0
      %5892 = vmatpush1.msra.mxu0 0.0
      %5893 = vmatprep.subr.mxu0 0.0
      %5894 = vmatpush1.msra.mxu0 0.0
      %5895 = vmatprep.subr.mxu0 0.0
      %5896 = vmatpush1.msra.mxu0 0.0
      %5897 = vmatprep.subr.mxu0 0.0
      %5898 = vmatpush1.msra.mxu0 0.0
      %5899 = vmatprep.subr.mxu0 0.0
      %5900 = vmatpush1.msra.mxu0 0.0
      %5901 = vmatprep.mubr.f32.mxu0 0.0
      %5902 = vmatmul.mubr.f32.gmra.mrb[0].mxu0 %v5835
      %v5903 = vpop.f32.mrb[0].mxu0
      %v5904 = vadd.f32 %v5833, %v5903
      %v5905 = vpop.f32.mrb[0].mxu0
      %5906 = vdwg.mxu0
      %5907 = vst.msk [vmem:[%s482 + $0xb] sm:$0x1] %vm2375, %v5904
      %v5908 = vld [vmem:[#allocation2] sm:$0x1]
      %5910 = vset.pattern.permute.xlu0 0
      %5911 = vperm.xlu0 %5910, %v5908
      %v5912 = vpop.permute.xlu0 %5911
      %v5914 = vlaneseq
      %v5915 = vshrl.u32 %v5914, 7
      %v5916 = vsub.s32 0, %v5915
      %v5917 = vrot.slane %v5912, %v5916
      %v5919 = vsel %vm2060, %v2045, 0
      %5921 = vmatprep.subr.mxu0 0.0
      %5922 = vmatpush1.xpose.msra.mxu0 %v5919
      %5923 = vmatprep.subr.mxu0 0.0
      %5924 = vmatpush1.xpose.msra.mxu0 0.0
      %5925 = vmatprep.subr.mxu0 0.0
      %5926 = vmatpush1.xpose.msra.mxu0 0.0
      %5927 = vmatprep.subr.mxu0 0.0
      %5928 = vmatpush1.xpose.msra.mxu0 0.0
      %5929 = vmatprep.subr.mxu0 0.0
      %5930 = vmatpush1.xpose.msra.mxu0 0.0
      %5931 = vmatprep.subr.mxu0 0.0
      %5932 = vmatpush1.xpose.msra.mxu0 0.0
      %5933 = vmatprep.subr.mxu0 0.0
      %5934 = vmatpush1.xpose.msra.mxu0 0.0
      %5935 = vmatprep.subr.mxu0 0.0
      %5936 = vmatpush1.xpose.msra.mxu0 0.0
      %5937 = vmatprep.subr.mxu0 0.0
      %5938 = vmatpush1.xpose.msra.mxu0 0.0
      %5939 = vmatprep.subr.mxu0 0.0
      %5940 = vmatpush1.xpose.msra.mxu0 0.0
      %5941 = vmatprep.subr.mxu0 0.0
      %5942 = vmatpush1.xpose.msra.mxu0 0.0
      %5943 = vmatprep.subr.mxu0 0.0
      %5944 = vmatpush1.xpose.msra.mxu0 0.0
      %5945 = vmatprep.subr.mxu0 0.0
      %5946 = vmatpush1.xpose.msra.mxu0 0.0
      %5947 = vmatprep.subr.mxu0 0.0
      %5948 = vmatpush1.xpose.msra.mxu0 0.0
      %5949 = vmatprep.subr.mxu0 0.0
      %5950 = vmatpush1.xpose.msra.mxu0 0.0
      %5951 = vmatprep.subr.mxu0 0.0
      %5952 = vmatpush1.xpose.msra.mxu0 0.0
      %5953 = vmatprep.subr.mxu0 0.0
      %5954 = vmatpush1.xpose.msra.mxu0 0.0
      %5955 = vmatprep.subr.mxu0 0.0
      %5956 = vmatpush1.xpose.msra.mxu0 0.0
      %5957 = vmatprep.subr.mxu0 0.0
      %5958 = vmatpush1.xpose.msra.mxu0 0.0
      %5959 = vmatprep.subr.mxu0 0.0
      %5960 = vmatpush1.xpose.msra.mxu0 0.0
      %5961 = vmatprep.subr.mxu0 0.0
      %5962 = vmatpush1.xpose.msra.mxu0 0.0
      %5963 = vmatprep.subr.mxu0 0.0
      %5964 = vmatpush1.xpose.msra.mxu0 0.0
      %5965 = vmatprep.subr.mxu0 0.0
      %5966 = vmatpush1.xpose.msra.mxu0 0.0
      %5967 = vmatprep.subr.mxu0 0.0
      %5968 = vmatpush1.xpose.msra.mxu0 0.0
      %5969 = vmatprep.subr.mxu0 0.0
      %5970 = vmatpush1.xpose.msra.mxu0 0.0
      %5971 = vmatprep.subr.mxu0 0.0
      %5972 = vmatpush1.xpose.msra.mxu0 0.0
      %5973 = vmatprep.subr.mxu0 0.0
      %5974 = vmatpush1.xpose.msra.mxu0 0.0
      %5975 = vmatprep.subr.mxu0 0.0
      %5976 = vmatpush1.xpose.msra.mxu0 0.0
      %5977 = vmatprep.subr.mxu0 0.0
      %5978 = vmatpush1.xpose.msra.mxu0 0.0
      %5979 = vmatprep.subr.mxu0 0.0
      %5980 = vmatpush1.xpose.msra.mxu0 0.0
      %5981 = vmatprep.subr.mxu0 0.0
      %5982 = vmatpush1.xpose.msra.mxu0 0.0
      %5983 = vmatprep.subr.mxu0 0.0
      %5984 = vmatpush1.xpose.msra.mxu0 0.0
      %5985 = vmatprep.mubr.f32.mxu0 0.0
      %5986 = vmatmul.mubr.f32.gmra.mrb[0].mxu0 %v2062
      %v5987 = vpop.f32.mrb[0].mxu0
      %v5988 = vadd.f32 %v5917, %v5987
      %v5989 = vpop.f32.mrb[0].mxu0
      %5990 = vdwg.mxu0
      %v5991 = vsel %vm2137, %v5988, -inf
      %5992 = vmax.xlane.f32.xlu0 %v5991
      %v5993 = vpop.xlane.xlu0 %5992
      %v5994 = vsub.f32 %v5988, %v5993
      %v5995 = vmul.f32 %v5994, 1.442695
      %v5996 = vpow.pop %v5995
      %v5997 = vsel %vm2137, %v5996, 0.0
      %5998 = vadd.xlane.f32.xlu0 %v5997
      %v5999 = vpop.xlane.xlu0 %5998
      %v6000 = vrcp.pop %v5999
      %v6001 = vmul.f32 %v5996, %v6000
      %6002 = vst.msk [vmem:[%s488 + $0xc] sm:$0x1] %vm2137, %v6001
      %v6004 = vsel %vm2060, %v6001, 0
      %6006 = vmatprep.subr.mxu0 0.0
      %6007 = vmatpush1.msra.mxu0 %v1813
      %6008 = vmatprep.subr.mxu0 0.0
      %6009 = vmatpush1.msra.mxu0 0.0
      %6010 = vmatprep.subr.mxu0 0.0
      %6011 = vmatpush1.msra.mxu0 0.0
      %6012 = vmatprep.subr.mxu0 0.0
      %6013 = vmatpush1.msra.mxu0 0.0
      %6014 = vmatprep.subr.mxu0 0.0
      %6015 = vmatpush1.msra.mxu0 0.0
      %6016 = vmatprep.subr.mxu0 0.0
      %6017 = vmatpush1.msra.mxu0 0.0
      %6018 = vmatprep.subr.mxu0 0.0
      %6019 = vmatpush1.msra.mxu0 0.0
      %6020 = vmatprep.subr.mxu0 0.0
      %6021 = vmatpush1.msra.mxu0 0.0
      %6022 = vmatprep.subr.mxu0 0.0
      %6023 = vmatpush1.msra.mxu0 0.0
      %6024 = vmatprep.subr.mxu0 0.0
      %6025 = vmatpush1.msra.mxu0 0.0
      %6026 = vmatprep.subr.mxu0 0.0
      %6027 = vmatpush1.msra.mxu0 0.0
      %6028 = vmatprep.subr.mxu0 0.0
      %6029 = vmatpush1.msra.mxu0 0.0
      %6030 = vmatprep.subr.mxu0 0.0
      %6031 = vmatpush1.msra.mxu0 0.0
      %6032 = vmatprep.subr.mxu0 0.0
      %6033 = vmatpush1.msra.mxu0 0.0
      %6034 = vmatprep.subr.mxu0 0.0
      %6035 = vmatpush1.msra.mxu0 0.0
      %6036 = vmatprep.subr.mxu0 0.0
      %6037 = vmatpush1.msra.mxu0 0.0
      %6038 = vmatprep.subr.mxu0 0.0
      %6039 = vmatpush1.msra.mxu0 0.0
      %6040 = vmatprep.subr.mxu0 0.0
      %6041 = vmatpush1.msra.mxu0 0.0
      %6042 = vmatprep.subr.mxu0 0.0
      %6043 = vmatpush1.msra.mxu0 0.0
      %6044 = vmatprep.subr.mxu0 0.0
      %6045 = vmatpush1.msra.mxu0 0.0
      %6046 = vmatprep.subr.mxu0 0.0
      %6047 = vmatpush1.msra.mxu0 0.0
      %6048 = vmatprep.subr.mxu0 0.0
      %6049 = vmatpush1.msra.mxu0 0.0
      %6050 = vmatprep.subr.mxu0 0.0
      %6051 = vmatpush1.msra.mxu0 0.0
      %6052 = vmatprep.subr.mxu0 0.0
      %6053 = vmatpush1.msra.mxu0 0.0
      %6054 = vmatprep.subr.mxu0 0.0
      %6055 = vmatpush1.msra.mxu0 0.0
      %6056 = vmatprep.subr.mxu0 0.0
      %6057 = vmatpush1.msra.mxu0 0.0
      %6058 = vmatprep.subr.mxu0 0.0
      %6059 = vmatpush1.msra.mxu0 0.0
      %6060 = vmatprep.subr.mxu0 0.0
      %6061 = vmatpush1.msra.mxu0 0.0
      %6062 = vmatprep.subr.mxu0 0.0
      %6063 = vmatpush1.msra.mxu0 0.0
      %6064 = vmatprep.subr.mxu0 0.0
      %6065 = vmatpush1.msra.mxu0 0.0
      %6066 = vmatprep.subr.mxu0 0.0
      %6067 = vmatpush1.msra.mxu0 0.0
      %6068 = vmatprep.subr.mxu0 0.0
      %6069 = vmatpush1.msra.mxu0 0.0
      %6070 = vmatprep.mubr.f32.mxu0 0.0
      %6071 = vmatmul.mubr.f32.gmra.mrb[0].mxu0 %v6004
      %v6072 = vpop.f32.mrb[0].mxu0
      %v6073 = vadd.f32 0.0, %v6072
      %v6074 = vpop.f32.mrb[0].mxu0
      %6075 = vdwg.mxu0
      %v6076 = vld [vmem:[%s9] sm:$0xff]
      %v6077 = vld [vmem:[%s9 + $0x8] sm:$0xff]
      %v6078 = vld [vmem:[%s10] sm:$0x1]
      %v6080 = vsel %vm1234, %v6073, 0
      %6082 = vmatprep.subr.mxu0 0.0
      %6083 = vmatpush1.msra.mxu0 %v6076
      %6084 = vmatprep.subr.mxu0 0.0
      %6085 = vmatpush1.msra.mxu0 %v6077
      %6086 = vmatprep.subr.mxu0 0.0
      %6087 = vmatpush1.msra.mxu0 0.0
      %6088 = vmatprep.subr.mxu0 0.0
      %6089 = vmatpush1.msra.mxu0 0.0
      %6090 = vmatprep.subr.mxu0 0.0
      %6091 = vmatpush1.msra.mxu0 0.0
      %6092 = vmatprep.subr.mxu0 0.0
      %6093 = vmatpush1.msra.mxu0 0.0
      %6094 = vmatprep.subr.mxu0 0.0
      %6095 = vmatpush1.msra.mxu0 0.0
      %6096 = vmatprep.subr.mxu0 0.0
      %6097 = vmatpush1.msra.mxu0 0.0
      %6098 = vmatprep.subr.mxu0 0.0
      %6099 = vmatpush1.msra.mxu0 0.0
      %6100 = vmatprep.subr.mxu0 0.0
      %6101 = vmatpush1.msra.mxu0 0.0
      %6102 = vmatprep.subr.mxu0 0.0
      %6103 = vmatpush1.msra.mxu0 0.0
      %6104 = vmatprep.subr.mxu0 0.0
      %6105 = vmatpush1.msra.mxu0 0.0
      %6106 = vmatprep.subr.mxu0 0.0
      %6107 = vmatpush1.msra.mxu0 0.0
      %6108 = vmatprep.subr.mxu0 0.0
      %6109 = vmatpush1.msra.mxu0 0.0
      %6110 = vmatprep.subr.mxu0 0.0
      %6111 = vmatpush1.msra.mxu0 0.0
      %6112 = vmatprep.subr.mxu0 0.0
      %6113 = vmatpush1.msra.mxu0 0.0
      %6114 = vmatprep.subr.mxu0 0.0
      %6115 = vmatpush1.msra.mxu0 0.0
      %6116 = vmatprep.subr.mxu0 0.0
      %6117 = vmatpush1.msra.mxu0 0.0
      %6118 = vmatprep.subr.mxu0 0.0
      %6119 = vmatpush1.msra.mxu0 0.0
      %6120 = vmatprep.subr.mxu0 0.0
      %6121 = vmatpush1.msra.mxu0 0.0
      %6122 = vmatprep.subr.mxu0 0.0
      %6123 = vmatpush1.msra.mxu0 0.0
      %6124 = vmatprep.subr.mxu0 0.0
      %6125 = vmatpush1.msra.mxu0 0.0
      %6126 = vmatprep.subr.mxu0 0.0
      %6127 = vmatpush1.msra.mxu0 0.0
      %6128 = vmatprep.subr.mxu0 0.0
      %6129 = vmatpush1.msra.mxu0 0.0
      %6130 = vmatprep.subr.mxu0 0.0
      %6131 = vmatpush1.msra.mxu0 0.0
      %6132 = vmatprep.subr.mxu0 0.0
      %6133 = vmatpush1.msra.mxu0 0.0
      %6134 = vmatprep.subr.mxu0 0.0
      %6135 = vmatpush1.msra.mxu0 0.0
      %6136 = vmatprep.subr.mxu0 0.0
      %6137 = vmatpush1.msra.mxu0 0.0
      %6138 = vmatprep.subr.mxu0 0.0
      %6139 = vmatpush1.msra.mxu0 0.0
      %6140 = vmatprep.subr.mxu0 0.0
      %6141 = vmatpush1.msra.mxu0 0.0
      %6142 = vmatprep.subr.mxu0 0.0
      %6143 = vmatpush1.msra.mxu0 0.0
      %6144 = vmatprep.subr.mxu0 0.0
      %6145 = vmatpush1.msra.mxu0 0.0
      %6146 = vmatprep.mubr.f32.mxu0 0.0
      %6147 = vmatmul.mubr.f32.gmra.mrb[0].mxu0 %v6080
      %v6148 = vpop.f32.mrb[0].mxu0
      %v6149 = vadd.f32 %v6078, %v6148
      %v6150 = vpop.f32.mrb[0].mxu0
      %6151 = vdwg.mxu0
      %v6152 = vmax.f32 %v6149, 0.0
      %v6153 = vld [vmem:[%s11] sm:$0xff]
      %v6154 = vld [vmem:[%s12] sm:$0x1]
      %v6156 = vsel %vm2060, %v6152, 0
      %6158 = vmatprep.subr.mxu0 0.0
      %6159 = vmatpush1.msra.mxu0 %v6153
      %6160 = vmatprep.subr.mxu0 0.0
      %6161 = vmatpush1.msra.mxu0 0.0
      %6162 = vmatprep.subr.mxu0 0.0
      %6163 = vmatpush1.msra.mxu0 0.0
      %6164 = vmatprep.subr.mxu0 0.0
      %6165 = vmatpush1.msra.mxu0 0.0
      %6166 = vmatprep.subr.mxu0 0.0
      %6167 = vmatpush1.msra.mxu0 0.0
      %6168 = vmatprep.subr.mxu0 0.0
      %6169 = vmatpush1.msra.mxu0 0.0
      %6170 = vmatprep.subr.mxu0 0.0
      %6171 = vmatpush1.msra.mxu0 0.0
      %6172 = vmatprep.subr.mxu0 0.0
      %6173 = vmatpush1.msra.mxu0 0.0
      %6174 = vmatprep.subr.mxu0 0.0
      %6175 = vmatpush1.msra.mxu0 0.0
      %6176 = vmatprep.subr.mxu0 0.0
      %6177 = vmatpush1.msra.mxu0 0.0
      %6178 = vmatprep.subr.mxu0 0.0
      %6179 = vmatpush1.msra.mxu0 0.0
      %6180 = vmatprep.subr.mxu0 0.0
      %6181 = vmatpush1.msra.mxu0 0.0
      %6182 = vmatprep.subr.mxu0 0.0
      %6183 = vmatpush1.msra.mxu0 0.0
      %6184 = vmatprep.subr.mxu0 0.0
      %6185 = vmatpush1.msra.mxu0 0.0
      %6186 = vmatprep.subr.mxu0 0.0
      %6187 = vmatpush1.msra.mxu0 0.0
      %6188 = vmatprep.subr.mxu0 0.0
      %6189 = vmatpush1.msra.mxu0 0.0
      %6190 = vmatprep.subr.mxu0 0.0
      %6191 = vmatpush1.msra.mxu0 0.0
      %6192 = vmatprep.subr.mxu0 0.0
      %6193 = vmatpush1.msra.mxu0 0.0
      %6194 = vmatprep.subr.mxu0 0.0
      %6195 = vmatpush1.msra.mxu0 0.0
      %6196 = vmatprep.subr.mxu0 0.0
      %6197 = vmatpush1.msra.mxu0 0.0
      %6198 = vmatprep.subr.mxu0 0.0
      %6199 = vmatpush1.msra.mxu0 0.0
      %6200 = vmatprep.subr.mxu0 0.0
      %6201 = vmatpush1.msra.mxu0 0.0
      %6202 = vmatprep.subr.mxu0 0.0
      %6203 = vmatpush1.msra.mxu0 0.0
      %6204 = vmatprep.subr.mxu0 0.0
      %6205 = vmatpush1.msra.mxu0 0.0
      %6206 = vmatprep.subr.mxu0 0.0
      %6207 = vmatpush1.msra.mxu0 0.0
      %6208 = vmatprep.subr.mxu0 0.0
      %6209 = vmatpush1.msra.mxu0 0.0
      %6210 = vmatprep.subr.mxu0 0.0
      %6211 = vmatpush1.msra.mxu0 0.0
      %6212 = vmatprep.subr.mxu0 0.0
      %6213 = vmatpush1.msra.mxu0 0.0
      %6214 = vmatprep.subr.mxu0 0.0
      %6215 = vmatpush1.msra.mxu0 0.0
      %6216 = vmatprep.subr.mxu0 0.0
      %6217 = vmatpush1.msra.mxu0 0.0
      %6218 = vmatprep.subr.mxu0 0.0
      %6219 = vmatpush1.msra.mxu0 0.0
      %6220 = vmatprep.subr.mxu0 0.0
      %6221 = vmatpush1.msra.mxu0 0.0
      %6222 = vmatprep.mubr.f32.mxu0 0.0
      %6223 = vmatmul.mubr.f32.gmra.mrb[0].mxu0 %v6156
      %v6224 = vpop.f32.mrb[0].mxu0
      %v6225 = vadd.f32 %v6154, %v6224
      %v6226 = vpop.f32.mrb[0].mxu0
      %6227 = vdwg.mxu0
      %6228 = vst.msk [vmem:[%s482 + $0xc] sm:$0x1] %vm2375, %v6225
      %v6229 = vld [vmem:[#allocation2] sm:$0x1]
      %6231 = vset.pattern.permute.xlu0 0
      %6232 = vperm.xlu0 %6231, %v6229
      %v6233 = vpop.permute.xlu0 %6232
      %v6235 = vlaneseq
      %v6236 = vshrl.u32 %v6235, 7
      %v6237 = vsub.s32 0, %v6236
      %v6238 = vrot.slane %v6233, %v6237
      %v6240 = vsel %vm2060, %v2046, 0
      %6242 = vmatprep.subr.mxu0 0.0
      %6243 = vmatpush1.xpose.msra.mxu0 %v6240
      %6244 = vmatprep.subr.mxu0 0.0
      %6245 = vmatpush1.xpose.msra.mxu0 0.0
      %6246 = vmatprep.subr.mxu0 0.0
      %6247 = vmatpush1.xpose.msra.mxu0 0.0
      %6248 = vmatprep.subr.mxu0 0.0
      %6249 = vmatpush1.xpose.msra.mxu0 0.0
      %6250 = vmatprep.subr.mxu0 0.0
      %6251 = vmatpush1.xpose.msra.mxu0 0.0
      %6252 = vmatprep.subr.mxu0 0.0
      %6253 = vmatpush1.xpose.msra.mxu0 0.0
      %6254 = vmatprep.subr.mxu0 0.0
      %6255 = vmatpush1.xpose.msra.mxu0 0.0
      %6256 = vmatprep.subr.mxu0 0.0
      %6257 = vmatpush1.xpose.msra.mxu0 0.0
      %6258 = vmatprep.subr.mxu0 0.0
      %6259 = vmatpush1.xpose.msra.mxu0 0.0
      %6260 = vmatprep.subr.mxu0 0.0
      %6261 = vmatpush1.xpose.msra.mxu0 0.0
      %6262 = vmatprep.subr.mxu0 0.0
      %6263 = vmatpush1.xpose.msra.mxu0 0.0
      %6264 = vmatprep.subr.mxu0 0.0
      %6265 = vmatpush1.xpose.msra.mxu0 0.0
      %6266 = vmatprep.subr.mxu0 0.0
      %6267 = vmatpush1.xpose.msra.mxu0 0.0
      %6268 = vmatprep.subr.mxu0 0.0
      %6269 = vmatpush1.xpose.msra.mxu0 0.0
      %6270 = vmatprep.subr.mxu0 0.0
      %6271 = vmatpush1.xpose.msra.mxu0 0.0
      %6272 = vmatprep.subr.mxu0 0.0
      %6273 = vmatpush1.xpose.msra.mxu0 0.0
      %6274 = vmatprep.subr.mxu0 0.0
      %6275 = vmatpush1.xpose.msra.mxu0 0.0
      %6276 = vmatprep.subr.mxu0 0.0
      %6277 = vmatpush1.xpose.msra.mxu0 0.0
      %6278 = vmatprep.subr.mxu0 0.0
      %6279 = vmatpush1.xpose.msra.mxu0 0.0
      %6280 = vmatprep.subr.mxu0 0.0
      %6281 = vmatpush1.xpose.msra.mxu0 0.0
      %6282 = vmatprep.subr.mxu0 0.0
      %6283 = vmatpush1.xpose.msra.mxu0 0.0
      %6284 = vmatprep.subr.mxu0 0.0
      %6285 = vmatpush1.xpose.msra.mxu0 0.0
      %6286 = vmatprep.subr.mxu0 0.0
      %6287 = vmatpush1.xpose.msra.mxu0 0.0
      %6288 = vmatprep.subr.mxu0 0.0
      %6289 = vmatpush1.xpose.msra.mxu0 0.0
      %6290 = vmatprep.subr.mxu0 0.0
      %6291 = vmatpush1.xpose.msra.mxu0 0.0
      %6292 = vmatprep.subr.mxu0 0.0
      %6293 = vmatpush1.xpose.msra.mxu0 0.0
      %6294 = vmatprep.subr.mxu0 0.0
      %6295 = vmatpush1.xpose.msra.mxu0 0.0
      %6296 = vmatprep.subr.mxu0 0.0
      %6297 = vmatpush1.xpose.msra.mxu0 0.0
      %6298 = vmatprep.subr.mxu0 0.0
      %6299 = vmatpush1.xpose.msra.mxu0 0.0
      %6300 = vmatprep.subr.mxu0 0.0
      %6301 = vmatpush1.xpose.msra.mxu0 0.0
      %6302 = vmatprep.subr.mxu0 0.0
      %6303 = vmatpush1.xpose.msra.mxu0 0.0
      %6304 = vmatprep.subr.mxu0 0.0
      %6305 = vmatpush1.xpose.msra.mxu0 0.0
      %6306 = vmatprep.mubr.f32.mxu0 0.0
      %6307 = vmatmul.mubr.f32.gmra.mrb[0].mxu0 %v2062
      %v6308 = vpop.f32.mrb[0].mxu0
      %v6309 = vadd.f32 %v6238, %v6308
      %v6310 = vpop.f32.mrb[0].mxu0
      %6311 = vdwg.mxu0
      %v6312 = vsel %vm2137, %v6309, -inf
      %6313 = vmax.xlane.f32.xlu0 %v6312
      %v6314 = vpop.xlane.xlu0 %6313
      %v6315 = vsub.f32 %v6309, %v6314
      %v6316 = vmul.f32 %v6315, 1.442695
      %v6317 = vpow.pop %v6316
      %v6318 = vsel %vm2137, %v6317, 0.0
      %6319 = vadd.xlane.f32.xlu0 %v6318
      %v6320 = vpop.xlane.xlu0 %6319
      %v6321 = vrcp.pop %v6320
      %v6322 = vmul.f32 %v6317, %v6321
      %6323 = vst.msk [vmem:[%s488 + $0xd] sm:$0x1] %vm2137, %v6322
      %v6325 = vsel %vm2060, %v6322, 0
      %6327 = vmatprep.subr.mxu0 0.0
      %6328 = vmatpush1.msra.mxu0 %v1818
      %6329 = vmatprep.subr.mxu0 0.0
      %6330 = vmatpush1.msra.mxu0 0.0
      %6331 = vmatprep.subr.mxu0 0.0
      %6332 = vmatpush1.msra.mxu0 0.0
      %6333 = vmatprep.subr.mxu0 0.0
      %6334 = vmatpush1.msra.mxu0 0.0
      %6335 = vmatprep.subr.mxu0 0.0
      %6336 = vmatpush1.msra.mxu0 0.0
      %6337 = vmatprep.subr.mxu0 0.0
      %6338 = vmatpush1.msra.mxu0 0.0
      %6339 = vmatprep.subr.mxu0 0.0
      %6340 = vmatpush1.msra.mxu0 0.0
      %6341 = vmatprep.subr.mxu0 0.0
      %6342 = vmatpush1.msra.mxu0 0.0
      %6343 = vmatprep.subr.mxu0 0.0
      %6344 = vmatpush1.msra.mxu0 0.0
      %6345 = vmatprep.subr.mxu0 0.0
      %6346 = vmatpush1.msra.mxu0 0.0
      %6347 = vmatprep.subr.mxu0 0.0
      %6348 = vmatpush1.msra.mxu0 0.0
      %6349 = vmatprep.subr.mxu0 0.0
      %6350 = vmatpush1.msra.mxu0 0.0
      %6351 = vmatprep.subr.mxu0 0.0
      %6352 = vmatpush1.msra.mxu0 0.0
      %6353 = vmatprep.subr.mxu0 0.0
      %6354 = vmatpush1.msra.mxu0 0.0
      %6355 = vmatprep.subr.mxu0 0.0
      %6356 = vmatpush1.msra.mxu0 0.0
      %6357 = vmatprep.subr.mxu0 0.0
      %6358 = vmatpush1.msra.mxu0 0.0
      %6359 = vmatprep.subr.mxu0 0.0
      %6360 = vmatpush1.msra.mxu0 0.0
      %6361 = vmatprep.subr.mxu0 0.0
      %6362 = vmatpush1.msra.mxu0 0.0
      %6363 = vmatprep.subr.mxu0 0.0
      %6364 = vmatpush1.msra.mxu0 0.0
      %6365 = vmatprep.subr.mxu0 0.0
      %6366 = vmatpush1.msra.mxu0 0.0
      %6367 = vmatprep.subr.mxu0 0.0
      %6368 = vmatpush1.msra.mxu0 0.0
      %6369 = vmatprep.subr.mxu0 0.0
      %6370 = vmatpush1.msra.mxu0 0.0
      %6371 = vmatprep.subr.mxu0 0.0
      %6372 = vmatpush1.msra.mxu0 0.0
      %6373 = vmatprep.subr.mxu0 0.0
      %6374 = vmatpush1.msra.mxu0 0.0
      %6375 = vmatprep.subr.mxu0 0.0
      %6376 = vmatpush1.msra.mxu0 0.0
      %6377 = vmatprep.subr.mxu0 0.0
      %6378 = vmatpush1.msra.mxu0 0.0
      %6379 = vmatprep.subr.mxu0 0.0
      %6380 = vmatpush1.msra.mxu0 0.0
      %6381 = vmatprep.subr.mxu0 0.0
      %6382 = vmatpush1.msra.mxu0 0.0
      %6383 = vmatprep.subr.mxu0 0.0
      %6384 = vmatpush1.msra.mxu0 0.0
      %6385 = vmatprep.subr.mxu0 0.0
      %6386 = vmatpush1.msra.mxu0 0.0
      %6387 = vmatprep.subr.mxu0 0.0
      %6388 = vmatpush1.msra.mxu0 0.0
      %6389 = vmatprep.subr.mxu0 0.0
      %6390 = vmatpush1.msra.mxu0 0.0
      %6391 = vmatprep.mubr.f32.mxu0 0.0
      %6392 = vmatmul.mubr.f32.gmra.mrb[0].mxu0 %v6325
      %v6393 = vpop.f32.mrb[0].mxu0
      %v6394 = vadd.f32 0.0, %v6393
      %v6395 = vpop.f32.mrb[0].mxu0
      %6396 = vdwg.mxu0
      %v6397 = vld [vmem:[%s9] sm:$0xff]
      %v6398 = vld [vmem:[%s9 + $0x8] sm:$0xff]
      %v6399 = vld [vmem:[%s10] sm:$0x1]
      %v6401 = vsel %vm1234, %v6394, 0
      %6403 = vmatprep.subr.mxu0 0.0
      %6404 = vmatpush1.msra.mxu0 %v6397
      %6405 = vmatprep.subr.mxu0 0.0
      %6406 = vmatpush1.msra.mxu0 %v6398
      %6407 = vmatprep.subr.mxu0 0.0
      %6408 = vmatpush1.msra.mxu0 0.0
      %6409 = vmatprep.subr.mxu0 0.0
      %6410 = vmatpush1.msra.mxu0 0.0
      %6411 = vmatprep.subr.mxu0 0.0
      %6412 = vmatpush1.msra.mxu0 0.0
      %6413 = vmatprep.subr.mxu0 0.0
      %6414 = vmatpush1.msra.mxu0 0.0
      %6415 = vmatprep.subr.mxu0 0.0
      %6416 = vmatpush1.msra.mxu0 0.0
      %6417 = vmatprep.subr.mxu0 0.0
      %6418 = vmatpush1.msra.mxu0 0.0
      %6419 = vmatprep.subr.mxu0 0.0
      %6420 = vmatpush1.msra.mxu0 0.0
      %6421 = vmatprep.subr.mxu0 0.0
      %6422 = vmatpush1.msra.mxu0 0.0
      %6423 = vmatprep.subr.mxu0 0.0
      %6424 = vmatpush1.msra.mxu0 0.0
      %6425 = vmatprep.subr.mxu0 0.0
      %6426 = vmatpush1.msra.mxu0 0.0
      %6427 = vmatprep.subr.mxu0 0.0
      %6428 = vmatpush1.msra.mxu0 0.0
      %6429 = vmatprep.subr.mxu0 0.0
      %6430 = vmatpush1.msra.mxu0 0.0
      %6431 = vmatprep.subr.mxu0 0.0
      %6432 = vmatpush1.msra.mxu0 0.0
      %6433 = vmatprep.subr.mxu0 0.0
      %6434 = vmatpush1.msra.mxu0 0.0
      %6435 = vmatprep.subr.mxu0 0.0
      %6436 = vmatpush1.msra.mxu0 0.0
      %6437 = vmatprep.subr.mxu0 0.0
      %6438 = vmatpush1.msra.mxu0 0.0
      %6439 = vmatprep.subr.mxu0 0.0
      %6440 = vmatpush1.msra.mxu0 0.0
      %6441 = vmatprep.subr.mxu0 0.0
      %6442 = vmatpush1.msra.mxu0 0.0
      %6443 = vmatprep.subr.mxu0 0.0
      %6444 = vmatpush1.msra.mxu0 0.0
      %6445 = vmatprep.subr.mxu0 0.0
      %6446 = vmatpush1.msra.mxu0 0.0
      %6447 = vmatprep.subr.mxu0 0.0
      %6448 = vmatpush1.msra.mxu0 0.0
      %6449 = vmatprep.subr.mxu0 0.0
      %6450 = vmatpush1.msra.mxu0 0.0
      %6451 = vmatprep.subr.mxu0 0.0
      %6452 = vmatpush1.msra.mxu0 0.0
      %6453 = vmatprep.subr.mxu0 0.0
      %6454 = vmatpush1.msra.mxu0 0.0
      %6455 = vmatprep.subr.mxu0 0.0
      %6456 = vmatpush1.msra.mxu0 0.0
      %6457 = vmatprep.subr.mxu0 0.0
      %6458 = vmatpush1.msra.mxu0 0.0
      %6459 = vmatprep.subr.mxu0 0.0
      %6460 = vmatpush1.msra.mxu0 0.0
      %6461 = vmatprep.subr.mxu0 0.0
      %6462 = vmatpush1.msra.mxu0 0.0
      %6463 = vmatprep.subr.mxu0 0.0
      %6464 = vmatpush1.msra.mxu0 0.0
      %6465 = vmatprep.subr.mxu0 0.0
      %6466 = vmatpush1.msra.mxu0 0.0
      %6467 = vmatprep.mubr.f32.mxu0 0.0
      %6468 = vmatmul.mubr.f32.gmra.mrb[0].mxu0 %v6401
      %v6469 = vpop.f32.mrb[0].mxu0
      %v6470 = vadd.f32 %v6399, %v6469
      %v6471 = vpop.f32.mrb[0].mxu0
      %6472 = vdwg.mxu0
      %v6473 = vmax.f32 %v6470, 0.0
      %v6474 = vld [vmem:[%s11] sm:$0xff]
      %v6475 = vld [vmem:[%s12] sm:$0x1]
      %v6477 = vsel %vm2060, %v6473, 0
      %6479 = vmatprep.subr.mxu0 0.0
      %6480 = vmatpush1.msra.mxu0 %v6474
      %6481 = vmatprep.subr.mxu0 0.0
      %6482 = vmatpush1.msra.mxu0 0.0
      %6483 = vmatprep.subr.mxu0 0.0
      %6484 = vmatpush1.msra.mxu0 0.0
      %6485 = vmatprep.subr.mxu0 0.0
      %6486 = vmatpush1.msra.mxu0 0.0
      %6487 = vmatprep.subr.mxu0 0.0
      %6488 = vmatpush1.msra.mxu0 0.0
      %6489 = vmatprep.subr.mxu0 0.0
      %6490 = vmatpush1.msra.mxu0 0.0
      %6491 = vmatprep.subr.mxu0 0.0
      %6492 = vmatpush1.msra.mxu0 0.0
      %6493 = vmatprep.subr.mxu0 0.0
      %6494 = vmatpush1.msra.mxu0 0.0
      %6495 = vmatprep.subr.mxu0 0.0
      %6496 = vmatpush1.msra.mxu0 0.0
      %6497 = vmatprep.subr.mxu0 0.0
      %6498 = vmatpush1.msra.mxu0 0.0
      %6499 = vmatprep.subr.mxu0 0.0
      %6500 = vmatpush1.msra.mxu0 0.0
      %6501 = vmatprep.subr.mxu0 0.0
      %6502 = vmatpush1.msra.mxu0 0.0
      %6503 = vmatprep.subr.mxu0 0.0
      %6504 = vmatpush1.msra.mxu0 0.0
      %6505 = vmatprep.subr.mxu0 0.0
      %6506 = vmatpush1.msra.mxu0 0.0
      %6507 = vmatprep.subr.mxu0 0.0
      %6508 = vmatpush1.msra.mxu0 0.0
      %6509 = vmatprep.subr.mxu0 0.0
      %6510 = vmatpush1.msra.mxu0 0.0
      %6511 = vmatprep.subr.mxu0 0.0
      %6512 = vmatpush1.msra.mxu0 0.0
      %6513 = vmatprep.subr.mxu0 0.0
      %6514 = vmatpush1.msra.mxu0 0.0
      %6515 = vmatprep.subr.mxu0 0.0
      %6516 = vmatpush1.msra.mxu0 0.0
      %6517 = vmatprep.subr.mxu0 0.0
      %6518 = vmatpush1.msra.mxu0 0.0
      %6519 = vmatprep.subr.mxu0 0.0
      %6520 = vmatpush1.msra.mxu0 0.0
      %6521 = vmatprep.subr.mxu0 0.0
      %6522 = vmatpush1.msra.mxu0 0.0
      %6523 = vmatprep.subr.mxu0 0.0
      %6524 = vmatpush1.msra.mxu0 0.0
      %6525 = vmatprep.subr.mxu0 0.0
      %6526 = vmatpush1.msra.mxu0 0.0
      %6527 = vmatprep.subr.mxu0 0.0
      %6528 = vmatpush1.msra.mxu0 0.0
      %6529 = vmatprep.subr.mxu0 0.0
      %6530 = vmatpush1.msra.mxu0 0.0
      %6531 = vmatprep.subr.mxu0 0.0
      %6532 = vmatpush1.msra.mxu0 0.0
      %6533 = vmatprep.subr.mxu0 0.0
      %6534 = vmatpush1.msra.mxu0 0.0
      %6535 = vmatprep.subr.mxu0 0.0
      %6536 = vmatpush1.msra.mxu0 0.0
      %6537 = vmatprep.subr.mxu0 0.0
      %6538 = vmatpush1.msra.mxu0 0.0
      %6539 = vmatprep.subr.mxu0 0.0
      %6540 = vmatpush1.msra.mxu0 0.0
      %6541 = vmatprep.subr.mxu0 0.0
      %6542 = vmatpush1.msra.mxu0 0.0
      %6543 = vmatprep.mubr.f32.mxu0 0.0
      %6544 = vmatmul.mubr.f32.gmra.mrb[0].mxu0 %v6477
      %v6545 = vpop.f32.mrb[0].mxu0
      %v6546 = vadd.f32 %v6475, %v6545
      %v6547 = vpop.f32.mrb[0].mxu0
      %6548 = vdwg.mxu0
      %6549 = vst.msk [vmem:[%s482 + $0xd] sm:$0x1] %vm2375, %v6546
      %v6550 = vld [vmem:[#allocation2] sm:$0x1]
      %6552 = vset.pattern.permute.xlu0 0
      %6553 = vperm.xlu0 %6552, %v6550
      %v6554 = vpop.permute.xlu0 %6553
      %v6556 = vlaneseq
      %v6557 = vshrl.u32 %v6556, 7
      %v6558 = vsub.s32 0, %v6557
      %v6559 = vrot.slane %v6554, %v6558
      %v6561 = vsel %vm2060, %v2047, 0
      %6563 = vmatprep.subr.mxu0 0.0
      %6564 = vmatpush1.xpose.msra.mxu0 %v6561
      %6565 = vmatprep.subr.mxu0 0.0
      %6566 = vmatpush1.xpose.msra.mxu0 0.0
      %6567 = vmatprep.subr.mxu0 0.0
      %6568 = vmatpush1.xpose.msra.mxu0 0.0
      %6569 = vmatprep.subr.mxu0 0.0
      %6570 = vmatpush1.xpose.msra.mxu0 0.0
      %6571 = vmatprep.subr.mxu0 0.0
      %6572 = vmatpush1.xpose.msra.mxu0 0.0
      %6573 = vmatprep.subr.mxu0 0.0
      %6574 = vmatpush1.xpose.msra.mxu0 0.0
      %6575 = vmatprep.subr.mxu0 0.0
      %6576 = vmatpush1.xpose.msra.mxu0 0.0
      %6577 = vmatprep.subr.mxu0 0.0
      %6578 = vmatpush1.xpose.msra.mxu0 0.0
      %6579 = vmatprep.subr.mxu0 0.0
      %6580 = vmatpush1.xpose.msra.mxu0 0.0
      %6581 = vmatprep.subr.mxu0 0.0
      %6582 = vmatpush1.xpose.msra.mxu0 0.0
      %6583 = vmatprep.subr.mxu0 0.0
      %6584 = vmatpush1.xpose.msra.mxu0 0.0
      %6585 = vmatprep.subr.mxu0 0.0
      %6586 = vmatpush1.xpose.msra.mxu0 0.0
      %6587 = vmatprep.subr.mxu0 0.0
      %6588 = vmatpush1.xpose.msra.mxu0 0.0
      %6589 = vmatprep.subr.mxu0 0.0
      %6590 = vmatpush1.xpose.msra.mxu0 0.0
      %6591 = vmatprep.subr.mxu0 0.0
      %6592 = vmatpush1.xpose.msra.mxu0 0.0
      %6593 = vmatprep.subr.mxu0 0.0
      %6594 = vmatpush1.xpose.msra.mxu0 0.0
      %6595 = vmatprep.subr.mxu0 0.0
      %6596 = vmatpush1.xpose.msra.mxu0 0.0
      %6597 = vmatprep.subr.mxu0 0.0
      %6598 = vmatpush1.xpose.msra.mxu0 0.0
      %6599 = vmatprep.subr.mxu0 0.0
      %6600 = vmatpush1.xpose.msra.mxu0 0.0
      %6601 = vmatprep.subr.mxu0 0.0
      %6602 = vmatpush1.xpose.msra.mxu0 0.0
      %6603 = vmatprep.subr.mxu0 0.0
      %6604 = vmatpush1.xpose.msra.mxu0 0.0
      %6605 = vmatprep.subr.mxu0 0.0
      %6606 = vmatpush1.xpose.msra.mxu0 0.0
      %6607 = vmatprep.subr.mxu0 0.0
      %6608 = vmatpush1.xpose.msra.mxu0 0.0
      %6609 = vmatprep.subr.mxu0 0.0
      %6610 = vmatpush1.xpose.msra.mxu0 0.0
      %6611 = vmatprep.subr.mxu0 0.0
      %6612 = vmatpush1.xpose.msra.mxu0 0.0
      %6613 = vmatprep.subr.mxu0 0.0
      %6614 = vmatpush1.xpose.msra.mxu0 0.0
      %6615 = vmatprep.subr.mxu0 0.0
      %6616 = vmatpush1.xpose.msra.mxu0 0.0
      %6617 = vmatprep.subr.mxu0 0.0
      %6618 = vmatpush1.xpose.msra.mxu0 0.0
      %6619 = vmatprep.subr.mxu0 0.0
      %6620 = vmatpush1.xpose.msra.mxu0 0.0
      %6621 = vmatprep.subr.mxu0 0.0
      %6622 = vmatpush1.xpose.msra.mxu0 0.0
      %6623 = vmatprep.subr.mxu0 0.0
      %6624 = vmatpush1.xpose.msra.mxu0 0.0
      %6625 = vmatprep.subr.mxu0 0.0
      %6626 = vmatpush1.xpose.msra.mxu0 0.0
      %6627 = vmatprep.mubr.f32.mxu0 0.0
      %6628 = vmatmul.mubr.f32.gmra.mrb[0].mxu0 %v2062
      %v6629 = vpop.f32.mrb[0].mxu0
      %v6630 = vadd.f32 %v6559, %v6629
      %v6631 = vpop.f32.mrb[0].mxu0
      %6632 = vdwg.mxu0
      %v6633 = vsel %vm2137, %v6630, -inf
      %6634 = vmax.xlane.f32.xlu0 %v6633
      %v6635 = vpop.xlane.xlu0 %6634
      %v6636 = vsub.f32 %v6630, %v6635
      %v6637 = vmul.f32 %v6636, 1.442695
      %v6638 = vpow.pop %v6637
      %v6639 = vsel %vm2137, %v6638, 0.0
      %6640 = vadd.xlane.f32.xlu0 %v6639
      %v6641 = vpop.xlane.xlu0 %6640
      %v6642 = vrcp.pop %v6641
      %v6643 = vmul.f32 %v6638, %v6642
      %6644 = vst.msk [vmem:[%s488 + $0xe] sm:$0x1] %vm2137, %v6643
      %v6646 = vsel %vm2060, %v6643, 0
      %6648 = vmatprep.subr.mxu0 0.0
      %6649 = vmatpush1.msra.mxu0 %v1823
      %6650 = vmatprep.subr.mxu0 0.0
      %6651 = vmatpush1.msra.mxu0 0.0
      %6652 = vmatprep.subr.mxu0 0.0
      %6653 = vmatpush1.msra.mxu0 0.0
      %6654 = vmatprep.subr.mxu0 0.0
      %6655 = vmatpush1.msra.mxu0 0.0
      %6656 = vmatprep.subr.mxu0 0.0
      %6657 = vmatpush1.msra.mxu0 0.0
      %6658 = vmatprep.subr.mxu0 0.0
      %6659 = vmatpush1.msra.mxu0 0.0
      %6660 = vmatprep.subr.mxu0 0.0
      %6661 = vmatpush1.msra.mxu0 0.0
      %6662 = vmatprep.subr.mxu0 0.0
      %6663 = vmatpush1.msra.mxu0 0.0
      %6664 = vmatprep.subr.mxu0 0.0
      %6665 = vmatpush1.msra.mxu0 0.0
      %6666 = vmatprep.subr.mxu0 0.0
      %6667 = vmatpush1.msra.mxu0 0.0
      %6668 = vmatprep.subr.mxu0 0.0
      %6669 = vmatpush1.msra.mxu0 0.0
      %6670 = vmatprep.subr.mxu0 0.0
      %6671 = vmatpush1.msra.mxu0 0.0
      %6672 = vmatprep.subr.mxu0 0.0
      %6673 = vmatpush1.msra.mxu0 0.0
      %6674 = vmatprep.subr.mxu0 0.0
      %6675 = vmatpush1.msra.mxu0 0.0
      %6676 = vmatprep.subr.mxu0 0.0
      %6677 = vmatpush1.msra.mxu0 0.0
      %6678 = vmatprep.subr.mxu0 0.0
      %6679 = vmatpush1.msra.mxu0 0.0
      %6680 = vmatprep.subr.mxu0 0.0
      %6681 = vmatpush1.msra.mxu0 0.0
      %6682 = vmatprep.subr.mxu0 0.0
      %6683 = vmatpush1.msra.mxu0 0.0
      %6684 = vmatprep.subr.mxu0 0.0
      %6685 = vmatpush1.msra.mxu0 0.0
      %6686 = vmatprep.subr.mxu0 0.0
      %6687 = vmatpush1.msra.mxu0 0.0
      %6688 = vmatprep.subr.mxu0 0.0
      %6689 = vmatpush1.msra.mxu0 0.0
      %6690 = vmatprep.subr.mxu0 0.0
      %6691 = vmatpush1.msra.mxu0 0.0
      %6692 = vmatprep.subr.mxu0 0.0
      %6693 = vmatpush1.msra.mxu0 0.0
      %6694 = vmatprep.subr.mxu0 0.0
      %6695 = vmatpush1.msra.mxu0 0.0
      %6696 = vmatprep.subr.mxu0 0.0
      %6697 = vmatpush1.msra.mxu0 0.0
      %6698 = vmatprep.subr.mxu0 0.0
      %6699 = vmatpush1.msra.mxu0 0.0
      %6700 = vmatprep.subr.mxu0 0.0
      %6701 = vmatpush1.msra.mxu0 0.0
      %6702 = vmatprep.subr.mxu0 0.0
      %6703 = vmatpush1.msra.mxu0 0.0
      %6704 = vmatprep.subr.mxu0 0.0
      %6705 = vmatpush1.msra.mxu0 0.0
      %6706 = vmatprep.subr.mxu0 0.0
      %6707 = vmatpush1.msra.mxu0 0.0
      %6708 = vmatprep.subr.mxu0 0.0
      %6709 = vmatpush1.msra.mxu0 0.0
      %6710 = vmatprep.subr.mxu0 0.0
      %6711 = vmatpush1.msra.mxu0 0.0
      %6712 = vmatprep.mubr.f32.mxu0 0.0
      %6713 = vmatmul.mubr.f32.gmra.mrb[0].mxu0 %v6646
      %v6714 = vpop.f32.mrb[0].mxu0
      %v6715 = vadd.f32 0.0, %v6714
      %v6716 = vpop.f32.mrb[0].mxu0
      %6717 = vdwg.mxu0
      %v6718 = vld [vmem:[%s9] sm:$0xff]
      %v6719 = vld [vmem:[%s9 + $0x8] sm:$0xff]
      %v6720 = vld [vmem:[%s10] sm:$0x1]
      %v6722 = vsel %vm1234, %v6715, 0
      %6724 = vmatprep.subr.mxu0 0.0
      %6725 = vmatpush1.msra.mxu0 %v6718
      %6726 = vmatprep.subr.mxu0 0.0
      %6727 = vmatpush1.msra.mxu0 %v6719
      %6728 = vmatprep.subr.mxu0 0.0
      %6729 = vmatpush1.msra.mxu0 0.0
      %6730 = vmatprep.subr.mxu0 0.0
      %6731 = vmatpush1.msra.mxu0 0.0
      %6732 = vmatprep.subr.mxu0 0.0
      %6733 = vmatpush1.msra.mxu0 0.0
      %6734 = vmatprep.subr.mxu0 0.0
      %6735 = vmatpush1.msra.mxu0 0.0
      %6736 = vmatprep.subr.mxu0 0.0
      %6737 = vmatpush1.msra.mxu0 0.0
      %6738 = vmatprep.subr.mxu0 0.0
      %6739 = vmatpush1.msra.mxu0 0.0
      %6740 = vmatprep.subr.mxu0 0.0
      %6741 = vmatpush1.msra.mxu0 0.0
      %6742 = vmatprep.subr.mxu0 0.0
      %6743 = vmatpush1.msra.mxu0 0.0
      %6744 = vmatprep.subr.mxu0 0.0
      %6745 = vmatpush1.msra.mxu0 0.0
      %6746 = vmatprep.subr.mxu0 0.0
      %6747 = vmatpush1.msra.mxu0 0.0
      %6748 = vmatprep.subr.mxu0 0.0
      %6749 = vmatpush1.msra.mxu0 0.0
      %6750 = vmatprep.subr.mxu0 0.0
      %6751 = vmatpush1.msra.mxu0 0.0
      %6752 = vmatprep.subr.mxu0 0.0
      %6753 = vmatpush1.msra.mxu0 0.0
      %6754 = vmatprep.subr.mxu0 0.0
      %6755 = vmatpush1.msra.mxu0 0.0
      %6756 = vmatprep.subr.mxu0 0.0
      %6757 = vmatpush1.msra.mxu0 0.0
      %6758 = vmatprep.subr.mxu0 0.0
      %6759 = vmatpush1.msra.mxu0 0.0
      %6760 = vmatprep.subr.mxu0 0.0
      %6761 = vmatpush1.msra.mxu0 0.0
      %6762 = vmatprep.subr.mxu0 0.0
      %6763 = vmatpush1.msra.mxu0 0.0
      %6764 = vmatprep.subr.mxu0 0.0
      %6765 = vmatpush1.msra.mxu0 0.0
      %6766 = vmatprep.subr.mxu0 0.0
      %6767 = vmatpush1.msra.mxu0 0.0
      %6768 = vmatprep.subr.mxu0 0.0
      %6769 = vmatpush1.msra.mxu0 0.0
      %6770 = vmatprep.subr.mxu0 0.0
      %6771 = vmatpush1.msra.mxu0 0.0
      %6772 = vmatprep.subr.mxu0 0.0
      %6773 = vmatpush1.msra.mxu0 0.0
      %6774 = vmatprep.subr.mxu0 0.0
      %6775 = vmatpush1.msra.mxu0 0.0
      %6776 = vmatprep.subr.mxu0 0.0
      %6777 = vmatpush1.msra.mxu0 0.0
      %6778 = vmatprep.subr.mxu0 0.0
      %6779 = vmatpush1.msra.mxu0 0.0
      %6780 = vmatprep.subr.mxu0 0.0
      %6781 = vmatpush1.msra.mxu0 0.0
      %6782 = vmatprep.subr.mxu0 0.0
      %6783 = vmatpush1.msra.mxu0 0.0
      %6784 = vmatprep.subr.mxu0 0.0
      %6785 = vmatpush1.msra.mxu0 0.0
      %6786 = vmatprep.subr.mxu0 0.0
      %6787 = vmatpush1.msra.mxu0 0.0
      %6788 = vmatprep.mubr.f32.mxu0 0.0
      %6789 = vmatmul.mubr.f32.gmra.mrb[0].mxu0 %v6722
      %v6790 = vpop.f32.mrb[0].mxu0
      %v6791 = vadd.f32 %v6720, %v6790
      %v6792 = vpop.f32.mrb[0].mxu0
      %6793 = vdwg.mxu0
      %v6794 = vmax.f32 %v6791, 0.0
      %v6795 = vld [vmem:[%s11] sm:$0xff]
      %v6796 = vld [vmem:[%s12] sm:$0x1]
      %v6798 = vsel %vm2060, %v6794, 0
      %6800 = vmatprep.subr.mxu0 0.0
      %6801 = vmatpush1.msra.mxu0 %v6795
      %6802 = vmatprep.subr.mxu0 0.0
      %6803 = vmatpush1.msra.mxu0 0.0
      %6804 = vmatprep.subr.mxu0 0.0
      %6805 = vmatpush1.msra.mxu0 0.0
      %6806 = vmatprep.subr.mxu0 0.0
      %6807 = vmatpush1.msra.mxu0 0.0
      %6808 = vmatprep.subr.mxu0 0.0
      %6809 = vmatpush1.msra.mxu0 0.0
      %6810 = vmatprep.subr.mxu0 0.0
      %6811 = vmatpush1.msra.mxu0 0.0
      %6812 = vmatprep.subr.mxu0 0.0
      %6813 = vmatpush1.msra.mxu0 0.0
      %6814 = vmatprep.subr.mxu0 0.0
      %6815 = vmatpush1.msra.mxu0 0.0
      %6816 = vmatprep.subr.mxu0 0.0
      %6817 = vmatpush1.msra.mxu0 0.0
      %6818 = vmatprep.subr.mxu0 0.0
      %6819 = vmatpush1.msra.mxu0 0.0
      %6820 = vmatprep.subr.mxu0 0.0
      %6821 = vmatpush1.msra.mxu0 0.0
      %6822 = vmatprep.subr.mxu0 0.0
      %6823 = vmatpush1.msra.mxu0 0.0
      %6824 = vmatprep.subr.mxu0 0.0
      %6825 = vmatpush1.msra.mxu0 0.0
      %6826 = vmatprep.subr.mxu0 0.0
      %6827 = vmatpush1.msra.mxu0 0.0
      %6828 = vmatprep.subr.mxu0 0.0
      %6829 = vmatpush1.msra.mxu0 0.0
      %6830 = vmatprep.subr.mxu0 0.0
      %6831 = vmatpush1.msra.mxu0 0.0
      %6832 = vmatprep.subr.mxu0 0.0
      %6833 = vmatpush1.msra.mxu0 0.0
      %6834 = vmatprep.subr.mxu0 0.0
      %6835 = vmatpush1.msra.mxu0 0.0
      %6836 = vmatprep.subr.mxu0 0.0
      %6837 = vmatpush1.msra.mxu0 0.0
      %6838 = vmatprep.subr.mxu0 0.0
      %6839 = vmatpush1.msra.mxu0 0.0
      %6840 = vmatprep.subr.mxu0 0.0
      %6841 = vmatpush1.msra.mxu0 0.0
      %6842 = vmatprep.subr.mxu0 0.0
      %6843 = vmatpush1.msra.mxu0 0.0
      %6844 = vmatprep.subr.mxu0 0.0
      %6845 = vmatpush1.msra.mxu0 0.0
      %6846 = vmatprep.subr.mxu0 0.0
      %6847 = vmatpush1.msra.mxu0 0.0
      %6848 = vmatprep.subr.mxu0 0.0
      %6849 = vmatpush1.msra.mxu0 0.0
      %6850 = vmatprep.subr.mxu0 0.0
      %6851 = vmatpush1.msra.mxu0 0.0
      %6852 = vmatprep.subr.mxu0 0.0
      %6853 = vmatpush1.msra.mxu0 0.0
      %6854 = vmatprep.subr.mxu0 0.0
      %6855 = vmatpush1.msra.mxu0 0.0
      %6856 = vmatprep.subr.mxu0 0.0
      %6857 = vmatpush1.msra.mxu0 0.0
      %6858 = vmatprep.subr.mxu0 0.0
      %6859 = vmatpush1.msra.mxu0 0.0
      %6860 = vmatprep.subr.mxu0 0.0
      %6861 = vmatpush1.msra.mxu0 0.0
      %6862 = vmatprep.subr.mxu0 0.0
      %6863 = vmatpush1.msra.mxu0 0.0
      %6864 = vmatprep.mubr.f32.mxu0 0.0
      %6865 = vmatmul.mubr.f32.gmra.mrb[0].mxu0 %v6798
      %v6866 = vpop.f32.mrb[0].mxu0
      %v6867 = vadd.f32 %v6796, %v6866
      %v6868 = vpop.f32.mrb[0].mxu0
      %6869 = vdwg.mxu0
      %6870 = vst.msk [vmem:[%s482 + $0xe] sm:$0x1] %vm2375, %v6867
      %v6871 = vld [vmem:[#allocation2] sm:$0x1]
      %6873 = vset.pattern.permute.xlu0 0
      %6874 = vperm.xlu0 %6873, %v6871
      %v6875 = vpop.permute.xlu0 %6874
      %v6877 = vlaneseq
      %v6878 = vshrl.u32 %v6877, 7
      %v6879 = vsub.s32 0, %v6878
      %v6880 = vrot.slane %v6875, %v6879
      %v6882 = vsel %vm2060, %v2048, 0
      %6884 = vmatprep.subr.mxu0 0.0
      %6885 = vmatpush1.xpose.msra.mxu0 %v6882
      %6886 = vmatprep.subr.mxu0 0.0
      %6887 = vmatpush1.xpose.msra.mxu0 0.0
      %6888 = vmatprep.subr.mxu0 0.0
      %6889 = vmatpush1.xpose.msra.mxu0 0.0
      %6890 = vmatprep.subr.mxu0 0.0
      %6891 = vmatpush1.xpose.msra.mxu0 0.0
      %6892 = vmatprep.subr.mxu0 0.0
      %6893 = vmatpush1.xpose.msra.mxu0 0.0
      %6894 = vmatprep.subr.mxu0 0.0
      %6895 = vmatpush1.xpose.msra.mxu0 0.0
      %6896 = vmatprep.subr.mxu0 0.0
      %6897 = vmatpush1.xpose.msra.mxu0 0.0
      %6898 = vmatprep.subr.mxu0 0.0
      %6899 = vmatpush1.xpose.msra.mxu0 0.0
      %6900 = vmatprep.subr.mxu0 0.0
      %6901 = vmatpush1.xpose.msra.mxu0 0.0
      %6902 = vmatprep.subr.mxu0 0.0
      %6903 = vmatpush1.xpose.msra.mxu0 0.0
      %6904 = vmatprep.subr.mxu0 0.0
      %6905 = vmatpush1.xpose.msra.mxu0 0.0
      %6906 = vmatprep.subr.mxu0 0.0
      %6907 = vmatpush1.xpose.msra.mxu0 0.0
      %6908 = vmatprep.subr.mxu0 0.0
      %6909 = vmatpush1.xpose.msra.mxu0 0.0
      %6910 = vmatprep.subr.mxu0 0.0
      %6911 = vmatpush1.xpose.msra.mxu0 0.0
      %6912 = vmatprep.subr.mxu0 0.0
      %6913 = vmatpush1.xpose.msra.mxu0 0.0
      %6914 = vmatprep.subr.mxu0 0.0
      %6915 = vmatpush1.xpose.msra.mxu0 0.0
      %6916 = vmatprep.subr.mxu0 0.0
      %6917 = vmatpush1.xpose.msra.mxu0 0.0
      %6918 = vmatprep.subr.mxu0 0.0
      %6919 = vmatpush1.xpose.msra.mxu0 0.0
      %6920 = vmatprep.subr.mxu0 0.0
      %6921 = vmatpush1.xpose.msra.mxu0 0.0
      %6922 = vmatprep.subr.mxu0 0.0
      %6923 = vmatpush1.xpose.msra.mxu0 0.0
      %6924 = vmatprep.subr.mxu0 0.0
      %6925 = vmatpush1.xpose.msra.mxu0 0.0
      %6926 = vmatprep.subr.mxu0 0.0
      %6927 = vmatpush1.xpose.msra.mxu0 0.0
      %6928 = vmatprep.subr.mxu0 0.0
      %6929 = vmatpush1.xpose.msra.mxu0 0.0
      %6930 = vmatprep.subr.mxu0 0.0
      %6931 = vmatpush1.xpose.msra.mxu0 0.0
      %6932 = vmatprep.subr.mxu0 0.0
      %6933 = vmatpush1.xpose.msra.mxu0 0.0
      %6934 = vmatprep.subr.mxu0 0.0
      %6935 = vmatpush1.xpose.msra.mxu0 0.0
      %6936 = vmatprep.subr.mxu0 0.0
      %6937 = vmatpush1.xpose.msra.mxu0 0.0
      %6938 = vmatprep.subr.mxu0 0.0
      %6939 = vmatpush1.xpose.msra.mxu0 0.0
      %6940 = vmatprep.subr.mxu0 0.0
      %6941 = vmatpush1.xpose.msra.mxu0 0.0
      %6942 = vmatprep.subr.mxu0 0.0
      %6943 = vmatpush1.xpose.msra.mxu0 0.0
      %6944 = vmatprep.subr.mxu0 0.0
      %6945 = vmatpush1.xpose.msra.mxu0 0.0
      %6946 = vmatprep.subr.mxu0 0.0
      %6947 = vmatpush1.xpose.msra.mxu0 0.0
      %6948 = vmatprep.mubr.f32.mxu0 0.0
      %6949 = vmatmul.mubr.f32.gmra.mrb[0].mxu0 %v2062
      %v6950 = vpop.f32.mrb[0].mxu0
      %v6951 = vadd.f32 %v6880, %v6950
      %v6952 = vpop.f32.mrb[0].mxu0
      %6953 = vdwg.mxu0
      %v6954 = vsel %vm2137, %v6951, -inf
      %6955 = vmax.xlane.f32.xlu0 %v6954
      %v6956 = vpop.xlane.xlu0 %6955
      %v6957 = vsub.f32 %v6951, %v6956
      %v6958 = vmul.f32 %v6957, 1.442695
      %v6959 = vpow.pop %v6958
      %v6960 = vsel %vm2137, %v6959, 0.0
      %6961 = vadd.xlane.f32.xlu0 %v6960
      %v6962 = vpop.xlane.xlu0 %6961
      %v6963 = vrcp.pop %v6962
      %v6964 = vmul.f32 %v6959, %v6963
      %6965 = vst.msk [vmem:[%s488 + $0xf] sm:$0x1] %vm2137, %v6964
      %v6967 = vsel %vm2060, %v6964, 0
      %6969 = vmatprep.subr.mxu0 0.0
      %6970 = vmatpush1.msra.mxu0 %v1828
      %6971 = vmatprep.subr.mxu0 0.0
      %6972 = vmatpush1.msra.mxu0 0.0
      %6973 = vmatprep.subr.mxu0 0.0
      %6974 = vmatpush1.msra.mxu0 0.0
      %6975 = vmatprep.subr.mxu0 0.0
      %6976 = vmatpush1.msra.mxu0 0.0
      %6977 = vmatprep.subr.mxu0 0.0
      %6978 = vmatpush1.msra.mxu0 0.0
      %6979 = vmatprep.subr.mxu0 0.0
      %6980 = vmatpush1.msra.mxu0 0.0
      %6981 = vmatprep.subr.mxu0 0.0
      %6982 = vmatpush1.msra.mxu0 0.0
      %6983 = vmatprep.subr.mxu0 0.0
      %6984 = vmatpush1.msra.mxu0 0.0
      %6985 = vmatprep.subr.mxu0 0.0
      %6986 = vmatpush1.msra.mxu0 0.0
      %6987 = vmatprep.subr.mxu0 0.0
      %6988 = vmatpush1.msra.mxu0 0.0
      %6989 = vmatprep.subr.mxu0 0.0
      %6990 = vmatpush1.msra.mxu0 0.0
      %6991 = vmatprep.subr.mxu0 0.0
      %6992 = vmatpush1.msra.mxu0 0.0
      %6993 = vmatprep.subr.mxu0 0.0
      %6994 = vmatpush1.msra.mxu0 0.0
      %6995 = vmatprep.subr.mxu0 0.0
      %6996 = vmatpush1.msra.mxu0 0.0
      %6997 = vmatprep.subr.mxu0 0.0
      %6998 = vmatpush1.msra.mxu0 0.0
      %6999 = vmatprep.subr.mxu0 0.0
      %7000 = vmatpush1.msra.mxu0 0.0
      %7001 = vmatprep.subr.mxu0 0.0
      %7002 = vmatpush1.msra.mxu0 0.0
      %7003 = vmatprep.subr.mxu0 0.0
      %7004 = vmatpush1.msra.mxu0 0.0
      %7005 = vmatprep.subr.mxu0 0.0
      %7006 = vmatpush1.msra.mxu0 0.0
      %7007 = vmatprep.subr.mxu0 0.0
      %7008 = vmatpush1.msra.mxu0 0.0
      %7009 = vmatprep.subr.mxu0 0.0
      %7010 = vmatpush1.msra.mxu0 0.0
      %7011 = vmatprep.subr.mxu0 0.0
      %7012 = vmatpush1.msra.mxu0 0.0
      %7013 = vmatprep.subr.mxu0 0.0
      %7014 = vmatpush1.msra.mxu0 0.0
      %7015 = vmatprep.subr.mxu0 0.0
      %7016 = vmatpush1.msra.mxu0 0.0
      %7017 = vmatprep.subr.mxu0 0.0
      %7018 = vmatpush1.msra.mxu0 0.0
      %7019 = vmatprep.subr.mxu0 0.0
      %7020 = vmatpush1.msra.mxu0 0.0
      %7021 = vmatprep.subr.mxu0 0.0
      %7022 = vmatpush1.msra.mxu0 0.0
      %7023 = vmatprep.subr.mxu0 0.0
      %7024 = vmatpush1.msra.mxu0 0.0
      %7025 = vmatprep.subr.mxu0 0.0
      %7026 = vmatpush1.msra.mxu0 0.0
      %7027 = vmatprep.subr.mxu0 0.0
      %7028 = vmatpush1.msra.mxu0 0.0
      %7029 = vmatprep.subr.mxu0 0.0
      %7030 = vmatpush1.msra.mxu0 0.0
      %7031 = vmatprep.subr.mxu0 0.0
      %7032 = vmatpush1.msra.mxu0 0.0
      %7033 = vmatprep.mubr.f32.mxu0 0.0
      %7034 = vmatmul.mubr.f32.gmra.mrb[0].mxu0 %v6967
      %v7035 = vpop.f32.mrb[0].mxu0
      %v7036 = vadd.f32 0.0, %v7035
      %v7037 = vpop.f32.mrb[0].mxu0
      %7038 = vdwg.mxu0
      %v7039 = vld [vmem:[%s9] sm:$0xff]
      %v7040 = vld [vmem:[%s9 + $0x8] sm:$0xff]
      %v7041 = vld [vmem:[%s10] sm:$0x1]
      %v7043 = vsel %vm1234, %v7036, 0
      %7045 = vmatprep.subr.mxu0 0.0
      %7046 = vmatpush1.msra.mxu0 %v7039
      %7047 = vmatprep.subr.mxu0 0.0
      %7048 = vmatpush1.msra.mxu0 %v7040
      %7049 = vmatprep.subr.mxu0 0.0
      %7050 = vmatpush1.msra.mxu0 0.0
      %7051 = vmatprep.subr.mxu0 0.0
      %7052 = vmatpush1.msra.mxu0 0.0
      %7053 = vmatprep.subr.mxu0 0.0
      %7054 = vmatpush1.msra.mxu0 0.0
      %7055 = vmatprep.subr.mxu0 0.0
      %7056 = vmatpush1.msra.mxu0 0.0
      %7057 = vmatprep.subr.mxu0 0.0
      %7058 = vmatpush1.msra.mxu0 0.0
      %7059 = vmatprep.subr.mxu0 0.0
      %7060 = vmatpush1.msra.mxu0 0.0
      %7061 = vmatprep.subr.mxu0 0.0
      %7062 = vmatpush1.msra.mxu0 0.0
      %7063 = vmatprep.subr.mxu0 0.0
      %7064 = vmatpush1.msra.mxu0 0.0
      %7065 = vmatprep.subr.mxu0 0.0
      %7066 = vmatpush1.msra.mxu0 0.0
      %7067 = vmatprep.subr.mxu0 0.0
      %7068 = vmatpush1.msra.mxu0 0.0
      %7069 = vmatprep.subr.mxu0 0.0
      %7070 = vmatpush1.msra.mxu0 0.0
      %7071 = vmatprep.subr.mxu0 0.0
      %7072 = vmatpush1.msra.mxu0 0.0
      %7073 = vmatprep.subr.mxu0 0.0
      %7074 = vmatpush1.msra.mxu0 0.0
      %7075 = vmatprep.subr.mxu0 0.0
      %7076 = vmatpush1.msra.mxu0 0.0
      %7077 = vmatprep.subr.mxu0 0.0
      %7078 = vmatpush1.msra.mxu0 0.0
      %7079 = vmatprep.subr.mxu0 0.0
      %7080 = vmatpush1.msra.mxu0 0.0
      %7081 = vmatprep.subr.mxu0 0.0
      %7082 = vmatpush1.msra.mxu0 0.0
      %7083 = vmatprep.subr.mxu0 0.0
      %7084 = vmatpush1.msra.mxu0 0.0
      %7085 = vmatprep.subr.mxu0 0.0
      %7086 = vmatpush1.msra.mxu0 0.0
      %7087 = vmatprep.subr.mxu0 0.0
      %7088 = vmatpush1.msra.mxu0 0.0
      %7089 = vmatprep.subr.mxu0 0.0
      %7090 = vmatpush1.msra.mxu0 0.0
      %7091 = vmatprep.subr.mxu0 0.0
      %7092 = vmatpush1.msra.mxu0 0.0
      %7093 = vmatprep.subr.mxu0 0.0
      %7094 = vmatpush1.msra.mxu0 0.0
      %7095 = vmatprep.subr.mxu0 0.0
      %7096 = vmatpush1.msra.mxu0 0.0
      %7097 = vmatprep.subr.mxu0 0.0
      %7098 = vmatpush1.msra.mxu0 0.0
      %7099 = vmatprep.subr.mxu0 0.0
      %7100 = vmatpush1.msra.mxu0 0.0
      %7101 = vmatprep.subr.mxu0 0.0
      %7102 = vmatpush1.msra.mxu0 0.0
      %7103 = vmatprep.subr.mxu0 0.0
      %7104 = vmatpush1.msra.mxu0 0.0
      %7105 = vmatprep.subr.mxu0 0.0
      %7106 = vmatpush1.msra.mxu0 0.0
      %7107 = vmatprep.subr.mxu0 0.0
      %7108 = vmatpush1.msra.mxu0 0.0
      %7109 = vmatprep.mubr.f32.mxu0 0.0
      %7110 = vmatmul.mubr.f32.gmra.mrb[0].mxu0 %v7043
      %v7111 = vpop.f32.mrb[0].mxu0
      %v7112 = vadd.f32 %v7041, %v7111
      %v7113 = vpop.f32.mrb[0].mxu0
      %7114 = vdwg.mxu0
      %v7115 = vmax.f32 %v7112, 0.0
      %v7116 = vld [vmem:[%s11] sm:$0xff]
      %v7117 = vld [vmem:[%s12] sm:$0x1]
      %v7119 = vsel %vm2060, %v7115, 0
      %7121 = vmatprep.subr.mxu0 0.0
      %7122 = vmatpush1.msra.mxu0 %v7116
      %7123 = vmatprep.subr.mxu0 0.0
      %7124 = vmatpush1.msra.mxu0 0.0
      %7125 = vmatprep.subr.mxu0 0.0
      %7126 = vmatpush1.msra.mxu0 0.0
      %7127 = vmatprep.subr.mxu0 0.0
      %7128 = vmatpush1.msra.mxu0 0.0
      %7129 = vmatprep.subr.mxu0 0.0
      %7130 = vmatpush1.msra.mxu0 0.0
      %7131 = vmatprep.subr.mxu0 0.0
      %7132 = vmatpush1.msra.mxu0 0.0
      %7133 = vmatprep.subr.mxu0 0.0
      %7134 = vmatpush1.msra.mxu0 0.0
      %7135 = vmatprep.subr.mxu0 0.0
      %7136 = vmatpush1.msra.mxu0 0.0
      %7137 = vmatprep.subr.mxu0 0.0
      %7138 = vmatpush1.msra.mxu0 0.0
      %7139 = vmatprep.subr.mxu0 0.0
      %7140 = vmatpush1.msra.mxu0 0.0
      %7141 = vmatprep.subr.mxu0 0.0
      %7142 = vmatpush1.msra.mxu0 0.0
      %7143 = vmatprep.subr.mxu0 0.0
      %7144 = vmatpush1.msra.mxu0 0.0
      %7145 = vmatprep.subr.mxu0 0.0
      %7146 = vmatpush1.msra.mxu0 0.0
      %7147 = vmatprep.subr.mxu0 0.0
      %7148 = vmatpush1.msra.mxu0 0.0
      %7149 = vmatprep.subr.mxu0 0.0
      %7150 = vmatpush1.msra.mxu0 0.0
      %7151 = vmatprep.subr.mxu0 0.0
      %7152 = vmatpush1.msra.mxu0 0.0
      %7153 = vmatprep.subr.mxu0 0.0
      %7154 = vmatpush1.msra.mxu0 0.0
      %7155 = vmatprep.subr.mxu0 0.0
      %7156 = vmatpush1.msra.mxu0 0.0
      %7157 = vmatprep.subr.mxu0 0.0
      %7158 = vmatpush1.msra.mxu0 0.0
      %7159 = vmatprep.subr.mxu0 0.0
      %7160 = vmatpush1.msra.mxu0 0.0
      %7161 = vmatprep.subr.mxu0 0.0
      %7162 = vmatpush1.msra.mxu0 0.0
      %7163 = vmatprep.subr.mxu0 0.0
      %7164 = vmatpush1.msra.mxu0 0.0
      %7165 = vmatprep.subr.mxu0 0.0
      %7166 = vmatpush1.msra.mxu0 0.0
      %7167 = vmatprep.subr.mxu0 0.0
      %7168 = vmatpush1.msra.mxu0 0.0
      %7169 = vmatprep.subr.mxu0 0.0
      %7170 = vmatpush1.msra.mxu0 0.0
      %7171 = vmatprep.subr.mxu0 0.0
      %7172 = vmatpush1.msra.mxu0 0.0
      %7173 = vmatprep.subr.mxu0 0.0
      %7174 = vmatpush1.msra.mxu0 0.0
      %7175 = vmatprep.subr.mxu0 0.0
      %7176 = vmatpush1.msra.mxu0 0.0
      %7177 = vmatprep.subr.mxu0 0.0
      %7178 = vmatpush1.msra.mxu0 0.0
      %7179 = vmatprep.subr.mxu0 0.0
      %7180 = vmatpush1.msra.mxu0 0.0
      %7181 = vmatprep.subr.mxu0 0.0
      %7182 = vmatpush1.msra.mxu0 0.0
      %7183 = vmatprep.subr.mxu0 0.0
      %7184 = vmatpush1.msra.mxu0 0.0
      %7185 = vmatprep.mubr.f32.mxu0 0.0
      %7186 = vmatmul.mubr.f32.gmra.mrb[0].mxu0 %v7119
      %v7187 = vpop.f32.mrb[0].mxu0
      %v7188 = vadd.f32 %v7117, %v7187
      %v7189 = vpop.f32.mrb[0].mxu0
      %7190 = vdwg.mxu0
      %7191 = vst.msk [vmem:[%s482 + $0xf] sm:$0x1] %vm2375, %v7188
      %s7192 = smul.u32 2, %s28
      %p7193 = scmp.lt.s32.totalorder %s7192, 3
      %s7194 = scalar_select %p7193, %s7192, 3
      %s7195 = smul.addr %s7194, 8
      %s7196 = scalar_lea.vmem %s13, %s7195
      %s7197 = smul.u32 2, %s28
      %p7198 = scmp.lt.s32.totalorder %s7197, 3
      %s7199 = scalar_select %p7198, %s7197, 3
      %s7200 = smul.addr %s7199, 8
      %s7201 = scalar_lea.vmem %s14, %s7200
      // Predicated region
      $region73: #{tpu_custom_call.1} parent=71 // pred_check
        %p7202 = pneg %p324
      $region74: #{tpu_custom_call.1} parent=71 // pred_check_branch
        %7204 = sbr.rel (%p7202) target = $region76
      $region75: #{tpu_custom_call.1} parent=71 // pred_region
        %s7205 = smul.u32 2, %s28
      $region76: #{tpu_custom_call.1} parent=71 // pred_fallthru
        _
      // Predicated region
      $region77: #{tpu_custom_call.1} parent=71 // pred_check
        %p7206 = pneg %p350
      $region78: #{tpu_custom_call.1} parent=71 // pred_check_branch
        %7208 = sbr.rel (%p7206) target = $region80
      $region79: #{tpu_custom_call.1} parent=71 // pred_region
        %s7209 = smul.u32 2, %s28
      $region80: #{tpu_custom_call.1} parent=71 // pred_fallthru
        _
    $region72: #{tpu_custom_call.1} parent=5 // pred_fallthru
      _
    %p7210 = scmp.le.s32.totalorder 2, %s23
    // Predicated region
    $region81: #{tpu_custom_call.1} parent=5 // pred_check
      %p7211 = pneg %p7210
    $region82: #{tpu_custom_call.1} parent=5 // pred_check_branch
      %7213 = sbr.rel (%p7211) target = $region84
    $region83: #{tpu_custom_call.1} parent=5 // pred_region
      %s7214 = ssub.s32 %s23, 2
      // Predicated region
      $region85: #{tpu_custom_call.1} parent=83 // pred_check
        %p7215 = pneg %p330
      $region86: #{tpu_custom_call.1} parent=83 // pred_check_branch
        %7217 = sbr.rel (%p7215) target = $region88
      $region87: #{tpu_custom_call.1} parent=83 // pred_region
        %s7218 = smul.u32 2, %s29
        %p7219 = scmp.lt.s32.totalorder %s7218, 3
        %s7220 = scalar_select %p7219, %s7218, 3
        %s7221 = smul.addr %s7220, 8
        %s7222 = scalar_lea.vmem %s13, %s7221
      $region88: #{tpu_custom_call.1} parent=83 // pred_fallthru
        _
      // Predicated region
      $region89: #{tpu_custom_call.1} parent=83 // pred_check
        %p7223 = pneg %p356
      $region90: #{tpu_custom_call.1} parent=83 // pred_check_branch
        %7225 = sbr.rel (%p7223) target = $region92
      $region91: #{tpu_custom_call.1} parent=83 // pred_region
        %s7226 = smul.u32 2, %s29
        %p7227 = scmp.lt.s32.totalorder %s7226, 3
        %s7228 = scalar_select %p7227, %s7226, 3
        %s7229 = smul.addr %s7228, 8
        %s7230 = scalar_lea.vmem %s14, %s7229
      $region92: #{tpu_custom_call.1} parent=83 // pred_fallthru
        _
    $region84: #{tpu_custom_call.1} parent=5 // pred_fallthru
      _
  $region6: #{tpu_custom_call.1} parent=0 // loop_footer
    %s27 = sadd.s32 1, %s23
  $region7: #{tpu_custom_call.1} parent=0 // loop_footer_branch
    %22 = sbr.rel target = $region3
  $region8: #{tpu_custom_call.1} parent=0 // loop_exit
    _

</llo_original>
